<compile_context>
chip_gen: v7x
topology: tpu7x:2x2x1
jax: 0.10.0
libtpu: 0.0.40
codegen_flags: <defaults>
</compile_context>

<pallas_src>
import numpy as np
import jax
import jax.numpy as jnp
from jax import lax
from jax.experimental import pallas as pl
from jax.experimental.pallas import tpu as pltpu


# --------------------------------------------------------------------------- #
# Kernel
# --------------------------------------------------------------------------- #
def _make_kernel(Bt, H, W, Cin, Cout):
    H2, W2 = H // 2, W // 2
    K0 = 9 * Cin + 1             # conv0 taps + bias (ones) column
    K1 = 16 * Cout + Cin + 1     # pooled-conv1 taps + pooled-x (residual) + bias column
    M0 = Bt * H * W              # rows of the conv0 matmul
    M1 = Bt * H2 * W2            # rows of the fused conv1+pool+residual matmul

    def kernel(x_ref, w0_ref, w1_ref, o_ref, p0_ref, p1_ref):
        # x block: (Bt, H, W, Cin) bf16 (DMA'd half-width); widen for patch building.
        xb = x_ref[...].astype(jnp.float32)

        # ---------------- conv0: 3x3, pad 1, stride 1 (full resolution) ------------
        # Patch scratch p0: (Bt, H, W, 9*Cin+1).  Zero-init supplies the 1-pixel halo,
        # the trailing ones column folds the conv0 bias into the matmul.
        p0_ref[...] = jnp.zeros((Bt, H, W, K0), p0_ref.dtype)
        p0_ref[:, :, :, K0 - 1:] = jnp.ones((Bt, H, W, 1), p0_ref.dtype)
        for ky in range(3):
            dh = ky - 1
            hlo, hhi = max(0, -dh), H - max(0, dh)
            for kx in range(3):
                dw = kx - 1
                wlo, whi = max(0, -dw), W - max(0, dw)
                tap = ky * 3 + kx
                p0_ref[:, hlo:hhi, wlo:whi, tap * Cin:(tap + 1) * Cin] = \
                    xb[:, hlo + dh:hhi + dh, wlo + dw:whi + dw, :]

        # conv0 + bias: one MXU matmul (bf16 operands, f32 accumulation) + ReLU.
        y = jnp.dot(p0_ref[...].reshape(M0, K0).astype(jnp.bfloat16), w0_ref[...],
                    preferred_element_type=jnp.float32)          # (M0, Cout) f32
        y0 = jnp.maximum(y, 0.0)

        # ---------------- conv1 folded with the 2x2 avg-pool -----------------------
        # pool2(conv3x3(y0)) == stride-2 4x4 conv with pool-averaged weights.  Split
        # y0 into its four (row, col)-parity planes: plane(s,t)[b,m,n,:] =
        # y0[b, 2m+s, 2n+t, :].  Each of the 16 taps of the 4x4 stride-2 conv is then
        # a contiguous slice of one parity plane, shifted by at most +-1 row/col.
        yw = y0.reshape(Bt * H * W2, 2, Cout)
        planes = {}
        for t in range(2):                                        # column parity
            col = yw[:, t, :].reshape(Bt * H2, 2, W2, Cout)
            for s in range(2):                                    # row parity
                planes[(s, t)] = col[:, s].reshape(Bt, H2, W2, Cout)

        # Patch scratch p1: (Bt, H2, W2, 16*Cout + Cin + 1) at HALF resolution.
        p1_ref[...] = jnp.zeros((Bt, H2, W2, K1), p1_ref.dtype)
        p1_ref[:, :, :, K1 - 1:] = jnp.ones((Bt, H2, W2, 1), p1_ref.dtype)
        for u in range(4):
            su, au = (u + 1) % 2, (u - 1) // 2          # row parity / plane shift
            hlo, hhi = max(0, -au), H2 - max(0, au)
            for v in range(4):
                tv, bv = (v + 1) % 2, (v - 1) // 2
                wlo, whi = max(0, -bv), W2 - max(0, bv)
                tap = u * 4 + v
                p1_ref[:, hlo:hhi, wlo:whi, tap * Cout:(tap + 1) * Cout] = \
                    planes[(su, tv)][:, hlo + au:hhi + au, wlo + bv:whi + bv, :]

        # Residual path: pool(conv1x1(x)) == conv1x1(pool(x)).  Append the 2x2-pooled
        # input as extra K columns so the residual rides in the same matmul.
        xw = xb.reshape(Bt * H * W2, 2, Cin)
        xpw = xw[:, 0, :] + xw[:, 1, :]                           # pooled along W
        xr = xpw.reshape(Bt * H2, 2, W2, Cin)
        xpool = ((xr[:, 0] + xr[:, 1]) * 0.25).reshape(Bt, H2, W2, Cin)
        p1_ref[:, :, :, 16 * Cout:16 * Cout + Cin] = xpool

        # conv1+pool + residual + both biases: one MXU matmul at half resolution.
        out = jnp.dot(p1_ref[...].reshape(M1, K1).astype(jnp.bfloat16), w1_ref[...],
                      preferred_element_type=jnp.float32)         # (M1, Cout) f32

        # ---------------- lane-dense writeback -------------------------------------
        # (Bt*H2*W2, Cout) -> (Bt, H2*W2*Cout) slab; the lane-merge runs on already
        # pooled data (4x smaller than before the pool fold).
        o3 = out.reshape(Bt * H2, W2, Cout)
        rows = jnp.concatenate([o3[:, n, :] for n in range(W2)], axis=-1)
        rows = rows.reshape(Bt, H2, W2 * Cout)
        flat = jnp.concatenate([rows[:, m, :] for m in range(H2)], axis=-1)
        o_ref[...] = flat[:, None, :].astype(o_ref.dtype)

    return kernel


# --------------------------------------------------------------------------- #
# Tiling helpers
# --------------------------------------------------------------------------- #
def _round_up(n, m):
    return ((n + m - 1) // m) * m


def _vmem_estimate(bt, H, W, Cin, Cout):
    """Rough per-step VMEM footprint in bytes (pipelined blocks + scratch + headroom)."""
    H2, W2 = H // 2, W // 2
    K0, K1 = 9 * Cin + 1, 16 * Cout + Cin + 1
    lane = lambda n: _round_up(n, 128)
    sub = lambda n: _round_up(n, 8)
    b = 0
    b += 2 * bt * H * sub(W) * lane(Cin) * 2                  # x block (double-buffered, bf16)
    b += 2 * sub(K0) * lane(Cout) * 2                         # w0big (bf16)
    b += 2 * sub(K1) * lane(Cout) * 2                         # w1big (bf16)
    b += 2 * bt * sub(1) * lane(H2 * W2 * Cout) * 4           # output block (f32)
    b += bt * H * sub(W) * lane(K0) * 4                       # p0 scratch (f32)
    b += bt * H2 * sub(W2) * lane(K1) * 4                     # p1 scratch (f32)
    return int(b * 1.5) + (2 << 20)                           # live-value headroom


def _pick_btile(B, H, W, Cin, Cout, vmem_budget=24 * 1024 * 1024):
    """Single grid step on 1-TC chips (v5e/v6e); keep >=2 'parallel' steps only on
    multi-TensorCore parts (v7x), capped by a per-step VMEM budget."""
    try:
        kind = jax.devices()[0].device_kind.lower()
    except Exception:
        kind = ""
    multi_tc = "v7" in kind
    if multi_tc and B >= 2:
        bt = B // 2
        while B % bt:
            bt -= 1
    else:
        bt = B
    while bt > 1 and _vmem_estimate(bt, H, W, Cin, Cout) > vmem_budget:
        bt -= 1
        while B % bt:
            bt -= 1
    return max(bt, 1)


# --------------------------------------------------------------------------- #
# Public wrapper
# --------------------------------------------------------------------------- #
def first_block_discriminator(x_nchw, params, *, btile=None):
    """Pallas implementation. x_nchw: (B, Cin, H, W) float32 -> (B, Cout, H/2, W/2)."""
    B, Cin, H, W = x_nchw.shape
    Cout = params["w_res"].shape[0]
    assert H % 2 == 0 and W % 2 == 0, "avg_pool2d(k=2) requires even H and W"
    H2, W2 = H // 2, W // 2
    K0 = 9 * Cin + 1
    K1 = 16 * Cout + Cin + 1

    if btile is None:
        btile = _pick_btile(B, H, W, Cin, Cout)
    assert B % btile == 0

    # NCHW -> NHWC, shipped to the kernel in bf16 (half the input DMA bytes).
    x = jnp.transpose(x_nchw, (0, 2, 3, 1)).astype(jnp.bfloat16)

    # conv0 weights + bias row (matched by the patch ones column): (9*Cin+1, Cout).
    w0 = jnp.transpose(params["w0"], (2, 3, 1, 0)).reshape(9 * Cin, Cout)
    w0big = jnp.concatenate([w0, params["b0"][None, :]], axis=0).astype(jnp.bfloat16)

    # conv1 folded with the 2x2 avg pool -> stride-2 4x4 weights:
    #   W4[:, :, u, v] = 0.25 * sum_{dy,dx in {0,1}} w1[:, :, u-dy, v-dx]
    w1 = params["w1"].astype(jnp.float32)
    w4 = jnp.zeros((Cout, Cout, 4, 4), jnp.float32)
    for dy in range(2):
        for dx in range(2):
            w4 = w4.at[:, :, dy:dy + 3, dx:dx + 3].add(w1)
    w4 = w4 * 0.25
    w4r = jnp.transpose(w4, (2, 3, 1, 0)).reshape(16 * Cout, Cout)
    wres = params["w_res"][:, :, 0, 0].T                               # (Cin, Cout)
    bias = (params["b1"] + params["b_res"])[None, :]                   # (1, Cout)
    w1big = jnp.concatenate([w4r, wres, bias], axis=0).astype(jnp.bfloat16)

    # Explicit VMEM guard (matters for production H/W/Cout, esp. v7x's 64 MiB).
    est = _vmem_estimate(btile, H, W, Cin, Cout)
    vmem_limit = None
    if est > 28 * 1024 * 1024:
        vmem_limit = min(int(est * 3 // 2), 60 * 1024 * 1024)

    out = pl.pallas_call(
        _make_kernel(btile, H, W, Cin, Cout),
        out_shape=jax.ShapeDtypeStruct((B, 1, H2 * W2 * Cout), jnp.float32),
        grid_spec=pltpu.PrefetchScalarGridSpec(
            num_scalar_prefetch=0,
            grid=(B // btile,),
            in_specs=[
                pl.BlockSpec((btile, H, W, Cin), lambda b: (b, 0, 0, 0)),
                pl.BlockSpec((K0, Cout), lambda b: (0, 0)),
                pl.BlockSpec((K1, Cout), lambda b: (0, 0)),
            ],
            out_specs=pl.BlockSpec((btile, 1, H2 * W2 * Cout), lambda b: (b, 0, 0)),
            scratch_shapes=[
                pltpu.VMEM((btile, H, W, K0), jnp.float32),    # conv0 patch matrix
                pltpu.VMEM((btile, H2, W2, K1), jnp.float32),  # fused conv1 patch matrix
            ],
        ),
        compiler_params=pltpu.CompilerParams(
            dimension_semantics=("parallel",),
            vmem_limit_bytes=vmem_limit),
    )(x, w0big, w1big)

    # (B, 1, H2*W2*Cout) -> (B, H2, W2, Cout) -> NCHW
    return jnp.transpose(out.reshape(B, H2, W2, Cout), (0, 3, 1, 2))


# --------------------------------------------------------------------------- #
# Pure-JAX reference and self-test
# --------------------------------------------------------------------------- #
def _reference(x, params):
    """Pure-JAX f32 reference matching the PyTorch module (NCHW, OIHW)."""
    dn = ("NCHW", "OIHW", "NCHW")

    def conv(inp, w, b, pad):
        y = lax.conv_general_dilated(inp, w, (1, 1), ((pad, pad), (pad, pad)),
                                     dimension_numbers=dn)
        return y + b[None, :, None, None]

    def pool2(v):
        s = lax.reduce_window(v, 0.0, lax.add, (1, 1, 2, 2), (1, 1, 2, 2), "VALID")
        return s * 0.25

    res = pool2(conv(x, params["w_res"], params["b_res"], 0))
    out = jnp.maximum(conv(x, params["w0"], params["b0"], 1), 0.0)
    out = pool2(conv(out, params["w1"], params["b1"], 1))
    return out + res


if __name__ == "__main__":
    B, Cin, Cout, H, W = 2, 4, 8, 16, 16

    key = jax.random.PRNGKey(0)
    ks = jax.random.split(key, 7)
    params = {
        "w_res": 0.1 * jax.random.normal(ks[0], (Cout, Cin, 1, 1), jnp.float32),
        "b_res": 0.1 * jax.random.normal(ks[1], (Cout,), jnp.float32),
        "w0":    0.1 * jax.random.normal(ks[2], (Cout, Cin, 3, 3), jnp.float32),
        "b0":    0.1 * jax.random.normal(ks[3], (Cout,), jnp.float32),
        "w1":    0.1 * jax.random.normal(ks[4], (Cout, Cout, 3, 3), jnp.float32),
        "b1":    0.1 * jax.random.normal(ks[5], (Cout,), jnp.float32),
    }
    x = jax.random.normal(ks[6], (B, Cin, H, W), jnp.float32)

    out = jax.block_until_ready(first_block_discriminator(x, params))
    ref = _reference(x, params)

    assert out.shape == (B, Cout, H // 2, W // 2), out.shape
    # Tolerance reflects bf16 MXU operands / bf16 input DMA (f32 accumulation);
    # observed error is ~1e-3.
    np.testing.assert_allclose(np.asarray(out), np.asarray(ref),
                               rtol=2e-2, atol=2e-2)
    print("KERNEL_OK")
</pallas_src>

<mosaic_0001>
module attributes {stable_mosaic.version = 11 : i64} {
  func.func @kernel(%arg0: i32, %arg1: memref<2x16x16x4xbf16, #tpu.memory_space<vmem>>, %arg2: memref<37x8xbf16, #tpu.memory_space<vmem>>, %arg3: memref<133x8xbf16, #tpu.memory_space<vmem>>, %arg4: memref<2x1x512xf32, #tpu.memory_space<vmem>>, %arg5: memref<2x16x16x37xf32, #tpu.memory_space<vmem>>, %arg6: memref<2x8x8x133xf32, #tpu.memory_space<vmem>>) attributes {dimension_semantics = [#tpu.dimension_semantics<parallel>], iteration_bounds = array<i64: 1>, scalar_prefetch = 0 : i64, scratch_operands = 2 : i64, tpu.core_type = #tpu.core_type<tc>, window_params = [{transform_indices = @transform_0, window_bounds = array<i64: 2, 16, 16, 4>}, {pipeline_mode = #tpu.pipeline_mode<synchronous>, transform_indices = @transform_1, window_bounds = array<i64: 37, 8>}, {pipeline_mode = #tpu.pipeline_mode<synchronous>, transform_indices = @transform_2, window_bounds = array<i64: 133, 8>}, {transform_indices = @transform_3, window_bounds = array<i64: 2, 1, 512>}]} {
    %c0 = arith.constant 0 : index
    %c0_0 = arith.constant 0 : index
    %c0_1 = arith.constant 0 : index
    %c0_2 = arith.constant 0 : index
    %0 = vector.load %arg1[%c0, %c0_0, %c0_1, %c0_2] : memref<2x16x16x4xbf16, #tpu.memory_space<vmem>>, vector<2x16x16x4xbf16>
    %1 = arith.extf %0 : vector<2x16x16x4xbf16> to vector<2x16x16x4xf32>
    %cst = arith.constant 0.000000e+00 : f32
    %2 = vector.broadcast %cst : f32 to vector<2x16x16x37xf32>
    %c0_3 = arith.constant 0 : index
    %c0_4 = arith.constant 0 : index
    %c0_5 = arith.constant 0 : index
    %c0_6 = arith.constant 0 : index
    %3 = vector.load %arg5[%c0_3, %c0_4, %c0_5, %c0_6] : memref<2x16x16x37xf32, #tpu.memory_space<vmem>>, vector<2x16x16x37xf32>
    tpu.vector_store %arg5[%c0_3, %c0_4, %c0_5, %c0_6], %2 {strides = array<i32>} : memref<2x16x16x37xf32, #tpu.memory_space<vmem>>, vector<2x16x16x37xf32>,
    %cst_7 = arith.constant 1.000000e+00 : f32
    %4 = vector.broadcast %cst_7 : f32 to vector<2x16x16x1xf32>
    %c0_8 = arith.constant 0 : index
    %c0_9 = arith.constant 0 : index
    %c0_10 = arith.constant 0 : index
    %c36 = arith.constant 36 : index
    %5 = vector.load %arg5[%c0_8, %c0_9, %c0_10, %c36] : memref<2x16x16x37xf32, #tpu.memory_space<vmem>>, vector<2x16x16x1xf32>
    tpu.vector_store %arg5[%c0_8, %c0_9, %c0_10, %c36], %4 {strides = array<i32>} : memref<2x16x16x37xf32, #tpu.memory_space<vmem>>, vector<2x16x16x1xf32>,
    %6 = vector.extract_strided_slice %1 {offsets = [0, 0, 0, 0], sizes = [2, 15, 15, 4], strides = [1, 1, 1, 1]} : vector<2x16x16x4xf32> to vector<2x15x15x4xf32>
    %c0_11 = arith.constant 0 : index
    %c1 = arith.constant 1 : index
    %c1_12 = arith.constant 1 : index
    %c0_13 = arith.constant 0 : index
    %7 = vector.load %arg5[%c0_11, %c1, %c1_12, %c0_13] : memref<2x16x16x37xf32, #tpu.memory_space<vmem>>, vector<2x15x15x4xf32>
    tpu.vector_store %arg5[%c0_11, %c1, %c1_12, %c0_13], %6 {strides = array<i32>} : memref<2x16x16x37xf32, #tpu.memory_space<vmem>>, vector<2x15x15x4xf32>,
    %8 = vector.extract_strided_slice %1 {offsets = [0, 0, 0, 0], sizes = [2, 15, 16, 4], strides = [1, 1, 1, 1]} : vector<2x16x16x4xf32> to vector<2x15x16x4xf32>
    %c0_14 = arith.constant 0 : index
    %c1_15 = arith.constant 1 : index
    %c0_16 = arith.constant 0 : index
    %c4 = arith.constant 4 : index
    %9 = vector.load %arg5[%c0_14, %c1_15, %c0_16, %c4] : memref<2x16x16x37xf32, #tpu.memory_space<vmem>>, vector<2x15x16x4xf32>
    tpu.vector_store %arg5[%c0_14, %c1_15, %c0_16, %c4], %8 {strides = array<i32>} : memref<2x16x16x37xf32, #tpu.memory_space<vmem>>, vector<2x15x16x4xf32>,
    %10 = vector.extract_strided_slice %1 {offsets = [0, 0, 1, 0], sizes = [2, 15, 15, 4], strides = [1, 1, 1, 1]} : vector<2x16x16x4xf32> to vector<2x15x15x4xf32>
    %c0_17 = arith.constant 0 : index
    %c1_18 = arith.constant 1 : index
    %c0_19 = arith.constant 0 : index
    %c8 = arith.constant 8 : index
    %11 = vector.load %arg5[%c0_17, %c1_18, %c0_19, %c8] : memref<2x16x16x37xf32, #tpu.memory_space<vmem>>, vector<2x15x15x4xf32>
    tpu.vector_store %arg5[%c0_17, %c1_18, %c0_19, %c8], %10 {strides = array<i32>} : memref<2x16x16x37xf32, #tpu.memory_space<vmem>>, vector<2x15x15x4xf32>,
    %12 = vector.extract_strided_slice %1 {offsets = [0, 0, 0, 0], sizes = [2, 16, 15, 4], strides = [1, 1, 1, 1]} : vector<2x16x16x4xf32> to vector<2x16x15x4xf32>
    %c0_20 = arith.constant 0 : index
    %c0_21 = arith.constant 0 : index
    %c1_22 = arith.constant 1 : index
    %c12 = arith.constant 12 : index
    %13 = vector.load %arg5[%c0_20, %c0_21, %c1_22, %c12] : memref<2x16x16x37xf32, #tpu.memory_space<vmem>>, vector<2x16x15x4xf32>
    tpu.vector_store %arg5[%c0_20, %c0_21, %c1_22, %c12], %12 {strides = array<i32>} : memref<2x16x16x37xf32, #tpu.memory_space<vmem>>, vector<2x16x15x4xf32>,
    %c0_23 = arith.constant 0 : index
    %c0_24 = arith.constant 0 : index
    %c0_25 = arith.constant 0 : index
    %c16 = arith.constant 16 : index
    %14 = vector.load %arg5[%c0_23, %c0_24, %c0_25, %c16] : memref<2x16x16x37xf32, #tpu.memory_space<vmem>>, vector<2x16x16x4xf32>
    tpu.vector_store %arg5[%c0_23, %c0_24, %c0_25, %c16], %1 {strides = array<i32>} : memref<2x16x16x37xf32, #tpu.memory_space<vmem>>, vector<2x16x16x4xf32>,
    %15 = vector.extract_strided_slice %1 {offsets = [0, 0, 1, 0], sizes = [2, 16, 15, 4], strides = [1, 1, 1, 1]} : vector<2x16x16x4xf32> to vector<2x16x15x4xf32>
    %c0_26 = arith.constant 0 : index
    %c0_27 = arith.constant 0 : index
    %c0_28 = arith.constant 0 : index
    %c20 = arith.constant 20 : index
    %16 = vector.load %arg5[%c0_26, %c0_27, %c0_28, %c20] : memref<2x16x16x37xf32, #tpu.memory_space<vmem>>, vector<2x16x15x4xf32>
    tpu.vector_store %arg5[%c0_26, %c0_27, %c0_28, %c20], %15 {strides = array<i32>} : memref<2x16x16x37xf32, #tpu.memory_space<vmem>>, vector<2x16x15x4xf32>,
    %17 = vector.extract_strided_slice %1 {offsets = [0, 1, 0, 0], sizes = [2, 15, 15, 4], strides = [1, 1, 1, 1]} : vector<2x16x16x4xf32> to vector<2x15x15x4xf32>
    %c0_29 = arith.constant 0 : index
    %c0_30 = arith.constant 0 : index
    %c1_31 = arith.constant 1 : index
    %c24 = arith.constant 24 : index
    %18 = vector.load %arg5[%c0_29, %c0_30, %c1_31, %c24] : memref<2x16x16x37xf32, #tpu.memory_space<vmem>>, vector<2x15x15x4xf32>
    tpu.vector_store %arg5[%c0_29, %c0_30, %c1_31, %c24], %17 {strides = array<i32>} : memref<2x16x16x37xf32, #tpu.memory_space<vmem>>, vector<2x15x15x4xf32>,
    %19 = vector.extract_strided_slice %1 {offsets = [0, 1, 0, 0], sizes = [2, 15, 16, 4], strides = [1, 1, 1, 1]} : vector<2x16x16x4xf32> to vector<2x15x16x4xf32>
    %c0_32 = arith.constant 0 : index
    %c0_33 = arith.constant 0 : index
    %c0_34 = arith.constant 0 : index
    %c28 = arith.constant 28 : index
    %20 = vector.load %arg5[%c0_32, %c0_33, %c0_34, %c28] : memref<2x16x16x37xf32, #tpu.memory_space<vmem>>, vector<2x15x16x4xf32>
    tpu.vector_store %arg5[%c0_32, %c0_33, %c0_34, %c28], %19 {strides = array<i32>} : memref<2x16x16x37xf32, #tpu.memory_space<vmem>>, vector<2x15x16x4xf32>,
    %21 = vector.extract_strided_slice %1 {offsets = [0, 1, 1, 0], sizes = [2, 15, 15, 4], strides = [1, 1, 1, 1]} : vector<2x16x16x4xf32> to vector<2x15x15x4xf32>
    %c0_35 = arith.constant 0 : index
    %c0_36 = arith.constant 0 : index
    %c0_37 = arith.constant 0 : index
    %c32 = arith.constant 32 : index
    %22 = vector.load %arg5[%c0_35, %c0_36, %c0_37, %c32] : memref<2x16x16x37xf32, #tpu.memory_space<vmem>>, vector<2x15x15x4xf32>
    tpu.vector_store %arg5[%c0_35, %c0_36, %c0_37, %c32], %21 {strides = array<i32>} : memref<2x16x16x37xf32, #tpu.memory_space<vmem>>, vector<2x15x15x4xf32>,
    %c0_38 = arith.constant 0 : index
    %c0_39 = arith.constant 0 : index
    %c0_40 = arith.constant 0 : index
    %c0_41 = arith.constant 0 : index
    %23 = vector.load %arg5[%c0_38, %c0_39, %c0_40, %c0_41] : memref<2x16x16x37xf32, #tpu.memory_space<vmem>>, vector<2x16x16x37xf32>
    %24 = vector.shape_cast %23 : vector<2x16x16x37xf32> to vector<512x37xf32>
    %25 = arith.truncf %24 : vector<512x37xf32> to vector<512x37xbf16>
    %c0_42 = arith.constant 0 : index
    %c0_43 = arith.constant 0 : index
    %26 = vector.load %arg2[%c0_42, %c0_43] : memref<37x8xbf16, #tpu.memory_space<vmem>>, vector<37x8xbf16>
    %cst_44 = arith.constant dense<0.000000e+00> : vector<512x8xf32>
    %27 = tpu.matmul %25, %26, %cst_44 {dimension_numbers = #tpu.dot_dimension_numbers<[1], [0], [0], [1], [0, 0, 1, 1], [], []>} : vector<512x37xbf16>, vector<37x8xbf16>, vector<512x8xf32> -> vector<512x8xf32>
    %cst_45 = arith.constant 0.000000e+00 : f32
    %28 = vector.broadcast %cst_45 : f32 to vector<512x8xf32>
    %29 = arith.maximumf %27, %28 : vector<512x8xf32>
    %30 = vector.shape_cast %29 : vector<512x8xf32> to vector<256x2x8xf32>
    %31 = vector.extract_strided_slice %30 {offsets = [0, 0, 0], sizes = [256, 1, 8], strides = [1, 1, 1]} : vector<256x2x8xf32> to vector<256x1x8xf32>
    %32 = vector.shape_cast %31 : vector<256x1x8xf32> to vector<256x8xf32>
    %33 = vector.shape_cast %32 : vector<256x8xf32> to vector<16x2x8x8xf32>
    %34 = vector.extract_strided_slice %33 {offsets = [0, 0, 0, 0], sizes = [16, 1, 8, 8], strides = [1, 1, 1, 1]} : vector<16x2x8x8xf32> to vector<16x1x8x8xf32>
    %35 = vector.shape_cast %34 : vector<16x1x8x8xf32> to vector<16x8x8xf32>
    %36 = vector.shape_cast %35 : vector<16x8x8xf32> to vector<2x8x8x8xf32>
    %37 = vector.extract_strided_slice %33 {offsets = [0, 1, 0, 0], sizes = [16, 1, 8, 8], strides = [1, 1, 1, 1]} : vector<16x2x8x8xf32> to vector<16x1x8x8xf32>
    %38 = vector.shape_cast %37 : vector<16x1x8x8xf32> to vector<16x8x8xf32>
    %39 = vector.shape_cast %38 : vector<16x8x8xf32> to vector<2x8x8x8xf32>
    %40 = vector.extract_strided_slice %30 {offsets = [0, 1, 0], sizes = [256, 1, 8], strides = [1, 1, 1]} : vector<256x2x8xf32> to vector<256x1x8xf32>
    %41 = vector.shape_cast %40 : vector<256x1x8xf32> to vector<256x8xf32>
    %42 = vector.shape_cast %41 : vector<256x8xf32> to vector<16x2x8x8xf32>
    %43 = vector.extract_strided_slice %42 {offsets = [0, 0, 0, 0], sizes = [16, 1, 8, 8], strides = [1, 1, 1, 1]} : vector<16x2x8x8xf32> to vector<16x1x8x8xf32>
    %44 = vector.shape_cast %43 : vector<16x1x8x8xf32> to vector<16x8x8xf32>
    %45 = vector.shape_cast %44 : vector<16x8x8xf32> to vector<2x8x8x8xf32>
    %46 = vector.extract_strided_slice %42 {offsets = [0, 1, 0, 0], sizes = [16, 1, 8, 8], strides = [1, 1, 1, 1]} : vector<16x2x8x8xf32> to vector<16x1x8x8xf32>
    %47 = vector.shape_cast %46 : vector<16x1x8x8xf32> to vector<16x8x8xf32>
    %48 = vector.shape_cast %47 : vector<16x8x8xf32> to vector<2x8x8x8xf32>
    %cst_46 = arith.constant 0.000000e+00 : f32
    %49 = vector.broadcast %cst_46 : f32 to vector<2x8x8x133xf32>
    %c0_47 = arith.constant 0 : index
    %c0_48 = arith.constant 0 : index
    %c0_49 = arith.constant 0 : index
    %c0_50 = arith.constant 0 : index
    %50 = vector.load %arg6[%c0_47, %c0_48, %c0_49, %c0_50] : memref<2x8x8x133xf32, #tpu.memory_space<vmem>>, vector<2x8x8x133xf32>
    tpu.vector_store %arg6[%c0_47, %c0_48, %c0_49, %c0_50], %49 {strides = array<i32>} : memref<2x8x8x133xf32, #tpu.memory_space<vmem>>, vector<2x8x8x133xf32>,
    %cst_51 = arith.constant 1.000000e+00 : f32
    %51 = vector.broadcast %cst_51 : f32 to vector<2x8x8x1xf32>
    %c0_52 = arith.constant 0 : index
    %c0_53 = arith.constant 0 : index
    %c0_54 = arith.constant 0 : index
    %c132 = arith.constant 132 : index
    %52 = vector.load %arg6[%c0_52, %c0_53, %c0_54, %c132] : memref<2x8x8x133xf32, #tpu.memory_space<vmem>>, vector<2x8x8x1xf32>
    tpu.vector_store %arg6[%c0_52, %c0_53, %c0_54, %c132], %51 {strides = array<i32>} : memref<2x8x8x133xf32, #tpu.memory_space<vmem>>, vector<2x8x8x1xf32>,
    %53 = vector.extract_strided_slice %48 {offsets = [0, 0, 0, 0], sizes = [2, 7, 7, 8], strides = [1, 1, 1, 1]} : vector<2x8x8x8xf32> to vector<2x7x7x8xf32>
    %c0_55 = arith.constant 0 : index
    %c1_56 = arith.constant 1 : index
    %c1_57 = arith.constant 1 : index
    %c0_58 = arith.constant 0 : index
    %54 = vector.load %arg6[%c0_55, %c1_56, %c1_57, %c0_58] : memref<2x8x8x133xf32, #tpu.memory_space<vmem>>, vector<2x7x7x8xf32>
    tpu.vector_store %arg6[%c0_55, %c1_56, %c1_57, %c0_58], %53 {strides = array<i32>} : memref<2x8x8x133xf32, #tpu.memory_space<vmem>>, vector<2x7x7x8xf32>,
    %55 = vector.extract_strided_slice %39 {offsets = [0, 0, 0, 0], sizes = [2, 7, 8, 8], strides = [1, 1, 1, 1]} : vector<2x8x8x8xf32> to vector<2x7x8x8xf32>
    %c0_59 = arith.constant 0 : index
    %c1_60 = arith.constant 1 : index
    %c0_61 = arith.constant 0 : index
    %c8_62 = arith.constant 8 : index
    %56 = vector.load %arg6[%c0_59, %c1_60, %c0_61, %c8_62] : memref<2x8x8x133xf32, #tpu.memory_space<vmem>>, vector<2x7x8x8xf32>
    tpu.vector_store %arg6[%c0_59, %c1_60, %c0_61, %c8_62], %55 {strides = array<i32>} : memref<2x8x8x133xf32, #tpu.memory_space<vmem>>, vector<2x7x8x8xf32>,
    %57 = vector.extract_strided_slice %48 {offsets = [0, 0, 0, 0], sizes = [2, 7, 8, 8], strides = [1, 1, 1, 1]} : vector<2x8x8x8xf32> to vector<2x7x8x8xf32>
    %c0_63 = arith.constant 0 : index
    %c1_64 = arith.constant 1 : index
    %c0_65 = arith.constant 0 : index
    %c16_66 = arith.constant 16 : index
    %58 = vector.load %arg6[%c0_63, %c1_64, %c0_65, %c16_66] : memref<2x8x8x133xf32, #tpu.memory_space<vmem>>, vector<2x7x8x8xf32>
    tpu.vector_store %arg6[%c0_63, %c1_64, %c0_65, %c16_66], %57 {strides = array<i32>} : memref<2x8x8x133xf32, #tpu.memory_space<vmem>>, vector<2x7x8x8xf32>,
    %59 = vector.extract_strided_slice %39 {offsets = [0, 0, 1, 0], sizes = [2, 7, 7, 8], strides = [1, 1, 1, 1]} : vector<2x8x8x8xf32> to vector<2x7x7x8xf32>
    %c0_67 = arith.constant 0 : index
    %c1_68 = arith.constant 1 : index
    %c0_69 = arith.constant 0 : index
    %c24_70 = arith.constant 24 : index
    %60 = vector.load %arg6[%c0_67, %c1_68, %c0_69, %c24_70] : memref<2x8x8x133xf32, #tpu.memory_space<vmem>>, vector<2x7x7x8xf32>
    tpu.vector_store %arg6[%c0_67, %c1_68, %c0_69, %c24_70], %59 {strides = array<i32>} : memref<2x8x8x133xf32, #tpu.memory_space<vmem>>, vector<2x7x7x8xf32>,
    %61 = vector.extract_strided_slice %45 {offsets = [0, 0, 0, 0], sizes = [2, 8, 7, 8], strides = [1, 1, 1, 1]} : vector<2x8x8x8xf32> to vector<2x8x7x8xf32>
    %c0_71 = arith.constant 0 : index
    %c0_72 = arith.constant 0 : index
    %c1_73 = arith.constant 1 : index
    %c32_74 = arith.constant 32 : index
    %62 = vector.load %arg6[%c0_71, %c0_72, %c1_73, %c32_74] : memref<2x8x8x133xf32, #tpu.memory_space<vmem>>, vector<2x8x7x8xf32>
    tpu.vector_store %arg6[%c0_71, %c0_72, %c1_73, %c32_74], %61 {strides = array<i32>} : memref<2x8x8x133xf32, #tpu.memory_space<vmem>>, vector<2x8x7x8xf32>,
    %c0_75 = arith.constant 0 : index
    %c0_76 = arith.constant 0 : index
    %c0_77 = arith.constant 0 : index
    %c40 = arith.constant 40 : index
    %63 = vector.load %arg6[%c0_75, %c0_76, %c0_77, %c40] : memref<2x8x8x133xf32, #tpu.memory_space<vmem>>, vector<2x8x8x8xf32>
    tpu.vector_store %arg6[%c0_75, %c0_76, %c0_77, %c40], %36 {strides = array<i32>} : memref<2x8x8x133xf32, #tpu.memory_space<vmem>>, vector<2x8x8x8xf32>,
    %c0_78 = arith.constant 0 : index
    %c0_79 = arith.constant 0 : index
    %c0_80 = arith.constant 0 : index
    %c48 = arith.constant 48 : index
    %64 = vector.load %arg6[%c0_78, %c0_79, %c0_80, %c48] : memref<2x8x8x133xf32, #tpu.memory_space<vmem>>, vector<2x8x8x8xf32>
    tpu.vector_store %arg6[%c0_78, %c0_79, %c0_80, %c48], %45 {strides = array<i32>} : memref<2x8x8x133xf32, #tpu.memory_space<vmem>>, vector<2x8x8x8xf32>,
    %65 = vector.extract_strided_slice %36 {offsets = [0, 0, 1, 0], sizes = [2, 8, 7, 8], strides = [1, 1, 1, 1]} : vector<2x8x8x8xf32> to vector<2x8x7x8xf32>
    %c0_81 = arith.constant 0 : index
    %c0_82 = arith.constant 0 : index
    %c0_83 = arith.constant 0 : index
    %c56 = arith.constant 56 : index
    %66 = vector.load %arg6[%c0_81, %c0_82, %c0_83, %c56] : memref<2x8x8x133xf32, #tpu.memory_space<vmem>>, vector<2x8x7x8xf32>
    tpu.vector_store %arg6[%c0_81, %c0_82, %c0_83, %c56], %65 {strides = array<i32>} : memref<2x8x8x133xf32, #tpu.memory_space<vmem>>, vector<2x8x7x8xf32>,
    %67 = vector.extract_strided_slice %48 {offsets = [0, 0, 0, 0], sizes = [2, 8, 7, 8], strides = [1, 1, 1, 1]} : vector<2x8x8x8xf32> to vector<2x8x7x8xf32>
    %c0_84 = arith.constant 0 : index
    %c0_85 = arith.constant 0 : index
    %c1_86 = arith.constant 1 : index
    %c64 = arith.constant 64 : index
    %68 = vector.load %arg6[%c0_84, %c0_85, %c1_86, %c64] : memref<2x8x8x133xf32, #tpu.memory_space<vmem>>, vector<2x8x7x8xf32>
    tpu.vector_store %arg6[%c0_84, %c0_85, %c1_86, %c64], %67 {strides = array<i32>} : memref<2x8x8x133xf32, #tpu.memory_space<vmem>>, vector<2x8x7x8xf32>,
    %c0_87 = arith.constant 0 : index
    %c0_88 = arith.constant 0 : index
    %c0_89 = arith.constant 0 : index
    %c72 = arith.constant 72 : index
    %69 = vector.load %arg6[%c0_87, %c0_88, %c0_89, %c72] : memref<2x8x8x133xf32, #tpu.memory_space<vmem>>, vector<2x8x8x8xf32>
    tpu.vector_store %arg6[%c0_87, %c0_88, %c0_89, %c72], %39 {strides = array<i32>} : memref<2x8x8x133xf32, #tpu.memory_space<vmem>>, vector<2x8x8x8xf32>,
    %c0_90 = arith.constant 0 : index
    %c0_91 = arith.constant 0 : index
    %c0_92 = arith.constant 0 : index
    %c80 = arith.constant 80 : index
    %70 = vector.load %arg6[%c0_90, %c0_91, %c0_92, %c80] : memref<2x8x8x133xf32, #tpu.memory_space<vmem>>, vector<2x8x8x8xf32>
    tpu.vector_store %arg6[%c0_90, %c0_91, %c0_92, %c80], %48 {strides = array<i32>} : memref<2x8x8x133xf32, #tpu.memory_space<vmem>>, vector<2x8x8x8xf32>,
    %71 = vector.extract_strided_slice %39 {offsets = [0, 0, 1, 0], sizes = [2, 8, 7, 8], strides = [1, 1, 1, 1]} : vector<2x8x8x8xf32> to vector<2x8x7x8xf32>
    %c0_93 = arith.constant 0 : index
    %c0_94 = arith.constant 0 : index
    %c0_95 = arith.constant 0 : index
    %c88 = arith.constant 88 : index
    %72 = vector.load %arg6[%c0_93, %c0_94, %c0_95, %c88] : memref<2x8x8x133xf32, #tpu.memory_space<vmem>>, vector<2x8x7x8xf32>
    tpu.vector_store %arg6[%c0_93, %c0_94, %c0_95, %c88], %71 {strides = array<i32>} : memref<2x8x8x133xf32, #tpu.memory_space<vmem>>, vector<2x8x7x8xf32>,
    %73 = vector.extract_strided_slice %45 {offsets = [0, 1, 0, 0], sizes = [2, 7, 7, 8], strides = [1, 1, 1, 1]} : vector<2x8x8x8xf32> to vector<2x7x7x8xf32>
    %c0_96 = arith.constant 0 : index
    %c0_97 = arith.constant 0 : index
    %c1_98 = arith.constant 1 : index
    %c96 = arith.constant 96 : index
    %74 = vector.load %arg6[%c0_96, %c0_97, %c1_98, %c96] : memref<2x8x8x133xf32, #tpu.memory_space<vmem>>, vector<2x7x7x8xf32>
    tpu.vector_store %arg6[%c0_96, %c0_97, %c1_98, %c96], %73 {strides = array<i32>} : memref<2x8x8x133xf32, #tpu.memory_space<vmem>>, vector<2x7x7x8xf32>,
    %75 = vector.extract_strided_slice %36 {offsets = [0, 1, 0, 0], sizes = [2, 7, 8, 8], strides = [1, 1, 1, 1]} : vector<2x8x8x8xf32> to vector<2x7x8x8xf32>
    %c0_99 = arith.constant 0 : index
    %c0_100 = arith.constant 0 : index
    %c0_101 = arith.constant 0 : index
    %c104 = arith.constant 104 : index
    %76 = vector.load %arg6[%c0_99, %c0_100, %c0_101, %c104] : memref<2x8x8x133xf32, #tpu.memory_space<vmem>>, vector<2x7x8x8xf32>
    tpu.vector_store %arg6[%c0_99, %c0_100, %c0_101, %c104], %75 {strides = array<i32>} : memref<2x8x8x133xf32, #tpu.memory_space<vmem>>, vector<2x7x8x8xf32>,
    %77 = vector.extract_strided_slice %45 {offsets = [0, 1, 0, 0], sizes = [2, 7, 8, 8], strides = [1, 1, 1, 1]} : vector<2x8x8x8xf32> to vector<2x7x8x8xf32>
    %c0_102 = arith.constant 0 : index
    %c0_103 = arith.constant 0 : index
    %c0_104 = arith.constant 0 : index
    %c112 = arith.constant 112 : index
    %78 = vector.load %arg6[%c0_102, %c0_103, %c0_104, %c112] : memref<2x8x8x133xf32, #tpu.memory_space<vmem>>, vector<2x7x8x8xf32>
    tpu.vector_store %arg6[%c0_102, %c0_103, %c0_104, %c112], %77 {strides = array<i32>} : memref<2x8x8x133xf32, #tpu.memory_space<vmem>>, vector<2x7x8x8xf32>,
    %79 = vector.extract_strided_slice %36 {offsets = [0, 1, 1, 0], sizes = [2, 7, 7, 8], strides = [1, 1, 1, 1]} : vector<2x8x8x8xf32> to vector<2x7x7x8xf32>
    %c0_105 = arith.constant 0 : index
    %c0_106 = arith.constant 0 : index
    %c0_107 = arith.constant 0 : index
    %c120 = arith.constant 120 : index
    %80 = vector.load %arg6[%c0_105, %c0_106, %c0_107, %c120] : memref<2x8x8x133xf32, #tpu.memory_space<vmem>>, vector<2x7x7x8xf32>
    tpu.vector_store %arg6[%c0_105, %c0_106, %c0_107, %c120], %79 {strides = array<i32>} : memref<2x8x8x133xf32, #tpu.memory_space<vmem>>, vector<2x7x7x8xf32>,
    %81 = vector.shape_cast %1 : vector<2x16x16x4xf32> to vector<256x2x4xf32>
    %82 = vector.extract_strided_slice %81 {offsets = [0, 0, 0], sizes = [256, 1, 4], strides = [1, 1, 1]} : vector<256x2x4xf32> to vector<256x1x4xf32>
    %83 = vector.shape_cast %82 : vector<256x1x4xf32> to vector<256x4xf32>
    %84 = vector.extract_strided_slice %81 {offsets = [0, 1, 0], sizes = [256, 1, 4], strides = [1, 1, 1]} : vector<256x2x4xf32> to vector<256x1x4xf32>
    %85 = vector.shape_cast %84 : vector<256x1x4xf32> to vector<256x4xf32>
    %86 = arith.addf %83, %85 : vector<256x4xf32>
    %87 = vector.shape_cast %86 : vector<256x4xf32> to vector<16x2x8x4xf32>
    %88 = vector.extract_strided_slice %87 {offsets = [0, 0, 0, 0], sizes = [16, 1, 8, 4], strides = [1, 1, 1, 1]} : vector<16x2x8x4xf32> to vector<16x1x8x4xf32>
    %89 = vector.shape_cast %88 : vector<16x1x8x4xf32> to vector<16x8x4xf32>
    %90 = vector.extract_strided_slice %87 {offsets = [0, 1, 0, 0], sizes = [16, 1, 8, 4], strides = [1, 1, 1, 1]} : vector<16x2x8x4xf32> to vector<16x1x8x4xf32>
    %91 = vector.shape_cast %90 : vector<16x1x8x4xf32> to vector<16x8x4xf32>
    %92 = arith.addf %89, %91 : vector<16x8x4xf32>
    %cst_108 = arith.constant 2.500000e-01 : f32
    %93 = vector.broadcast %cst_108 : f32 to vector<16x8x4xf32>
    %94 = arith.mulf %92, %93 : vector<16x8x4xf32>
    %95 = vector.shape_cast %94 : vector<16x8x4xf32> to vector<2x8x8x4xf32>
    %c0_109 = arith.constant 0 : index
    %c0_110 = arith.constant 0 : index
    %c0_111 = arith.constant 0 : index
    %c128 = arith.constant 128 : index
    %96 = vector.load %arg6[%c0_109, %c0_110, %c0_111, %c128] : memref<2x8x8x133xf32, #tpu.memory_space<vmem>>, vector<2x8x8x4xf32>
    tpu.vector_store %arg6[%c0_109, %c0_110, %c0_111, %c128], %95 {strides = array<i32>} : memref<2x8x8x133xf32, #tpu.memory_space<vmem>>, vector<2x8x8x4xf32>,
    %c0_112 = arith.constant 0 : index
    %c0_113 = arith.constant 0 : index
    %c0_114 = arith.constant 0 : index
    %c0_115 = arith.constant 0 : index
    %97 = vector.load %arg6[%c0_112, %c0_113, %c0_114, %c0_115] : memref<2x8x8x133xf32, #tpu.memory_space<vmem>>, vector<2x8x8x133xf32>
    %98 = vector.shape_cast %97 : vector<2x8x8x133xf32> to vector<128x133xf32>
    %99 = arith.truncf %98 : vector<128x133xf32> to vector<128x133xbf16>
    %c0_116 = arith.constant 0 : index
    %c0_117 = arith.constant 0 : index
    %100 = vector.load %arg3[%c0_116, %c0_117] : memref<133x8xbf16, #tpu.memory_space<vmem>>, vector<133x8xbf16>
    %cst_118 = arith.constant dense<0.000000e+00> : vector<128x8xf32>
    %101 = tpu.matmul %99, %100, %cst_118 {dimension_numbers = #tpu.dot_dimension_numbers<[1], [0], [0], [1], [0, 0, 1, 1], [], []>} : vector<128x133xbf16>, vector<133x8xbf16>, vector<128x8xf32> -> vector<128x8xf32>
    %102 = vector.shape_cast %101 : vector<128x8xf32> to vector<16x8x8xf32>
    %103 = vector.extract_strided_slice %102 {offsets = [0, 0, 0], sizes = [16, 1, 8], strides = [1, 1, 1]} : vector<16x8x8xf32> to vector<16x1x8xf32>
    %104 = vector.shape_cast %103 : vector<16x1x8xf32> to vector<16x8xf32>
    %105 = vector.extract_strided_slice %102 {offsets = [0, 1, 0], sizes = [16, 1, 8], strides = [1, 1, 1]} : vector<16x8x8xf32> to vector<16x1x8xf32>
    %106 = vector.shape_cast %105 : vector<16x1x8xf32> to vector<16x8xf32>
    %107 = vector.extract_strided_slice %102 {offsets = [0, 2, 0], sizes = [16, 1, 8], strides = [1, 1, 1]} : vector<16x8x8xf32> to vector<16x1x8xf32>
    %108 = vector.shape_cast %107 : vector<16x1x8xf32> to vector<16x8xf32>
    %109 = vector.extract_strided_slice %102 {offsets = [0, 3, 0], sizes = [16, 1, 8], strides = [1, 1, 1]} : vector<16x8x8xf32> to vector<16x1x8xf32>
    %110 = vector.shape_cast %109 : vector<16x1x8xf32> to vector<16x8xf32>
    %111 = vector.extract_strided_slice %102 {offsets = [0, 4, 0], sizes = [16, 1, 8], strides = [1, 1, 1]} : vector<16x8x8xf32> to vector<16x1x8xf32>
    %112 = vector.shape_cast %111 : vector<16x1x8xf32> to vector<16x8xf32>
    %113 = vector.extract_strided_slice %102 {offsets = [0, 5, 0], sizes = [16, 1, 8], strides = [1, 1, 1]} : vector<16x8x8xf32> to vector<16x1x8xf32>
    %114 = vector.shape_cast %113 : vector<16x1x8xf32> to vector<16x8xf32>
    %115 = vector.extract_strided_slice %102 {offsets = [0, 6, 0], sizes = [16, 1, 8], strides = [1, 1, 1]} : vector<16x8x8xf32> to vector<16x1x8xf32>
    %116 = vector.shape_cast %115 : vector<16x1x8xf32> to vector<16x8xf32>
    %117 = vector.extract_strided_slice %102 {offsets = [0, 7, 0], sizes = [16, 1, 8], strides = [1, 1, 1]} : vector<16x8x8xf32> to vector<16x1x8xf32>
    %118 = vector.shape_cast %117 : vector<16x1x8xf32> to vector<16x8xf32>
    %119 = tpu.concatenate %104, %106, %108, %110, %112, %114, %116, %118 in 1 : vector<16x8xf32>, vector<16x8xf32>, vector<16x8xf32>, vector<16x8xf32>, vector<16x8xf32>, vector<16x8xf32>, vector<16x8xf32>, vector<16x8xf32> -> vector<16x64xf32>
    %120 = vector.shape_cast %119 : vector<16x64xf32> to vector<2x8x64xf32>
    %121 = vector.extract_strided_slice %120 {offsets = [0, 0, 0], sizes = [2, 1, 64], strides = [1, 1, 1]} : vector<2x8x64xf32> to vector<2x1x64xf32>
    %122 = vector.shape_cast %121 : vector<2x1x64xf32> to vector<2x64xf32>
    %123 = vector.extract_strided_slice %120 {offsets = [0, 1, 0], sizes = [2, 1, 64], strides = [1, 1, 1]} : vector<2x8x64xf32> to vector<2x1x64xf32>
    %124 = vector.shape_cast %123 : vector<2x1x64xf32> to vector<2x64xf32>
    %125 = vector.extract_strided_slice %120 {offsets = [0, 2, 0], sizes = [2, 1, 64], strides = [1, 1, 1]} : vector<2x8x64xf32> to vector<2x1x64xf32>
    %126 = vector.shape_cast %125 : vector<2x1x64xf32> to vector<2x64xf32>
    %127 = vector.extract_strided_slice %120 {offsets = [0, 3, 0], sizes = [2, 1, 64], strides = [1, 1, 1]} : vector<2x8x64xf32> to vector<2x1x64xf32>
    %128 = vector.shape_cast %127 : vector<2x1x64xf32> to vector<2x64xf32>
    %129 = vector.extract_strided_slice %120 {offsets = [0, 4, 0], sizes = [2, 1, 64], strides = [1, 1, 1]} : vector<2x8x64xf32> to vector<2x1x64xf32>
    %130 = vector.shape_cast %129 : vector<2x1x64xf32> to vector<2x64xf32>
    %131 = vector.extract_strided_slice %120 {offsets = [0, 5, 0], sizes = [2, 1, 64], strides = [1, 1, 1]} : vector<2x8x64xf32> to vector<2x1x64xf32>
    %132 = vector.shape_cast %131 : vector<2x1x64xf32> to vector<2x64xf32>
    %133 = vector.extract_strided_slice %120 {offsets = [0, 6, 0], sizes = [2, 1, 64], strides = [1, 1, 1]} : vector<2x8x64xf32> to vector<2x1x64xf32>
    %134 = vector.shape_cast %133 : vector<2x1x64xf32> to vector<2x64xf32>
    %135 = vector.extract_strided_slice %120 {offsets = [0, 7, 0], sizes = [2, 1, 64], strides = [1, 1, 1]} : vector<2x8x64xf32> to vector<2x1x64xf32>
    %136 = vector.shape_cast %135 : vector<2x1x64xf32> to vector<2x64xf32>
    %137 = tpu.concatenate %122, %124, %126, %128, %130, %132, %134, %136 in 1 : vector<2x64xf32>, vector<2x64xf32>, vector<2x64xf32>, vector<2x64xf32>, vector<2x64xf32>, vector<2x64xf32>, vector<2x64xf32>, vector<2x64xf32> -> vector<2x512xf32>
    %138 = vector.shape_cast %137 : vector<2x512xf32> to vector<2x1x512xf32>
    %c0_119 = arith.constant 0 : index
    %c0_120 = arith.constant 0 : index
    %c0_121 = arith.constant 0 : index
    %139 = vector.load %arg4[%c0_119, %c0_120, %c0_121] : memref<2x1x512xf32, #tpu.memory_space<vmem>>, vector<2x1x512xf32>
    tpu.vector_store %arg4[%c0_119, %c0_120, %c0_121], %138 {strides = array<i32>} : memref<2x1x512xf32, #tpu.memory_space<vmem>>, vector<2x1x512xf32>,
    return
  }
  func.func @transform_0(%arg0: i32) -> (i32, i32, i32, i32) {
    %c0_i32 = arith.constant 0 : i32
    %c0_i32_0 = arith.constant 0 : i32
    %c0_i32_1 = arith.constant 0 : i32
    %c0_i32_2 = arith.constant 0 : i32
    return %arg0, %c0_i32, %c0_i32_0, %c0_i32_1 : i32, i32, i32, i32
  }
  func.func @transform_1(%arg0: i32) -> (i32, i32) {
    %c0_i32 = arith.constant 0 : i32
    %c0_i32_0 = arith.constant 0 : i32
    %c0_i32_1 = arith.constant 0 : i32
    return %c0_i32, %c0_i32_0 : i32, i32
  }
  func.func @transform_2(%arg0: i32) -> (i32, i32) {
    %c0_i32 = arith.constant 0 : i32
    %c0_i32_0 = arith.constant 0 : i32
    %c0_i32_1 = arith.constant 0 : i32
    return %c0_i32, %c0_i32_0 : i32, i32
  }
  func.func @transform_3(%arg0: i32) -> (i32, i32, i32) {
    %c0_i32 = arith.constant 0 : i32
    %c0_i32_0 = arith.constant 0 : i32
    %c0_i32_1 = arith.constant 0 : i32
    return %arg0, %c0_i32, %c0_i32_0 : i32, i32, i32
  }
}

</mosaic_0001>

<llo_original>
// kernel: tpu_custom_call.1
$region0: #{tpu_custom_call.1}
  #allocation0 [shape = 'u32[]', space=smem, size = 0x4, offset = 0x4, fixed_abs, tag = 'smem constant byte address 0x4 - core index']
  #allocation1 [shape = 'u32[144,128]{1,0:T(1,128)}', space=vmem, size = 0x12000, scoped, tag = 'internal scratch']
  #allocation2 [shape = 'f32[2,16,16,37]{3,2,1,0:T(8,128)}', space=vmem, size = 0x40000, scoped, tag = 'scratch operand']
  #allocation3 [shape = 'f32[2,8,8,133]{3,2,1,0:T(8,128)}', space=vmem, size = 0x20000, scoped, tag = 'scratch operand']
  %s0 = inlined_call_operand.vmem [shape: bf16[2,16,16,4], index: 0, kind: input, shape index: {}]
  %s1 = inlined_call_operand.vmem [shape: bf16[37,8], index: 1, kind: input, shape index: {}]
  %s2 = inlined_call_operand.vmem [shape: bf16[133,8], index: 2, kind: input, shape index: {}]
  %s3 = inlined_call_operand.hbm [shape: f32[2,1,512], index: 3, kind: output, shape index: {}]
  %s4 = sld [smem:[#allocation0]]
  $region22: #{tpu_custom_call.1} parent=0
    _
  %s6 = ssub.s32 1, %s4
  %s7 = scalar_select 0, %s6, %s4
  $region1: #{tpu_custom_call.1} parent=0
    #allocation4 [shape = 'u8[4096]{0}', space=vmem, size = 0x1000, scoped, tag = 'output window, operand 0, single buffered']
    #allocation5 [shape = 's32[1]{0}', space=sflag, size = 0x4, scoped, tag = 'scoped memory for tpu_custom_call.1']
    %8 = vsyncpa [#allocation5], 0
    // Predicated region
    $region2: #{tpu_custom_call.1} parent=1 // pred_check
      _
    $region3: #{tpu_custom_call.1} parent=1 // pred_check_branch
      %10 = sbr.rel (0) target = $region5
    $region4: #{tpu_custom_call.1} parent=1 // pred_region
      _
    $region5: #{tpu_custom_call.1} parent=1 // pred_fallthru
      _
    // Predicated region
    $region6: #{tpu_custom_call.1} parent=1 // pred_check
      _
    $region7: #{tpu_custom_call.1} parent=1 // pred_check_branch
      %12 = sbr.rel (0) target = $region9
    $region8: #{tpu_custom_call.1} parent=1 // pred_region
      _
    $region9: #{tpu_custom_call.1} parent=1 // pred_fallthru
      _
    // Predicated region
    $region10: #{tpu_custom_call.1} parent=1 // pred_check
      _
    $region11: #{tpu_custom_call.1} parent=1 // pred_check_branch
      %14 = sbr.rel (0) target = $region13
    $region12: #{tpu_custom_call.1} parent=1 // pred_region
      _
    $region13: #{tpu_custom_call.1} parent=1 // pred_fallthru
      _
    %v16 = vld [vmem:[%s0] sm:$0xf]
    %v17 = vld [vmem:[%s0 + $0x4] sm:$0xf]
    %v18 = vld [vmem:[%s0 + $0x8] sm:$0xf]
    %v19 = vld [vmem:[%s0 + $0xc] sm:$0xf]
    %v20 = vld [vmem:[%s0 + $0x10] sm:$0xf]
    %v21 = vld [vmem:[%s0 + $0x14] sm:$0xf]
    %v22 = vld [vmem:[%s0 + $0x18] sm:$0xf]
    %v23 = vld [vmem:[%s0 + $0x1c] sm:$0xf]
    %v24 = vld [vmem:[%s0 + $0x20] sm:$0xf]
    %v25 = vld [vmem:[%s0 + $0x24] sm:$0xf]
    %v26 = vld [vmem:[%s0 + $0x28] sm:$0xf]
    %v27 = vld [vmem:[%s0 + $0x2c] sm:$0xf]
    %v28 = vld [vmem:[%s0 + $0x30] sm:$0xf]
    %v29 = vld [vmem:[%s0 + $0x34] sm:$0xf]
    %v30 = vld [vmem:[%s0 + $0x38] sm:$0xf]
    %v31 = vld [vmem:[%s0 + $0x3c] sm:$0xf]
    %v32 = vld [vmem:[%s0 + $0x40] sm:$0xf]
    %v33 = vld [vmem:[%s0 + $0x44] sm:$0xf]
    %v34 = vld [vmem:[%s0 + $0x48] sm:$0xf]
    %v35 = vld [vmem:[%s0 + $0x4c] sm:$0xf]
    %v36 = vld [vmem:[%s0 + $0x50] sm:$0xf]
    %v37 = vld [vmem:[%s0 + $0x54] sm:$0xf]
    %v38 = vld [vmem:[%s0 + $0x58] sm:$0xf]
    %v39 = vld [vmem:[%s0 + $0x5c] sm:$0xf]
    %v40 = vld [vmem:[%s0 + $0x60] sm:$0xf]
    %v41 = vld [vmem:[%s0 + $0x64] sm:$0xf]
    %v42 = vld [vmem:[%s0 + $0x68] sm:$0xf]
    %v43 = vld [vmem:[%s0 + $0x6c] sm:$0xf]
    %v44 = vld [vmem:[%s0 + $0x70] sm:$0xf]
    %v45 = vld [vmem:[%s0 + $0x74] sm:$0xf]
    %v46 = vld [vmem:[%s0 + $0x78] sm:$0xf]
    %v47 = vld [vmem:[%s0 + $0x7c] sm:$0xf]
    %v48 = vld [vmem:[%s0 + $0x80] sm:$0xf]
    %v49 = vld [vmem:[%s0 + $0x84] sm:$0xf]
    %v50 = vld [vmem:[%s0 + $0x88] sm:$0xf]
    %v51 = vld [vmem:[%s0 + $0x8c] sm:$0xf]
    %v52 = vld [vmem:[%s0 + $0x90] sm:$0xf]
    %v53 = vld [vmem:[%s0 + $0x94] sm:$0xf]
    %v54 = vld [vmem:[%s0 + $0x98] sm:$0xf]
    %v55 = vld [vmem:[%s0 + $0x9c] sm:$0xf]
    %v56 = vld [vmem:[%s0 + $0xa0] sm:$0xf]
    %v57 = vld [vmem:[%s0 + $0xa4] sm:$0xf]
    %v58 = vld [vmem:[%s0 + $0xa8] sm:$0xf]
    %v59 = vld [vmem:[%s0 + $0xac] sm:$0xf]
    %v60 = vld [vmem:[%s0 + $0xb0] sm:$0xf]
    %v61 = vld [vmem:[%s0 + $0xb4] sm:$0xf]
    %v62 = vld [vmem:[%s0 + $0xb8] sm:$0xf]
    %v63 = vld [vmem:[%s0 + $0xbc] sm:$0xf]
    %v64 = vld [vmem:[%s0 + $0xc0] sm:$0xf]
    %v65 = vld [vmem:[%s0 + $0xc4] sm:$0xf]
    %v66 = vld [vmem:[%s0 + $0xc8] sm:$0xf]
    %v67 = vld [vmem:[%s0 + $0xcc] sm:$0xf]
    %v68 = vld [vmem:[%s0 + $0xd0] sm:$0xf]
    %v69 = vld [vmem:[%s0 + $0xd4] sm:$0xf]
    %v70 = vld [vmem:[%s0 + $0xd8] sm:$0xf]
    %v71 = vld [vmem:[%s0 + $0xdc] sm:$0xf]
    %v72 = vld [vmem:[%s0 + $0xe0] sm:$0xf]
    %v73 = vld [vmem:[%s0 + $0xe4] sm:$0xf]
    %v74 = vld [vmem:[%s0 + $0xe8] sm:$0xf]
    %v75 = vld [vmem:[%s0 + $0xec] sm:$0xf]
    %v76 = vld [vmem:[%s0 + $0xf0] sm:$0xf]
    %v77 = vld [vmem:[%s0 + $0xf4] sm:$0xf]
    %v78 = vld [vmem:[%s0 + $0xf8] sm:$0xf]
    %v79 = vld [vmem:[%s0 + $0xfc] sm:$0xf]
    %v80 = vunpack.c.l.bf16 %v16
    %v81 = vunpack.c.l.bf16 %v17
    %v82 = vunpack.c.l.bf16 %v18
    %v83 = vunpack.c.l.bf16 %v19
    %v84 = vunpack.c.l.bf16 %v20
    %v85 = vunpack.c.l.bf16 %v21
    %v86 = vunpack.c.l.bf16 %v22
    %v87 = vunpack.c.l.bf16 %v23
    %v88 = vunpack.c.l.bf16 %v24
    %v89 = vunpack.c.l.bf16 %v25
    %v90 = vunpack.c.l.bf16 %v26
    %v91 = vunpack.c.l.bf16 %v27
    %v92 = vunpack.c.l.bf16 %v28
    %v93 = vunpack.c.l.bf16 %v29
    %v94 = vunpack.c.l.bf16 %v30
    %v95 = vunpack.c.l.bf16 %v31
    %v96 = vunpack.c.l.bf16 %v32
    %v97 = vunpack.c.l.bf16 %v33
    %v98 = vunpack.c.l.bf16 %v34
    %v99 = vunpack.c.l.bf16 %v35
    %v100 = vunpack.c.l.bf16 %v36
    %v101 = vunpack.c.l.bf16 %v37
    %v102 = vunpack.c.l.bf16 %v38
    %v103 = vunpack.c.l.bf16 %v39
    %v104 = vunpack.c.l.bf16 %v40
    %v105 = vunpack.c.l.bf16 %v41
    %v106 = vunpack.c.l.bf16 %v42
    %v107 = vunpack.c.l.bf16 %v43
    %v108 = vunpack.c.l.bf16 %v44
    %v109 = vunpack.c.l.bf16 %v45
    %v110 = vunpack.c.l.bf16 %v46
    %v111 = vunpack.c.l.bf16 %v47
    %v112 = vunpack.c.l.bf16 %v48
    %v113 = vunpack.c.l.bf16 %v49
    %v114 = vunpack.c.l.bf16 %v50
    %v115 = vunpack.c.l.bf16 %v51
    %v116 = vunpack.c.l.bf16 %v52
    %v117 = vunpack.c.l.bf16 %v53
    %v118 = vunpack.c.l.bf16 %v54
    %v119 = vunpack.c.l.bf16 %v55
    %v120 = vunpack.c.l.bf16 %v56
    %v121 = vunpack.c.l.bf16 %v57
    %v122 = vunpack.c.l.bf16 %v58
    %v123 = vunpack.c.l.bf16 %v59
    %v124 = vunpack.c.l.bf16 %v60
    %v125 = vunpack.c.l.bf16 %v61
    %v126 = vunpack.c.l.bf16 %v62
    %v127 = vunpack.c.l.bf16 %v63
    %v128 = vunpack.c.l.bf16 %v64
    %v129 = vunpack.c.l.bf16 %v65
    %v130 = vunpack.c.l.bf16 %v66
    %v131 = vunpack.c.l.bf16 %v67
    %v132 = vunpack.c.l.bf16 %v68
    %v133 = vunpack.c.l.bf16 %v69
    %v134 = vunpack.c.l.bf16 %v70
    %v135 = vunpack.c.l.bf16 %v71
    %v136 = vunpack.c.l.bf16 %v72
    %v137 = vunpack.c.l.bf16 %v73
    %v138 = vunpack.c.l.bf16 %v74
    %v139 = vunpack.c.l.bf16 %v75
    %v140 = vunpack.c.l.bf16 %v76
    %v141 = vunpack.c.l.bf16 %v77
    %v142 = vunpack.c.l.bf16 %v78
    %v143 = vunpack.c.l.bf16 %v79
    %vm144 = vcmask 302080
    %145 = vst.msk [vmem:[#allocation2] sm:$0xff] %vm144, 0.0
    %146 = vst.msk [vmem:[#allocation2 + $0x8] sm:$0xff] %vm144, 0.0
    %147 = vst.msk [vmem:[#allocation2 + $0x10] sm:$0xff] %vm144, 0.0
    %148 = vst.msk [vmem:[#allocation2 + $0x18] sm:$0xff] %vm144, 0.0
    %149 = vst.msk [vmem:[#allocation2 + $0x20] sm:$0xff] %vm144, 0.0
    %150 = vst.msk [vmem:[#allocation2 + $0x28] sm:$0xff] %vm144, 0.0
    %151 = vst.msk [vmem:[#allocation2 + $0x30] sm:$0xff] %vm144, 0.0
    %152 = vst.msk [vmem:[#allocation2 + $0x38] sm:$0xff] %vm144, 0.0
    %153 = vst.msk [vmem:[#allocation2 + $0x40] sm:$0xff] %vm144, 0.0
    %154 = vst.msk [vmem:[#allocation2 + $0x48] sm:$0xff] %vm144, 0.0
    %155 = vst.msk [vmem:[#allocation2 + $0x50] sm:$0xff] %vm144, 0.0
    %156 = vst.msk [vmem:[#allocation2 + $0x58] sm:$0xff] %vm144, 0.0
    %157 = vst.msk [vmem:[#allocation2 + $0x60] sm:$0xff] %vm144, 0.0
    %158 = vst.msk [vmem:[#allocation2 + $0x68] sm:$0xff] %vm144, 0.0
    %159 = vst.msk [vmem:[#allocation2 + $0x70] sm:$0xff] %vm144, 0.0
    %160 = vst.msk [vmem:[#allocation2 + $0x78] sm:$0xff] %vm144, 0.0
    %161 = vst.msk [vmem:[#allocation2 + $0x80] sm:$0xff] %vm144, 0.0
    %162 = vst.msk [vmem:[#allocation2 + $0x88] sm:$0xff] %vm144, 0.0
    %163 = vst.msk [vmem:[#allocation2 + $0x90] sm:$0xff] %vm144, 0.0
    %164 = vst.msk [vmem:[#allocation2 + $0x98] sm:$0xff] %vm144, 0.0
    %165 = vst.msk [vmem:[#allocation2 + $0xa0] sm:$0xff] %vm144, 0.0
    %166 = vst.msk [vmem:[#allocation2 + $0xa8] sm:$0xff] %vm144, 0.0
    %167 = vst.msk [vmem:[#allocation2 + $0xb0] sm:$0xff] %vm144, 0.0
    %168 = vst.msk [vmem:[#allocation2 + $0xb8] sm:$0xff] %vm144, 0.0
    %169 = vst.msk [vmem:[#allocation2 + $0xc0] sm:$0xff] %vm144, 0.0
    %170 = vst.msk [vmem:[#allocation2 + $0xc8] sm:$0xff] %vm144, 0.0
    %171 = vst.msk [vmem:[#allocation2 + $0xd0] sm:$0xff] %vm144, 0.0
    %172 = vst.msk [vmem:[#allocation2 + $0xd8] sm:$0xff] %vm144, 0.0
    %173 = vst.msk [vmem:[#allocation2 + $0xe0] sm:$0xff] %vm144, 0.0
    %174 = vst.msk [vmem:[#allocation2 + $0xe8] sm:$0xff] %vm144, 0.0
    %175 = vst.msk [vmem:[#allocation2 + $0xf0] sm:$0xff] %vm144, 0.0
    %176 = vst.msk [vmem:[#allocation2 + $0xf8] sm:$0xff] %vm144, 0.0
    %177 = vst.msk [vmem:[#allocation2 + $0x100] sm:$0xff] %vm144, 0.0
    %178 = vst.msk [vmem:[#allocation2 + $0x108] sm:$0xff] %vm144, 0.0
    %179 = vst.msk [vmem:[#allocation2 + $0x110] sm:$0xff] %vm144, 0.0
    %180 = vst.msk [vmem:[#allocation2 + $0x118] sm:$0xff] %vm144, 0.0
    %181 = vst.msk [vmem:[#allocation2 + $0x120] sm:$0xff] %vm144, 0.0
    %182 = vst.msk [vmem:[#allocation2 + $0x128] sm:$0xff] %vm144, 0.0
    %183 = vst.msk [vmem:[#allocation2 + $0x130] sm:$0xff] %vm144, 0.0
    %184 = vst.msk [vmem:[#allocation2 + $0x138] sm:$0xff] %vm144, 0.0
    %185 = vst.msk [vmem:[#allocation2 + $0x140] sm:$0xff] %vm144, 0.0
    %186 = vst.msk [vmem:[#allocation2 + $0x148] sm:$0xff] %vm144, 0.0
    %187 = vst.msk [vmem:[#allocation2 + $0x150] sm:$0xff] %vm144, 0.0
    %188 = vst.msk [vmem:[#allocation2 + $0x158] sm:$0xff] %vm144, 0.0
    %189 = vst.msk [vmem:[#allocation2 + $0x160] sm:$0xff] %vm144, 0.0
    %190 = vst.msk [vmem:[#allocation2 + $0x168] sm:$0xff] %vm144, 0.0
    %191 = vst.msk [vmem:[#allocation2 + $0x170] sm:$0xff] %vm144, 0.0
    %192 = vst.msk [vmem:[#allocation2 + $0x178] sm:$0xff] %vm144, 0.0
    %193 = vst.msk [vmem:[#allocation2 + $0x180] sm:$0xff] %vm144, 0.0
    %194 = vst.msk [vmem:[#allocation2 + $0x188] sm:$0xff] %vm144, 0.0
    %195 = vst.msk [vmem:[#allocation2 + $0x190] sm:$0xff] %vm144, 0.0
    %196 = vst.msk [vmem:[#allocation2 + $0x198] sm:$0xff] %vm144, 0.0
    %197 = vst.msk [vmem:[#allocation2 + $0x1a0] sm:$0xff] %vm144, 0.0
    %198 = vst.msk [vmem:[#allocation2 + $0x1a8] sm:$0xff] %vm144, 0.0
    %199 = vst.msk [vmem:[#allocation2 + $0x1b0] sm:$0xff] %vm144, 0.0
    %200 = vst.msk [vmem:[#allocation2 + $0x1b8] sm:$0xff] %vm144, 0.0
    %201 = vst.msk [vmem:[#allocation2 + $0x1c0] sm:$0xff] %vm144, 0.0
    %202 = vst.msk [vmem:[#allocation2 + $0x1c8] sm:$0xff] %vm144, 0.0
    %203 = vst.msk [vmem:[#allocation2 + $0x1d0] sm:$0xff] %vm144, 0.0
    %204 = vst.msk [vmem:[#allocation2 + $0x1d8] sm:$0xff] %vm144, 0.0
    %205 = vst.msk [vmem:[#allocation2 + $0x1e0] sm:$0xff] %vm144, 0.0
    %206 = vst.msk [vmem:[#allocation2 + $0x1e8] sm:$0xff] %vm144, 0.0
    %207 = vst.msk [vmem:[#allocation2 + $0x1f0] sm:$0xff] %vm144, 0.0
    %208 = vst.msk [vmem:[#allocation2 + $0x1f8] sm:$0xff] %vm144, 0.0
    %vm209 = vcmask 302368
    %210 = vst.msk [vmem:[#allocation2] sm:$0xff] %vm209, 1.0
    %211 = vst.msk [vmem:[#allocation2 + $0x8] sm:$0xff] %vm209, 1.0
    %212 = vst.msk [vmem:[#allocation2 + $0x10] sm:$0xff] %vm209, 1.0
    %213 = vst.msk [vmem:[#allocation2 + $0x18] sm:$0xff] %vm209, 1.0
    %214 = vst.msk [vmem:[#allocation2 + $0x20] sm:$0xff] %vm209, 1.0
    %215 = vst.msk [vmem:[#allocation2 + $0x28] sm:$0xff] %vm209, 1.0
    %216 = vst.msk [vmem:[#allocation2 + $0x30] sm:$0xff] %vm209, 1.0
    %217 = vst.msk [vmem:[#allocation2 + $0x38] sm:$0xff] %vm209, 1.0
    %218 = vst.msk [vmem:[#allocation2 + $0x40] sm:$0xff] %vm209, 1.0
    %219 = vst.msk [vmem:[#allocation2 + $0x48] sm:$0xff] %vm209, 1.0
    %220 = vst.msk [vmem:[#allocation2 + $0x50] sm:$0xff] %vm209, 1.0
    %221 = vst.msk [vmem:[#allocation2 + $0x58] sm:$0xff] %vm209, 1.0
    %222 = vst.msk [vmem:[#allocation2 + $0x60] sm:$0xff] %vm209, 1.0
    %223 = vst.msk [vmem:[#allocation2 + $0x68] sm:$0xff] %vm209, 1.0
    %224 = vst.msk [vmem:[#allocation2 + $0x70] sm:$0xff] %vm209, 1.0
    %225 = vst.msk [vmem:[#allocation2 + $0x78] sm:$0xff] %vm209, 1.0
    %226 = vst.msk [vmem:[#allocation2 + $0x80] sm:$0xff] %vm209, 1.0
    %227 = vst.msk [vmem:[#allocation2 + $0x88] sm:$0xff] %vm209, 1.0
    %228 = vst.msk [vmem:[#allocation2 + $0x90] sm:$0xff] %vm209, 1.0
    %229 = vst.msk [vmem:[#allocation2 + $0x98] sm:$0xff] %vm209, 1.0
    %230 = vst.msk [vmem:[#allocation2 + $0xa0] sm:$0xff] %vm209, 1.0
    %231 = vst.msk [vmem:[#allocation2 + $0xa8] sm:$0xff] %vm209, 1.0
    %232 = vst.msk [vmem:[#allocation2 + $0xb0] sm:$0xff] %vm209, 1.0
    %233 = vst.msk [vmem:[#allocation2 + $0xb8] sm:$0xff] %vm209, 1.0
    %234 = vst.msk [vmem:[#allocation2 + $0xc0] sm:$0xff] %vm209, 1.0
    %235 = vst.msk [vmem:[#allocation2 + $0xc8] sm:$0xff] %vm209, 1.0
    %236 = vst.msk [vmem:[#allocation2 + $0xd0] sm:$0xff] %vm209, 1.0
    %237 = vst.msk [vmem:[#allocation2 + $0xd8] sm:$0xff] %vm209, 1.0
    %238 = vst.msk [vmem:[#allocation2 + $0xe0] sm:$0xff] %vm209, 1.0
    %239 = vst.msk [vmem:[#allocation2 + $0xe8] sm:$0xff] %vm209, 1.0
    %240 = vst.msk [vmem:[#allocation2 + $0xf0] sm:$0xff] %vm209, 1.0
    %241 = vst.msk [vmem:[#allocation2 + $0xf8] sm:$0xff] %vm209, 1.0
    %242 = vst.msk [vmem:[#allocation2 + $0x100] sm:$0xff] %vm209, 1.0
    %243 = vst.msk [vmem:[#allocation2 + $0x108] sm:$0xff] %vm209, 1.0
    %244 = vst.msk [vmem:[#allocation2 + $0x110] sm:$0xff] %vm209, 1.0
    %245 = vst.msk [vmem:[#allocation2 + $0x118] sm:$0xff] %vm209, 1.0
    %246 = vst.msk [vmem:[#allocation2 + $0x120] sm:$0xff] %vm209, 1.0
    %247 = vst.msk [vmem:[#allocation2 + $0x128] sm:$0xff] %vm209, 1.0
    %248 = vst.msk [vmem:[#allocation2 + $0x130] sm:$0xff] %vm209, 1.0
    %249 = vst.msk [vmem:[#allocation2 + $0x138] sm:$0xff] %vm209, 1.0
    %250 = vst.msk [vmem:[#allocation2 + $0x140] sm:$0xff] %vm209, 1.0
    %251 = vst.msk [vmem:[#allocation2 + $0x148] sm:$0xff] %vm209, 1.0
    %252 = vst.msk [vmem:[#allocation2 + $0x150] sm:$0xff] %vm209, 1.0
    %253 = vst.msk [vmem:[#allocation2 + $0x158] sm:$0xff] %vm209, 1.0
    %254 = vst.msk [vmem:[#allocation2 + $0x160] sm:$0xff] %vm209, 1.0
    %255 = vst.msk [vmem:[#allocation2 + $0x168] sm:$0xff] %vm209, 1.0
    %256 = vst.msk [vmem:[#allocation2 + $0x170] sm:$0xff] %vm209, 1.0
    %257 = vst.msk [vmem:[#allocation2 + $0x178] sm:$0xff] %vm209, 1.0
    %258 = vst.msk [vmem:[#allocation2 + $0x180] sm:$0xff] %vm209, 1.0
    %259 = vst.msk [vmem:[#allocation2 + $0x188] sm:$0xff] %vm209, 1.0
    %260 = vst.msk [vmem:[#allocation2 + $0x190] sm:$0xff] %vm209, 1.0
    %261 = vst.msk [vmem:[#allocation2 + $0x198] sm:$0xff] %vm209, 1.0
    %262 = vst.msk [vmem:[#allocation2 + $0x1a0] sm:$0xff] %vm209, 1.0
    %263 = vst.msk [vmem:[#allocation2 + $0x1a8] sm:$0xff] %vm209, 1.0
    %264 = vst.msk [vmem:[#allocation2 + $0x1b0] sm:$0xff] %vm209, 1.0
    %265 = vst.msk [vmem:[#allocation2 + $0x1b8] sm:$0xff] %vm209, 1.0
    %266 = vst.msk [vmem:[#allocation2 + $0x1c0] sm:$0xff] %vm209, 1.0
    %267 = vst.msk [vmem:[#allocation2 + $0x1c8] sm:$0xff] %vm209, 1.0
    %268 = vst.msk [vmem:[#allocation2 + $0x1d0] sm:$0xff] %vm209, 1.0
    %269 = vst.msk [vmem:[#allocation2 + $0x1d8] sm:$0xff] %vm209, 1.0
    %270 = vst.msk [vmem:[#allocation2 + $0x1e0] sm:$0xff] %vm209, 1.0
    %271 = vst.msk [vmem:[#allocation2 + $0x1e8] sm:$0xff] %vm209, 1.0
    %272 = vst.msk [vmem:[#allocation2 + $0x1f0] sm:$0xff] %vm209, 1.0
    %273 = vst.msk [vmem:[#allocation2 + $0x1f8] sm:$0xff] %vm209, 1.0
    %s274 = scalar_lea.vmem [#allocation2], 16
    %vm275 = vcmask 31744
    %276 = vst.msk [vmem:[%s274 + $0x1] sm:$0xff] %vm275, %v80
    %vm277 = vcmask 30720
    %278 = vst.msk [vmem:[%s274 + $0x9] sm:$0x7f] %vm277, %v81
    %279 = vst.msk [vmem:[%s274 + $0x11] sm:$0xff] %vm275, %v82
    %280 = vst.msk [vmem:[%s274 + $0x19] sm:$0x7f] %vm277, %v83
    %281 = vst.msk [vmem:[%s274 + $0x21] sm:$0xff] %vm275, %v84
    %282 = vst.msk [vmem:[%s274 + $0x29] sm:$0x7f] %vm277, %v85
    %283 = vst.msk [vmem:[%s274 + $0x31] sm:$0xff] %vm275, %v86
    %284 = vst.msk [vmem:[%s274 + $0x39] sm:$0x7f] %vm277, %v87
    %285 = vst.msk [vmem:[%s274 + $0x41] sm:$0xff] %vm275, %v88
    %286 = vst.msk [vmem:[%s274 + $0x49] sm:$0x7f] %vm277, %v89
    %287 = vst.msk [vmem:[%s274 + $0x51] sm:$0xff] %vm275, %v90
    %288 = vst.msk [vmem:[%s274 + $0x59] sm:$0x7f] %vm277, %v91
    %289 = vst.msk [vmem:[%s274 + $0x61] sm:$0xff] %vm275, %v92
    %290 = vst.msk [vmem:[%s274 + $0x69] sm:$0x7f] %vm277, %v93
    %291 = vst.msk [vmem:[%s274 + $0x71] sm:$0xff] %vm275, %v94
    %292 = vst.msk [vmem:[%s274 + $0x79] sm:$0x7f] %vm277, %v95
    %293 = vst.msk [vmem:[%s274 + $0x81] sm:$0xff] %vm275, %v96
    %294 = vst.msk [vmem:[%s274 + $0x89] sm:$0x7f] %vm277, %v97
    %295 = vst.msk [vmem:[%s274 + $0x91] sm:$0xff] %vm275, %v98
    %296 = vst.msk [vmem:[%s274 + $0x99] sm:$0x7f] %vm277, %v99
    %297 = vst.msk [vmem:[%s274 + $0xa1] sm:$0xff] %vm275, %v100
    %298 = vst.msk [vmem:[%s274 + $0xa9] sm:$0x7f] %vm277, %v101
    %299 = vst.msk [vmem:[%s274 + $0xb1] sm:$0xff] %vm275, %v102
    %300 = vst.msk [vmem:[%s274 + $0xb9] sm:$0x7f] %vm277, %v103
    %301 = vst.msk [vmem:[%s274 + $0xc1] sm:$0xff] %vm275, %v104
    %302 = vst.msk [vmem:[%s274 + $0xc9] sm:$0x7f] %vm277, %v105
    %303 = vst.msk [vmem:[%s274 + $0xd1] sm:$0xff] %vm275, %v106
    %304 = vst.msk [vmem:[%s274 + $0xd9] sm:$0x7f] %vm277, %v107
    %305 = vst.msk [vmem:[%s274 + $0xe1] sm:$0xff] %vm275, %v108
    %306 = vst.msk [vmem:[%s274 + $0xe9] sm:$0x7f] %vm277, %v109
    %307 = vst.msk [vmem:[%s274 + $0x101] sm:$0xff] %vm275, %v112
    %308 = vst.msk [vmem:[%s274 + $0x109] sm:$0x7f] %vm277, %v113
    %309 = vst.msk [vmem:[%s274 + $0x111] sm:$0xff] %vm275, %v114
    %310 = vst.msk [vmem:[%s274 + $0x119] sm:$0x7f] %vm277, %v115
    %311 = vst.msk [vmem:[%s274 + $0x121] sm:$0xff] %vm275, %v116
    %312 = vst.msk [vmem:[%s274 + $0x129] sm:$0x7f] %vm277, %v117
    %313 = vst.msk [vmem:[%s274 + $0x131] sm:$0xff] %vm275, %v118
    %314 = vst.msk [vmem:[%s274 + $0x139] sm:$0x7f] %vm277, %v119
    %315 = vst.msk [vmem:[%s274 + $0x141] sm:$0xff] %vm275, %v120
    %316 = vst.msk [vmem:[%s274 + $0x149] sm:$0x7f] %vm277, %v121
    %317 = vst.msk [vmem:[%s274 + $0x151] sm:$0xff] %vm275, %v122
    %318 = vst.msk [vmem:[%s274 + $0x159] sm:$0x7f] %vm277, %v123
    %319 = vst.msk [vmem:[%s274 + $0x161] sm:$0xff] %vm275, %v124
    %320 = vst.msk [vmem:[%s274 + $0x169] sm:$0x7f] %vm277, %v125
    %321 = vst.msk [vmem:[%s274 + $0x171] sm:$0xff] %vm275, %v126
    %322 = vst.msk [vmem:[%s274 + $0x179] sm:$0x7f] %vm277, %v127
    %323 = vst.msk [vmem:[%s274 + $0x181] sm:$0xff] %vm275, %v128
    %324 = vst.msk [vmem:[%s274 + $0x189] sm:$0x7f] %vm277, %v129
    %325 = vst.msk [vmem:[%s274 + $0x191] sm:$0xff] %vm275, %v130
    %326 = vst.msk [vmem:[%s274 + $0x199] sm:$0x7f] %vm277, %v131
    %327 = vst.msk [vmem:[%s274 + $0x1a1] sm:$0xff] %vm275, %v132
    %328 = vst.msk [vmem:[%s274 + $0x1a9] sm:$0x7f] %vm277, %v133
    %329 = vst.msk [vmem:[%s274 + $0x1b1] sm:$0xff] %vm275, %v134
    %330 = vst.msk [vmem:[%s274 + $0x1b9] sm:$0x7f] %vm277, %v135
    %331 = vst.msk [vmem:[%s274 + $0x1c1] sm:$0xff] %vm275, %v136
    %332 = vst.msk [vmem:[%s274 + $0x1c9] sm:$0x7f] %vm277, %v137
    %333 = vst.msk [vmem:[%s274 + $0x1d1] sm:$0xff] %vm275, %v138
    %334 = vst.msk [vmem:[%s274 + $0x1d9] sm:$0x7f] %vm277, %v139
    %335 = vst.msk [vmem:[%s274 + $0x1e1] sm:$0xff] %vm275, %v140
    %336 = vst.msk [vmem:[%s274 + $0x1e9] sm:$0x7f] %vm277, %v141
    %397 = vrot.lane.b32.xlu0 %v80, 4
    %v398 = vpop.permute.xlu0 %397
    %399 = vrot.lane.b32.xlu0 %v81, 4
    %v400 = vpop.permute.xlu0 %399
    %401 = vrot.lane.b32.xlu0 %v82, 4
    %v402 = vpop.permute.xlu0 %401
    %403 = vrot.lane.b32.xlu0 %v83, 4
    %v404 = vpop.permute.xlu0 %403
    %405 = vrot.lane.b32.xlu0 %v84, 4
    %v406 = vpop.permute.xlu0 %405
    %407 = vrot.lane.b32.xlu0 %v85, 4
    %v408 = vpop.permute.xlu0 %407
    %409 = vrot.lane.b32.xlu0 %v86, 4
    %v410 = vpop.permute.xlu0 %409
    %411 = vrot.lane.b32.xlu0 %v87, 4
    %v412 = vpop.permute.xlu0 %411
    %413 = vrot.lane.b32.xlu0 %v88, 4
    %v414 = vpop.permute.xlu0 %413
    %415 = vrot.lane.b32.xlu0 %v89, 4
    %v416 = vpop.permute.xlu0 %415
    %417 = vrot.lane.b32.xlu0 %v90, 4
    %v418 = vpop.permute.xlu0 %417
    %419 = vrot.lane.b32.xlu0 %v91, 4
    %v420 = vpop.permute.xlu0 %419
    %421 = vrot.lane.b32.xlu0 %v92, 4
    %v422 = vpop.permute.xlu0 %421
    %423 = vrot.lane.b32.xlu0 %v93, 4
    %v424 = vpop.permute.xlu0 %423
    %425 = vrot.lane.b32.xlu0 %v94, 4
    %v426 = vpop.permute.xlu0 %425
    %427 = vrot.lane.b32.xlu0 %v95, 4
    %v428 = vpop.permute.xlu0 %427
    %429 = vrot.lane.b32.xlu0 %v96, 4
    %v430 = vpop.permute.xlu0 %429
    %431 = vrot.lane.b32.xlu0 %v97, 4
    %v432 = vpop.permute.xlu0 %431
    %433 = vrot.lane.b32.xlu0 %v98, 4
    %v434 = vpop.permute.xlu0 %433
    %435 = vrot.lane.b32.xlu0 %v99, 4
    %v436 = vpop.permute.xlu0 %435
    %437 = vrot.lane.b32.xlu0 %v100, 4
    %v438 = vpop.permute.xlu0 %437
    %439 = vrot.lane.b32.xlu0 %v101, 4
    %v440 = vpop.permute.xlu0 %439
    %441 = vrot.lane.b32.xlu0 %v102, 4
    %v442 = vpop.permute.xlu0 %441
    %443 = vrot.lane.b32.xlu0 %v103, 4
    %v444 = vpop.permute.xlu0 %443
    %445 = vrot.lane.b32.xlu0 %v104, 4
    %v446 = vpop.permute.xlu0 %445
    %447 = vrot.lane.b32.xlu0 %v105, 4
    %v448 = vpop.permute.xlu0 %447
    %449 = vrot.lane.b32.xlu0 %v106, 4
    %v450 = vpop.permute.xlu0 %449
    %451 = vrot.lane.b32.xlu0 %v107, 4
    %v452 = vpop.permute.xlu0 %451
    %453 = vrot.lane.b32.xlu0 %v108, 4
    %v454 = vpop.permute.xlu0 %453
    %455 = vrot.lane.b32.xlu0 %v109, 4
    %v456 = vpop.permute.xlu0 %455
    %457 = vrot.lane.b32.xlu0 %v112, 4
    %v458 = vpop.permute.xlu0 %457
    %459 = vrot.lane.b32.xlu0 %v113, 4
    %v460 = vpop.permute.xlu0 %459
    %461 = vrot.lane.b32.xlu0 %v114, 4
    %v462 = vpop.permute.xlu0 %461
    %463 = vrot.lane.b32.xlu0 %v115, 4
    %v464 = vpop.permute.xlu0 %463
    %465 = vrot.lane.b32.xlu0 %v116, 4
    %v466 = vpop.permute.xlu0 %465
    %467 = vrot.lane.b32.xlu0 %v117, 4
    %v468 = vpop.permute.xlu0 %467
    %469 = vrot.lane.b32.xlu0 %v118, 4
    %v470 = vpop.permute.xlu0 %469
    %471 = vrot.lane.b32.xlu0 %v119, 4
    %v472 = vpop.permute.xlu0 %471
    %473 = vrot.lane.b32.xlu0 %v120, 4
    %v474 = vpop.permute.xlu0 %473
    %475 = vrot.lane.b32.xlu0 %v121, 4
    %v476 = vpop.permute.xlu0 %475
    %477 = vrot.lane.b32.xlu0 %v122, 4
    %v478 = vpop.permute.xlu0 %477
    %479 = vrot.lane.b32.xlu0 %v123, 4
    %v480 = vpop.permute.xlu0 %479
    %481 = vrot.lane.b32.xlu0 %v124, 4
    %v482 = vpop.permute.xlu0 %481
    %483 = vrot.lane.b32.xlu0 %v125, 4
    %v484 = vpop.permute.xlu0 %483
    %485 = vrot.lane.b32.xlu0 %v126, 4
    %v486 = vpop.permute.xlu0 %485
    %487 = vrot.lane.b32.xlu0 %v127, 4
    %v488 = vpop.permute.xlu0 %487
    %489 = vrot.lane.b32.xlu0 %v128, 4
    %v490 = vpop.permute.xlu0 %489
    %491 = vrot.lane.b32.xlu0 %v129, 4
    %v492 = vpop.permute.xlu0 %491
    %493 = vrot.lane.b32.xlu0 %v130, 4
    %v494 = vpop.permute.xlu0 %493
    %495 = vrot.lane.b32.xlu0 %v131, 4
    %v496 = vpop.permute.xlu0 %495
    %497 = vrot.lane.b32.xlu0 %v132, 4
    %v498 = vpop.permute.xlu0 %497
    %499 = vrot.lane.b32.xlu0 %v133, 4
    %v500 = vpop.permute.xlu0 %499
    %501 = vrot.lane.b32.xlu0 %v134, 4
    %v502 = vpop.permute.xlu0 %501
    %503 = vrot.lane.b32.xlu0 %v135, 4
    %v504 = vpop.permute.xlu0 %503
    %505 = vrot.lane.b32.xlu0 %v136, 4
    %v506 = vpop.permute.xlu0 %505
    %507 = vrot.lane.b32.xlu0 %v137, 4
    %v508 = vpop.permute.xlu0 %507
    %509 = vrot.lane.b32.xlu0 %v138, 4
    %v510 = vpop.permute.xlu0 %509
    %511 = vrot.lane.b32.xlu0 %v139, 4
    %v512 = vpop.permute.xlu0 %511
    %513 = vrot.lane.b32.xlu0 %v140, 4
    %v514 = vpop.permute.xlu0 %513
    %515 = vrot.lane.b32.xlu0 %v141, 4
    %v516 = vpop.permute.xlu0 %515
    %vm577 = vcmask 64544
    %578 = vst.msk [vmem:[%s274] sm:$0xff] %vm577, %v398
    %579 = vst.msk [vmem:[%s274 + $0x8] sm:$0xff] %vm577, %v400
    %580 = vst.msk [vmem:[%s274 + $0x10] sm:$0xff] %vm577, %v402
    %581 = vst.msk [vmem:[%s274 + $0x18] sm:$0xff] %vm577, %v404
    %582 = vst.msk [vmem:[%s274 + $0x20] sm:$0xff] %vm577, %v406
    %583 = vst.msk [vmem:[%s274 + $0x28] sm:$0xff] %vm577, %v408
    %584 = vst.msk [vmem:[%s274 + $0x30] sm:$0xff] %vm577, %v410
    %585 = vst.msk [vmem:[%s274 + $0x38] sm:$0xff] %vm577, %v412
    %586 = vst.msk [vmem:[%s274 + $0x40] sm:$0xff] %vm577, %v414
    %587 = vst.msk [vmem:[%s274 + $0x48] sm:$0xff] %vm577, %v416
    %588 = vst.msk [vmem:[%s274 + $0x50] sm:$0xff] %vm577, %v418
    %589 = vst.msk [vmem:[%s274 + $0x58] sm:$0xff] %vm577, %v420
    %590 = vst.msk [vmem:[%s274 + $0x60] sm:$0xff] %vm577, %v422
    %591 = vst.msk [vmem:[%s274 + $0x68] sm:$0xff] %vm577, %v424
    %592 = vst.msk [vmem:[%s274 + $0x70] sm:$0xff] %vm577, %v426
    %593 = vst.msk [vmem:[%s274 + $0x78] sm:$0xff] %vm577, %v428
    %594 = vst.msk [vmem:[%s274 + $0x80] sm:$0xff] %vm577, %v430
    %595 = vst.msk [vmem:[%s274 + $0x88] sm:$0xff] %vm577, %v432
    %596 = vst.msk [vmem:[%s274 + $0x90] sm:$0xff] %vm577, %v434
    %597 = vst.msk [vmem:[%s274 + $0x98] sm:$0xff] %vm577, %v436
    %598 = vst.msk [vmem:[%s274 + $0xa0] sm:$0xff] %vm577, %v438
    %599 = vst.msk [vmem:[%s274 + $0xa8] sm:$0xff] %vm577, %v440
    %600 = vst.msk [vmem:[%s274 + $0xb0] sm:$0xff] %vm577, %v442
    %601 = vst.msk [vmem:[%s274 + $0xb8] sm:$0xff] %vm577, %v444
    %602 = vst.msk [vmem:[%s274 + $0xc0] sm:$0xff] %vm577, %v446
    %603 = vst.msk [vmem:[%s274 + $0xc8] sm:$0xff] %vm577, %v448
    %604 = vst.msk [vmem:[%s274 + $0xd0] sm:$0xff] %vm577, %v450
    %605 = vst.msk [vmem:[%s274 + $0xd8] sm:$0xff] %vm577, %v452
    %606 = vst.msk [vmem:[%s274 + $0xe0] sm:$0xff] %vm577, %v454
    %607 = vst.msk [vmem:[%s274 + $0xe8] sm:$0xff] %vm577, %v456
    %608 = vst.msk [vmem:[%s274 + $0x100] sm:$0xff] %vm577, %v458
    %609 = vst.msk [vmem:[%s274 + $0x108] sm:$0xff] %vm577, %v460
    %610 = vst.msk [vmem:[%s274 + $0x110] sm:$0xff] %vm577, %v462
    %611 = vst.msk [vmem:[%s274 + $0x118] sm:$0xff] %vm577, %v464
    %612 = vst.msk [vmem:[%s274 + $0x120] sm:$0xff] %vm577, %v466
    %613 = vst.msk [vmem:[%s274 + $0x128] sm:$0xff] %vm577, %v468
    %614 = vst.msk [vmem:[%s274 + $0x130] sm:$0xff] %vm577, %v470
    %615 = vst.msk [vmem:[%s274 + $0x138] sm:$0xff] %vm577, %v472
    %616 = vst.msk [vmem:[%s274 + $0x140] sm:$0xff] %vm577, %v474
    %617 = vst.msk [vmem:[%s274 + $0x148] sm:$0xff] %vm577, %v476
    %618 = vst.msk [vmem:[%s274 + $0x150] sm:$0xff] %vm577, %v478
    %619 = vst.msk [vmem:[%s274 + $0x158] sm:$0xff] %vm577, %v480
    %620 = vst.msk [vmem:[%s274 + $0x160] sm:$0xff] %vm577, %v482
    %621 = vst.msk [vmem:[%s274 + $0x168] sm:$0xff] %vm577, %v484
    %622 = vst.msk [vmem:[%s274 + $0x170] sm:$0xff] %vm577, %v486
    %623 = vst.msk [vmem:[%s274 + $0x178] sm:$0xff] %vm577, %v488
    %624 = vst.msk [vmem:[%s274 + $0x180] sm:$0xff] %vm577, %v490
    %625 = vst.msk [vmem:[%s274 + $0x188] sm:$0xff] %vm577, %v492
    %626 = vst.msk [vmem:[%s274 + $0x190] sm:$0xff] %vm577, %v494
    %627 = vst.msk [vmem:[%s274 + $0x198] sm:$0xff] %vm577, %v496
    %628 = vst.msk [vmem:[%s274 + $0x1a0] sm:$0xff] %vm577, %v498
    %629 = vst.msk [vmem:[%s274 + $0x1a8] sm:$0xff] %vm577, %v500
    %630 = vst.msk [vmem:[%s274 + $0x1b0] sm:$0xff] %vm577, %v502
    %631 = vst.msk [vmem:[%s274 + $0x1b8] sm:$0xff] %vm577, %v504
    %632 = vst.msk [vmem:[%s274 + $0x1c0] sm:$0xff] %vm577, %v506
    %633 = vst.msk [vmem:[%s274 + $0x1c8] sm:$0xff] %vm577, %v508
    %634 = vst.msk [vmem:[%s274 + $0x1d0] sm:$0xff] %vm577, %v510
    %635 = vst.msk [vmem:[%s274 + $0x1d8] sm:$0xff] %vm577, %v512
    %636 = vst.msk [vmem:[%s274 + $0x1e0] sm:$0xff] %vm577, %v514
    %637 = vst.msk [vmem:[%s274 + $0x1e8] sm:$0xff] %vm577, %v516
    %638 = vrot.lane.b32.xlu0 %v80, 8
    %v639 = vpop.permute.xlu0 %638
    %640 = vrot.lane.b32.xlu0 %v81, 8
    %v641 = vpop.permute.xlu0 %640
    %642 = vrot.lane.b32.xlu0 %v82, 8
    %v643 = vpop.permute.xlu0 %642
    %644 = vrot.lane.b32.xlu0 %v83, 8
    %v645 = vpop.permute.xlu0 %644
    %646 = vrot.lane.b32.xlu0 %v84, 8
    %v647 = vpop.permute.xlu0 %646
    %648 = vrot.lane.b32.xlu0 %v85, 8
    %v649 = vpop.permute.xlu0 %648
    %650 = vrot.lane.b32.xlu0 %v86, 8
    %v651 = vpop.permute.xlu0 %650
    %652 = vrot.lane.b32.xlu0 %v87, 8
    %v653 = vpop.permute.xlu0 %652
    %654 = vrot.lane.b32.xlu0 %v88, 8
    %v655 = vpop.permute.xlu0 %654
    %656 = vrot.lane.b32.xlu0 %v89, 8
    %v657 = vpop.permute.xlu0 %656
    %658 = vrot.lane.b32.xlu0 %v90, 8
    %v659 = vpop.permute.xlu0 %658
    %660 = vrot.lane.b32.xlu0 %v91, 8
    %v661 = vpop.permute.xlu0 %660
    %662 = vrot.lane.b32.xlu0 %v92, 8
    %v663 = vpop.permute.xlu0 %662
    %664 = vrot.lane.b32.xlu0 %v93, 8
    %v665 = vpop.permute.xlu0 %664
    %666 = vrot.lane.b32.xlu0 %v94, 8
    %v667 = vpop.permute.xlu0 %666
    %668 = vrot.lane.b32.xlu0 %v95, 8
    %v669 = vpop.permute.xlu0 %668
    %670 = vrot.lane.b32.xlu0 %v96, 8
    %v671 = vpop.permute.xlu0 %670
    %672 = vrot.lane.b32.xlu0 %v97, 8
    %v673 = vpop.permute.xlu0 %672
    %674 = vrot.lane.b32.xlu0 %v98, 8
    %v675 = vpop.permute.xlu0 %674
    %676 = vrot.lane.b32.xlu0 %v99, 8
    %v677 = vpop.permute.xlu0 %676
    %678 = vrot.lane.b32.xlu0 %v100, 8
    %v679 = vpop.permute.xlu0 %678
    %680 = vrot.lane.b32.xlu0 %v101, 8
    %v681 = vpop.permute.xlu0 %680
    %682 = vrot.lane.b32.xlu0 %v102, 8
    %v683 = vpop.permute.xlu0 %682
    %684 = vrot.lane.b32.xlu0 %v103, 8
    %v685 = vpop.permute.xlu0 %684
    %686 = vrot.lane.b32.xlu0 %v104, 8
    %v687 = vpop.permute.xlu0 %686
    %688 = vrot.lane.b32.xlu0 %v105, 8
    %v689 = vpop.permute.xlu0 %688
    %690 = vrot.lane.b32.xlu0 %v106, 8
    %v691 = vpop.permute.xlu0 %690
    %692 = vrot.lane.b32.xlu0 %v107, 8
    %v693 = vpop.permute.xlu0 %692
    %694 = vrot.lane.b32.xlu0 %v108, 8
    %v695 = vpop.permute.xlu0 %694
    %696 = vrot.lane.b32.xlu0 %v109, 8
    %v697 = vpop.permute.xlu0 %696
    %698 = vrot.lane.b32.xlu0 %v112, 8
    %v699 = vpop.permute.xlu0 %698
    %700 = vrot.lane.b32.xlu0 %v113, 8
    %v701 = vpop.permute.xlu0 %700
    %702 = vrot.lane.b32.xlu0 %v114, 8
    %v703 = vpop.permute.xlu0 %702
    %704 = vrot.lane.b32.xlu0 %v115, 8
    %v705 = vpop.permute.xlu0 %704
    %706 = vrot.lane.b32.xlu0 %v116, 8
    %v707 = vpop.permute.xlu0 %706
    %708 = vrot.lane.b32.xlu0 %v117, 8
    %v709 = vpop.permute.xlu0 %708
    %710 = vrot.lane.b32.xlu0 %v118, 8
    %v711 = vpop.permute.xlu0 %710
    %712 = vrot.lane.b32.xlu0 %v119, 8
    %v713 = vpop.permute.xlu0 %712
    %714 = vrot.lane.b32.xlu0 %v120, 8
    %v715 = vpop.permute.xlu0 %714
    %716 = vrot.lane.b32.xlu0 %v121, 8
    %v717 = vpop.permute.xlu0 %716
    %718 = vrot.lane.b32.xlu0 %v122, 8
    %v719 = vpop.permute.xlu0 %718
    %720 = vrot.lane.b32.xlu0 %v123, 8
    %v721 = vpop.permute.xlu0 %720
    %722 = vrot.lane.b32.xlu0 %v124, 8
    %v723 = vpop.permute.xlu0 %722
    %724 = vrot.lane.b32.xlu0 %v125, 8
    %v725 = vpop.permute.xlu0 %724
    %726 = vrot.lane.b32.xlu0 %v126, 8
    %v727 = vpop.permute.xlu0 %726
    %728 = vrot.lane.b32.xlu0 %v127, 8
    %v729 = vpop.permute.xlu0 %728
    %730 = vrot.lane.b32.xlu0 %v128, 8
    %v731 = vpop.permute.xlu0 %730
    %732 = vrot.lane.b32.xlu0 %v129, 8
    %v733 = vpop.permute.xlu0 %732
    %734 = vrot.lane.b32.xlu0 %v130, 8
    %v735 = vpop.permute.xlu0 %734
    %736 = vrot.lane.b32.xlu0 %v131, 8
    %v737 = vpop.permute.xlu0 %736
    %738 = vrot.lane.b32.xlu0 %v132, 8
    %v739 = vpop.permute.xlu0 %738
    %740 = vrot.lane.b32.xlu0 %v133, 8
    %v741 = vpop.permute.xlu0 %740
    %742 = vrot.lane.b32.xlu0 %v134, 8
    %v743 = vpop.permute.xlu0 %742
    %744 = vrot.lane.b32.xlu0 %v135, 8
    %v745 = vpop.permute.xlu0 %744
    %746 = vrot.lane.b32.xlu0 %v136, 8
    %v747 = vpop.permute.xlu0 %746
    %748 = vrot.lane.b32.xlu0 %v137, 8
    %v749 = vpop.permute.xlu0 %748
    %750 = vrot.lane.b32.xlu0 %v138, 8
    %v751 = vpop.permute.xlu0 %750
    %752 = vrot.lane.b32.xlu0 %v139, 8
    %v753 = vpop.permute.xlu0 %752
    %754 = vrot.lane.b32.xlu0 %v140, 8
    %v755 = vpop.permute.xlu0 %754
    %756 = vrot.lane.b32.xlu0 %v141, 8
    %v757 = vpop.permute.xlu0 %756
    %vm818 = vcmask 97345
    %819 = vst.msk [vmem:[%s274 - $0x1] sm:$0xfe] %vm818, %v639
    %vm820 = vcmask 97344
    %821 = vst.msk [vmem:[%s274 + $0x7] sm:$0xff] %vm820, %v641
    %822 = vst.msk [vmem:[%s274 + $0xf] sm:$0xfe] %vm818, %v643
    %823 = vst.msk [vmem:[%s274 + $0x17] sm:$0xff] %vm820, %v645
    %824 = vst.msk [vmem:[%s274 + $0x1f] sm:$0xfe] %vm818, %v647
    %825 = vst.msk [vmem:[%s274 + $0x27] sm:$0xff] %vm820, %v649
    %826 = vst.msk [vmem:[%s274 + $0x2f] sm:$0xfe] %vm818, %v651
    %827 = vst.msk [vmem:[%s274 + $0x37] sm:$0xff] %vm820, %v653
    %828 = vst.msk [vmem:[%s274 + $0x3f] sm:$0xfe] %vm818, %v655
    %829 = vst.msk [vmem:[%s274 + $0x47] sm:$0xff] %vm820, %v657
    %830 = vst.msk [vmem:[%s274 + $0x4f] sm:$0xfe] %vm818, %v659
    %831 = vst.msk [vmem:[%s274 + $0x57] sm:$0xff] %vm820, %v661
    %832 = vst.msk [vmem:[%s274 + $0x5f] sm:$0xfe] %vm818, %v663
    %833 = vst.msk [vmem:[%s274 + $0x67] sm:$0xff] %vm820, %v665
    %834 = vst.msk [vmem:[%s274 + $0x6f] sm:$0xfe] %vm818, %v667
    %835 = vst.msk [vmem:[%s274 + $0x77] sm:$0xff] %vm820, %v669
    %836 = vst.msk [vmem:[%s274 + $0x7f] sm:$0xfe] %vm818, %v671
    %837 = vst.msk [vmem:[%s274 + $0x87] sm:$0xff] %vm820, %v673
    %838 = vst.msk [vmem:[%s274 + $0x8f] sm:$0xfe] %vm818, %v675
    %839 = vst.msk [vmem:[%s274 + $0x97] sm:$0xff] %vm820, %v677
    %840 = vst.msk [vmem:[%s274 + $0x9f] sm:$0xfe] %vm818, %v679
    %841 = vst.msk [vmem:[%s274 + $0xa7] sm:$0xff] %vm820, %v681
    %842 = vst.msk [vmem:[%s274 + $0xaf] sm:$0xfe] %vm818, %v683
    %843 = vst.msk [vmem:[%s274 + $0xb7] sm:$0xff] %vm820, %v685
    %844 = vst.msk [vmem:[%s274 + $0xbf] sm:$0xfe] %vm818, %v687
    %845 = vst.msk [vmem:[%s274 + $0xc7] sm:$0xff] %vm820, %v689
    %846 = vst.msk [vmem:[%s274 + $0xcf] sm:$0xfe] %vm818, %v691
    %847 = vst.msk [vmem:[%s274 + $0xd7] sm:$0xff] %vm820, %v693
    %848 = vst.msk [vmem:[%s274 + $0xdf] sm:$0xfe] %vm818, %v695
    %849 = vst.msk [vmem:[%s274 + $0xe7] sm:$0xff] %vm820, %v697
    %850 = vst.msk [vmem:[%s274 + $0xff] sm:$0xfe] %vm818, %v699
    %851 = vst.msk [vmem:[%s274 + $0x107] sm:$0xff] %vm820, %v701
    %852 = vst.msk [vmem:[%s274 + $0x10f] sm:$0xfe] %vm818, %v703
    %853 = vst.msk [vmem:[%s274 + $0x117] sm:$0xff] %vm820, %v705
    %854 = vst.msk [vmem:[%s274 + $0x11f] sm:$0xfe] %vm818, %v707
    %855 = vst.msk [vmem:[%s274 + $0x127] sm:$0xff] %vm820, %v709
    %856 = vst.msk [vmem:[%s274 + $0x12f] sm:$0xfe] %vm818, %v711
    %857 = vst.msk [vmem:[%s274 + $0x137] sm:$0xff] %vm820, %v713
    %858 = vst.msk [vmem:[%s274 + $0x13f] sm:$0xfe] %vm818, %v715
    %859 = vst.msk [vmem:[%s274 + $0x147] sm:$0xff] %vm820, %v717
    %860 = vst.msk [vmem:[%s274 + $0x14f] sm:$0xfe] %vm818, %v719
    %861 = vst.msk [vmem:[%s274 + $0x157] sm:$0xff] %vm820, %v721
    %862 = vst.msk [vmem:[%s274 + $0x15f] sm:$0xfe] %vm818, %v723
    %863 = vst.msk [vmem:[%s274 + $0x167] sm:$0xff] %vm820, %v725
    %864 = vst.msk [vmem:[%s274 + $0x16f] sm:$0xfe] %vm818, %v727
    %865 = vst.msk [vmem:[%s274 + $0x177] sm:$0xff] %vm820, %v729
    %866 = vst.msk [vmem:[%s274 + $0x17f] sm:$0xfe] %vm818, %v731
    %867 = vst.msk [vmem:[%s274 + $0x187] sm:$0xff] %vm820, %v733
    %868 = vst.msk [vmem:[%s274 + $0x18f] sm:$0xfe] %vm818, %v735
    %869 = vst.msk [vmem:[%s274 + $0x197] sm:$0xff] %vm820, %v737
    %870 = vst.msk [vmem:[%s274 + $0x19f] sm:$0xfe] %vm818, %v739
    %871 = vst.msk [vmem:[%s274 + $0x1a7] sm:$0xff] %vm820, %v741
    %872 = vst.msk [vmem:[%s274 + $0x1af] sm:$0xfe] %vm818, %v743
    %873 = vst.msk [vmem:[%s274 + $0x1b7] sm:$0xff] %vm820, %v745
    %874 = vst.msk [vmem:[%s274 + $0x1bf] sm:$0xfe] %vm818, %v747
    %875 = vst.msk [vmem:[%s274 + $0x1c7] sm:$0xff] %vm820, %v749
    %876 = vst.msk [vmem:[%s274 + $0x1cf] sm:$0xfe] %vm818, %v751
    %877 = vst.msk [vmem:[%s274 + $0x1d7] sm:$0xff] %vm820, %v753
    %878 = vst.msk [vmem:[%s274 + $0x1df] sm:$0xfe] %vm818, %v755
    %879 = vst.msk [vmem:[%s274 + $0x1e7] sm:$0xff] %vm820, %v757
    %884 = vrot.lane.b32.xlu0 %v80, 12
    %v885 = vpop.permute.xlu0 %884
    %886 = vrot.lane.b32.xlu0 %v81, 12
    %v887 = vpop.permute.xlu0 %886
    %888 = vrot.lane.b32.xlu0 %v82, 12
    %v889 = vpop.permute.xlu0 %888
    %890 = vrot.lane.b32.xlu0 %v83, 12
    %v891 = vpop.permute.xlu0 %890
    %892 = vrot.lane.b32.xlu0 %v84, 12
    %v893 = vpop.permute.xlu0 %892
    %894 = vrot.lane.b32.xlu0 %v85, 12
    %v895 = vpop.permute.xlu0 %894
    %896 = vrot.lane.b32.xlu0 %v86, 12
    %v897 = vpop.permute.xlu0 %896
    %898 = vrot.lane.b32.xlu0 %v87, 12
    %v899 = vpop.permute.xlu0 %898
    %900 = vrot.lane.b32.xlu0 %v88, 12
    %v901 = vpop.permute.xlu0 %900
    %902 = vrot.lane.b32.xlu0 %v89, 12
    %v903 = vpop.permute.xlu0 %902
    %904 = vrot.lane.b32.xlu0 %v90, 12
    %v905 = vpop.permute.xlu0 %904
    %906 = vrot.lane.b32.xlu0 %v91, 12
    %v907 = vpop.permute.xlu0 %906
    %908 = vrot.lane.b32.xlu0 %v92, 12
    %v909 = vpop.permute.xlu0 %908
    %910 = vrot.lane.b32.xlu0 %v93, 12
    %v911 = vpop.permute.xlu0 %910
    %912 = vrot.lane.b32.xlu0 %v94, 12
    %v913 = vpop.permute.xlu0 %912
    %914 = vrot.lane.b32.xlu0 %v95, 12
    %v915 = vpop.permute.xlu0 %914
    %916 = vrot.lane.b32.xlu0 %v96, 12
    %v917 = vpop.permute.xlu0 %916
    %918 = vrot.lane.b32.xlu0 %v97, 12
    %v919 = vpop.permute.xlu0 %918
    %920 = vrot.lane.b32.xlu0 %v98, 12
    %v921 = vpop.permute.xlu0 %920
    %922 = vrot.lane.b32.xlu0 %v99, 12
    %v923 = vpop.permute.xlu0 %922
    %924 = vrot.lane.b32.xlu0 %v100, 12
    %v925 = vpop.permute.xlu0 %924
    %926 = vrot.lane.b32.xlu0 %v101, 12
    %v927 = vpop.permute.xlu0 %926
    %928 = vrot.lane.b32.xlu0 %v102, 12
    %v929 = vpop.permute.xlu0 %928
    %930 = vrot.lane.b32.xlu0 %v103, 12
    %v931 = vpop.permute.xlu0 %930
    %932 = vrot.lane.b32.xlu0 %v104, 12
    %v933 = vpop.permute.xlu0 %932
    %934 = vrot.lane.b32.xlu0 %v105, 12
    %v935 = vpop.permute.xlu0 %934
    %936 = vrot.lane.b32.xlu0 %v106, 12
    %v937 = vpop.permute.xlu0 %936
    %938 = vrot.lane.b32.xlu0 %v107, 12
    %v939 = vpop.permute.xlu0 %938
    %940 = vrot.lane.b32.xlu0 %v108, 12
    %v941 = vpop.permute.xlu0 %940
    %942 = vrot.lane.b32.xlu0 %v109, 12
    %v943 = vpop.permute.xlu0 %942
    %944 = vrot.lane.b32.xlu0 %v110, 12
    %v945 = vpop.permute.xlu0 %944
    %946 = vrot.lane.b32.xlu0 %v111, 12
    %v947 = vpop.permute.xlu0 %946
    %948 = vrot.lane.b32.xlu0 %v112, 12
    %v949 = vpop.permute.xlu0 %948
    %950 = vrot.lane.b32.xlu0 %v113, 12
    %v951 = vpop.permute.xlu0 %950
    %952 = vrot.lane.b32.xlu0 %v114, 12
    %v953 = vpop.permute.xlu0 %952
    %954 = vrot.lane.b32.xlu0 %v115, 12
    %v955 = vpop.permute.xlu0 %954
    %956 = vrot.lane.b32.xlu0 %v116, 12
    %v957 = vpop.permute.xlu0 %956
    %958 = vrot.lane.b32.xlu0 %v117, 12
    %v959 = vpop.permute.xlu0 %958
    %960 = vrot.lane.b32.xlu0 %v118, 12
    %v961 = vpop.permute.xlu0 %960
    %962 = vrot.lane.b32.xlu0 %v119, 12
    %v963 = vpop.permute.xlu0 %962
    %964 = vrot.lane.b32.xlu0 %v120, 12
    %v965 = vpop.permute.xlu0 %964
    %966 = vrot.lane.b32.xlu0 %v121, 12
    %v967 = vpop.permute.xlu0 %966
    %968 = vrot.lane.b32.xlu0 %v122, 12
    %v969 = vpop.permute.xlu0 %968
    %970 = vrot.lane.b32.xlu0 %v123, 12
    %v971 = vpop.permute.xlu0 %970
    %972 = vrot.lane.b32.xlu0 %v124, 12
    %v973 = vpop.permute.xlu0 %972
    %974 = vrot.lane.b32.xlu0 %v125, 12
    %v975 = vpop.permute.xlu0 %974
    %976 = vrot.lane.b32.xlu0 %v126, 12
    %v977 = vpop.permute.xlu0 %976
    %978 = vrot.lane.b32.xlu0 %v127, 12
    %v979 = vpop.permute.xlu0 %978
    %980 = vrot.lane.b32.xlu0 %v128, 12
    %v981 = vpop.permute.xlu0 %980
    %982 = vrot.lane.b32.xlu0 %v129, 12
    %v983 = vpop.permute.xlu0 %982
    %984 = vrot.lane.b32.xlu0 %v130, 12
    %v985 = vpop.permute.xlu0 %984
    %986 = vrot.lane.b32.xlu0 %v131, 12
    %v987 = vpop.permute.xlu0 %986
    %988 = vrot.lane.b32.xlu0 %v132, 12
    %v989 = vpop.permute.xlu0 %988
    %990 = vrot.lane.b32.xlu0 %v133, 12
    %v991 = vpop.permute.xlu0 %990
    %992 = vrot.lane.b32.xlu0 %v134, 12
    %v993 = vpop.permute.xlu0 %992
    %994 = vrot.lane.b32.xlu0 %v135, 12
    %v995 = vpop.permute.xlu0 %994
    %996 = vrot.lane.b32.xlu0 %v136, 12
    %v997 = vpop.permute.xlu0 %996
    %998 = vrot.lane.b32.xlu0 %v137, 12
    %v999 = vpop.permute.xlu0 %998
    %1000 = vrot.lane.b32.xlu0 %v138, 12
    %v1001 = vpop.permute.xlu0 %1000
    %1002 = vrot.lane.b32.xlu0 %v139, 12
    %v1003 = vpop.permute.xlu0 %1002
    %1004 = vrot.lane.b32.xlu0 %v140, 12
    %v1005 = vpop.permute.xlu0 %1004
    %1006 = vrot.lane.b32.xlu0 %v141, 12
    %v1007 = vpop.permute.xlu0 %1006
    %1008 = vrot.lane.b32.xlu0 %v142, 12
    %v1009 = vpop.permute.xlu0 %1008
    %1010 = vrot.lane.b32.xlu0 %v143, 12
    %v1011 = vpop.permute.xlu0 %1010
    %vm1076 = vcmask 130144
    %1077 = vst.msk [vmem:[#allocation2 + $0x1] sm:$0xff] %vm1076, %v885
    %vm1078 = vcmask 129120
    %1079 = vst.msk [vmem:[#allocation2 + $0x9] sm:$0x7f] %vm1078, %v887
    %1080 = vst.msk [vmem:[#allocation2 + $0x11] sm:$0xff] %vm1076, %v889
    %1081 = vst.msk [vmem:[#allocation2 + $0x19] sm:$0x7f] %vm1078, %v891
    %1082 = vst.msk [vmem:[#allocation2 + $0x21] sm:$0xff] %vm1076, %v893
    %1083 = vst.msk [vmem:[#allocation2 + $0x29] sm:$0x7f] %vm1078, %v895
    %1084 = vst.msk [vmem:[#allocation2 + $0x31] sm:$0xff] %vm1076, %v897
    %1085 = vst.msk [vmem:[#allocation2 + $0x39] sm:$0x7f] %vm1078, %v899
    %1086 = vst.msk [vmem:[#allocation2 + $0x41] sm:$0xff] %vm1076, %v901
    %1087 = vst.msk [vmem:[#allocation2 + $0x49] sm:$0x7f] %vm1078, %v903
    %1088 = vst.msk [vmem:[#allocation2 + $0x51] sm:$0xff] %vm1076, %v905
    %1089 = vst.msk [vmem:[#allocation2 + $0x59] sm:$0x7f] %vm1078, %v907
    %1090 = vst.msk [vmem:[#allocation2 + $0x61] sm:$0xff] %vm1076, %v909
    %1091 = vst.msk [vmem:[#allocation2 + $0x69] sm:$0x7f] %vm1078, %v911
    %1092 = vst.msk [vmem:[#allocation2 + $0x71] sm:$0xff] %vm1076, %v913
    %1093 = vst.msk [vmem:[#allocation2 + $0x79] sm:$0x7f] %vm1078, %v915
    %1094 = vst.msk [vmem:[#allocation2 + $0x81] sm:$0xff] %vm1076, %v917
    %1095 = vst.msk [vmem:[#allocation2 + $0x89] sm:$0x7f] %vm1078, %v919
    %1096 = vst.msk [vmem:[#allocation2 + $0x91] sm:$0xff] %vm1076, %v921
    %1097 = vst.msk [vmem:[#allocation2 + $0x99] sm:$0x7f] %vm1078, %v923
    %1098 = vst.msk [vmem:[#allocation2 + $0xa1] sm:$0xff] %vm1076, %v925
    %1099 = vst.msk [vmem:[#allocation2 + $0xa9] sm:$0x7f] %vm1078, %v927
    %1100 = vst.msk [vmem:[#allocation2 + $0xb1] sm:$0xff] %vm1076, %v929
    %1101 = vst.msk [vmem:[#allocation2 + $0xb9] sm:$0x7f] %vm1078, %v931
    %1102 = vst.msk [vmem:[#allocation2 + $0xc1] sm:$0xff] %vm1076, %v933
    %1103 = vst.msk [vmem:[#allocation2 + $0xc9] sm:$0x7f] %vm1078, %v935
    %1104 = vst.msk [vmem:[#allocation2 + $0xd1] sm:$0xff] %vm1076, %v937
    %1105 = vst.msk [vmem:[#allocation2 + $0xd9] sm:$0x7f] %vm1078, %v939
    %1106 = vst.msk [vmem:[#allocation2 + $0xe1] sm:$0xff] %vm1076, %v941
    %1107 = vst.msk [vmem:[#allocation2 + $0xe9] sm:$0x7f] %vm1078, %v943
    %1108 = vst.msk [vmem:[#allocation2 + $0xf1] sm:$0xff] %vm1076, %v945
    %1109 = vst.msk [vmem:[#allocation2 + $0xf9] sm:$0x7f] %vm1078, %v947
    %1110 = vst.msk [vmem:[#allocation2 + $0x101] sm:$0xff] %vm1076, %v949
    %1111 = vst.msk [vmem:[#allocation2 + $0x109] sm:$0x7f] %vm1078, %v951
    %1112 = vst.msk [vmem:[#allocation2 + $0x111] sm:$0xff] %vm1076, %v953
    %1113 = vst.msk [vmem:[#allocation2 + $0x119] sm:$0x7f] %vm1078, %v955
    %1114 = vst.msk [vmem:[#allocation2 + $0x121] sm:$0xff] %vm1076, %v957
    %1115 = vst.msk [vmem:[#allocation2 + $0x129] sm:$0x7f] %vm1078, %v959
    %1116 = vst.msk [vmem:[#allocation2 + $0x131] sm:$0xff] %vm1076, %v961
    %1117 = vst.msk [vmem:[#allocation2 + $0x139] sm:$0x7f] %vm1078, %v963
    %1118 = vst.msk [vmem:[#allocation2 + $0x141] sm:$0xff] %vm1076, %v965
    %1119 = vst.msk [vmem:[#allocation2 + $0x149] sm:$0x7f] %vm1078, %v967
    %1120 = vst.msk [vmem:[#allocation2 + $0x151] sm:$0xff] %vm1076, %v969
    %1121 = vst.msk [vmem:[#allocation2 + $0x159] sm:$0x7f] %vm1078, %v971
    %1122 = vst.msk [vmem:[#allocation2 + $0x161] sm:$0xff] %vm1076, %v973
    %1123 = vst.msk [vmem:[#allocation2 + $0x169] sm:$0x7f] %vm1078, %v975
    %1124 = vst.msk [vmem:[#allocation2 + $0x171] sm:$0xff] %vm1076, %v977
    %1125 = vst.msk [vmem:[#allocation2 + $0x179] sm:$0x7f] %vm1078, %v979
    %1126 = vst.msk [vmem:[#allocation2 + $0x181] sm:$0xff] %vm1076, %v981
    %1127 = vst.msk [vmem:[#allocation2 + $0x189] sm:$0x7f] %vm1078, %v983
    %1128 = vst.msk [vmem:[#allocation2 + $0x191] sm:$0xff] %vm1076, %v985
    %1129 = vst.msk [vmem:[#allocation2 + $0x199] sm:$0x7f] %vm1078, %v987
    %1130 = vst.msk [vmem:[#allocation2 + $0x1a1] sm:$0xff] %vm1076, %v989
    %1131 = vst.msk [vmem:[#allocation2 + $0x1a9] sm:$0x7f] %vm1078, %v991
    %1132 = vst.msk [vmem:[#allocation2 + $0x1b1] sm:$0xff] %vm1076, %v993
    %1133 = vst.msk [vmem:[#allocation2 + $0x1b9] sm:$0x7f] %vm1078, %v995
    %1134 = vst.msk [vmem:[#allocation2 + $0x1c1] sm:$0xff] %vm1076, %v997
    %1135 = vst.msk [vmem:[#allocation2 + $0x1c9] sm:$0x7f] %vm1078, %v999
    %1136 = vst.msk [vmem:[#allocation2 + $0x1d1] sm:$0xff] %vm1076, %v1001
    %1137 = vst.msk [vmem:[#allocation2 + $0x1d9] sm:$0x7f] %vm1078, %v1003
    %1138 = vst.msk [vmem:[#allocation2 + $0x1e1] sm:$0xff] %vm1076, %v1005
    %1139 = vst.msk [vmem:[#allocation2 + $0x1e9] sm:$0x7f] %vm1078, %v1007
    %1140 = vst.msk [vmem:[#allocation2 + $0x1f1] sm:$0xff] %vm1076, %v1009
    %1141 = vst.msk [vmem:[#allocation2 + $0x1f9] sm:$0x7f] %vm1078, %v1011
    %1142 = vrot.lane.b32.xlu0 %v80, 16
    %v1143 = vpop.permute.xlu0 %1142
    %1144 = vrot.lane.b32.xlu0 %v81, 16
    %v1145 = vpop.permute.xlu0 %1144
    %1146 = vrot.lane.b32.xlu0 %v82, 16
    %v1147 = vpop.permute.xlu0 %1146
    %1148 = vrot.lane.b32.xlu0 %v83, 16
    %v1149 = vpop.permute.xlu0 %1148
    %1150 = vrot.lane.b32.xlu0 %v84, 16
    %v1151 = vpop.permute.xlu0 %1150
    %1152 = vrot.lane.b32.xlu0 %v85, 16
    %v1153 = vpop.permute.xlu0 %1152
    %1154 = vrot.lane.b32.xlu0 %v86, 16
    %v1155 = vpop.permute.xlu0 %1154
    %1156 = vrot.lane.b32.xlu0 %v87, 16
    %v1157 = vpop.permute.xlu0 %1156
    %1158 = vrot.lane.b32.xlu0 %v88, 16
    %v1159 = vpop.permute.xlu0 %1158
    %1160 = vrot.lane.b32.xlu0 %v89, 16
    %v1161 = vpop.permute.xlu0 %1160
    %1162 = vrot.lane.b32.xlu0 %v90, 16
    %v1163 = vpop.permute.xlu0 %1162
    %1164 = vrot.lane.b32.xlu0 %v91, 16
    %v1165 = vpop.permute.xlu0 %1164
    %1166 = vrot.lane.b32.xlu0 %v92, 16
    %v1167 = vpop.permute.xlu0 %1166
    %1168 = vrot.lane.b32.xlu0 %v93, 16
    %v1169 = vpop.permute.xlu0 %1168
    %1170 = vrot.lane.b32.xlu0 %v94, 16
    %v1171 = vpop.permute.xlu0 %1170
    %1172 = vrot.lane.b32.xlu0 %v95, 16
    %v1173 = vpop.permute.xlu0 %1172
    %1174 = vrot.lane.b32.xlu0 %v96, 16
    %v1175 = vpop.permute.xlu0 %1174
    %1176 = vrot.lane.b32.xlu0 %v97, 16
    %v1177 = vpop.permute.xlu0 %1176
    %1178 = vrot.lane.b32.xlu0 %v98, 16
    %v1179 = vpop.permute.xlu0 %1178
    %1180 = vrot.lane.b32.xlu0 %v99, 16
    %v1181 = vpop.permute.xlu0 %1180
    %1182 = vrot.lane.b32.xlu0 %v100, 16
    %v1183 = vpop.permute.xlu0 %1182
    %1184 = vrot.lane.b32.xlu0 %v101, 16
    %v1185 = vpop.permute.xlu0 %1184
    %1186 = vrot.lane.b32.xlu0 %v102, 16
    %v1187 = vpop.permute.xlu0 %1186
    %1188 = vrot.lane.b32.xlu0 %v103, 16
    %v1189 = vpop.permute.xlu0 %1188
    %1190 = vrot.lane.b32.xlu0 %v104, 16
    %v1191 = vpop.permute.xlu0 %1190
    %1192 = vrot.lane.b32.xlu0 %v105, 16
    %v1193 = vpop.permute.xlu0 %1192
    %1194 = vrot.lane.b32.xlu0 %v106, 16
    %v1195 = vpop.permute.xlu0 %1194
    %1196 = vrot.lane.b32.xlu0 %v107, 16
    %v1197 = vpop.permute.xlu0 %1196
    %1198 = vrot.lane.b32.xlu0 %v108, 16
    %v1199 = vpop.permute.xlu0 %1198
    %1200 = vrot.lane.b32.xlu0 %v109, 16
    %v1201 = vpop.permute.xlu0 %1200
    %1202 = vrot.lane.b32.xlu0 %v110, 16
    %v1203 = vpop.permute.xlu0 %1202
    %1204 = vrot.lane.b32.xlu0 %v111, 16
    %v1205 = vpop.permute.xlu0 %1204
    %1206 = vrot.lane.b32.xlu0 %v112, 16
    %v1207 = vpop.permute.xlu0 %1206
    %1208 = vrot.lane.b32.xlu0 %v113, 16
    %v1209 = vpop.permute.xlu0 %1208
    %1210 = vrot.lane.b32.xlu0 %v114, 16
    %v1211 = vpop.permute.xlu0 %1210
    %1212 = vrot.lane.b32.xlu0 %v115, 16
    %v1213 = vpop.permute.xlu0 %1212
    %1214 = vrot.lane.b32.xlu0 %v116, 16
    %v1215 = vpop.permute.xlu0 %1214
    %1216 = vrot.lane.b32.xlu0 %v117, 16
    %v1217 = vpop.permute.xlu0 %1216
    %1218 = vrot.lane.b32.xlu0 %v118, 16
    %v1219 = vpop.permute.xlu0 %1218
    %1220 = vrot.lane.b32.xlu0 %v119, 16
    %v1221 = vpop.permute.xlu0 %1220
    %1222 = vrot.lane.b32.xlu0 %v120, 16
    %v1223 = vpop.permute.xlu0 %1222
    %1224 = vrot.lane.b32.xlu0 %v121, 16
    %v1225 = vpop.permute.xlu0 %1224
    %1226 = vrot.lane.b32.xlu0 %v122, 16
    %v1227 = vpop.permute.xlu0 %1226
    %1228 = vrot.lane.b32.xlu0 %v123, 16
    %v1229 = vpop.permute.xlu0 %1228
    %1230 = vrot.lane.b32.xlu0 %v124, 16
    %v1231 = vpop.permute.xlu0 %1230
    %1232 = vrot.lane.b32.xlu0 %v125, 16
    %v1233 = vpop.permute.xlu0 %1232
    %1234 = vrot.lane.b32.xlu0 %v126, 16
    %v1235 = vpop.permute.xlu0 %1234
    %1236 = vrot.lane.b32.xlu0 %v127, 16
    %v1237 = vpop.permute.xlu0 %1236
    %1238 = vrot.lane.b32.xlu0 %v128, 16
    %v1239 = vpop.permute.xlu0 %1238
    %1240 = vrot.lane.b32.xlu0 %v129, 16
    %v1241 = vpop.permute.xlu0 %1240
    %1242 = vrot.lane.b32.xlu0 %v130, 16
    %v1243 = vpop.permute.xlu0 %1242
    %1244 = vrot.lane.b32.xlu0 %v131, 16
    %v1245 = vpop.permute.xlu0 %1244
    %1246 = vrot.lane.b32.xlu0 %v132, 16
    %v1247 = vpop.permute.xlu0 %1246
    %1248 = vrot.lane.b32.xlu0 %v133, 16
    %v1249 = vpop.permute.xlu0 %1248
    %1250 = vrot.lane.b32.xlu0 %v134, 16
    %v1251 = vpop.permute.xlu0 %1250
    %1252 = vrot.lane.b32.xlu0 %v135, 16
    %v1253 = vpop.permute.xlu0 %1252
    %1254 = vrot.lane.b32.xlu0 %v136, 16
    %v1255 = vpop.permute.xlu0 %1254
    %1256 = vrot.lane.b32.xlu0 %v137, 16
    %v1257 = vpop.permute.xlu0 %1256
    %1258 = vrot.lane.b32.xlu0 %v138, 16
    %v1259 = vpop.permute.xlu0 %1258
    %1260 = vrot.lane.b32.xlu0 %v139, 16
    %v1261 = vpop.permute.xlu0 %1260
    %1262 = vrot.lane.b32.xlu0 %v140, 16
    %v1263 = vpop.permute.xlu0 %1262
    %1264 = vrot.lane.b32.xlu0 %v141, 16
    %v1265 = vpop.permute.xlu0 %1264
    %1266 = vrot.lane.b32.xlu0 %v142, 16
    %v1267 = vpop.permute.xlu0 %1266
    %1268 = vrot.lane.b32.xlu0 %v143, 16
    %v1269 = vpop.permute.xlu0 %1268
    %vm1334 = vcmask 162944
    %1335 = vst.msk [vmem:[#allocation2] sm:$0xff] %vm1334, %v1143
    %1336 = vst.msk [vmem:[#allocation2 + $0x8] sm:$0xff] %vm1334, %v1145
    %1337 = vst.msk [vmem:[#allocation2 + $0x10] sm:$0xff] %vm1334, %v1147
    %1338 = vst.msk [vmem:[#allocation2 + $0x18] sm:$0xff] %vm1334, %v1149
    %1339 = vst.msk [vmem:[#allocation2 + $0x20] sm:$0xff] %vm1334, %v1151
    %1340 = vst.msk [vmem:[#allocation2 + $0x28] sm:$0xff] %vm1334, %v1153
    %1341 = vst.msk [vmem:[#allocation2 + $0x30] sm:$0xff] %vm1334, %v1155
    %1342 = vst.msk [vmem:[#allocation2 + $0x38] sm:$0xff] %vm1334, %v1157
    %1343 = vst.msk [vmem:[#allocation2 + $0x40] sm:$0xff] %vm1334, %v1159
    %1344 = vst.msk [vmem:[#allocation2 + $0x48] sm:$0xff] %vm1334, %v1161
    %1345 = vst.msk [vmem:[#allocation2 + $0x50] sm:$0xff] %vm1334, %v1163
    %1346 = vst.msk [vmem:[#allocation2 + $0x58] sm:$0xff] %vm1334, %v1165
    %1347 = vst.msk [vmem:[#allocation2 + $0x60] sm:$0xff] %vm1334, %v1167
    %1348 = vst.msk [vmem:[#allocation2 + $0x68] sm:$0xff] %vm1334, %v1169
    %1349 = vst.msk [vmem:[#allocation2 + $0x70] sm:$0xff] %vm1334, %v1171
    %1350 = vst.msk [vmem:[#allocation2 + $0x78] sm:$0xff] %vm1334, %v1173
    %1351 = vst.msk [vmem:[#allocation2 + $0x80] sm:$0xff] %vm1334, %v1175
    %1352 = vst.msk [vmem:[#allocation2 + $0x88] sm:$0xff] %vm1334, %v1177
    %1353 = vst.msk [vmem:[#allocation2 + $0x90] sm:$0xff] %vm1334, %v1179
    %1354 = vst.msk [vmem:[#allocation2 + $0x98] sm:$0xff] %vm1334, %v1181
    %1355 = vst.msk [vmem:[#allocation2 + $0xa0] sm:$0xff] %vm1334, %v1183
    %1356 = vst.msk [vmem:[#allocation2 + $0xa8] sm:$0xff] %vm1334, %v1185
    %1357 = vst.msk [vmem:[#allocation2 + $0xb0] sm:$0xff] %vm1334, %v1187
    %1358 = vst.msk [vmem:[#allocation2 + $0xb8] sm:$0xff] %vm1334, %v1189
    %1359 = vst.msk [vmem:[#allocation2 + $0xc0] sm:$0xff] %vm1334, %v1191
    %1360 = vst.msk [vmem:[#allocation2 + $0xc8] sm:$0xff] %vm1334, %v1193
    %1361 = vst.msk [vmem:[#allocation2 + $0xd0] sm:$0xff] %vm1334, %v1195
    %1362 = vst.msk [vmem:[#allocation2 + $0xd8] sm:$0xff] %vm1334, %v1197
    %1363 = vst.msk [vmem:[#allocation2 + $0xe0] sm:$0xff] %vm1334, %v1199
    %1364 = vst.msk [vmem:[#allocation2 + $0xe8] sm:$0xff] %vm1334, %v1201
    %1365 = vst.msk [vmem:[#allocation2 + $0xf0] sm:$0xff] %vm1334, %v1203
    %1366 = vst.msk [vmem:[#allocation2 + $0xf8] sm:$0xff] %vm1334, %v1205
    %1367 = vst.msk [vmem:[#allocation2 + $0x100] sm:$0xff] %vm1334, %v1207
    %1368 = vst.msk [vmem:[#allocation2 + $0x108] sm:$0xff] %vm1334, %v1209
    %1369 = vst.msk [vmem:[#allocation2 + $0x110] sm:$0xff] %vm1334, %v1211
    %1370 = vst.msk [vmem:[#allocation2 + $0x118] sm:$0xff] %vm1334, %v1213
    %1371 = vst.msk [vmem:[#allocation2 + $0x120] sm:$0xff] %vm1334, %v1215
    %1372 = vst.msk [vmem:[#allocation2 + $0x128] sm:$0xff] %vm1334, %v1217
    %1373 = vst.msk [vmem:[#allocation2 + $0x130] sm:$0xff] %vm1334, %v1219
    %1374 = vst.msk [vmem:[#allocation2 + $0x138] sm:$0xff] %vm1334, %v1221
    %1375 = vst.msk [vmem:[#allocation2 + $0x140] sm:$0xff] %vm1334, %v1223
    %1376 = vst.msk [vmem:[#allocation2 + $0x148] sm:$0xff] %vm1334, %v1225
    %1377 = vst.msk [vmem:[#allocation2 + $0x150] sm:$0xff] %vm1334, %v1227
    %1378 = vst.msk [vmem:[#allocation2 + $0x158] sm:$0xff] %vm1334, %v1229
    %1379 = vst.msk [vmem:[#allocation2 + $0x160] sm:$0xff] %vm1334, %v1231
    %1380 = vst.msk [vmem:[#allocation2 + $0x168] sm:$0xff] %vm1334, %v1233
    %1381 = vst.msk [vmem:[#allocation2 + $0x170] sm:$0xff] %vm1334, %v1235
    %1382 = vst.msk [vmem:[#allocation2 + $0x178] sm:$0xff] %vm1334, %v1237
    %1383 = vst.msk [vmem:[#allocation2 + $0x180] sm:$0xff] %vm1334, %v1239
    %1384 = vst.msk [vmem:[#allocation2 + $0x188] sm:$0xff] %vm1334, %v1241
    %1385 = vst.msk [vmem:[#allocation2 + $0x190] sm:$0xff] %vm1334, %v1243
    %1386 = vst.msk [vmem:[#allocation2 + $0x198] sm:$0xff] %vm1334, %v1245
    %1387 = vst.msk [vmem:[#allocation2 + $0x1a0] sm:$0xff] %vm1334, %v1247
    %1388 = vst.msk [vmem:[#allocation2 + $0x1a8] sm:$0xff] %vm1334, %v1249
    %1389 = vst.msk [vmem:[#allocation2 + $0x1b0] sm:$0xff] %vm1334, %v1251
    %1390 = vst.msk [vmem:[#allocation2 + $0x1b8] sm:$0xff] %vm1334, %v1253
    %1391 = vst.msk [vmem:[#allocation2 + $0x1c0] sm:$0xff] %vm1334, %v1255
    %1392 = vst.msk [vmem:[#allocation2 + $0x1c8] sm:$0xff] %vm1334, %v1257
    %1393 = vst.msk [vmem:[#allocation2 + $0x1d0] sm:$0xff] %vm1334, %v1259
    %1394 = vst.msk [vmem:[#allocation2 + $0x1d8] sm:$0xff] %vm1334, %v1261
    %1395 = vst.msk [vmem:[#allocation2 + $0x1e0] sm:$0xff] %vm1334, %v1263
    %1396 = vst.msk [vmem:[#allocation2 + $0x1e8] sm:$0xff] %vm1334, %v1265
    %1397 = vst.msk [vmem:[#allocation2 + $0x1f0] sm:$0xff] %vm1334, %v1267
    %1398 = vst.msk [vmem:[#allocation2 + $0x1f8] sm:$0xff] %vm1334, %v1269
    %1399 = vrot.lane.b32.xlu0 %v80, 20
    %v1400 = vpop.permute.xlu0 %1399
    %1401 = vrot.lane.b32.xlu0 %v81, 20
    %v1402 = vpop.permute.xlu0 %1401
    %1403 = vrot.lane.b32.xlu0 %v82, 20
    %v1404 = vpop.permute.xlu0 %1403
    %1405 = vrot.lane.b32.xlu0 %v83, 20
    %v1406 = vpop.permute.xlu0 %1405
    %1407 = vrot.lane.b32.xlu0 %v84, 20
    %v1408 = vpop.permute.xlu0 %1407
    %1409 = vrot.lane.b32.xlu0 %v85, 20
    %v1410 = vpop.permute.xlu0 %1409
    %1411 = vrot.lane.b32.xlu0 %v86, 20
    %v1412 = vpop.permute.xlu0 %1411
    %1413 = vrot.lane.b32.xlu0 %v87, 20
    %v1414 = vpop.permute.xlu0 %1413
    %1415 = vrot.lane.b32.xlu0 %v88, 20
    %v1416 = vpop.permute.xlu0 %1415
    %1417 = vrot.lane.b32.xlu0 %v89, 20
    %v1418 = vpop.permute.xlu0 %1417
    %1419 = vrot.lane.b32.xlu0 %v90, 20
    %v1420 = vpop.permute.xlu0 %1419
    %1421 = vrot.lane.b32.xlu0 %v91, 20
    %v1422 = vpop.permute.xlu0 %1421
    %1423 = vrot.lane.b32.xlu0 %v92, 20
    %v1424 = vpop.permute.xlu0 %1423
    %1425 = vrot.lane.b32.xlu0 %v93, 20
    %v1426 = vpop.permute.xlu0 %1425
    %1427 = vrot.lane.b32.xlu0 %v94, 20
    %v1428 = vpop.permute.xlu0 %1427
    %1429 = vrot.lane.b32.xlu0 %v95, 20
    %v1430 = vpop.permute.xlu0 %1429
    %1431 = vrot.lane.b32.xlu0 %v96, 20
    %v1432 = vpop.permute.xlu0 %1431
    %1433 = vrot.lane.b32.xlu0 %v97, 20
    %v1434 = vpop.permute.xlu0 %1433
    %1435 = vrot.lane.b32.xlu0 %v98, 20
    %v1436 = vpop.permute.xlu0 %1435
    %1437 = vrot.lane.b32.xlu0 %v99, 20
    %v1438 = vpop.permute.xlu0 %1437
    %1439 = vrot.lane.b32.xlu0 %v100, 20
    %v1440 = vpop.permute.xlu0 %1439
    %1441 = vrot.lane.b32.xlu0 %v101, 20
    %v1442 = vpop.permute.xlu0 %1441
    %1443 = vrot.lane.b32.xlu0 %v102, 20
    %v1444 = vpop.permute.xlu0 %1443
    %1445 = vrot.lane.b32.xlu0 %v103, 20
    %v1446 = vpop.permute.xlu0 %1445
    %1447 = vrot.lane.b32.xlu0 %v104, 20
    %v1448 = vpop.permute.xlu0 %1447
    %1449 = vrot.lane.b32.xlu0 %v105, 20
    %v1450 = vpop.permute.xlu0 %1449
    %1451 = vrot.lane.b32.xlu0 %v106, 20
    %v1452 = vpop.permute.xlu0 %1451
    %1453 = vrot.lane.b32.xlu0 %v107, 20
    %v1454 = vpop.permute.xlu0 %1453
    %1455 = vrot.lane.b32.xlu0 %v108, 20
    %v1456 = vpop.permute.xlu0 %1455
    %1457 = vrot.lane.b32.xlu0 %v109, 20
    %v1458 = vpop.permute.xlu0 %1457
    %1459 = vrot.lane.b32.xlu0 %v110, 20
    %v1460 = vpop.permute.xlu0 %1459
    %1461 = vrot.lane.b32.xlu0 %v111, 20
    %v1462 = vpop.permute.xlu0 %1461
    %1463 = vrot.lane.b32.xlu0 %v112, 20
    %v1464 = vpop.permute.xlu0 %1463
    %1465 = vrot.lane.b32.xlu0 %v113, 20
    %v1466 = vpop.permute.xlu0 %1465
    %1467 = vrot.lane.b32.xlu0 %v114, 20
    %v1468 = vpop.permute.xlu0 %1467
    %1469 = vrot.lane.b32.xlu0 %v115, 20
    %v1470 = vpop.permute.xlu0 %1469
    %1471 = vrot.lane.b32.xlu0 %v116, 20
    %v1472 = vpop.permute.xlu0 %1471
    %1473 = vrot.lane.b32.xlu0 %v117, 20
    %v1474 = vpop.permute.xlu0 %1473
    %1475 = vrot.lane.b32.xlu0 %v118, 20
    %v1476 = vpop.permute.xlu0 %1475
    %1477 = vrot.lane.b32.xlu0 %v119, 20
    %v1478 = vpop.permute.xlu0 %1477
    %1479 = vrot.lane.b32.xlu0 %v120, 20
    %v1480 = vpop.permute.xlu0 %1479
    %1481 = vrot.lane.b32.xlu0 %v121, 20
    %v1482 = vpop.permute.xlu0 %1481
    %1483 = vrot.lane.b32.xlu0 %v122, 20
    %v1484 = vpop.permute.xlu0 %1483
    %1485 = vrot.lane.b32.xlu0 %v123, 20
    %v1486 = vpop.permute.xlu0 %1485
    %1487 = vrot.lane.b32.xlu0 %v124, 20
    %v1488 = vpop.permute.xlu0 %1487
    %1489 = vrot.lane.b32.xlu0 %v125, 20
    %v1490 = vpop.permute.xlu0 %1489
    %1491 = vrot.lane.b32.xlu0 %v126, 20
    %v1492 = vpop.permute.xlu0 %1491
    %1493 = vrot.lane.b32.xlu0 %v127, 20
    %v1494 = vpop.permute.xlu0 %1493
    %1495 = vrot.lane.b32.xlu0 %v128, 20
    %v1496 = vpop.permute.xlu0 %1495
    %1497 = vrot.lane.b32.xlu0 %v129, 20
    %v1498 = vpop.permute.xlu0 %1497
    %1499 = vrot.lane.b32.xlu0 %v130, 20
    %v1500 = vpop.permute.xlu0 %1499
    %1501 = vrot.lane.b32.xlu0 %v131, 20
    %v1502 = vpop.permute.xlu0 %1501
    %1503 = vrot.lane.b32.xlu0 %v132, 20
    %v1504 = vpop.permute.xlu0 %1503
    %1505 = vrot.lane.b32.xlu0 %v133, 20
    %v1506 = vpop.permute.xlu0 %1505
    %1507 = vrot.lane.b32.xlu0 %v134, 20
    %v1508 = vpop.permute.xlu0 %1507
    %1509 = vrot.lane.b32.xlu0 %v135, 20
    %v1510 = vpop.permute.xlu0 %1509
    %1511 = vrot.lane.b32.xlu0 %v136, 20
    %v1512 = vpop.permute.xlu0 %1511
    %1513 = vrot.lane.b32.xlu0 %v137, 20
    %v1514 = vpop.permute.xlu0 %1513
    %1515 = vrot.lane.b32.xlu0 %v138, 20
    %v1516 = vpop.permute.xlu0 %1515
    %1517 = vrot.lane.b32.xlu0 %v139, 20
    %v1518 = vpop.permute.xlu0 %1517
    %1519 = vrot.lane.b32.xlu0 %v140, 20
    %v1520 = vpop.permute.xlu0 %1519
    %1521 = vrot.lane.b32.xlu0 %v141, 20
    %v1522 = vpop.permute.xlu0 %1521
    %1523 = vrot.lane.b32.xlu0 %v142, 20
    %v1524 = vpop.permute.xlu0 %1523
    %1525 = vrot.lane.b32.xlu0 %v143, 20
    %v1526 = vpop.permute.xlu0 %1525
    %vm1591 = vcmask 195745
    %1592 = vst.msk [vmem:[#allocation2 - $0x1] sm:$0xfe] %vm1591, %v1400
    %vm1593 = vcmask 195744
    %1594 = vst.msk [vmem:[#allocation2 + $0x7] sm:$0xff] %vm1593, %v1402
    %1595 = vst.msk [vmem:[#allocation2 + $0xf] sm:$0xfe] %vm1591, %v1404
    %1596 = vst.msk [vmem:[#allocation2 + $0x17] sm:$0xff] %vm1593, %v1406
    %1597 = vst.msk [vmem:[#allocation2 + $0x1f] sm:$0xfe] %vm1591, %v1408
    %1598 = vst.msk [vmem:[#allocation2 + $0x27] sm:$0xff] %vm1593, %v1410
    %1599 = vst.msk [vmem:[#allocation2 + $0x2f] sm:$0xfe] %vm1591, %v1412
    %1600 = vst.msk [vmem:[#allocation2 + $0x37] sm:$0xff] %vm1593, %v1414
    %1601 = vst.msk [vmem:[#allocation2 + $0x3f] sm:$0xfe] %vm1591, %v1416
    %1602 = vst.msk [vmem:[#allocation2 + $0x47] sm:$0xff] %vm1593, %v1418
    %1603 = vst.msk [vmem:[#allocation2 + $0x4f] sm:$0xfe] %vm1591, %v1420
    %1604 = vst.msk [vmem:[#allocation2 + $0x57] sm:$0xff] %vm1593, %v1422
    %1605 = vst.msk [vmem:[#allocation2 + $0x5f] sm:$0xfe] %vm1591, %v1424
    %1606 = vst.msk [vmem:[#allocation2 + $0x67] sm:$0xff] %vm1593, %v1426
    %1607 = vst.msk [vmem:[#allocation2 + $0x6f] sm:$0xfe] %vm1591, %v1428
    %1608 = vst.msk [vmem:[#allocation2 + $0x77] sm:$0xff] %vm1593, %v1430
    %1609 = vst.msk [vmem:[#allocation2 + $0x7f] sm:$0xfe] %vm1591, %v1432
    %1610 = vst.msk [vmem:[#allocation2 + $0x87] sm:$0xff] %vm1593, %v1434
    %1611 = vst.msk [vmem:[#allocation2 + $0x8f] sm:$0xfe] %vm1591, %v1436
    %1612 = vst.msk [vmem:[#allocation2 + $0x97] sm:$0xff] %vm1593, %v1438
    %1613 = vst.msk [vmem:[#allocation2 + $0x9f] sm:$0xfe] %vm1591, %v1440
    %1614 = vst.msk [vmem:[#allocation2 + $0xa7] sm:$0xff] %vm1593, %v1442
    %1615 = vst.msk [vmem:[#allocation2 + $0xaf] sm:$0xfe] %vm1591, %v1444
    %1616 = vst.msk [vmem:[#allocation2 + $0xb7] sm:$0xff] %vm1593, %v1446
    %1617 = vst.msk [vmem:[#allocation2 + $0xbf] sm:$0xfe] %vm1591, %v1448
    %1618 = vst.msk [vmem:[#allocation2 + $0xc7] sm:$0xff] %vm1593, %v1450
    %1619 = vst.msk [vmem:[#allocation2 + $0xcf] sm:$0xfe] %vm1591, %v1452
    %1620 = vst.msk [vmem:[#allocation2 + $0xd7] sm:$0xff] %vm1593, %v1454
    %1621 = vst.msk [vmem:[#allocation2 + $0xdf] sm:$0xfe] %vm1591, %v1456
    %1622 = vst.msk [vmem:[#allocation2 + $0xe7] sm:$0xff] %vm1593, %v1458
    %1623 = vst.msk [vmem:[#allocation2 + $0xef] sm:$0xfe] %vm1591, %v1460
    %1624 = vst.msk [vmem:[#allocation2 + $0xf7] sm:$0xff] %vm1593, %v1462
    %1625 = vst.msk [vmem:[#allocation2 + $0xff] sm:$0xfe] %vm1591, %v1464
    %1626 = vst.msk [vmem:[#allocation2 + $0x107] sm:$0xff] %vm1593, %v1466
    %1627 = vst.msk [vmem:[#allocation2 + $0x10f] sm:$0xfe] %vm1591, %v1468
    %1628 = vst.msk [vmem:[#allocation2 + $0x117] sm:$0xff] %vm1593, %v1470
    %1629 = vst.msk [vmem:[#allocation2 + $0x11f] sm:$0xfe] %vm1591, %v1472
    %1630 = vst.msk [vmem:[#allocation2 + $0x127] sm:$0xff] %vm1593, %v1474
    %1631 = vst.msk [vmem:[#allocation2 + $0x12f] sm:$0xfe] %vm1591, %v1476
    %1632 = vst.msk [vmem:[#allocation2 + $0x137] sm:$0xff] %vm1593, %v1478
    %1633 = vst.msk [vmem:[#allocation2 + $0x13f] sm:$0xfe] %vm1591, %v1480
    %1634 = vst.msk [vmem:[#allocation2 + $0x147] sm:$0xff] %vm1593, %v1482
    %1635 = vst.msk [vmem:[#allocation2 + $0x14f] sm:$0xfe] %vm1591, %v1484
    %1636 = vst.msk [vmem:[#allocation2 + $0x157] sm:$0xff] %vm1593, %v1486
    %1637 = vst.msk [vmem:[#allocation2 + $0x15f] sm:$0xfe] %vm1591, %v1488
    %1638 = vst.msk [vmem:[#allocation2 + $0x167] sm:$0xff] %vm1593, %v1490
    %1639 = vst.msk [vmem:[#allocation2 + $0x16f] sm:$0xfe] %vm1591, %v1492
    %1640 = vst.msk [vmem:[#allocation2 + $0x177] sm:$0xff] %vm1593, %v1494
    %1641 = vst.msk [vmem:[#allocation2 + $0x17f] sm:$0xfe] %vm1591, %v1496
    %1642 = vst.msk [vmem:[#allocation2 + $0x187] sm:$0xff] %vm1593, %v1498
    %1643 = vst.msk [vmem:[#allocation2 + $0x18f] sm:$0xfe] %vm1591, %v1500
    %1644 = vst.msk [vmem:[#allocation2 + $0x197] sm:$0xff] %vm1593, %v1502
    %1645 = vst.msk [vmem:[#allocation2 + $0x19f] sm:$0xfe] %vm1591, %v1504
    %1646 = vst.msk [vmem:[#allocation2 + $0x1a7] sm:$0xff] %vm1593, %v1506
    %1647 = vst.msk [vmem:[#allocation2 + $0x1af] sm:$0xfe] %vm1591, %v1508
    %1648 = vst.msk [vmem:[#allocation2 + $0x1b7] sm:$0xff] %vm1593, %v1510
    %1649 = vst.msk [vmem:[#allocation2 + $0x1bf] sm:$0xfe] %vm1591, %v1512
    %1650 = vst.msk [vmem:[#allocation2 + $0x1c7] sm:$0xff] %vm1593, %v1514
    %1651 = vst.msk [vmem:[#allocation2 + $0x1cf] sm:$0xfe] %vm1591, %v1516
    %1652 = vst.msk [vmem:[#allocation2 + $0x1d7] sm:$0xff] %vm1593, %v1518
    %1653 = vst.msk [vmem:[#allocation2 + $0x1df] sm:$0xfe] %vm1591, %v1520
    %1654 = vst.msk [vmem:[#allocation2 + $0x1e7] sm:$0xff] %vm1593, %v1522
    %1655 = vst.msk [vmem:[#allocation2 + $0x1ef] sm:$0xfe] %vm1591, %v1524
    %1656 = vst.msk [vmem:[#allocation2 + $0x1f7] sm:$0xff] %vm1593, %v1526
    %1657 = vrot.lane.b32.xlu0 %v82, 24
    %v1658 = vpop.permute.xlu0 %1657
    %1659 = vrot.lane.b32.xlu0 %v83, 24
    %v1660 = vpop.permute.xlu0 %1659
    %1661 = vrot.lane.b32.xlu0 %v84, 24
    %v1662 = vpop.permute.xlu0 %1661
    %1663 = vrot.lane.b32.xlu0 %v85, 24
    %v1664 = vpop.permute.xlu0 %1663
    %1665 = vrot.lane.b32.xlu0 %v86, 24
    %v1666 = vpop.permute.xlu0 %1665
    %1667 = vrot.lane.b32.xlu0 %v87, 24
    %v1668 = vpop.permute.xlu0 %1667
    %1669 = vrot.lane.b32.xlu0 %v88, 24
    %v1670 = vpop.permute.xlu0 %1669
    %1671 = vrot.lane.b32.xlu0 %v89, 24
    %v1672 = vpop.permute.xlu0 %1671
    %1673 = vrot.lane.b32.xlu0 %v90, 24
    %v1674 = vpop.permute.xlu0 %1673
    %1675 = vrot.lane.b32.xlu0 %v91, 24
    %v1676 = vpop.permute.xlu0 %1675
    %1677 = vrot.lane.b32.xlu0 %v92, 24
    %v1678 = vpop.permute.xlu0 %1677
    %1679 = vrot.lane.b32.xlu0 %v93, 24
    %v1680 = vpop.permute.xlu0 %1679
    %1681 = vrot.lane.b32.xlu0 %v94, 24
    %v1682 = vpop.permute.xlu0 %1681
    %1683 = vrot.lane.b32.xlu0 %v95, 24
    %v1684 = vpop.permute.xlu0 %1683
    %1685 = vrot.lane.b32.xlu0 %v96, 24
    %v1686 = vpop.permute.xlu0 %1685
    %1687 = vrot.lane.b32.xlu0 %v97, 24
    %v1688 = vpop.permute.xlu0 %1687
    %1689 = vrot.lane.b32.xlu0 %v98, 24
    %v1690 = vpop.permute.xlu0 %1689
    %1691 = vrot.lane.b32.xlu0 %v99, 24
    %v1692 = vpop.permute.xlu0 %1691
    %1693 = vrot.lane.b32.xlu0 %v100, 24
    %v1694 = vpop.permute.xlu0 %1693
    %1695 = vrot.lane.b32.xlu0 %v101, 24
    %v1696 = vpop.permute.xlu0 %1695
    %1697 = vrot.lane.b32.xlu0 %v102, 24
    %v1698 = vpop.permute.xlu0 %1697
    %1699 = vrot.lane.b32.xlu0 %v103, 24
    %v1700 = vpop.permute.xlu0 %1699
    %1701 = vrot.lane.b32.xlu0 %v104, 24
    %v1702 = vpop.permute.xlu0 %1701
    %1703 = vrot.lane.b32.xlu0 %v105, 24
    %v1704 = vpop.permute.xlu0 %1703
    %1705 = vrot.lane.b32.xlu0 %v106, 24
    %v1706 = vpop.permute.xlu0 %1705
    %1707 = vrot.lane.b32.xlu0 %v107, 24
    %v1708 = vpop.permute.xlu0 %1707
    %1709 = vrot.lane.b32.xlu0 %v108, 24
    %v1710 = vpop.permute.xlu0 %1709
    %1711 = vrot.lane.b32.xlu0 %v109, 24
    %v1712 = vpop.permute.xlu0 %1711
    %1713 = vrot.lane.b32.xlu0 %v110, 24
    %v1714 = vpop.permute.xlu0 %1713
    %1715 = vrot.lane.b32.xlu0 %v111, 24
    %v1716 = vpop.permute.xlu0 %1715
    %1717 = vrot.lane.b32.xlu0 %v114, 24
    %v1718 = vpop.permute.xlu0 %1717
    %1719 = vrot.lane.b32.xlu0 %v115, 24
    %v1720 = vpop.permute.xlu0 %1719
    %1721 = vrot.lane.b32.xlu0 %v116, 24
    %v1722 = vpop.permute.xlu0 %1721
    %1723 = vrot.lane.b32.xlu0 %v117, 24
    %v1724 = vpop.permute.xlu0 %1723
    %1725 = vrot.lane.b32.xlu0 %v118, 24
    %v1726 = vpop.permute.xlu0 %1725
    %1727 = vrot.lane.b32.xlu0 %v119, 24
    %v1728 = vpop.permute.xlu0 %1727
    %1729 = vrot.lane.b32.xlu0 %v120, 24
    %v1730 = vpop.permute.xlu0 %1729
    %1731 = vrot.lane.b32.xlu0 %v121, 24
    %v1732 = vpop.permute.xlu0 %1731
    %1733 = vrot.lane.b32.xlu0 %v122, 24
    %v1734 = vpop.permute.xlu0 %1733
    %1735 = vrot.lane.b32.xlu0 %v123, 24
    %v1736 = vpop.permute.xlu0 %1735
    %1737 = vrot.lane.b32.xlu0 %v124, 24
    %v1738 = vpop.permute.xlu0 %1737
    %1739 = vrot.lane.b32.xlu0 %v125, 24
    %v1740 = vpop.permute.xlu0 %1739
    %1741 = vrot.lane.b32.xlu0 %v126, 24
    %v1742 = vpop.permute.xlu0 %1741
    %1743 = vrot.lane.b32.xlu0 %v127, 24
    %v1744 = vpop.permute.xlu0 %1743
    %1745 = vrot.lane.b32.xlu0 %v128, 24
    %v1746 = vpop.permute.xlu0 %1745
    %1747 = vrot.lane.b32.xlu0 %v129, 24
    %v1748 = vpop.permute.xlu0 %1747
    %1749 = vrot.lane.b32.xlu0 %v130, 24
    %v1750 = vpop.permute.xlu0 %1749
    %1751 = vrot.lane.b32.xlu0 %v131, 24
    %v1752 = vpop.permute.xlu0 %1751
    %1753 = vrot.lane.b32.xlu0 %v132, 24
    %v1754 = vpop.permute.xlu0 %1753
    %1755 = vrot.lane.b32.xlu0 %v133, 24
    %v1756 = vpop.permute.xlu0 %1755
    %1757 = vrot.lane.b32.xlu0 %v134, 24
    %v1758 = vpop.permute.xlu0 %1757
    %1759 = vrot.lane.b32.xlu0 %v135, 24
    %v1760 = vpop.permute.xlu0 %1759
    %1761 = vrot.lane.b32.xlu0 %v136, 24
    %v1762 = vpop.permute.xlu0 %1761
    %1763 = vrot.lane.b32.xlu0 %v137, 24
    %v1764 = vpop.permute.xlu0 %1763
    %1765 = vrot.lane.b32.xlu0 %v138, 24
    %v1766 = vpop.permute.xlu0 %1765
    %1767 = vrot.lane.b32.xlu0 %v139, 24
    %v1768 = vpop.permute.xlu0 %1767
    %1769 = vrot.lane.b32.xlu0 %v140, 24
    %v1770 = vpop.permute.xlu0 %1769
    %1771 = vrot.lane.b32.xlu0 %v141, 24
    %v1772 = vpop.permute.xlu0 %1771
    %1773 = vrot.lane.b32.xlu0 %v142, 24
    %v1774 = vpop.permute.xlu0 %1773
    %1775 = vrot.lane.b32.xlu0 %v143, 24
    %v1776 = vpop.permute.xlu0 %1775
    %vm1837 = vcmask 228544
    %1838 = vst.msk [vmem:[#allocation2 + $0x1] sm:$0xff] %vm1837, %v1658
    %vm1839 = vcmask 227520
    %1840 = vst.msk [vmem:[#allocation2 + $0x9] sm:$0x7f] %vm1839, %v1660
    %1841 = vst.msk [vmem:[#allocation2 + $0x11] sm:$0xff] %vm1837, %v1662
    %1842 = vst.msk [vmem:[#allocation2 + $0x19] sm:$0x7f] %vm1839, %v1664
    %1843 = vst.msk [vmem:[#allocation2 + $0x21] sm:$0xff] %vm1837, %v1666
    %1844 = vst.msk [vmem:[#allocation2 + $0x29] sm:$0x7f] %vm1839, %v1668
    %1845 = vst.msk [vmem:[#allocation2 + $0x31] sm:$0xff] %vm1837, %v1670
    %1846 = vst.msk [vmem:[#allocation2 + $0x39] sm:$0x7f] %vm1839, %v1672
    %1847 = vst.msk [vmem:[#allocation2 + $0x41] sm:$0xff] %vm1837, %v1674
    %1848 = vst.msk [vmem:[#allocation2 + $0x49] sm:$0x7f] %vm1839, %v1676
    %1849 = vst.msk [vmem:[#allocation2 + $0x51] sm:$0xff] %vm1837, %v1678
    %1850 = vst.msk [vmem:[#allocation2 + $0x59] sm:$0x7f] %vm1839, %v1680
    %1851 = vst.msk [vmem:[#allocation2 + $0x61] sm:$0xff] %vm1837, %v1682
    %1852 = vst.msk [vmem:[#allocation2 + $0x69] sm:$0x7f] %vm1839, %v1684
    %1853 = vst.msk [vmem:[#allocation2 + $0x71] sm:$0xff] %vm1837, %v1686
    %1854 = vst.msk [vmem:[#allocation2 + $0x79] sm:$0x7f] %vm1839, %v1688
    %1855 = vst.msk [vmem:[#allocation2 + $0x81] sm:$0xff] %vm1837, %v1690
    %1856 = vst.msk [vmem:[#allocation2 + $0x89] sm:$0x7f] %vm1839, %v1692
    %1857 = vst.msk [vmem:[#allocation2 + $0x91] sm:$0xff] %vm1837, %v1694
    %1858 = vst.msk [vmem:[#allocation2 + $0x99] sm:$0x7f] %vm1839, %v1696
    %1859 = vst.msk [vmem:[#allocation2 + $0xa1] sm:$0xff] %vm1837, %v1698
    %1860 = vst.msk [vmem:[#allocation2 + $0xa9] sm:$0x7f] %vm1839, %v1700
    %1861 = vst.msk [vmem:[#allocation2 + $0xb1] sm:$0xff] %vm1837, %v1702
    %1862 = vst.msk [vmem:[#allocation2 + $0xb9] sm:$0x7f] %vm1839, %v1704
    %1863 = vst.msk [vmem:[#allocation2 + $0xc1] sm:$0xff] %vm1837, %v1706
    %1864 = vst.msk [vmem:[#allocation2 + $0xc9] sm:$0x7f] %vm1839, %v1708
    %1865 = vst.msk [vmem:[#allocation2 + $0xd1] sm:$0xff] %vm1837, %v1710
    %1866 = vst.msk [vmem:[#allocation2 + $0xd9] sm:$0x7f] %vm1839, %v1712
    %1867 = vst.msk [vmem:[#allocation2 + $0xe1] sm:$0xff] %vm1837, %v1714
    %1868 = vst.msk [vmem:[#allocation2 + $0xe9] sm:$0x7f] %vm1839, %v1716
    %1869 = vst.msk [vmem:[#allocation2 + $0x101] sm:$0xff] %vm1837, %v1718
    %1870 = vst.msk [vmem:[#allocation2 + $0x109] sm:$0x7f] %vm1839, %v1720
    %1871 = vst.msk [vmem:[#allocation2 + $0x111] sm:$0xff] %vm1837, %v1722
    %1872 = vst.msk [vmem:[#allocation2 + $0x119] sm:$0x7f] %vm1839, %v1724
    %1873 = vst.msk [vmem:[#allocation2 + $0x121] sm:$0xff] %vm1837, %v1726
    %1874 = vst.msk [vmem:[#allocation2 + $0x129] sm:$0x7f] %vm1839, %v1728
    %1875 = vst.msk [vmem:[#allocation2 + $0x131] sm:$0xff] %vm1837, %v1730
    %1876 = vst.msk [vmem:[#allocation2 + $0x139] sm:$0x7f] %vm1839, %v1732
    %1877 = vst.msk [vmem:[#allocation2 + $0x141] sm:$0xff] %vm1837, %v1734
    %1878 = vst.msk [vmem:[#allocation2 + $0x149] sm:$0x7f] %vm1839, %v1736
    %1879 = vst.msk [vmem:[#allocation2 + $0x151] sm:$0xff] %vm1837, %v1738
    %1880 = vst.msk [vmem:[#allocation2 + $0x159] sm:$0x7f] %vm1839, %v1740
    %1881 = vst.msk [vmem:[#allocation2 + $0x161] sm:$0xff] %vm1837, %v1742
    %1882 = vst.msk [vmem:[#allocation2 + $0x169] sm:$0x7f] %vm1839, %v1744
    %1883 = vst.msk [vmem:[#allocation2 + $0x171] sm:$0xff] %vm1837, %v1746
    %1884 = vst.msk [vmem:[#allocation2 + $0x179] sm:$0x7f] %vm1839, %v1748
    %1885 = vst.msk [vmem:[#allocation2 + $0x181] sm:$0xff] %vm1837, %v1750
    %1886 = vst.msk [vmem:[#allocation2 + $0x189] sm:$0x7f] %vm1839, %v1752
    %1887 = vst.msk [vmem:[#allocation2 + $0x191] sm:$0xff] %vm1837, %v1754
    %1888 = vst.msk [vmem:[#allocation2 + $0x199] sm:$0x7f] %vm1839, %v1756
    %1889 = vst.msk [vmem:[#allocation2 + $0x1a1] sm:$0xff] %vm1837, %v1758
    %1890 = vst.msk [vmem:[#allocation2 + $0x1a9] sm:$0x7f] %vm1839, %v1760
    %1891 = vst.msk [vmem:[#allocation2 + $0x1b1] sm:$0xff] %vm1837, %v1762
    %1892 = vst.msk [vmem:[#allocation2 + $0x1b9] sm:$0x7f] %vm1839, %v1764
    %1893 = vst.msk [vmem:[#allocation2 + $0x1c1] sm:$0xff] %vm1837, %v1766
    %1894 = vst.msk [vmem:[#allocation2 + $0x1c9] sm:$0x7f] %vm1839, %v1768
    %1895 = vst.msk [vmem:[#allocation2 + $0x1d1] sm:$0xff] %vm1837, %v1770
    %1896 = vst.msk [vmem:[#allocation2 + $0x1d9] sm:$0x7f] %vm1839, %v1772
    %1897 = vst.msk [vmem:[#allocation2 + $0x1e1] sm:$0xff] %vm1837, %v1774
    %1898 = vst.msk [vmem:[#allocation2 + $0x1e9] sm:$0x7f] %vm1839, %v1776
    %1899 = vrot.lane.b32.xlu0 %v82, 28
    %v1900 = vpop.permute.xlu0 %1899
    %1901 = vrot.lane.b32.xlu0 %v83, 28
    %v1902 = vpop.permute.xlu0 %1901
    %1903 = vrot.lane.b32.xlu0 %v84, 28
    %v1904 = vpop.permute.xlu0 %1903
    %1905 = vrot.lane.b32.xlu0 %v85, 28
    %v1906 = vpop.permute.xlu0 %1905
    %1907 = vrot.lane.b32.xlu0 %v86, 28
    %v1908 = vpop.permute.xlu0 %1907
    %1909 = vrot.lane.b32.xlu0 %v87, 28
    %v1910 = vpop.permute.xlu0 %1909
    %1911 = vrot.lane.b32.xlu0 %v88, 28
    %v1912 = vpop.permute.xlu0 %1911
    %1913 = vrot.lane.b32.xlu0 %v89, 28
    %v1914 = vpop.permute.xlu0 %1913
    %1915 = vrot.lane.b32.xlu0 %v90, 28
    %v1916 = vpop.permute.xlu0 %1915
    %1917 = vrot.lane.b32.xlu0 %v91, 28
    %v1918 = vpop.permute.xlu0 %1917
    %1919 = vrot.lane.b32.xlu0 %v92, 28
    %v1920 = vpop.permute.xlu0 %1919
    %1921 = vrot.lane.b32.xlu0 %v93, 28
    %v1922 = vpop.permute.xlu0 %1921
    %1923 = vrot.lane.b32.xlu0 %v94, 28
    %v1924 = vpop.permute.xlu0 %1923
    %1925 = vrot.lane.b32.xlu0 %v95, 28
    %v1926 = vpop.permute.xlu0 %1925
    %1927 = vrot.lane.b32.xlu0 %v96, 28
    %v1928 = vpop.permute.xlu0 %1927
    %1929 = vrot.lane.b32.xlu0 %v97, 28
    %v1930 = vpop.permute.xlu0 %1929
    %1931 = vrot.lane.b32.xlu0 %v98, 28
    %v1932 = vpop.permute.xlu0 %1931
    %1933 = vrot.lane.b32.xlu0 %v99, 28
    %v1934 = vpop.permute.xlu0 %1933
    %1935 = vrot.lane.b32.xlu0 %v100, 28
    %v1936 = vpop.permute.xlu0 %1935
    %1937 = vrot.lane.b32.xlu0 %v101, 28
    %v1938 = vpop.permute.xlu0 %1937
    %1939 = vrot.lane.b32.xlu0 %v102, 28
    %v1940 = vpop.permute.xlu0 %1939
    %1941 = vrot.lane.b32.xlu0 %v103, 28
    %v1942 = vpop.permute.xlu0 %1941
    %1943 = vrot.lane.b32.xlu0 %v104, 28
    %v1944 = vpop.permute.xlu0 %1943
    %1945 = vrot.lane.b32.xlu0 %v105, 28
    %v1946 = vpop.permute.xlu0 %1945
    %1947 = vrot.lane.b32.xlu0 %v106, 28
    %v1948 = vpop.permute.xlu0 %1947
    %1949 = vrot.lane.b32.xlu0 %v107, 28
    %v1950 = vpop.permute.xlu0 %1949
    %1951 = vrot.lane.b32.xlu0 %v108, 28
    %v1952 = vpop.permute.xlu0 %1951
    %1953 = vrot.lane.b32.xlu0 %v109, 28
    %v1954 = vpop.permute.xlu0 %1953
    %1955 = vrot.lane.b32.xlu0 %v110, 28
    %v1956 = vpop.permute.xlu0 %1955
    %1957 = vrot.lane.b32.xlu0 %v111, 28
    %v1958 = vpop.permute.xlu0 %1957
    %1959 = vrot.lane.b32.xlu0 %v114, 28
    %v1960 = vpop.permute.xlu0 %1959
    %1961 = vrot.lane.b32.xlu0 %v115, 28
    %v1962 = vpop.permute.xlu0 %1961
    %1963 = vrot.lane.b32.xlu0 %v116, 28
    %v1964 = vpop.permute.xlu0 %1963
    %1965 = vrot.lane.b32.xlu0 %v117, 28
    %v1966 = vpop.permute.xlu0 %1965
    %1967 = vrot.lane.b32.xlu0 %v118, 28
    %v1968 = vpop.permute.xlu0 %1967
    %1969 = vrot.lane.b32.xlu0 %v119, 28
    %v1970 = vpop.permute.xlu0 %1969
    %1971 = vrot.lane.b32.xlu0 %v120, 28
    %v1972 = vpop.permute.xlu0 %1971
    %1973 = vrot.lane.b32.xlu0 %v121, 28
    %v1974 = vpop.permute.xlu0 %1973
    %1975 = vrot.lane.b32.xlu0 %v122, 28
    %v1976 = vpop.permute.xlu0 %1975
    %1977 = vrot.lane.b32.xlu0 %v123, 28
    %v1978 = vpop.permute.xlu0 %1977
    %1979 = vrot.lane.b32.xlu0 %v124, 28
    %v1980 = vpop.permute.xlu0 %1979
    %1981 = vrot.lane.b32.xlu0 %v125, 28
    %v1982 = vpop.permute.xlu0 %1981
    %1983 = vrot.lane.b32.xlu0 %v126, 28
    %v1984 = vpop.permute.xlu0 %1983
    %1985 = vrot.lane.b32.xlu0 %v127, 28
    %v1986 = vpop.permute.xlu0 %1985
    %1987 = vrot.lane.b32.xlu0 %v128, 28
    %v1988 = vpop.permute.xlu0 %1987
    %1989 = vrot.lane.b32.xlu0 %v129, 28
    %v1990 = vpop.permute.xlu0 %1989
    %1991 = vrot.lane.b32.xlu0 %v130, 28
    %v1992 = vpop.permute.xlu0 %1991
    %1993 = vrot.lane.b32.xlu0 %v131, 28
    %v1994 = vpop.permute.xlu0 %1993
    %1995 = vrot.lane.b32.xlu0 %v132, 28
    %v1996 = vpop.permute.xlu0 %1995
    %1997 = vrot.lane.b32.xlu0 %v133, 28
    %v1998 = vpop.permute.xlu0 %1997
    %1999 = vrot.lane.b32.xlu0 %v134, 28
    %v2000 = vpop.permute.xlu0 %1999
    %2001 = vrot.lane.b32.xlu0 %v135, 28
    %v2002 = vpop.permute.xlu0 %2001
    %2003 = vrot.lane.b32.xlu0 %v136, 28
    %v2004 = vpop.permute.xlu0 %2003
    %2005 = vrot.lane.b32.xlu0 %v137, 28
    %v2006 = vpop.permute.xlu0 %2005
    %2007 = vrot.lane.b32.xlu0 %v138, 28
    %v2008 = vpop.permute.xlu0 %2007
    %2009 = vrot.lane.b32.xlu0 %v139, 28
    %v2010 = vpop.permute.xlu0 %2009
    %2011 = vrot.lane.b32.xlu0 %v140, 28
    %v2012 = vpop.permute.xlu0 %2011
    %2013 = vrot.lane.b32.xlu0 %v141, 28
    %v2014 = vpop.permute.xlu0 %2013
    %2015 = vrot.lane.b32.xlu0 %v142, 28
    %v2016 = vpop.permute.xlu0 %2015
    %2017 = vrot.lane.b32.xlu0 %v143, 28
    %v2018 = vpop.permute.xlu0 %2017
    %vm2079 = vcmask 261344
    %2080 = vst.msk [vmem:[#allocation2] sm:$0xff] %vm2079, %v1900
    %2081 = vst.msk [vmem:[#allocation2 + $0x8] sm:$0xff] %vm2079, %v1902
    %2082 = vst.msk [vmem:[#allocation2 + $0x10] sm:$0xff] %vm2079, %v1904
    %2083 = vst.msk [vmem:[#allocation2 + $0x18] sm:$0xff] %vm2079, %v1906
    %2084 = vst.msk [vmem:[#allocation2 + $0x20] sm:$0xff] %vm2079, %v1908
    %2085 = vst.msk [vmem:[#allocation2 + $0x28] sm:$0xff] %vm2079, %v1910
    %2086 = vst.msk [vmem:[#allocation2 + $0x30] sm:$0xff] %vm2079, %v1912
    %2087 = vst.msk [vmem:[#allocation2 + $0x38] sm:$0xff] %vm2079, %v1914
    %2088 = vst.msk [vmem:[#allocation2 + $0x40] sm:$0xff] %vm2079, %v1916
    %2089 = vst.msk [vmem:[#allocation2 + $0x48] sm:$0xff] %vm2079, %v1918
    %2090 = vst.msk [vmem:[#allocation2 + $0x50] sm:$0xff] %vm2079, %v1920
    %2091 = vst.msk [vmem:[#allocation2 + $0x58] sm:$0xff] %vm2079, %v1922
    %2092 = vst.msk [vmem:[#allocation2 + $0x60] sm:$0xff] %vm2079, %v1924
    %2093 = vst.msk [vmem:[#allocation2 + $0x68] sm:$0xff] %vm2079, %v1926
    %2094 = vst.msk [vmem:[#allocation2 + $0x70] sm:$0xff] %vm2079, %v1928
    %2095 = vst.msk [vmem:[#allocation2 + $0x78] sm:$0xff] %vm2079, %v1930
    %2096 = vst.msk [vmem:[#allocation2 + $0x80] sm:$0xff] %vm2079, %v1932
    %2097 = vst.msk [vmem:[#allocation2 + $0x88] sm:$0xff] %vm2079, %v1934
    %2098 = vst.msk [vmem:[#allocation2 + $0x90] sm:$0xff] %vm2079, %v1936
    %2099 = vst.msk [vmem:[#allocation2 + $0x98] sm:$0xff] %vm2079, %v1938
    %2100 = vst.msk [vmem:[#allocation2 + $0xa0] sm:$0xff] %vm2079, %v1940
    %2101 = vst.msk [vmem:[#allocation2 + $0xa8] sm:$0xff] %vm2079, %v1942
    %2102 = vst.msk [vmem:[#allocation2 + $0xb0] sm:$0xff] %vm2079, %v1944
    %2103 = vst.msk [vmem:[#allocation2 + $0xb8] sm:$0xff] %vm2079, %v1946
    %2104 = vst.msk [vmem:[#allocation2 + $0xc0] sm:$0xff] %vm2079, %v1948
    %2105 = vst.msk [vmem:[#allocation2 + $0xc8] sm:$0xff] %vm2079, %v1950
    %2106 = vst.msk [vmem:[#allocation2 + $0xd0] sm:$0xff] %vm2079, %v1952
    %2107 = vst.msk [vmem:[#allocation2 + $0xd8] sm:$0xff] %vm2079, %v1954
    %2108 = vst.msk [vmem:[#allocation2 + $0xe0] sm:$0xff] %vm2079, %v1956
    %2109 = vst.msk [vmem:[#allocation2 + $0xe8] sm:$0xff] %vm2079, %v1958
    %2110 = vst.msk [vmem:[#allocation2 + $0x100] sm:$0xff] %vm2079, %v1960
    %2111 = vst.msk [vmem:[#allocation2 + $0x108] sm:$0xff] %vm2079, %v1962
    %2112 = vst.msk [vmem:[#allocation2 + $0x110] sm:$0xff] %vm2079, %v1964
    %2113 = vst.msk [vmem:[#allocation2 + $0x118] sm:$0xff] %vm2079, %v1966
    %2114 = vst.msk [vmem:[#allocation2 + $0x120] sm:$0xff] %vm2079, %v1968
    %2115 = vst.msk [vmem:[#allocation2 + $0x128] sm:$0xff] %vm2079, %v1970
    %2116 = vst.msk [vmem:[#allocation2 + $0x130] sm:$0xff] %vm2079, %v1972
    %2117 = vst.msk [vmem:[#allocation2 + $0x138] sm:$0xff] %vm2079, %v1974
    %2118 = vst.msk [vmem:[#allocation2 + $0x140] sm:$0xff] %vm2079, %v1976
    %2119 = vst.msk [vmem:[#allocation2 + $0x148] sm:$0xff] %vm2079, %v1978
    %2120 = vst.msk [vmem:[#allocation2 + $0x150] sm:$0xff] %vm2079, %v1980
    %2121 = vst.msk [vmem:[#allocation2 + $0x158] sm:$0xff] %vm2079, %v1982
    %2122 = vst.msk [vmem:[#allocation2 + $0x160] sm:$0xff] %vm2079, %v1984
    %2123 = vst.msk [vmem:[#allocation2 + $0x168] sm:$0xff] %vm2079, %v1986
    %2124 = vst.msk [vmem:[#allocation2 + $0x170] sm:$0xff] %vm2079, %v1988
    %2125 = vst.msk [vmem:[#allocation2 + $0x178] sm:$0xff] %vm2079, %v1990
    %2126 = vst.msk [vmem:[#allocation2 + $0x180] sm:$0xff] %vm2079, %v1992
    %2127 = vst.msk [vmem:[#allocation2 + $0x188] sm:$0xff] %vm2079, %v1994
    %2128 = vst.msk [vmem:[#allocation2 + $0x190] sm:$0xff] %vm2079, %v1996
    %2129 = vst.msk [vmem:[#allocation2 + $0x198] sm:$0xff] %vm2079, %v1998
    %2130 = vst.msk [vmem:[#allocation2 + $0x1a0] sm:$0xff] %vm2079, %v2000
    %2131 = vst.msk [vmem:[#allocation2 + $0x1a8] sm:$0xff] %vm2079, %v2002
    %2132 = vst.msk [vmem:[#allocation2 + $0x1b0] sm:$0xff] %vm2079, %v2004
    %2133 = vst.msk [vmem:[#allocation2 + $0x1b8] sm:$0xff] %vm2079, %v2006
    %2134 = vst.msk [vmem:[#allocation2 + $0x1c0] sm:$0xff] %vm2079, %v2008
    %2135 = vst.msk [vmem:[#allocation2 + $0x1c8] sm:$0xff] %vm2079, %v2010
    %2136 = vst.msk [vmem:[#allocation2 + $0x1d0] sm:$0xff] %vm2079, %v2012
    %2137 = vst.msk [vmem:[#allocation2 + $0x1d8] sm:$0xff] %vm2079, %v2014
    %2138 = vst.msk [vmem:[#allocation2 + $0x1e0] sm:$0xff] %vm2079, %v2016
    %2139 = vst.msk [vmem:[#allocation2 + $0x1e8] sm:$0xff] %vm2079, %v2018
    %2140 = vrot.lane.b32.xlu0 %v82, 32
    %v2141 = vpop.permute.xlu0 %2140
    %2142 = vrot.lane.b32.xlu0 %v83, 32
    %v2143 = vpop.permute.xlu0 %2142
    %2144 = vrot.lane.b32.xlu0 %v84, 32
    %v2145 = vpop.permute.xlu0 %2144
    %2146 = vrot.lane.b32.xlu0 %v85, 32
    %v2147 = vpop.permute.xlu0 %2146
    %2148 = vrot.lane.b32.xlu0 %v86, 32
    %v2149 = vpop.permute.xlu0 %2148
    %2150 = vrot.lane.b32.xlu0 %v87, 32
    %v2151 = vpop.permute.xlu0 %2150
    %2152 = vrot.lane.b32.xlu0 %v88, 32
    %v2153 = vpop.permute.xlu0 %2152
    %2154 = vrot.lane.b32.xlu0 %v89, 32
    %v2155 = vpop.permute.xlu0 %2154
    %2156 = vrot.lane.b32.xlu0 %v90, 32
    %v2157 = vpop.permute.xlu0 %2156
    %2158 = vrot.lane.b32.xlu0 %v91, 32
    %v2159 = vpop.permute.xlu0 %2158
    %2160 = vrot.lane.b32.xlu0 %v92, 32
    %v2161 = vpop.permute.xlu0 %2160
    %2162 = vrot.lane.b32.xlu0 %v93, 32
    %v2163 = vpop.permute.xlu0 %2162
    %2164 = vrot.lane.b32.xlu0 %v94, 32
    %v2165 = vpop.permute.xlu0 %2164
    %2166 = vrot.lane.b32.xlu0 %v95, 32
    %v2167 = vpop.permute.xlu0 %2166
    %2168 = vrot.lane.b32.xlu0 %v96, 32
    %v2169 = vpop.permute.xlu0 %2168
    %2170 = vrot.lane.b32.xlu0 %v97, 32
    %v2171 = vpop.permute.xlu0 %2170
    %2172 = vrot.lane.b32.xlu0 %v98, 32
    %v2173 = vpop.permute.xlu0 %2172
    %2174 = vrot.lane.b32.xlu0 %v99, 32
    %v2175 = vpop.permute.xlu0 %2174
    %2176 = vrot.lane.b32.xlu0 %v100, 32
    %v2177 = vpop.permute.xlu0 %2176
    %2178 = vrot.lane.b32.xlu0 %v101, 32
    %v2179 = vpop.permute.xlu0 %2178
    %2180 = vrot.lane.b32.xlu0 %v102, 32
    %v2181 = vpop.permute.xlu0 %2180
    %2182 = vrot.lane.b32.xlu0 %v103, 32
    %v2183 = vpop.permute.xlu0 %2182
    %2184 = vrot.lane.b32.xlu0 %v104, 32
    %v2185 = vpop.permute.xlu0 %2184
    %2186 = vrot.lane.b32.xlu0 %v105, 32
    %v2187 = vpop.permute.xlu0 %2186
    %2188 = vrot.lane.b32.xlu0 %v106, 32
    %v2189 = vpop.permute.xlu0 %2188
    %2190 = vrot.lane.b32.xlu0 %v107, 32
    %v2191 = vpop.permute.xlu0 %2190
    %2192 = vrot.lane.b32.xlu0 %v108, 32
    %v2193 = vpop.permute.xlu0 %2192
    %2194 = vrot.lane.b32.xlu0 %v109, 32
    %v2195 = vpop.permute.xlu0 %2194
    %2196 = vrot.lane.b32.xlu0 %v110, 32
    %v2197 = vpop.permute.xlu0 %2196
    %2198 = vrot.lane.b32.xlu0 %v111, 32
    %v2199 = vpop.permute.xlu0 %2198
    %2200 = vrot.lane.b32.xlu0 %v114, 32
    %v2201 = vpop.permute.xlu0 %2200
    %2202 = vrot.lane.b32.xlu0 %v115, 32
    %v2203 = vpop.permute.xlu0 %2202
    %2204 = vrot.lane.b32.xlu0 %v116, 32
    %v2205 = vpop.permute.xlu0 %2204
    %2206 = vrot.lane.b32.xlu0 %v117, 32
    %v2207 = vpop.permute.xlu0 %2206
    %2208 = vrot.lane.b32.xlu0 %v118, 32
    %v2209 = vpop.permute.xlu0 %2208
    %2210 = vrot.lane.b32.xlu0 %v119, 32
    %v2211 = vpop.permute.xlu0 %2210
    %2212 = vrot.lane.b32.xlu0 %v120, 32
    %v2213 = vpop.permute.xlu0 %2212
    %2214 = vrot.lane.b32.xlu0 %v121, 32
    %v2215 = vpop.permute.xlu0 %2214
    %2216 = vrot.lane.b32.xlu0 %v122, 32
    %v2217 = vpop.permute.xlu0 %2216
    %2218 = vrot.lane.b32.xlu0 %v123, 32
    %v2219 = vpop.permute.xlu0 %2218
    %2220 = vrot.lane.b32.xlu0 %v124, 32
    %v2221 = vpop.permute.xlu0 %2220
    %2222 = vrot.lane.b32.xlu0 %v125, 32
    %v2223 = vpop.permute.xlu0 %2222
    %2224 = vrot.lane.b32.xlu0 %v126, 32
    %v2225 = vpop.permute.xlu0 %2224
    %2226 = vrot.lane.b32.xlu0 %v127, 32
    %v2227 = vpop.permute.xlu0 %2226
    %2228 = vrot.lane.b32.xlu0 %v128, 32
    %v2229 = vpop.permute.xlu0 %2228
    %2230 = vrot.lane.b32.xlu0 %v129, 32
    %v2231 = vpop.permute.xlu0 %2230
    %2232 = vrot.lane.b32.xlu0 %v130, 32
    %v2233 = vpop.permute.xlu0 %2232
    %2234 = vrot.lane.b32.xlu0 %v131, 32
    %v2235 = vpop.permute.xlu0 %2234
    %2236 = vrot.lane.b32.xlu0 %v132, 32
    %v2237 = vpop.permute.xlu0 %2236
    %2238 = vrot.lane.b32.xlu0 %v133, 32
    %v2239 = vpop.permute.xlu0 %2238
    %2240 = vrot.lane.b32.xlu0 %v134, 32
    %v2241 = vpop.permute.xlu0 %2240
    %2242 = vrot.lane.b32.xlu0 %v135, 32
    %v2243 = vpop.permute.xlu0 %2242
    %2244 = vrot.lane.b32.xlu0 %v136, 32
    %v2245 = vpop.permute.xlu0 %2244
    %2246 = vrot.lane.b32.xlu0 %v137, 32
    %v2247 = vpop.permute.xlu0 %2246
    %2248 = vrot.lane.b32.xlu0 %v138, 32
    %v2249 = vpop.permute.xlu0 %2248
    %2250 = vrot.lane.b32.xlu0 %v139, 32
    %v2251 = vpop.permute.xlu0 %2250
    %2252 = vrot.lane.b32.xlu0 %v140, 32
    %v2253 = vpop.permute.xlu0 %2252
    %2254 = vrot.lane.b32.xlu0 %v141, 32
    %v2255 = vpop.permute.xlu0 %2254
    %2256 = vrot.lane.b32.xlu0 %v142, 32
    %v2257 = vpop.permute.xlu0 %2256
    %2258 = vrot.lane.b32.xlu0 %v143, 32
    %v2259 = vpop.permute.xlu0 %2258
    %vm2320 = vcmask 294145
    %2321 = vst.msk [vmem:[#allocation2 - $0x1] sm:$0xfe] %vm2320, %v2141
    %vm2322 = vcmask 294144
    %2323 = vst.msk [vmem:[#allocation2 + $0x7] sm:$0xff] %vm2322, %v2143
    %2324 = vst.msk [vmem:[#allocation2 + $0xf] sm:$0xfe] %vm2320, %v2145
    %2325 = vst.msk [vmem:[#allocation2 + $0x17] sm:$0xff] %vm2322, %v2147
    %2326 = vst.msk [vmem:[#allocation2 + $0x1f] sm:$0xfe] %vm2320, %v2149
    %2327 = vst.msk [vmem:[#allocation2 + $0x27] sm:$0xff] %vm2322, %v2151
    %2328 = vst.msk [vmem:[#allocation2 + $0x2f] sm:$0xfe] %vm2320, %v2153
    %2329 = vst.msk [vmem:[#allocation2 + $0x37] sm:$0xff] %vm2322, %v2155
    %2330 = vst.msk [vmem:[#allocation2 + $0x3f] sm:$0xfe] %vm2320, %v2157
    %2331 = vst.msk [vmem:[#allocation2 + $0x47] sm:$0xff] %vm2322, %v2159
    %2332 = vst.msk [vmem:[#allocation2 + $0x4f] sm:$0xfe] %vm2320, %v2161
    %2333 = vst.msk [vmem:[#allocation2 + $0x57] sm:$0xff] %vm2322, %v2163
    %2334 = vst.msk [vmem:[#allocation2 + $0x5f] sm:$0xfe] %vm2320, %v2165
    %2335 = vst.msk [vmem:[#allocation2 + $0x67] sm:$0xff] %vm2322, %v2167
    %2336 = vst.msk [vmem:[#allocation2 + $0x6f] sm:$0xfe] %vm2320, %v2169
    %2337 = vst.msk [vmem:[#allocation2 + $0x77] sm:$0xff] %vm2322, %v2171
    %2338 = vst.msk [vmem:[#allocation2 + $0x7f] sm:$0xfe] %vm2320, %v2173
    %2339 = vst.msk [vmem:[#allocation2 + $0x87] sm:$0xff] %vm2322, %v2175
    %2340 = vst.msk [vmem:[#allocation2 + $0x8f] sm:$0xfe] %vm2320, %v2177
    %2341 = vst.msk [vmem:[#allocation2 + $0x97] sm:$0xff] %vm2322, %v2179
    %2342 = vst.msk [vmem:[#allocation2 + $0x9f] sm:$0xfe] %vm2320, %v2181
    %2343 = vst.msk [vmem:[#allocation2 + $0xa7] sm:$0xff] %vm2322, %v2183
    %2344 = vst.msk [vmem:[#allocation2 + $0xaf] sm:$0xfe] %vm2320, %v2185
    %2345 = vst.msk [vmem:[#allocation2 + $0xb7] sm:$0xff] %vm2322, %v2187
    %2346 = vst.msk [vmem:[#allocation2 + $0xbf] sm:$0xfe] %vm2320, %v2189
    %2347 = vst.msk [vmem:[#allocation2 + $0xc7] sm:$0xff] %vm2322, %v2191
    %2348 = vst.msk [vmem:[#allocation2 + $0xcf] sm:$0xfe] %vm2320, %v2193
    %2349 = vst.msk [vmem:[#allocation2 + $0xd7] sm:$0xff] %vm2322, %v2195
    %2350 = vst.msk [vmem:[#allocation2 + $0xdf] sm:$0xfe] %vm2320, %v2197
    %2351 = vst.msk [vmem:[#allocation2 + $0xe7] sm:$0xff] %vm2322, %v2199
    %2352 = vst.msk [vmem:[#allocation2 + $0xff] sm:$0xfe] %vm2320, %v2201
    %2353 = vst.msk [vmem:[#allocation2 + $0x107] sm:$0xff] %vm2322, %v2203
    %2354 = vst.msk [vmem:[#allocation2 + $0x10f] sm:$0xfe] %vm2320, %v2205
    %2355 = vst.msk [vmem:[#allocation2 + $0x117] sm:$0xff] %vm2322, %v2207
    %2356 = vst.msk [vmem:[#allocation2 + $0x11f] sm:$0xfe] %vm2320, %v2209
    %2357 = vst.msk [vmem:[#allocation2 + $0x127] sm:$0xff] %vm2322, %v2211
    %2358 = vst.msk [vmem:[#allocation2 + $0x12f] sm:$0xfe] %vm2320, %v2213
    %2359 = vst.msk [vmem:[#allocation2 + $0x137] sm:$0xff] %vm2322, %v2215
    %2360 = vst.msk [vmem:[#allocation2 + $0x13f] sm:$0xfe] %vm2320, %v2217
    %2361 = vst.msk [vmem:[#allocation2 + $0x147] sm:$0xff] %vm2322, %v2219
    %2362 = vst.msk [vmem:[#allocation2 + $0x14f] sm:$0xfe] %vm2320, %v2221
    %2363 = vst.msk [vmem:[#allocation2 + $0x157] sm:$0xff] %vm2322, %v2223
    %2364 = vst.msk [vmem:[#allocation2 + $0x15f] sm:$0xfe] %vm2320, %v2225
    %2365 = vst.msk [vmem:[#allocation2 + $0x167] sm:$0xff] %vm2322, %v2227
    %2366 = vst.msk [vmem:[#allocation2 + $0x16f] sm:$0xfe] %vm2320, %v2229
    %2367 = vst.msk [vmem:[#allocation2 + $0x177] sm:$0xff] %vm2322, %v2231
    %2368 = vst.msk [vmem:[#allocation2 + $0x17f] sm:$0xfe] %vm2320, %v2233
    %2369 = vst.msk [vmem:[#allocation2 + $0x187] sm:$0xff] %vm2322, %v2235
    %2370 = vst.msk [vmem:[#allocation2 + $0x18f] sm:$0xfe] %vm2320, %v2237
    %2371 = vst.msk [vmem:[#allocation2 + $0x197] sm:$0xff] %vm2322, %v2239
    %2372 = vst.msk [vmem:[#allocation2 + $0x19f] sm:$0xfe] %vm2320, %v2241
    %2373 = vst.msk [vmem:[#allocation2 + $0x1a7] sm:$0xff] %vm2322, %v2243
    %2374 = vst.msk [vmem:[#allocation2 + $0x1af] sm:$0xfe] %vm2320, %v2245
    %2375 = vst.msk [vmem:[#allocation2 + $0x1b7] sm:$0xff] %vm2322, %v2247
    %2376 = vst.msk [vmem:[#allocation2 + $0x1bf] sm:$0xfe] %vm2320, %v2249
    %2377 = vst.msk [vmem:[#allocation2 + $0x1c7] sm:$0xff] %vm2322, %v2251
    %2378 = vst.msk [vmem:[#allocation2 + $0x1cf] sm:$0xfe] %vm2320, %v2253
    %2379 = vst.msk [vmem:[#allocation2 + $0x1d7] sm:$0xff] %vm2322, %v2255
    %2380 = vst.msk [vmem:[#allocation2 + $0x1df] sm:$0xfe] %vm2320, %v2257
    %2381 = vst.msk [vmem:[#allocation2 + $0x1e7] sm:$0xff] %vm2322, %v2259
    %v2382 = vld [vmem:[#allocation2] sm:$0xff]
    %v2383 = vld [vmem:[#allocation2 + $0x8] sm:$0xff]
    %v2384 = vld [vmem:[#allocation2 + $0x10] sm:$0xff]
    %v2385 = vld [vmem:[#allocation2 + $0x18] sm:$0xff]
    %v2386 = vld [vmem:[#allocation2 + $0x20] sm:$0xff]
    %v2387 = vld [vmem:[#allocation2 + $0x28] sm:$0xff]
    %v2388 = vld [vmem:[#allocation2 + $0x30] sm:$0xff]
    %v2389 = vld [vmem:[#allocation2 + $0x38] sm:$0xff]
    %v2390 = vld [vmem:[#allocation2 + $0x40] sm:$0xff]
    %v2391 = vld [vmem:[#allocation2 + $0x48] sm:$0xff]
    %v2392 = vld [vmem:[#allocation2 + $0x50] sm:$0xff]
    %v2393 = vld [vmem:[#allocation2 + $0x58] sm:$0xff]
    %v2394 = vld [vmem:[#allocation2 + $0x60] sm:$0xff]
    %v2395 = vld [vmem:[#allocation2 + $0x68] sm:$0xff]
    %v2396 = vld [vmem:[#allocation2 + $0x70] sm:$0xff]
    %v2397 = vld [vmem:[#allocation2 + $0x78] sm:$0xff]
    %v2398 = vld [vmem:[#allocation2 + $0x80] sm:$0xff]
    %v2399 = vld [vmem:[#allocation2 + $0x88] sm:$0xff]
    %v2400 = vld [vmem:[#allocation2 + $0x90] sm:$0xff]
    %v2401 = vld [vmem:[#allocation2 + $0x98] sm:$0xff]
    %v2402 = vld [vmem:[#allocation2 + $0xa0] sm:$0xff]
    %v2403 = vld [vmem:[#allocation2 + $0xa8] sm:$0xff]
    %v2404 = vld [vmem:[#allocation2 + $0xb0] sm:$0xff]
    %v2405 = vld [vmem:[#allocation2 + $0xb8] sm:$0xff]
    %v2406 = vld [vmem:[#allocation2 + $0xc0] sm:$0xff]
    %v2407 = vld [vmem:[#allocation2 + $0xc8] sm:$0xff]
    %v2408 = vld [vmem:[#allocation2 + $0xd0] sm:$0xff]
    %v2409 = vld [vmem:[#allocation2 + $0xd8] sm:$0xff]
    %v2410 = vld [vmem:[#allocation2 + $0xe0] sm:$0xff]
    %v2411 = vld [vmem:[#allocation2 + $0xe8] sm:$0xff]
    %v2412 = vld [vmem:[#allocation2 + $0xf0] sm:$0xff]
    %v2413 = vld [vmem:[#allocation2 + $0xf8] sm:$0xff]
    %v2414 = vld [vmem:[#allocation2 + $0x100] sm:$0xff]
    %v2415 = vld [vmem:[#allocation2 + $0x108] sm:$0xff]
    %v2416 = vld [vmem:[#allocation2 + $0x110] sm:$0xff]
    %v2417 = vld [vmem:[#allocation2 + $0x118] sm:$0xff]
    %v2418 = vld [vmem:[#allocation2 + $0x120] sm:$0xff]
    %v2419 = vld [vmem:[#allocation2 + $0x128] sm:$0xff]
    %v2420 = vld [vmem:[#allocation2 + $0x130] sm:$0xff]
    %v2421 = vld [vmem:[#allocation2 + $0x138] sm:$0xff]
    %v2422 = vld [vmem:[#allocation2 + $0x140] sm:$0xff]
    %v2423 = vld [vmem:[#allocation2 + $0x148] sm:$0xff]
    %v2424 = vld [vmem:[#allocation2 + $0x150] sm:$0xff]
    %v2425 = vld [vmem:[#allocation2 + $0x158] sm:$0xff]
    %v2426 = vld [vmem:[#allocation2 + $0x160] sm:$0xff]
    %v2427 = vld [vmem:[#allocation2 + $0x168] sm:$0xff]
    %v2428 = vld [vmem:[#allocation2 + $0x170] sm:$0xff]
    %v2429 = vld [vmem:[#allocation2 + $0x178] sm:$0xff]
    %v2430 = vld [vmem:[#allocation2 + $0x180] sm:$0xff]
    %v2431 = vld [vmem:[#allocation2 + $0x188] sm:$0xff]
    %v2432 = vld [vmem:[#allocation2 + $0x190] sm:$0xff]
    %v2433 = vld [vmem:[#allocation2 + $0x198] sm:$0xff]
    %v2434 = vld [vmem:[#allocation2 + $0x1a0] sm:$0xff]
    %v2435 = vld [vmem:[#allocation2 + $0x1a8] sm:$0xff]
    %v2436 = vld [vmem:[#allocation2 + $0x1b0] sm:$0xff]
    %v2437 = vld [vmem:[#allocation2 + $0x1b8] sm:$0xff]
    %v2438 = vld [vmem:[#allocation2 + $0x1c0] sm:$0xff]
    %v2439 = vld [vmem:[#allocation2 + $0x1c8] sm:$0xff]
    %v2440 = vld [vmem:[#allocation2 + $0x1d0] sm:$0xff]
    %v2441 = vld [vmem:[#allocation2 + $0x1d8] sm:$0xff]
    %v2442 = vld [vmem:[#allocation2 + $0x1e0] sm:$0xff]
    %v2443 = vld [vmem:[#allocation2 + $0x1e8] sm:$0xff]
    %v2444 = vld [vmem:[#allocation2 + $0x1f0] sm:$0xff]
    %v2445 = vld [vmem:[#allocation2 + $0x1f8] sm:$0xff]
    %v2446 = vpack.c.bf16 %v2383, %v2382
    %v2447 = vpack.c.bf16 %v2385, %v2384
    %v2448 = vpack.c.bf16 %v2387, %v2386
    %v2449 = vpack.c.bf16 %v2389, %v2388
    %v2450 = vpack.c.bf16 %v2391, %v2390
    %v2451 = vpack.c.bf16 %v2393, %v2392
    %v2452 = vpack.c.bf16 %v2395, %v2394
    %v2453 = vpack.c.bf16 %v2397, %v2396
    %v2454 = vpack.c.bf16 %v2399, %v2398
    %v2455 = vpack.c.bf16 %v2401, %v2400
    %v2456 = vpack.c.bf16 %v2403, %v2402
    %v2457 = vpack.c.bf16 %v2405, %v2404
    %v2458 = vpack.c.bf16 %v2407, %v2406
    %v2459 = vpack.c.bf16 %v2409, %v2408
    %v2460 = vpack.c.bf16 %v2411, %v2410
    %v2461 = vpack.c.bf16 %v2413, %v2412
    %v2462 = vpack.c.bf16 %v2415, %v2414
    %v2463 = vpack.c.bf16 %v2417, %v2416
    %v2464 = vpack.c.bf16 %v2419, %v2418
    %v2465 = vpack.c.bf16 %v2421, %v2420
    %v2466 = vpack.c.bf16 %v2423, %v2422
    %v2467 = vpack.c.bf16 %v2425, %v2424
    %v2468 = vpack.c.bf16 %v2427, %v2426
    %v2469 = vpack.c.bf16 %v2429, %v2428
    %v2470 = vpack.c.bf16 %v2431, %v2430
    %v2471 = vpack.c.bf16 %v2433, %v2432
    %v2472 = vpack.c.bf16 %v2435, %v2434
    %v2473 = vpack.c.bf16 %v2437, %v2436
    %v2474 = vpack.c.bf16 %v2439, %v2438
    %v2475 = vpack.c.bf16 %v2441, %v2440
    %v2476 = vpack.c.bf16 %v2443, %v2442
    %v2477 = vpack.c.bf16 %v2445, %v2444
    %v2478 = vld [vmem:[%s1] sm:$0xf]
    %v2479 = vld [vmem:[%s1 + $0x4] sm:$0xf]
    %v2480 = vld [vmem:[%s1 + $0x8] sm:$0xf]
    %v2481 = vld [vmem:[%s1 + $0xc] sm:$0xf]
    %v2482 = vld [vmem:[%s1 + $0x10] sm:$0x7]
    %v2488 = vunpack.c.l.b16 %v2478
    %v2489 = vunpack.c.l.b16 %v2479
    %v2490 = vunpack.c.l.b16 %v2480
    %v2491 = vunpack.c.l.b16 %v2481
    %v2492 = vunpack.c.l.b16 %v2482
    %v2493 = vpack.c.b16 %v2489, %v2488
    %v2494 = vpack.c.b16 %v2491, %v2490
    %v2495 = vpack.c.b16 %v2492, %v2492
    %v2499 = vsel %vm144, %v2446, 0
    %v2502 = vsel %vm144, %v2447, 0
    %v2505 = vsel %vm144, %v2448, 0
    %v2508 = vsel %vm144, %v2449, 0
    %v2511 = vsel %vm144, %v2450, 0
    %v2514 = vsel %vm144, %v2451, 0
    %v2517 = vsel %vm144, %v2452, 0
    %v2520 = vsel %vm144, %v2453, 0
    %v2523 = vsel %vm144, %v2454, 0
    %v2526 = vsel %vm144, %v2455, 0
    %v2529 = vsel %vm144, %v2456, 0
    %v2532 = vsel %vm144, %v2457, 0
    %v2535 = vsel %vm144, %v2458, 0
    %v2538 = vsel %vm144, %v2459, 0
    %v2541 = vsel %vm144, %v2460, 0
    %v2544 = vsel %vm144, %v2461, 0
    %v2547 = vsel %vm144, %v2462, 0
    %v2550 = vsel %vm144, %v2463, 0
    %v2553 = vsel %vm144, %v2464, 0
    %v2556 = vsel %vm144, %v2465, 0
    %v2559 = vsel %vm144, %v2466, 0
    %v2562 = vsel %vm144, %v2467, 0
    %v2565 = vsel %vm144, %v2468, 0
    %v2568 = vsel %vm144, %v2469, 0
    %v2571 = vsel %vm144, %v2470, 0
    %v2574 = vsel %vm144, %v2471, 0
    %v2577 = vsel %vm144, %v2472, 0
    %v2580 = vsel %vm144, %v2473, 0
    %v2583 = vsel %vm144, %v2474, 0
    %v2586 = vsel %vm144, %v2475, 0
    %v2589 = vsel %vm144, %v2476, 0
    %v2592 = vsel %vm144, %v2477, 0
    %vm2594 = vcmask 1041408
    %vm2595 = vcmask 1042432
    %v2596 = vsel %vm2594, 4294967295, 65535
    %v2597 = vsel %vm2595, %v2596, 0
    %v2599 = vand.u32 %v2495, %v2597
    %2601 = vmatprep.subr.bf16.mxu0 0
    %2602 = vmatpush1.bf16.msra.mxu0 %v2493
    %2603 = vmatprep.subr.bf16.mxu0 0
    %2604 = vmatpush1.bf16.msra.mxu0 %v2494
    %2605 = vmatprep.subr.bf16.mxu0 0
    %2606 = vmatpush1.bf16.msra.mxu0 %v2599
    %2607 = vmatprep.subr.bf16.mxu0 0
    %2608 = vmatpush1.bf16.msra.mxu0 0
    %2609 = vmatprep.subr.bf16.mxu0 0
    %2610 = vmatpush1.bf16.msra.mxu0 0
    %2611 = vmatprep.subr.bf16.mxu0 0
    %2612 = vmatpush1.bf16.msra.mxu0 0
    %2613 = vmatprep.subr.bf16.mxu0 0
    %2614 = vmatpush1.bf16.msra.mxu0 0
    %2615 = vmatprep.subr.bf16.mxu0 0
    %2616 = vmatpush1.bf16.msra.mxu0 0
    %2617 = vmatprep.subr.bf16.mxu0 0
    %2618 = vmatpush1.bf16.msra.mxu0 0
    %2619 = vmatprep.subr.bf16.mxu0 0
    %2620 = vmatpush1.bf16.msra.mxu0 0
    %2621 = vmatprep.subr.bf16.mxu0 0
    %2622 = vmatpush1.bf16.msra.mxu0 0
    %2623 = vmatprep.subr.bf16.mxu0 0
    %2624 = vmatpush1.bf16.msra.mxu0 0
    %2625 = vmatprep.subr.bf16.mxu0 0
    %2626 = vmatpush1.bf16.msra.mxu0 0
    %2627 = vmatprep.subr.bf16.mxu0 0
    %2628 = vmatpush1.bf16.msra.mxu0 0
    %2629 = vmatprep.subr.bf16.mxu0 0
    %2630 = vmatpush1.bf16.msra.mxu0 0
    %2631 = vmatprep.subr.bf16.mxu0 0
    %2632 = vmatpush1.bf16.msra.mxu0 0
    %2633 = vmatprep.mubr.bf16.mxu0 0
    %2634 = vmatmul.mubr.bf16.gmra.mrb[0].mxu0 %v2499
    %v2635 = vpop.f32.mrb[0].mxu0
    %v2636 = vadd.f32 0.0, %v2635
    %v2637 = vpop.f32.mrb[0].mxu0
    %v2638 = vpop.f32.mrb[0].mxu0
    %v2639 = vadd.f32 0.0, %v2638
    %v2640 = vpop.f32.mrb[0].mxu0
    %2641 = vmatprep.mubr.bf16.mxu0 0
    %2642 = vmatmul.mubr.bf16.gmra.mrb[0].mxu0 %v2502
    %v2643 = vpop.f32.mrb[0].mxu0
    %v2644 = vadd.f32 0.0, %v2643
    %v2645 = vpop.f32.mrb[0].mxu0
    %v2646 = vpop.f32.mrb[0].mxu0
    %v2647 = vadd.f32 0.0, %v2646
    %v2648 = vpop.f32.mrb[0].mxu0
    %2649 = vmatprep.mubr.bf16.mxu0 0
    %2650 = vmatmul.mubr.bf16.gmra.mrb[0].mxu0 %v2505
    %v2651 = vpop.f32.mrb[0].mxu0
    %v2652 = vadd.f32 0.0, %v2651
    %v2653 = vpop.f32.mrb[0].mxu0
    %v2654 = vpop.f32.mrb[0].mxu0
    %v2655 = vadd.f32 0.0, %v2654
    %v2656 = vpop.f32.mrb[0].mxu0
    %2657 = vmatprep.mubr.bf16.mxu0 0
    %2658 = vmatmul.mubr.bf16.gmra.mrb[0].mxu0 %v2508
    %v2659 = vpop.f32.mrb[0].mxu0
    %v2660 = vadd.f32 0.0, %v2659
    %v2661 = vpop.f32.mrb[0].mxu0
    %v2662 = vpop.f32.mrb[0].mxu0
    %v2663 = vadd.f32 0.0, %v2662
    %v2664 = vpop.f32.mrb[0].mxu0
    %2665 = vmatprep.mubr.bf16.mxu0 0
    %2666 = vmatmul.mubr.bf16.gmra.mrb[0].mxu0 %v2511
    %v2667 = vpop.f32.mrb[0].mxu0
    %v2668 = vadd.f32 0.0, %v2667
    %v2669 = vpop.f32.mrb[0].mxu0
    %v2670 = vpop.f32.mrb[0].mxu0
    %v2671 = vadd.f32 0.0, %v2670
    %v2672 = vpop.f32.mrb[0].mxu0
    %2673 = vmatprep.mubr.bf16.mxu0 0
    %2674 = vmatmul.mubr.bf16.gmra.mrb[0].mxu0 %v2514
    %v2675 = vpop.f32.mrb[0].mxu0
    %v2676 = vadd.f32 0.0, %v2675
    %v2677 = vpop.f32.mrb[0].mxu0
    %v2678 = vpop.f32.mrb[0].mxu0
    %v2679 = vadd.f32 0.0, %v2678
    %v2680 = vpop.f32.mrb[0].mxu0
    %2681 = vmatprep.mubr.bf16.mxu0 0
    %2682 = vmatmul.mubr.bf16.gmra.mrb[0].mxu0 %v2517
    %v2683 = vpop.f32.mrb[0].mxu0
    %v2684 = vadd.f32 0.0, %v2683
    %v2685 = vpop.f32.mrb[0].mxu0
    %v2686 = vpop.f32.mrb[0].mxu0
    %v2687 = vadd.f32 0.0, %v2686
    %v2688 = vpop.f32.mrb[0].mxu0
    %2689 = vmatprep.mubr.bf16.mxu0 0
    %2690 = vmatmul.mubr.bf16.gmra.mrb[0].mxu0 %v2520
    %v2691 = vpop.f32.mrb[0].mxu0
    %v2692 = vadd.f32 0.0, %v2691
    %v2693 = vpop.f32.mrb[0].mxu0
    %v2694 = vpop.f32.mrb[0].mxu0
    %v2695 = vadd.f32 0.0, %v2694
    %v2696 = vpop.f32.mrb[0].mxu0
    %2697 = vmatprep.mubr.bf16.mxu0 0
    %2698 = vmatmul.mubr.bf16.gmra.mrb[0].mxu0 %v2523
    %v2699 = vpop.f32.mrb[0].mxu0
    %v2700 = vadd.f32 0.0, %v2699
    %v2701 = vpop.f32.mrb[0].mxu0
    %v2702 = vpop.f32.mrb[0].mxu0
    %v2703 = vadd.f32 0.0, %v2702
    %v2704 = vpop.f32.mrb[0].mxu0
    %2705 = vmatprep.mubr.bf16.mxu0 0
    %2706 = vmatmul.mubr.bf16.gmra.mrb[0].mxu0 %v2526
    %v2707 = vpop.f32.mrb[0].mxu0
    %v2708 = vadd.f32 0.0, %v2707
    %v2709 = vpop.f32.mrb[0].mxu0
    %v2710 = vpop.f32.mrb[0].mxu0
    %v2711 = vadd.f32 0.0, %v2710
    %v2712 = vpop.f32.mrb[0].mxu0
    %2713 = vmatprep.mubr.bf16.mxu0 0
    %2714 = vmatmul.mubr.bf16.gmra.mrb[0].mxu0 %v2529
    %v2715 = vpop.f32.mrb[0].mxu0
    %v2716 = vadd.f32 0.0, %v2715
    %v2717 = vpop.f32.mrb[0].mxu0
    %v2718 = vpop.f32.mrb[0].mxu0
    %v2719 = vadd.f32 0.0, %v2718
    %v2720 = vpop.f32.mrb[0].mxu0
    %2721 = vmatprep.mubr.bf16.mxu0 0
    %2722 = vmatmul.mubr.bf16.gmra.mrb[0].mxu0 %v2532
    %v2723 = vpop.f32.mrb[0].mxu0
    %v2724 = vadd.f32 0.0, %v2723
    %v2725 = vpop.f32.mrb[0].mxu0
    %v2726 = vpop.f32.mrb[0].mxu0
    %v2727 = vadd.f32 0.0, %v2726
    %v2728 = vpop.f32.mrb[0].mxu0
    %2729 = vmatprep.mubr.bf16.mxu0 0
    %2730 = vmatmul.mubr.bf16.gmra.mrb[0].mxu0 %v2535
    %v2731 = vpop.f32.mrb[0].mxu0
    %v2732 = vadd.f32 0.0, %v2731
    %v2733 = vpop.f32.mrb[0].mxu0
    %v2734 = vpop.f32.mrb[0].mxu0
    %v2735 = vadd.f32 0.0, %v2734
    %v2736 = vpop.f32.mrb[0].mxu0
    %2737 = vmatprep.mubr.bf16.mxu0 0
    %2738 = vmatmul.mubr.bf16.gmra.mrb[0].mxu0 %v2538
    %v2739 = vpop.f32.mrb[0].mxu0
    %v2740 = vadd.f32 0.0, %v2739
    %v2741 = vpop.f32.mrb[0].mxu0
    %v2742 = vpop.f32.mrb[0].mxu0
    %v2743 = vadd.f32 0.0, %v2742
    %v2744 = vpop.f32.mrb[0].mxu0
    %2745 = vmatprep.mubr.bf16.mxu0 0
    %2746 = vmatmul.mubr.bf16.gmra.mrb[0].mxu0 %v2541
    %v2747 = vpop.f32.mrb[0].mxu0
    %v2748 = vadd.f32 0.0, %v2747
    %v2749 = vpop.f32.mrb[0].mxu0
    %v2750 = vpop.f32.mrb[0].mxu0
    %v2751 = vadd.f32 0.0, %v2750
    %v2752 = vpop.f32.mrb[0].mxu0
    %2753 = vmatprep.mubr.bf16.mxu0 0
    %2754 = vmatmul.mubr.bf16.gmra.mrb[0].mxu0 %v2544
    %v2755 = vpop.f32.mrb[0].mxu0
    %v2756 = vadd.f32 0.0, %v2755
    %v2757 = vpop.f32.mrb[0].mxu0
    %v2758 = vpop.f32.mrb[0].mxu0
    %v2759 = vadd.f32 0.0, %v2758
    %v2760 = vpop.f32.mrb[0].mxu0
    %2761 = vmatprep.mubr.bf16.mxu0 0
    %2762 = vmatmul.mubr.bf16.gmra.mrb[0].mxu0 %v2547
    %v2763 = vpop.f32.mrb[0].mxu0
    %v2764 = vadd.f32 0.0, %v2763
    %v2765 = vpop.f32.mrb[0].mxu0
    %v2766 = vpop.f32.mrb[0].mxu0
    %v2767 = vadd.f32 0.0, %v2766
    %v2768 = vpop.f32.mrb[0].mxu0
    %2769 = vmatprep.mubr.bf16.mxu0 0
    %2770 = vmatmul.mubr.bf16.gmra.mrb[0].mxu0 %v2550
    %v2771 = vpop.f32.mrb[0].mxu0
    %v2772 = vadd.f32 0.0, %v2771
    %v2773 = vpop.f32.mrb[0].mxu0
    %v2774 = vpop.f32.mrb[0].mxu0
    %v2775 = vadd.f32 0.0, %v2774
    %v2776 = vpop.f32.mrb[0].mxu0
    %2777 = vmatprep.mubr.bf16.mxu0 0
    %2778 = vmatmul.mubr.bf16.gmra.mrb[0].mxu0 %v2553
    %v2779 = vpop.f32.mrb[0].mxu0
    %v2780 = vadd.f32 0.0, %v2779
    %v2781 = vpop.f32.mrb[0].mxu0
    %v2782 = vpop.f32.mrb[0].mxu0
    %v2783 = vadd.f32 0.0, %v2782
    %v2784 = vpop.f32.mrb[0].mxu0
    %2785 = vmatprep.mubr.bf16.mxu0 0
    %2786 = vmatmul.mubr.bf16.gmra.mrb[0].mxu0 %v2556
    %v2787 = vpop.f32.mrb[0].mxu0
    %v2788 = vadd.f32 0.0, %v2787
    %v2789 = vpop.f32.mrb[0].mxu0
    %v2790 = vpop.f32.mrb[0].mxu0
    %v2791 = vadd.f32 0.0, %v2790
    %v2792 = vpop.f32.mrb[0].mxu0
    %2793 = vmatprep.mubr.bf16.mxu0 0
    %2794 = vmatmul.mubr.bf16.gmra.mrb[0].mxu0 %v2559
    %v2795 = vpop.f32.mrb[0].mxu0
    %v2796 = vadd.f32 0.0, %v2795
    %v2797 = vpop.f32.mrb[0].mxu0
    %v2798 = vpop.f32.mrb[0].mxu0
    %v2799 = vadd.f32 0.0, %v2798
    %v2800 = vpop.f32.mrb[0].mxu0
    %2801 = vmatprep.mubr.bf16.mxu0 0
    %2802 = vmatmul.mubr.bf16.gmra.mrb[0].mxu0 %v2562
    %v2803 = vpop.f32.mrb[0].mxu0
    %v2804 = vadd.f32 0.0, %v2803
    %v2805 = vpop.f32.mrb[0].mxu0
    %v2806 = vpop.f32.mrb[0].mxu0
    %v2807 = vadd.f32 0.0, %v2806
    %v2808 = vpop.f32.mrb[0].mxu0
    %2809 = vmatprep.mubr.bf16.mxu0 0
    %2810 = vmatmul.mubr.bf16.gmra.mrb[0].mxu0 %v2565
    %v2811 = vpop.f32.mrb[0].mxu0
    %v2812 = vadd.f32 0.0, %v2811
    %v2813 = vpop.f32.mrb[0].mxu0
    %v2814 = vpop.f32.mrb[0].mxu0
    %v2815 = vadd.f32 0.0, %v2814
    %v2816 = vpop.f32.mrb[0].mxu0
    %2817 = vmatprep.mubr.bf16.mxu0 0
    %2818 = vmatmul.mubr.bf16.gmra.mrb[0].mxu0 %v2568
    %v2819 = vpop.f32.mrb[0].mxu0
    %v2820 = vadd.f32 0.0, %v2819
    %v2821 = vpop.f32.mrb[0].mxu0
    %v2822 = vpop.f32.mrb[0].mxu0
    %v2823 = vadd.f32 0.0, %v2822
    %v2824 = vpop.f32.mrb[0].mxu0
    %2825 = vmatprep.mubr.bf16.mxu0 0
    %2826 = vmatmul.mubr.bf16.gmra.mrb[0].mxu0 %v2571
    %v2827 = vpop.f32.mrb[0].mxu0
    %v2828 = vadd.f32 0.0, %v2827
    %v2829 = vpop.f32.mrb[0].mxu0
    %v2830 = vpop.f32.mrb[0].mxu0
    %v2831 = vadd.f32 0.0, %v2830
    %v2832 = vpop.f32.mrb[0].mxu0
    %2833 = vmatprep.mubr.bf16.mxu0 0
    %2834 = vmatmul.mubr.bf16.gmra.mrb[0].mxu0 %v2574
    %v2835 = vpop.f32.mrb[0].mxu0
    %v2836 = vadd.f32 0.0, %v2835
    %v2837 = vpop.f32.mrb[0].mxu0
    %v2838 = vpop.f32.mrb[0].mxu0
    %v2839 = vadd.f32 0.0, %v2838
    %v2840 = vpop.f32.mrb[0].mxu0
    %2841 = vmatprep.mubr.bf16.mxu0 0
    %2842 = vmatmul.mubr.bf16.gmra.mrb[0].mxu0 %v2577
    %v2843 = vpop.f32.mrb[0].mxu0
    %v2844 = vadd.f32 0.0, %v2843
    %v2845 = vpop.f32.mrb[0].mxu0
    %v2846 = vpop.f32.mrb[0].mxu0
    %v2847 = vadd.f32 0.0, %v2846
    %v2848 = vpop.f32.mrb[0].mxu0
    %2849 = vmatprep.mubr.bf16.mxu0 0
    %2850 = vmatmul.mubr.bf16.gmra.mrb[0].mxu0 %v2580
    %v2851 = vpop.f32.mrb[0].mxu0
    %v2852 = vadd.f32 0.0, %v2851
    %v2853 = vpop.f32.mrb[0].mxu0
    %v2854 = vpop.f32.mrb[0].mxu0
    %v2855 = vadd.f32 0.0, %v2854
    %v2856 = vpop.f32.mrb[0].mxu0
    %2857 = vmatprep.mubr.bf16.mxu0 0
    %2858 = vmatmul.mubr.bf16.gmra.mrb[0].mxu0 %v2583
    %v2859 = vpop.f32.mrb[0].mxu0
    %v2860 = vadd.f32 0.0, %v2859
    %v2861 = vpop.f32.mrb[0].mxu0
    %v2862 = vpop.f32.mrb[0].mxu0
    %v2863 = vadd.f32 0.0, %v2862
    %v2864 = vpop.f32.mrb[0].mxu0
    %2865 = vmatprep.mubr.bf16.mxu0 0
    %2866 = vmatmul.mubr.bf16.gmra.mrb[0].mxu0 %v2586
    %v2867 = vpop.f32.mrb[0].mxu0
    %v2868 = vadd.f32 0.0, %v2867
    %v2869 = vpop.f32.mrb[0].mxu0
    %v2870 = vpop.f32.mrb[0].mxu0
    %v2871 = vadd.f32 0.0, %v2870
    %v2872 = vpop.f32.mrb[0].mxu0
    %2873 = vmatprep.mubr.bf16.mxu0 0
    %2874 = vmatmul.mubr.bf16.gmra.mrb[0].mxu0 %v2589
    %v2875 = vpop.f32.mrb[0].mxu0
    %v2876 = vadd.f32 0.0, %v2875
    %v2877 = vpop.f32.mrb[0].mxu0
    %v2878 = vpop.f32.mrb[0].mxu0
    %v2879 = vadd.f32 0.0, %v2878
    %v2880 = vpop.f32.mrb[0].mxu0
    %2881 = vmatprep.mubr.bf16.mxu0 0
    %2882 = vmatmul.mubr.bf16.gmra.mrb[0].mxu0 %v2592
    %v2883 = vpop.f32.mrb[0].mxu0
    %v2884 = vadd.f32 0.0, %v2883
    %v2885 = vpop.f32.mrb[0].mxu0
    %v2886 = vpop.f32.mrb[0].mxu0
    %v2887 = vadd.f32 0.0, %v2886
    %v2888 = vpop.f32.mrb[0].mxu0
    %2889 = vdwg.mxu0
    %v2890 = vmax.f32 %v2636, 0.0
    %v2891 = vmax.f32 %v2639, 0.0
    %v2892 = vmax.f32 %v2644, 0.0
    %v2893 = vmax.f32 %v2647, 0.0
    %v2894 = vmax.f32 %v2652, 0.0
    %v2895 = vmax.f32 %v2655, 0.0
    %v2896 = vmax.f32 %v2660, 0.0
    %v2897 = vmax.f32 %v2663, 0.0
    %v2898 = vmax.f32 %v2668, 0.0
    %v2899 = vmax.f32 %v2671, 0.0
    %v2900 = vmax.f32 %v2676, 0.0
    %v2901 = vmax.f32 %v2679, 0.0
    %v2902 = vmax.f32 %v2684, 0.0
    %v2903 = vmax.f32 %v2687, 0.0
    %v2904 = vmax.f32 %v2692, 0.0
    %v2905 = vmax.f32 %v2695, 0.0
    %v2906 = vmax.f32 %v2700, 0.0
    %v2907 = vmax.f32 %v2703, 0.0
    %v2908 = vmax.f32 %v2708, 0.0
    %v2909 = vmax.f32 %v2711, 0.0
    %v2910 = vmax.f32 %v2716, 0.0
    %v2911 = vmax.f32 %v2719, 0.0
    %v2912 = vmax.f32 %v2724, 0.0
    %v2913 = vmax.f32 %v2727, 0.0
    %v2914 = vmax.f32 %v2732, 0.0
    %v2915 = vmax.f32 %v2735, 0.0
    %v2916 = vmax.f32 %v2740, 0.0
    %v2917 = vmax.f32 %v2743, 0.0
    %v2918 = vmax.f32 %v2748, 0.0
    %v2919 = vmax.f32 %v2751, 0.0
    %v2920 = vmax.f32 %v2756, 0.0
    %v2921 = vmax.f32 %v2759, 0.0
    %v2922 = vmax.f32 %v2764, 0.0
    %v2923 = vmax.f32 %v2767, 0.0
    %v2924 = vmax.f32 %v2772, 0.0
    %v2925 = vmax.f32 %v2775, 0.0
    %v2926 = vmax.f32 %v2780, 0.0
    %v2927 = vmax.f32 %v2783, 0.0
    %v2928 = vmax.f32 %v2788, 0.0
    %v2929 = vmax.f32 %v2791, 0.0
    %v2930 = vmax.f32 %v2796, 0.0
    %v2931 = vmax.f32 %v2799, 0.0
    %v2932 = vmax.f32 %v2804, 0.0
    %v2933 = vmax.f32 %v2807, 0.0
    %v2934 = vmax.f32 %v2812, 0.0
    %v2935 = vmax.f32 %v2815, 0.0
    %v2936 = vmax.f32 %v2820, 0.0
    %v2937 = vmax.f32 %v2823, 0.0
    %v2938 = vmax.f32 %v2828, 0.0
    %v2939 = vmax.f32 %v2831, 0.0
    %v2940 = vmax.f32 %v2836, 0.0
    %v2941 = vmax.f32 %v2839, 0.0
    %v2942 = vmax.f32 %v2844, 0.0
    %v2943 = vmax.f32 %v2847, 0.0
    %v2944 = vmax.f32 %v2852, 0.0
    %v2945 = vmax.f32 %v2855, 0.0
    %v2946 = vmax.f32 %v2860, 0.0
    %v2947 = vmax.f32 %v2863, 0.0
    %v2948 = vmax.f32 %v2868, 0.0
    %v2949 = vmax.f32 %v2871, 0.0
    %v2950 = vmax.f32 %v2876, 0.0
    %v2951 = vmax.f32 %v2879, 0.0
    %v2952 = vmax.f32 %v2884, 0.0
    %v2953 = vmax.f32 %v2887, 0.0
    %v3018 = vcombine.high %v2890, %v2890
    %v3020 = vunpack.c.l.s4 1983009808
    %v3021 = vunpack.c.0.s8 %v3020
    %v3022 = vlaneseq
    %v3023 = vshrl.u32 %v3022, 7
    %v3024 = vsub.s32 %v3021, %v3023
    %v3025 = vrot.slane %v2890, %v3024
    %v3027 = vunpack.c.l.s4 1983009808
    %v3028 = vunpack.c.0.s8 %v3027
    %v3029 = vlaneseq
    %v3030 = vshrl.u32 %v3029, 7
    %v3031 = vsub.s32 %v3028, %v3030
    %v3032 = vrot.slane %v3018, %v3031
    %v3033 = vcombine.high %v3025, %v3025
    %v3034 = vcombine.high %v3032, %v3032
    %v3035 = vcombine.high %v2891, %v2891
    %v3037 = vunpack.c.l.s4 1983009808
    %v3038 = vunpack.c.0.s8 %v3037
    %v3039 = vlaneseq
    %v3040 = vshrl.u32 %v3039, 7
    %v3041 = vsub.s32 %v3038, %v3040
    %v3042 = vrot.slane %v2891, %v3041
    %v3044 = vunpack.c.l.s4 1983009808
    %v3045 = vunpack.c.0.s8 %v3044
    %v3046 = vlaneseq
    %v3047 = vshrl.u32 %v3046, 7
    %v3048 = vsub.s32 %v3045, %v3047
    %v3049 = vrot.slane %v3035, %v3048
    %v3050 = vcombine.high %v3042, %v3042
    %v3051 = vcombine.high %v3049, %v3049
    %v3052 = vcombine.high %v2892, %v2892
    %v3054 = vunpack.c.l.s4 1983009808
    %v3055 = vunpack.c.0.s8 %v3054
    %v3056 = vlaneseq
    %v3057 = vshrl.u32 %v3056, 7
    %v3058 = vsub.s32 %v3055, %v3057
    %v3059 = vrot.slane %v2892, %v3058
    %v3061 = vunpack.c.l.s4 1983009808
    %v3062 = vunpack.c.0.s8 %v3061
    %v3063 = vlaneseq
    %v3064 = vshrl.u32 %v3063, 7
    %v3065 = vsub.s32 %v3062, %v3064
    %v3066 = vrot.slane %v3052, %v3065
    %v3067 = vcombine.high %v3059, %v3059
    %v3068 = vcombine.high %v3066, %v3066
    %v3069 = vcombine.high %v2893, %v2893
    %v3071 = vunpack.c.l.s4 1983009808
    %v3072 = vunpack.c.0.s8 %v3071
    %v3073 = vlaneseq
    %v3074 = vshrl.u32 %v3073, 7
    %v3075 = vsub.s32 %v3072, %v3074
    %v3076 = vrot.slane %v2893, %v3075
    %v3078 = vunpack.c.l.s4 1983009808
    %v3079 = vunpack.c.0.s8 %v3078
    %v3080 = vlaneseq
    %v3081 = vshrl.u32 %v3080, 7
    %v3082 = vsub.s32 %v3079, %v3081
    %v3083 = vrot.slane %v3069, %v3082
    %v3084 = vcombine.high %v3076, %v3076
    %v3085 = vcombine.high %v3083, %v3083
    %v3086 = vcombine.high %v2894, %v2894
    %v3088 = vunpack.c.l.s4 1983009808
    %v3089 = vunpack.c.0.s8 %v3088
    %v3090 = vlaneseq
    %v3091 = vshrl.u32 %v3090, 7
    %v3092 = vsub.s32 %v3089, %v3091
    %v3093 = vrot.slane %v2894, %v3092
    %v3095 = vunpack.c.l.s4 1983009808
    %v3096 = vunpack.c.0.s8 %v3095
    %v3097 = vlaneseq
    %v3098 = vshrl.u32 %v3097, 7
    %v3099 = vsub.s32 %v3096, %v3098
    %v3100 = vrot.slane %v3086, %v3099
    %v3101 = vcombine.high %v3093, %v3093
    %v3102 = vcombine.high %v3100, %v3100
    %v3103 = vcombine.high %v2895, %v2895
    %v3105 = vunpack.c.l.s4 1983009808
    %v3106 = vunpack.c.0.s8 %v3105
    %v3107 = vlaneseq
    %v3108 = vshrl.u32 %v3107, 7
    %v3109 = vsub.s32 %v3106, %v3108
    %v3110 = vrot.slane %v2895, %v3109
    %v3112 = vunpack.c.l.s4 1983009808
    %v3113 = vunpack.c.0.s8 %v3112
    %v3114 = vlaneseq
    %v3115 = vshrl.u32 %v3114, 7
    %v3116 = vsub.s32 %v3113, %v3115
    %v3117 = vrot.slane %v3103, %v3116
    %v3118 = vcombine.high %v3110, %v3110
    %v3119 = vcombine.high %v3117, %v3117
    %v3120 = vcombine.high %v2896, %v2896
    %v3122 = vunpack.c.l.s4 1983009808
    %v3123 = vunpack.c.0.s8 %v3122
    %v3124 = vlaneseq
    %v3125 = vshrl.u32 %v3124, 7
    %v3126 = vsub.s32 %v3123, %v3125
    %v3127 = vrot.slane %v2896, %v3126
    %v3129 = vunpack.c.l.s4 1983009808
    %v3130 = vunpack.c.0.s8 %v3129
    %v3131 = vlaneseq
    %v3132 = vshrl.u32 %v3131, 7
    %v3133 = vsub.s32 %v3130, %v3132
    %v3134 = vrot.slane %v3120, %v3133
    %v3135 = vcombine.high %v3127, %v3127
    %v3136 = vcombine.high %v3134, %v3134
    %v3137 = vcombine.high %v2897, %v2897
    %v3139 = vunpack.c.l.s4 1983009808
    %v3140 = vunpack.c.0.s8 %v3139
    %v3141 = vlaneseq
    %v3142 = vshrl.u32 %v3141, 7
    %v3143 = vsub.s32 %v3140, %v3142
    %v3144 = vrot.slane %v2897, %v3143
    %v3146 = vunpack.c.l.s4 1983009808
    %v3147 = vunpack.c.0.s8 %v3146
    %v3148 = vlaneseq
    %v3149 = vshrl.u32 %v3148, 7
    %v3150 = vsub.s32 %v3147, %v3149
    %v3151 = vrot.slane %v3137, %v3150
    %v3152 = vcombine.high %v3144, %v3144
    %v3153 = vcombine.high %v3151, %v3151
    %v3154 = vcombine.high %v2898, %v2898
    %v3156 = vunpack.c.l.s4 1983009808
    %v3157 = vunpack.c.0.s8 %v3156
    %v3158 = vlaneseq
    %v3159 = vshrl.u32 %v3158, 7
    %v3160 = vsub.s32 %v3157, %v3159
    %v3161 = vrot.slane %v2898, %v3160
    %v3163 = vunpack.c.l.s4 1983009808
    %v3164 = vunpack.c.0.s8 %v3163
    %v3165 = vlaneseq
    %v3166 = vshrl.u32 %v3165, 7
    %v3167 = vsub.s32 %v3164, %v3166
    %v3168 = vrot.slane %v3154, %v3167
    %v3169 = vcombine.high %v3161, %v3161
    %v3170 = vcombine.high %v3168, %v3168
    %v3171 = vcombine.high %v2899, %v2899
    %v3173 = vunpack.c.l.s4 1983009808
    %v3174 = vunpack.c.0.s8 %v3173
    %v3175 = vlaneseq
    %v3176 = vshrl.u32 %v3175, 7
    %v3177 = vsub.s32 %v3174, %v3176
    %v3178 = vrot.slane %v2899, %v3177
    %v3180 = vunpack.c.l.s4 1983009808
    %v3181 = vunpack.c.0.s8 %v3180
    %v3182 = vlaneseq
    %v3183 = vshrl.u32 %v3182, 7
    %v3184 = vsub.s32 %v3181, %v3183
    %v3185 = vrot.slane %v3171, %v3184
    %v3186 = vcombine.high %v3178, %v3178
    %v3187 = vcombine.high %v3185, %v3185
    %v3188 = vcombine.high %v2900, %v2900
    %v3190 = vunpack.c.l.s4 1983009808
    %v3191 = vunpack.c.0.s8 %v3190
    %v3192 = vlaneseq
    %v3193 = vshrl.u32 %v3192, 7
    %v3194 = vsub.s32 %v3191, %v3193
    %v3195 = vrot.slane %v2900, %v3194
    %v3197 = vunpack.c.l.s4 1983009808
    %v3198 = vunpack.c.0.s8 %v3197
    %v3199 = vlaneseq
    %v3200 = vshrl.u32 %v3199, 7
    %v3201 = vsub.s32 %v3198, %v3200
    %v3202 = vrot.slane %v3188, %v3201
    %v3203 = vcombine.high %v3195, %v3195
    %v3204 = vcombine.high %v3202, %v3202
    %v3205 = vcombine.high %v2901, %v2901
    %v3207 = vunpack.c.l.s4 1983009808
    %v3208 = vunpack.c.0.s8 %v3207
    %v3209 = vlaneseq
    %v3210 = vshrl.u32 %v3209, 7
    %v3211 = vsub.s32 %v3208, %v3210
    %v3212 = vrot.slane %v2901, %v3211
    %v3214 = vunpack.c.l.s4 1983009808
    %v3215 = vunpack.c.0.s8 %v3214
    %v3216 = vlaneseq
    %v3217 = vshrl.u32 %v3216, 7
    %v3218 = vsub.s32 %v3215, %v3217
    %v3219 = vrot.slane %v3205, %v3218
    %v3220 = vcombine.high %v3212, %v3212
    %v3221 = vcombine.high %v3219, %v3219
    %v3222 = vcombine.high %v2902, %v2902
    %v3224 = vunpack.c.l.s4 1983009808
    %v3225 = vunpack.c.0.s8 %v3224
    %v3226 = vlaneseq
    %v3227 = vshrl.u32 %v3226, 7
    %v3228 = vsub.s32 %v3225, %v3227
    %v3229 = vrot.slane %v2902, %v3228
    %v3231 = vunpack.c.l.s4 1983009808
    %v3232 = vunpack.c.0.s8 %v3231
    %v3233 = vlaneseq
    %v3234 = vshrl.u32 %v3233, 7
    %v3235 = vsub.s32 %v3232, %v3234
    %v3236 = vrot.slane %v3222, %v3235
    %v3237 = vcombine.high %v3229, %v3229
    %v3238 = vcombine.high %v3236, %v3236
    %v3239 = vcombine.high %v2903, %v2903
    %v3241 = vunpack.c.l.s4 1983009808
    %v3242 = vunpack.c.0.s8 %v3241
    %v3243 = vlaneseq
    %v3244 = vshrl.u32 %v3243, 7
    %v3245 = vsub.s32 %v3242, %v3244
    %v3246 = vrot.slane %v2903, %v3245
    %v3248 = vunpack.c.l.s4 1983009808
    %v3249 = vunpack.c.0.s8 %v3248
    %v3250 = vlaneseq
    %v3251 = vshrl.u32 %v3250, 7
    %v3252 = vsub.s32 %v3249, %v3251
    %v3253 = vrot.slane %v3239, %v3252
    %v3254 = vcombine.high %v3246, %v3246
    %v3255 = vcombine.high %v3253, %v3253
    %v3256 = vcombine.high %v2904, %v2904
    %v3258 = vunpack.c.l.s4 1983009808
    %v3259 = vunpack.c.0.s8 %v3258
    %v3260 = vlaneseq
    %v3261 = vshrl.u32 %v3260, 7
    %v3262 = vsub.s32 %v3259, %v3261
    %v3263 = vrot.slane %v2904, %v3262
    %v3265 = vunpack.c.l.s4 1983009808
    %v3266 = vunpack.c.0.s8 %v3265
    %v3267 = vlaneseq
    %v3268 = vshrl.u32 %v3267, 7
    %v3269 = vsub.s32 %v3266, %v3268
    %v3270 = vrot.slane %v3256, %v3269
    %v3271 = vcombine.high %v3263, %v3263
    %v3272 = vcombine.high %v3270, %v3270
    %v3273 = vcombine.high %v2905, %v2905
    %v3275 = vunpack.c.l.s4 1983009808
    %v3276 = vunpack.c.0.s8 %v3275
    %v3277 = vlaneseq
    %v3278 = vshrl.u32 %v3277, 7
    %v3279 = vsub.s32 %v3276, %v3278
    %v3280 = vrot.slane %v2905, %v3279
    %v3282 = vunpack.c.l.s4 1983009808
    %v3283 = vunpack.c.0.s8 %v3282
    %v3284 = vlaneseq
    %v3285 = vshrl.u32 %v3284, 7
    %v3286 = vsub.s32 %v3283, %v3285
    %v3287 = vrot.slane %v3273, %v3286
    %v3288 = vcombine.high %v3280, %v3280
    %v3289 = vcombine.high %v3287, %v3287
    %v3290 = vcombine.high %v2906, %v2906
    %v3292 = vunpack.c.l.s4 1983009808
    %v3293 = vunpack.c.0.s8 %v3292
    %v3294 = vlaneseq
    %v3295 = vshrl.u32 %v3294, 7
    %v3296 = vsub.s32 %v3293, %v3295
    %v3297 = vrot.slane %v2906, %v3296
    %v3299 = vunpack.c.l.s4 1983009808
    %v3300 = vunpack.c.0.s8 %v3299
    %v3301 = vlaneseq
    %v3302 = vshrl.u32 %v3301, 7
    %v3303 = vsub.s32 %v3300, %v3302
    %v3304 = vrot.slane %v3290, %v3303
    %v3305 = vcombine.high %v3297, %v3297
    %v3306 = vcombine.high %v3304, %v3304
    %v3307 = vcombine.high %v2907, %v2907
    %v3309 = vunpack.c.l.s4 1983009808
    %v3310 = vunpack.c.0.s8 %v3309
    %v3311 = vlaneseq
    %v3312 = vshrl.u32 %v3311, 7
    %v3313 = vsub.s32 %v3310, %v3312
    %v3314 = vrot.slane %v2907, %v3313
    %v3316 = vunpack.c.l.s4 1983009808
    %v3317 = vunpack.c.0.s8 %v3316
    %v3318 = vlaneseq
    %v3319 = vshrl.u32 %v3318, 7
    %v3320 = vsub.s32 %v3317, %v3319
    %v3321 = vrot.slane %v3307, %v3320
    %v3322 = vcombine.high %v3314, %v3314
    %v3323 = vcombine.high %v3321, %v3321
    %v3324 = vcombine.high %v2908, %v2908
    %v3326 = vunpack.c.l.s4 1983009808
    %v3327 = vunpack.c.0.s8 %v3326
    %v3328 = vlaneseq
    %v3329 = vshrl.u32 %v3328, 7
    %v3330 = vsub.s32 %v3327, %v3329
    %v3331 = vrot.slane %v2908, %v3330
    %v3333 = vunpack.c.l.s4 1983009808
    %v3334 = vunpack.c.0.s8 %v3333
    %v3335 = vlaneseq
    %v3336 = vshrl.u32 %v3335, 7
    %v3337 = vsub.s32 %v3334, %v3336
    %v3338 = vrot.slane %v3324, %v3337
    %v3339 = vcombine.high %v3331, %v3331
    %v3340 = vcombine.high %v3338, %v3338
    %v3341 = vcombine.high %v2909, %v2909
    %v3343 = vunpack.c.l.s4 1983009808
    %v3344 = vunpack.c.0.s8 %v3343
    %v3345 = vlaneseq
    %v3346 = vshrl.u32 %v3345, 7
    %v3347 = vsub.s32 %v3344, %v3346
    %v3348 = vrot.slane %v2909, %v3347
    %v3350 = vunpack.c.l.s4 1983009808
    %v3351 = vunpack.c.0.s8 %v3350
    %v3352 = vlaneseq
    %v3353 = vshrl.u32 %v3352, 7
    %v3354 = vsub.s32 %v3351, %v3353
    %v3355 = vrot.slane %v3341, %v3354
    %v3356 = vcombine.high %v3348, %v3348
    %v3357 = vcombine.high %v3355, %v3355
    %v3358 = vcombine.high %v2910, %v2910
    %v3360 = vunpack.c.l.s4 1983009808
    %v3361 = vunpack.c.0.s8 %v3360
    %v3362 = vlaneseq
    %v3363 = vshrl.u32 %v3362, 7
    %v3364 = vsub.s32 %v3361, %v3363
    %v3365 = vrot.slane %v2910, %v3364
    %v3367 = vunpack.c.l.s4 1983009808
    %v3368 = vunpack.c.0.s8 %v3367
    %v3369 = vlaneseq
    %v3370 = vshrl.u32 %v3369, 7
    %v3371 = vsub.s32 %v3368, %v3370
    %v3372 = vrot.slane %v3358, %v3371
    %v3373 = vcombine.high %v3365, %v3365
    %v3374 = vcombine.high %v3372, %v3372
    %v3375 = vcombine.high %v2911, %v2911
    %v3377 = vunpack.c.l.s4 1983009808
    %v3378 = vunpack.c.0.s8 %v3377
    %v3379 = vlaneseq
    %v3380 = vshrl.u32 %v3379, 7
    %v3381 = vsub.s32 %v3378, %v3380
    %v3382 = vrot.slane %v2911, %v3381
    %v3384 = vunpack.c.l.s4 1983009808
    %v3385 = vunpack.c.0.s8 %v3384
    %v3386 = vlaneseq
    %v3387 = vshrl.u32 %v3386, 7
    %v3388 = vsub.s32 %v3385, %v3387
    %v3389 = vrot.slane %v3375, %v3388
    %v3390 = vcombine.high %v3382, %v3382
    %v3391 = vcombine.high %v3389, %v3389
    %v3392 = vcombine.high %v2912, %v2912
    %v3394 = vunpack.c.l.s4 1983009808
    %v3395 = vunpack.c.0.s8 %v3394
    %v3396 = vlaneseq
    %v3397 = vshrl.u32 %v3396, 7
    %v3398 = vsub.s32 %v3395, %v3397
    %v3399 = vrot.slane %v2912, %v3398
    %v3401 = vunpack.c.l.s4 1983009808
    %v3402 = vunpack.c.0.s8 %v3401
    %v3403 = vlaneseq
    %v3404 = vshrl.u32 %v3403, 7
    %v3405 = vsub.s32 %v3402, %v3404
    %v3406 = vrot.slane %v3392, %v3405
    %v3407 = vcombine.high %v3399, %v3399
    %v3408 = vcombine.high %v3406, %v3406
    %v3409 = vcombine.high %v2913, %v2913
    %v3411 = vunpack.c.l.s4 1983009808
    %v3412 = vunpack.c.0.s8 %v3411
    %v3413 = vlaneseq
    %v3414 = vshrl.u32 %v3413, 7
    %v3415 = vsub.s32 %v3412, %v3414
    %v3416 = vrot.slane %v2913, %v3415
    %v3418 = vunpack.c.l.s4 1983009808
    %v3419 = vunpack.c.0.s8 %v3418
    %v3420 = vlaneseq
    %v3421 = vshrl.u32 %v3420, 7
    %v3422 = vsub.s32 %v3419, %v3421
    %v3423 = vrot.slane %v3409, %v3422
    %v3424 = vcombine.high %v3416, %v3416
    %v3425 = vcombine.high %v3423, %v3423
    %v3426 = vcombine.high %v2914, %v2914
    %v3428 = vunpack.c.l.s4 1983009808
    %v3429 = vunpack.c.0.s8 %v3428
    %v3430 = vlaneseq
    %v3431 = vshrl.u32 %v3430, 7
    %v3432 = vsub.s32 %v3429, %v3431
    %v3433 = vrot.slane %v2914, %v3432
    %v3435 = vunpack.c.l.s4 1983009808
    %v3436 = vunpack.c.0.s8 %v3435
    %v3437 = vlaneseq
    %v3438 = vshrl.u32 %v3437, 7
    %v3439 = vsub.s32 %v3436, %v3438
    %v3440 = vrot.slane %v3426, %v3439
    %v3441 = vcombine.high %v3433, %v3433
    %v3442 = vcombine.high %v3440, %v3440
    %v3443 = vcombine.high %v2915, %v2915
    %v3445 = vunpack.c.l.s4 1983009808
    %v3446 = vunpack.c.0.s8 %v3445
    %v3447 = vlaneseq
    %v3448 = vshrl.u32 %v3447, 7
    %v3449 = vsub.s32 %v3446, %v3448
    %v3450 = vrot.slane %v2915, %v3449
    %v3452 = vunpack.c.l.s4 1983009808
    %v3453 = vunpack.c.0.s8 %v3452
    %v3454 = vlaneseq
    %v3455 = vshrl.u32 %v3454, 7
    %v3456 = vsub.s32 %v3453, %v3455
    %v3457 = vrot.slane %v3443, %v3456
    %v3458 = vcombine.high %v3450, %v3450
    %v3459 = vcombine.high %v3457, %v3457
    %v3460 = vcombine.high %v2916, %v2916
    %v3462 = vunpack.c.l.s4 1983009808
    %v3463 = vunpack.c.0.s8 %v3462
    %v3464 = vlaneseq
    %v3465 = vshrl.u32 %v3464, 7
    %v3466 = vsub.s32 %v3463, %v3465
    %v3467 = vrot.slane %v2916, %v3466
    %v3469 = vunpack.c.l.s4 1983009808
    %v3470 = vunpack.c.0.s8 %v3469
    %v3471 = vlaneseq
    %v3472 = vshrl.u32 %v3471, 7
    %v3473 = vsub.s32 %v3470, %v3472
    %v3474 = vrot.slane %v3460, %v3473
    %v3475 = vcombine.high %v3467, %v3467
    %v3476 = vcombine.high %v3474, %v3474
    %v3477 = vcombine.high %v2917, %v2917
    %v3479 = vunpack.c.l.s4 1983009808
    %v3480 = vunpack.c.0.s8 %v3479
    %v3481 = vlaneseq
    %v3482 = vshrl.u32 %v3481, 7
    %v3483 = vsub.s32 %v3480, %v3482
    %v3484 = vrot.slane %v2917, %v3483
    %v3486 = vunpack.c.l.s4 1983009808
    %v3487 = vunpack.c.0.s8 %v3486
    %v3488 = vlaneseq
    %v3489 = vshrl.u32 %v3488, 7
    %v3490 = vsub.s32 %v3487, %v3489
    %v3491 = vrot.slane %v3477, %v3490
    %v3492 = vcombine.high %v3484, %v3484
    %v3493 = vcombine.high %v3491, %v3491
    %v3494 = vcombine.high %v2918, %v2918
    %v3496 = vunpack.c.l.s4 1983009808
    %v3497 = vunpack.c.0.s8 %v3496
    %v3498 = vlaneseq
    %v3499 = vshrl.u32 %v3498, 7
    %v3500 = vsub.s32 %v3497, %v3499
    %v3501 = vrot.slane %v2918, %v3500
    %v3503 = vunpack.c.l.s4 1983009808
    %v3504 = vunpack.c.0.s8 %v3503
    %v3505 = vlaneseq
    %v3506 = vshrl.u32 %v3505, 7
    %v3507 = vsub.s32 %v3504, %v3506
    %v3508 = vrot.slane %v3494, %v3507
    %v3509 = vcombine.high %v3501, %v3501
    %v3510 = vcombine.high %v3508, %v3508
    %v3511 = vcombine.high %v2919, %v2919
    %v3513 = vunpack.c.l.s4 1983009808
    %v3514 = vunpack.c.0.s8 %v3513
    %v3515 = vlaneseq
    %v3516 = vshrl.u32 %v3515, 7
    %v3517 = vsub.s32 %v3514, %v3516
    %v3518 = vrot.slane %v2919, %v3517
    %v3520 = vunpack.c.l.s4 1983009808
    %v3521 = vunpack.c.0.s8 %v3520
    %v3522 = vlaneseq
    %v3523 = vshrl.u32 %v3522, 7
    %v3524 = vsub.s32 %v3521, %v3523
    %v3525 = vrot.slane %v3511, %v3524
    %v3526 = vcombine.high %v3518, %v3518
    %v3527 = vcombine.high %v3525, %v3525
    %v3528 = vcombine.high %v2920, %v2920
    %v3530 = vunpack.c.l.s4 1983009808
    %v3531 = vunpack.c.0.s8 %v3530
    %v3532 = vlaneseq
    %v3533 = vshrl.u32 %v3532, 7
    %v3534 = vsub.s32 %v3531, %v3533
    %v3535 = vrot.slane %v2920, %v3534
    %v3537 = vunpack.c.l.s4 1983009808
    %v3538 = vunpack.c.0.s8 %v3537
    %v3539 = vlaneseq
    %v3540 = vshrl.u32 %v3539, 7
    %v3541 = vsub.s32 %v3538, %v3540
    %v3542 = vrot.slane %v3528, %v3541
    %v3543 = vcombine.high %v3535, %v3535
    %v3544 = vcombine.high %v3542, %v3542
    %v3545 = vcombine.high %v2921, %v2921
    %v3547 = vunpack.c.l.s4 1983009808
    %v3548 = vunpack.c.0.s8 %v3547
    %v3549 = vlaneseq
    %v3550 = vshrl.u32 %v3549, 7
    %v3551 = vsub.s32 %v3548, %v3550
    %v3552 = vrot.slane %v2921, %v3551
    %v3554 = vunpack.c.l.s4 1983009808
    %v3555 = vunpack.c.0.s8 %v3554
    %v3556 = vlaneseq
    %v3557 = vshrl.u32 %v3556, 7
    %v3558 = vsub.s32 %v3555, %v3557
    %v3559 = vrot.slane %v3545, %v3558
    %v3560 = vcombine.high %v3552, %v3552
    %v3561 = vcombine.high %v3559, %v3559
    %v3562 = vcombine.high %v2922, %v2922
    %v3564 = vunpack.c.l.s4 1983009808
    %v3565 = vunpack.c.0.s8 %v3564
    %v3566 = vlaneseq
    %v3567 = vshrl.u32 %v3566, 7
    %v3568 = vsub.s32 %v3565, %v3567
    %v3569 = vrot.slane %v2922, %v3568
    %v3571 = vunpack.c.l.s4 1983009808
    %v3572 = vunpack.c.0.s8 %v3571
    %v3573 = vlaneseq
    %v3574 = vshrl.u32 %v3573, 7
    %v3575 = vsub.s32 %v3572, %v3574
    %v3576 = vrot.slane %v3562, %v3575
    %v3577 = vcombine.high %v3569, %v3569
    %v3578 = vcombine.high %v3576, %v3576
    %v3579 = vcombine.high %v2923, %v2923
    %v3581 = vunpack.c.l.s4 1983009808
    %v3582 = vunpack.c.0.s8 %v3581
    %v3583 = vlaneseq
    %v3584 = vshrl.u32 %v3583, 7
    %v3585 = vsub.s32 %v3582, %v3584
    %v3586 = vrot.slane %v2923, %v3585
    %v3588 = vunpack.c.l.s4 1983009808
    %v3589 = vunpack.c.0.s8 %v3588
    %v3590 = vlaneseq
    %v3591 = vshrl.u32 %v3590, 7
    %v3592 = vsub.s32 %v3589, %v3591
    %v3593 = vrot.slane %v3579, %v3592
    %v3594 = vcombine.high %v3586, %v3586
    %v3595 = vcombine.high %v3593, %v3593
    %v3596 = vcombine.high %v2924, %v2924
    %v3598 = vunpack.c.l.s4 1983009808
    %v3599 = vunpack.c.0.s8 %v3598
    %v3600 = vlaneseq
    %v3601 = vshrl.u32 %v3600, 7
    %v3602 = vsub.s32 %v3599, %v3601
    %v3603 = vrot.slane %v2924, %v3602
    %v3605 = vunpack.c.l.s4 1983009808
    %v3606 = vunpack.c.0.s8 %v3605
    %v3607 = vlaneseq
    %v3608 = vshrl.u32 %v3607, 7
    %v3609 = vsub.s32 %v3606, %v3608
    %v3610 = vrot.slane %v3596, %v3609
    %v3611 = vcombine.high %v3603, %v3603
    %v3612 = vcombine.high %v3610, %v3610
    %v3613 = vcombine.high %v2925, %v2925
    %v3615 = vunpack.c.l.s4 1983009808
    %v3616 = vunpack.c.0.s8 %v3615
    %v3617 = vlaneseq
    %v3618 = vshrl.u32 %v3617, 7
    %v3619 = vsub.s32 %v3616, %v3618
    %v3620 = vrot.slane %v2925, %v3619
    %v3622 = vunpack.c.l.s4 1983009808
    %v3623 = vunpack.c.0.s8 %v3622
    %v3624 = vlaneseq
    %v3625 = vshrl.u32 %v3624, 7
    %v3626 = vsub.s32 %v3623, %v3625
    %v3627 = vrot.slane %v3613, %v3626
    %v3628 = vcombine.high %v3620, %v3620
    %v3629 = vcombine.high %v3627, %v3627
    %v3630 = vcombine.high %v2926, %v2926
    %v3632 = vunpack.c.l.s4 1983009808
    %v3633 = vunpack.c.0.s8 %v3632
    %v3634 = vlaneseq
    %v3635 = vshrl.u32 %v3634, 7
    %v3636 = vsub.s32 %v3633, %v3635
    %v3637 = vrot.slane %v2926, %v3636
    %v3639 = vunpack.c.l.s4 1983009808
    %v3640 = vunpack.c.0.s8 %v3639
    %v3641 = vlaneseq
    %v3642 = vshrl.u32 %v3641, 7
    %v3643 = vsub.s32 %v3640, %v3642
    %v3644 = vrot.slane %v3630, %v3643
    %v3645 = vcombine.high %v3637, %v3637
    %v3646 = vcombine.high %v3644, %v3644
    %v3647 = vcombine.high %v2927, %v2927
    %v3649 = vunpack.c.l.s4 1983009808
    %v3650 = vunpack.c.0.s8 %v3649
    %v3651 = vlaneseq
    %v3652 = vshrl.u32 %v3651, 7
    %v3653 = vsub.s32 %v3650, %v3652
    %v3654 = vrot.slane %v2927, %v3653
    %v3656 = vunpack.c.l.s4 1983009808
    %v3657 = vunpack.c.0.s8 %v3656
    %v3658 = vlaneseq
    %v3659 = vshrl.u32 %v3658, 7
    %v3660 = vsub.s32 %v3657, %v3659
    %v3661 = vrot.slane %v3647, %v3660
    %v3662 = vcombine.high %v3654, %v3654
    %v3663 = vcombine.high %v3661, %v3661
    %v3664 = vcombine.high %v2928, %v2928
    %v3666 = vunpack.c.l.s4 1983009808
    %v3667 = vunpack.c.0.s8 %v3666
    %v3668 = vlaneseq
    %v3669 = vshrl.u32 %v3668, 7
    %v3670 = vsub.s32 %v3667, %v3669
    %v3671 = vrot.slane %v2928, %v3670
    %v3673 = vunpack.c.l.s4 1983009808
    %v3674 = vunpack.c.0.s8 %v3673
    %v3675 = vlaneseq
    %v3676 = vshrl.u32 %v3675, 7
    %v3677 = vsub.s32 %v3674, %v3676
    %v3678 = vrot.slane %v3664, %v3677
    %v3679 = vcombine.high %v3671, %v3671
    %v3680 = vcombine.high %v3678, %v3678
    %v3681 = vcombine.high %v2929, %v2929
    %v3683 = vunpack.c.l.s4 1983009808
    %v3684 = vunpack.c.0.s8 %v3683
    %v3685 = vlaneseq
    %v3686 = vshrl.u32 %v3685, 7
    %v3687 = vsub.s32 %v3684, %v3686
    %v3688 = vrot.slane %v2929, %v3687
    %v3690 = vunpack.c.l.s4 1983009808
    %v3691 = vunpack.c.0.s8 %v3690
    %v3692 = vlaneseq
    %v3693 = vshrl.u32 %v3692, 7
    %v3694 = vsub.s32 %v3691, %v3693
    %v3695 = vrot.slane %v3681, %v3694
    %v3696 = vcombine.high %v3688, %v3688
    %v3697 = vcombine.high %v3695, %v3695
    %v3698 = vcombine.high %v2930, %v2930
    %v3700 = vunpack.c.l.s4 1983009808
    %v3701 = vunpack.c.0.s8 %v3700
    %v3702 = vlaneseq
    %v3703 = vshrl.u32 %v3702, 7
    %v3704 = vsub.s32 %v3701, %v3703
    %v3705 = vrot.slane %v2930, %v3704
    %v3707 = vunpack.c.l.s4 1983009808
    %v3708 = vunpack.c.0.s8 %v3707
    %v3709 = vlaneseq
    %v3710 = vshrl.u32 %v3709, 7
    %v3711 = vsub.s32 %v3708, %v3710
    %v3712 = vrot.slane %v3698, %v3711
    %v3713 = vcombine.high %v3705, %v3705
    %v3714 = vcombine.high %v3712, %v3712
    %v3715 = vcombine.high %v2931, %v2931
    %v3717 = vunpack.c.l.s4 1983009808
    %v3718 = vunpack.c.0.s8 %v3717
    %v3719 = vlaneseq
    %v3720 = vshrl.u32 %v3719, 7
    %v3721 = vsub.s32 %v3718, %v3720
    %v3722 = vrot.slane %v2931, %v3721
    %v3724 = vunpack.c.l.s4 1983009808
    %v3725 = vunpack.c.0.s8 %v3724
    %v3726 = vlaneseq
    %v3727 = vshrl.u32 %v3726, 7
    %v3728 = vsub.s32 %v3725, %v3727
    %v3729 = vrot.slane %v3715, %v3728
    %v3730 = vcombine.high %v3722, %v3722
    %v3731 = vcombine.high %v3729, %v3729
    %v3732 = vcombine.high %v2932, %v2932
    %v3734 = vunpack.c.l.s4 1983009808
    %v3735 = vunpack.c.0.s8 %v3734
    %v3736 = vlaneseq
    %v3737 = vshrl.u32 %v3736, 7
    %v3738 = vsub.s32 %v3735, %v3737
    %v3739 = vrot.slane %v2932, %v3738
    %v3741 = vunpack.c.l.s4 1983009808
    %v3742 = vunpack.c.0.s8 %v3741
    %v3743 = vlaneseq
    %v3744 = vshrl.u32 %v3743, 7
    %v3745 = vsub.s32 %v3742, %v3744
    %v3746 = vrot.slane %v3732, %v3745
    %v3747 = vcombine.high %v3739, %v3739
    %v3748 = vcombine.high %v3746, %v3746
    %v3749 = vcombine.high %v2933, %v2933
    %v3751 = vunpack.c.l.s4 1983009808
    %v3752 = vunpack.c.0.s8 %v3751
    %v3753 = vlaneseq
    %v3754 = vshrl.u32 %v3753, 7
    %v3755 = vsub.s32 %v3752, %v3754
    %v3756 = vrot.slane %v2933, %v3755
    %v3758 = vunpack.c.l.s4 1983009808
    %v3759 = vunpack.c.0.s8 %v3758
    %v3760 = vlaneseq
    %v3761 = vshrl.u32 %v3760, 7
    %v3762 = vsub.s32 %v3759, %v3761
    %v3763 = vrot.slane %v3749, %v3762
    %v3764 = vcombine.high %v3756, %v3756
    %v3765 = vcombine.high %v3763, %v3763
    %v3766 = vcombine.high %v2934, %v2934
    %v3768 = vunpack.c.l.s4 1983009808
    %v3769 = vunpack.c.0.s8 %v3768
    %v3770 = vlaneseq
    %v3771 = vshrl.u32 %v3770, 7
    %v3772 = vsub.s32 %v3769, %v3771
    %v3773 = vrot.slane %v2934, %v3772
    %v3775 = vunpack.c.l.s4 1983009808
    %v3776 = vunpack.c.0.s8 %v3775
    %v3777 = vlaneseq
    %v3778 = vshrl.u32 %v3777, 7
    %v3779 = vsub.s32 %v3776, %v3778
    %v3780 = vrot.slane %v3766, %v3779
    %v3781 = vcombine.high %v3773, %v3773
    %v3782 = vcombine.high %v3780, %v3780
    %v3783 = vcombine.high %v2935, %v2935
    %v3785 = vunpack.c.l.s4 1983009808
    %v3786 = vunpack.c.0.s8 %v3785
    %v3787 = vlaneseq
    %v3788 = vshrl.u32 %v3787, 7
    %v3789 = vsub.s32 %v3786, %v3788
    %v3790 = vrot.slane %v2935, %v3789
    %v3792 = vunpack.c.l.s4 1983009808
    %v3793 = vunpack.c.0.s8 %v3792
    %v3794 = vlaneseq
    %v3795 = vshrl.u32 %v3794, 7
    %v3796 = vsub.s32 %v3793, %v3795
    %v3797 = vrot.slane %v3783, %v3796
    %v3798 = vcombine.high %v3790, %v3790
    %v3799 = vcombine.high %v3797, %v3797
    %v3800 = vcombine.high %v2936, %v2936
    %v3802 = vunpack.c.l.s4 1983009808
    %v3803 = vunpack.c.0.s8 %v3802
    %v3804 = vlaneseq
    %v3805 = vshrl.u32 %v3804, 7
    %v3806 = vsub.s32 %v3803, %v3805
    %v3807 = vrot.slane %v2936, %v3806
    %v3809 = vunpack.c.l.s4 1983009808
    %v3810 = vunpack.c.0.s8 %v3809
    %v3811 = vlaneseq
    %v3812 = vshrl.u32 %v3811, 7
    %v3813 = vsub.s32 %v3810, %v3812
    %v3814 = vrot.slane %v3800, %v3813
    %v3815 = vcombine.high %v3807, %v3807
    %v3816 = vcombine.high %v3814, %v3814
    %v3817 = vcombine.high %v2937, %v2937
    %v3819 = vunpack.c.l.s4 1983009808
    %v3820 = vunpack.c.0.s8 %v3819
    %v3821 = vlaneseq
    %v3822 = vshrl.u32 %v3821, 7
    %v3823 = vsub.s32 %v3820, %v3822
    %v3824 = vrot.slane %v2937, %v3823
    %v3826 = vunpack.c.l.s4 1983009808
    %v3827 = vunpack.c.0.s8 %v3826
    %v3828 = vlaneseq
    %v3829 = vshrl.u32 %v3828, 7
    %v3830 = vsub.s32 %v3827, %v3829
    %v3831 = vrot.slane %v3817, %v3830
    %v3832 = vcombine.high %v3824, %v3824
    %v3833 = vcombine.high %v3831, %v3831
    %v3834 = vcombine.high %v2938, %v2938
    %v3836 = vunpack.c.l.s4 1983009808
    %v3837 = vunpack.c.0.s8 %v3836
    %v3838 = vlaneseq
    %v3839 = vshrl.u32 %v3838, 7
    %v3840 = vsub.s32 %v3837, %v3839
    %v3841 = vrot.slane %v2938, %v3840
    %v3843 = vunpack.c.l.s4 1983009808
    %v3844 = vunpack.c.0.s8 %v3843
    %v3845 = vlaneseq
    %v3846 = vshrl.u32 %v3845, 7
    %v3847 = vsub.s32 %v3844, %v3846
    %v3848 = vrot.slane %v3834, %v3847
    %v3849 = vcombine.high %v3841, %v3841
    %v3850 = vcombine.high %v3848, %v3848
    %v3851 = vcombine.high %v2939, %v2939
    %v3853 = vunpack.c.l.s4 1983009808
    %v3854 = vunpack.c.0.s8 %v3853
    %v3855 = vlaneseq
    %v3856 = vshrl.u32 %v3855, 7
    %v3857 = vsub.s32 %v3854, %v3856
    %v3858 = vrot.slane %v2939, %v3857
    %v3860 = vunpack.c.l.s4 1983009808
    %v3861 = vunpack.c.0.s8 %v3860
    %v3862 = vlaneseq
    %v3863 = vshrl.u32 %v3862, 7
    %v3864 = vsub.s32 %v3861, %v3863
    %v3865 = vrot.slane %v3851, %v3864
    %v3866 = vcombine.high %v3858, %v3858
    %v3867 = vcombine.high %v3865, %v3865
    %v3868 = vcombine.high %v2940, %v2940
    %v3870 = vunpack.c.l.s4 1983009808
    %v3871 = vunpack.c.0.s8 %v3870
    %v3872 = vlaneseq
    %v3873 = vshrl.u32 %v3872, 7
    %v3874 = vsub.s32 %v3871, %v3873
    %v3875 = vrot.slane %v2940, %v3874
    %v3877 = vunpack.c.l.s4 1983009808
    %v3878 = vunpack.c.0.s8 %v3877
    %v3879 = vlaneseq
    %v3880 = vshrl.u32 %v3879, 7
    %v3881 = vsub.s32 %v3878, %v3880
    %v3882 = vrot.slane %v3868, %v3881
    %v3883 = vcombine.high %v3875, %v3875
    %v3884 = vcombine.high %v3882, %v3882
    %v3885 = vcombine.high %v2941, %v2941
    %v3887 = vunpack.c.l.s4 1983009808
    %v3888 = vunpack.c.0.s8 %v3887
    %v3889 = vlaneseq
    %v3890 = vshrl.u32 %v3889, 7
    %v3891 = vsub.s32 %v3888, %v3890
    %v3892 = vrot.slane %v2941, %v3891
    %v3894 = vunpack.c.l.s4 1983009808
    %v3895 = vunpack.c.0.s8 %v3894
    %v3896 = vlaneseq
    %v3897 = vshrl.u32 %v3896, 7
    %v3898 = vsub.s32 %v3895, %v3897
    %v3899 = vrot.slane %v3885, %v3898
    %v3900 = vcombine.high %v3892, %v3892
    %v3901 = vcombine.high %v3899, %v3899
    %v3902 = vcombine.high %v2942, %v2942
    %v3904 = vunpack.c.l.s4 1983009808
    %v3905 = vunpack.c.0.s8 %v3904
    %v3906 = vlaneseq
    %v3907 = vshrl.u32 %v3906, 7
    %v3908 = vsub.s32 %v3905, %v3907
    %v3909 = vrot.slane %v2942, %v3908
    %v3911 = vunpack.c.l.s4 1983009808
    %v3912 = vunpack.c.0.s8 %v3911
    %v3913 = vlaneseq
    %v3914 = vshrl.u32 %v3913, 7
    %v3915 = vsub.s32 %v3912, %v3914
    %v3916 = vrot.slane %v3902, %v3915
    %v3917 = vcombine.high %v3909, %v3909
    %v3918 = vcombine.high %v3916, %v3916
    %v3919 = vcombine.high %v2943, %v2943
    %v3921 = vunpack.c.l.s4 1983009808
    %v3922 = vunpack.c.0.s8 %v3921
    %v3923 = vlaneseq
    %v3924 = vshrl.u32 %v3923, 7
    %v3925 = vsub.s32 %v3922, %v3924
    %v3926 = vrot.slane %v2943, %v3925
    %v3928 = vunpack.c.l.s4 1983009808
    %v3929 = vunpack.c.0.s8 %v3928
    %v3930 = vlaneseq
    %v3931 = vshrl.u32 %v3930, 7
    %v3932 = vsub.s32 %v3929, %v3931
    %v3933 = vrot.slane %v3919, %v3932
    %v3934 = vcombine.high %v3926, %v3926
    %v3935 = vcombine.high %v3933, %v3933
    %v3936 = vcombine.high %v2944, %v2944
    %v3938 = vunpack.c.l.s4 1983009808
    %v3939 = vunpack.c.0.s8 %v3938
    %v3940 = vlaneseq
    %v3941 = vshrl.u32 %v3940, 7
    %v3942 = vsub.s32 %v3939, %v3941
    %v3943 = vrot.slane %v2944, %v3942
    %v3945 = vunpack.c.l.s4 1983009808
    %v3946 = vunpack.c.0.s8 %v3945
    %v3947 = vlaneseq
    %v3948 = vshrl.u32 %v3947, 7
    %v3949 = vsub.s32 %v3946, %v3948
    %v3950 = vrot.slane %v3936, %v3949
    %v3951 = vcombine.high %v3943, %v3943
    %v3952 = vcombine.high %v3950, %v3950
    %v3953 = vcombine.high %v2945, %v2945
    %v3955 = vunpack.c.l.s4 1983009808
    %v3956 = vunpack.c.0.s8 %v3955
    %v3957 = vlaneseq
    %v3958 = vshrl.u32 %v3957, 7
    %v3959 = vsub.s32 %v3956, %v3958
    %v3960 = vrot.slane %v2945, %v3959
    %v3962 = vunpack.c.l.s4 1983009808
    %v3963 = vunpack.c.0.s8 %v3962
    %v3964 = vlaneseq
    %v3965 = vshrl.u32 %v3964, 7
    %v3966 = vsub.s32 %v3963, %v3965
    %v3967 = vrot.slane %v3953, %v3966
    %v3968 = vcombine.high %v3960, %v3960
    %v3969 = vcombine.high %v3967, %v3967
    %v3970 = vcombine.high %v2946, %v2946
    %v3972 = vunpack.c.l.s4 1983009808
    %v3973 = vunpack.c.0.s8 %v3972
    %v3974 = vlaneseq
    %v3975 = vshrl.u32 %v3974, 7
    %v3976 = vsub.s32 %v3973, %v3975
    %v3977 = vrot.slane %v2946, %v3976
    %v3979 = vunpack.c.l.s4 1983009808
    %v3980 = vunpack.c.0.s8 %v3979
    %v3981 = vlaneseq
    %v3982 = vshrl.u32 %v3981, 7
    %v3983 = vsub.s32 %v3980, %v3982
    %v3984 = vrot.slane %v3970, %v3983
    %v3985 = vcombine.high %v3977, %v3977
    %v3986 = vcombine.high %v3984, %v3984
    %v3987 = vcombine.high %v2947, %v2947
    %v3989 = vunpack.c.l.s4 1983009808
    %v3990 = vunpack.c.0.s8 %v3989
    %v3991 = vlaneseq
    %v3992 = vshrl.u32 %v3991, 7
    %v3993 = vsub.s32 %v3990, %v3992
    %v3994 = vrot.slane %v2947, %v3993
    %v3996 = vunpack.c.l.s4 1983009808
    %v3997 = vunpack.c.0.s8 %v3996
    %v3998 = vlaneseq
    %v3999 = vshrl.u32 %v3998, 7
    %v4000 = vsub.s32 %v3997, %v3999
    %v4001 = vrot.slane %v3987, %v4000
    %v4002 = vcombine.high %v3994, %v3994
    %v4003 = vcombine.high %v4001, %v4001
    %v4004 = vcombine.high %v2948, %v2948
    %v4006 = vunpack.c.l.s4 1983009808
    %v4007 = vunpack.c.0.s8 %v4006
    %v4008 = vlaneseq
    %v4009 = vshrl.u32 %v4008, 7
    %v4010 = vsub.s32 %v4007, %v4009
    %v4011 = vrot.slane %v2948, %v4010
    %v4013 = vunpack.c.l.s4 1983009808
    %v4014 = vunpack.c.0.s8 %v4013
    %v4015 = vlaneseq
    %v4016 = vshrl.u32 %v4015, 7
    %v4017 = vsub.s32 %v4014, %v4016
    %v4018 = vrot.slane %v4004, %v4017
    %v4019 = vcombine.high %v4011, %v4011
    %v4020 = vcombine.high %v4018, %v4018
    %v4021 = vcombine.high %v2949, %v2949
    %v4023 = vunpack.c.l.s4 1983009808
    %v4024 = vunpack.c.0.s8 %v4023
    %v4025 = vlaneseq
    %v4026 = vshrl.u32 %v4025, 7
    %v4027 = vsub.s32 %v4024, %v4026
    %v4028 = vrot.slane %v2949, %v4027
    %v4030 = vunpack.c.l.s4 1983009808
    %v4031 = vunpack.c.0.s8 %v4030
    %v4032 = vlaneseq
    %v4033 = vshrl.u32 %v4032, 7
    %v4034 = vsub.s32 %v4031, %v4033
    %v4035 = vrot.slane %v4021, %v4034
    %v4036 = vcombine.high %v4028, %v4028
    %v4037 = vcombine.high %v4035, %v4035
    %v4038 = vcombine.high %v2950, %v2950
    %v4040 = vunpack.c.l.s4 1983009808
    %v4041 = vunpack.c.0.s8 %v4040
    %v4042 = vlaneseq
    %v4043 = vshrl.u32 %v4042, 7
    %v4044 = vsub.s32 %v4041, %v4043
    %v4045 = vrot.slane %v2950, %v4044
    %v4047 = vunpack.c.l.s4 1983009808
    %v4048 = vunpack.c.0.s8 %v4047
    %v4049 = vlaneseq
    %v4050 = vshrl.u32 %v4049, 7
    %v4051 = vsub.s32 %v4048, %v4050
    %v4052 = vrot.slane %v4038, %v4051
    %v4053 = vcombine.high %v4045, %v4045
    %v4054 = vcombine.high %v4052, %v4052
    %v4055 = vcombine.high %v2951, %v2951
    %v4057 = vunpack.c.l.s4 1983009808
    %v4058 = vunpack.c.0.s8 %v4057
    %v4059 = vlaneseq
    %v4060 = vshrl.u32 %v4059, 7
    %v4061 = vsub.s32 %v4058, %v4060
    %v4062 = vrot.slane %v2951, %v4061
    %v4064 = vunpack.c.l.s4 1983009808
    %v4065 = vunpack.c.0.s8 %v4064
    %v4066 = vlaneseq
    %v4067 = vshrl.u32 %v4066, 7
    %v4068 = vsub.s32 %v4065, %v4067
    %v4069 = vrot.slane %v4055, %v4068
    %v4070 = vcombine.high %v4062, %v4062
    %v4071 = vcombine.high %v4069, %v4069
    %v4072 = vcombine.high %v2952, %v2952
    %v4074 = vunpack.c.l.s4 1983009808
    %v4075 = vunpack.c.0.s8 %v4074
    %v4076 = vlaneseq
    %v4077 = vshrl.u32 %v4076, 7
    %v4078 = vsub.s32 %v4075, %v4077
    %v4079 = vrot.slane %v2952, %v4078
    %v4081 = vunpack.c.l.s4 1983009808
    %v4082 = vunpack.c.0.s8 %v4081
    %v4083 = vlaneseq
    %v4084 = vshrl.u32 %v4083, 7
    %v4085 = vsub.s32 %v4082, %v4084
    %v4086 = vrot.slane %v4072, %v4085
    %v4087 = vcombine.high %v4079, %v4079
    %v4088 = vcombine.high %v4086, %v4086
    %v4089 = vcombine.high %v2953, %v2953
    %v4091 = vunpack.c.l.s4 1983009808
    %v4092 = vunpack.c.0.s8 %v4091
    %v4093 = vlaneseq
    %v4094 = vshrl.u32 %v4093, 7
    %v4095 = vsub.s32 %v4092, %v4094
    %v4096 = vrot.slane %v2953, %v4095
    %v4098 = vunpack.c.l.s4 1983009808
    %v4099 = vunpack.c.0.s8 %v4098
    %v4100 = vlaneseq
    %v4101 = vshrl.u32 %v4100, 7
    %v4102 = vsub.s32 %v4099, %v4101
    %v4103 = vrot.slane %v4089, %v4102
    %v4104 = vcombine.high %v4096, %v4096
    %v4105 = vcombine.high %v4103, %v4103
    %4106 = vst [vmem:[#allocation3] sm:$0xff] 0.0
    %vm4107 = vcmask 39936
    %4108 = vst.msk [vmem:[#allocation3 + $0x8] sm:$0xff] %vm4107, 0.0
    %4109 = vst [vmem:[#allocation3 + $0x10] sm:$0xff] 0.0
    %4110 = vst.msk [vmem:[#allocation3 + $0x18] sm:$0xff] %vm4107, 0.0
    %4111 = vst [vmem:[#allocation3 + $0x20] sm:$0xff] 0.0
    %4112 = vst.msk [vmem:[#allocation3 + $0x28] sm:$0xff] %vm4107, 0.0
    %4113 = vst [vmem:[#allocation3 + $0x30] sm:$0xff] 0.0
    %4114 = vst.msk [vmem:[#allocation3 + $0x38] sm:$0xff] %vm4107, 0.0
    %4115 = vst [vmem:[#allocation3 + $0x40] sm:$0xff] 0.0
    %4116 = vst.msk [vmem:[#allocation3 + $0x48] sm:$0xff] %vm4107, 0.0
    %4117 = vst [vmem:[#allocation3 + $0x50] sm:$0xff] 0.0
    %4118 = vst.msk [vmem:[#allocation3 + $0x58] sm:$0xff] %vm4107, 0.0
    %4119 = vst [vmem:[#allocation3 + $0x60] sm:$0xff] 0.0
    %4120 = vst.msk [vmem:[#allocation3 + $0x68] sm:$0xff] %vm4107, 0.0
    %4121 = vst [vmem:[#allocation3 + $0x70] sm:$0xff] 0.0
    %4122 = vst.msk [vmem:[#allocation3 + $0x78] sm:$0xff] %vm4107, 0.0
    %4123 = vst [vmem:[#allocation3 + $0x80] sm:$0xff] 0.0
    %4124 = vst.msk [vmem:[#allocation3 + $0x88] sm:$0xff] %vm4107, 0.0
    %4125 = vst [vmem:[#allocation3 + $0x90] sm:$0xff] 0.0
    %4126 = vst.msk [vmem:[#allocation3 + $0x98] sm:$0xff] %vm4107, 0.0
    %4127 = vst [vmem:[#allocation3 + $0xa0] sm:$0xff] 0.0
    %4128 = vst.msk [vmem:[#allocation3 + $0xa8] sm:$0xff] %vm4107, 0.0
    %4129 = vst [vmem:[#allocation3 + $0xb0] sm:$0xff] 0.0
    %4130 = vst.msk [vmem:[#allocation3 + $0xb8] sm:$0xff] %vm4107, 0.0
    %4131 = vst [vmem:[#allocation3 + $0xc0] sm:$0xff] 0.0
    %4132 = vst.msk [vmem:[#allocation3 + $0xc8] sm:$0xff] %vm4107, 0.0
    %4133 = vst [vmem:[#allocation3 + $0xd0] sm:$0xff] 0.0
    %4134 = vst.msk [vmem:[#allocation3 + $0xd8] sm:$0xff] %vm4107, 0.0
    %4135 = vst [vmem:[#allocation3 + $0xe0] sm:$0xff] 0.0
    %4136 = vst.msk [vmem:[#allocation3 + $0xe8] sm:$0xff] %vm4107, 0.0
    %4137 = vst [vmem:[#allocation3 + $0xf0] sm:$0xff] 0.0
    %4138 = vst.msk [vmem:[#allocation3 + $0xf8] sm:$0xff] %vm4107, 0.0
    %vm4139 = vcmask 39968
    %4140 = vst.msk [vmem:[#allocation3 + $0x8] sm:$0xff] %vm4139, 1.0
    %4141 = vst.msk [vmem:[#allocation3 + $0x18] sm:$0xff] %vm4139, 1.0
    %4142 = vst.msk [vmem:[#allocation3 + $0x28] sm:$0xff] %vm4139, 1.0
    %4143 = vst.msk [vmem:[#allocation3 + $0x38] sm:$0xff] %vm4139, 1.0
    %4144 = vst.msk [vmem:[#allocation3 + $0x48] sm:$0xff] %vm4139, 1.0
    %4145 = vst.msk [vmem:[#allocation3 + $0x58] sm:$0xff] %vm4139, 1.0
    %4146 = vst.msk [vmem:[#allocation3 + $0x68] sm:$0xff] %vm4139, 1.0
    %4147 = vst.msk [vmem:[#allocation3 + $0x78] sm:$0xff] %vm4139, 1.0
    %4148 = vst.msk [vmem:[#allocation3 + $0x88] sm:$0xff] %vm4139, 1.0
    %4149 = vst.msk [vmem:[#allocation3 + $0x98] sm:$0xff] %vm4139, 1.0
    %4150 = vst.msk [vmem:[#allocation3 + $0xa8] sm:$0xff] %vm4139, 1.0
    %4151 = vst.msk [vmem:[#allocation3 + $0xb8] sm:$0xff] %vm4139, 1.0
    %4152 = vst.msk [vmem:[#allocation3 + $0xc8] sm:$0xff] %vm4139, 1.0
    %4153 = vst.msk [vmem:[#allocation3 + $0xd8] sm:$0xff] %vm4139, 1.0
    %4154 = vst.msk [vmem:[#allocation3 + $0xe8] sm:$0xff] %vm4139, 1.0
    %4155 = vst.msk [vmem:[#allocation3 + $0xf8] sm:$0xff] %vm4139, 1.0
    %v4156 = vlaneseq
    %v4157 = vshrl.u32 %v4156, 7
    %v4158 = vsub.s32 1, %v4157
    %v4159 = vrot.slane %v3059, %v4158
    %v4160 = vlaneseq
    %v4161 = vshrl.u32 %v4160, 7
    %v4162 = vsub.s32 1, %v4161
    %v4163 = vrot.slane %v3067, %v4162
    %v4164 = vlaneseq
    %v4165 = vshrl.u32 %v4164, 7
    %v4166 = vsub.s32 1, %v4165
    %v4167 = vrot.slane %v3066, %v4166
    %v4168 = vlaneseq
    %v4169 = vshrl.u32 %v4168, 7
    %v4170 = vsub.s32 1, %v4169
    %v4171 = vrot.slane %v3068, %v4170
    %v4172 = vlaneseq
    %v4173 = vshrl.u32 %v4172, 7
    %v4174 = vsub.s32 1, %v4173
    %v4175 = vrot.slane %v3076, %v4174
    %v4176 = vlaneseq
    %v4177 = vshrl.u32 %v4176, 7
    %v4178 = vsub.s32 1, %v4177
    %v4179 = vrot.slane %v3084, %v4178
    %v4180 = vlaneseq
    %v4181 = vshrl.u32 %v4180, 7
    %v4182 = vsub.s32 1, %v4181
    %v4183 = vrot.slane %v3083, %v4182
    %v4184 = vlaneseq
    %v4185 = vshrl.u32 %v4184, 7
    %v4186 = vsub.s32 1, %v4185
    %v4187 = vrot.slane %v3127, %v4186
    %v4188 = vlaneseq
    %v4189 = vshrl.u32 %v4188, 7
    %v4190 = vsub.s32 1, %v4189
    %v4191 = vrot.slane %v3135, %v4190
    %v4192 = vlaneseq
    %v4193 = vshrl.u32 %v4192, 7
    %v4194 = vsub.s32 1, %v4193
    %v4195 = vrot.slane %v3134, %v4194
    %v4196 = vlaneseq
    %v4197 = vshrl.u32 %v4196, 7
    %v4198 = vsub.s32 1, %v4197
    %v4199 = vrot.slane %v3136, %v4198
    %v4200 = vlaneseq
    %v4201 = vshrl.u32 %v4200, 7
    %v4202 = vsub.s32 1, %v4201
    %v4203 = vrot.slane %v3144, %v4202
    %v4204 = vlaneseq
    %v4205 = vshrl.u32 %v4204, 7
    %v4206 = vsub.s32 1, %v4205
    %v4207 = vrot.slane %v3152, %v4206
    %v4208 = vlaneseq
    %v4209 = vshrl.u32 %v4208, 7
    %v4210 = vsub.s32 1, %v4209
    %v4211 = vrot.slane %v3151, %v4210
    %v4212 = vlaneseq
    %v4213 = vshrl.u32 %v4212, 7
    %v4214 = vsub.s32 1, %v4213
    %v4215 = vrot.slane %v3195, %v4214
    %v4216 = vlaneseq
    %v4217 = vshrl.u32 %v4216, 7
    %v4218 = vsub.s32 1, %v4217
    %v4219 = vrot.slane %v3203, %v4218
    %v4220 = vlaneseq
    %v4221 = vshrl.u32 %v4220, 7
    %v4222 = vsub.s32 1, %v4221
    %v4223 = vrot.slane %v3202, %v4222
    %v4224 = vlaneseq
    %v4225 = vshrl.u32 %v4224, 7
    %v4226 = vsub.s32 1, %v4225
    %v4227 = vrot.slane %v3204, %v4226
    %v4228 = vlaneseq
    %v4229 = vshrl.u32 %v4228, 7
    %v4230 = vsub.s32 1, %v4229
    %v4231 = vrot.slane %v3212, %v4230
    %v4232 = vlaneseq
    %v4233 = vshrl.u32 %v4232, 7
    %v4234 = vsub.s32 1, %v4233
    %v4235 = vrot.slane %v3220, %v4234
    %v4236 = vlaneseq
    %v4237 = vshrl.u32 %v4236, 7
    %v4238 = vsub.s32 1, %v4237
    %v4239 = vrot.slane %v3219, %v4238
    %v4240 = vlaneseq
    %v4241 = vshrl.u32 %v4240, 7
    %v4242 = vsub.s32 1, %v4241
    %v4243 = vrot.slane %v3263, %v4242
    %v4244 = vlaneseq
    %v4245 = vshrl.u32 %v4244, 7
    %v4246 = vsub.s32 1, %v4245
    %v4247 = vrot.slane %v3271, %v4246
    %v4248 = vlaneseq
    %v4249 = vshrl.u32 %v4248, 7
    %v4250 = vsub.s32 1, %v4249
    %v4251 = vrot.slane %v3270, %v4250
    %v4252 = vlaneseq
    %v4253 = vshrl.u32 %v4252, 7
    %v4254 = vsub.s32 1, %v4253
    %v4255 = vrot.slane %v3272, %v4254
    %v4256 = vlaneseq
    %v4257 = vshrl.u32 %v4256, 7
    %v4258 = vsub.s32 1, %v4257
    %v4259 = vrot.slane %v3280, %v4258
    %v4260 = vlaneseq
    %v4261 = vshrl.u32 %v4260, 7
    %v4262 = vsub.s32 1, %v4261
    %v4263 = vrot.slane %v3288, %v4262
    %v4264 = vlaneseq
    %v4265 = vshrl.u32 %v4264, 7
    %v4266 = vsub.s32 1, %v4265
    %v4267 = vrot.slane %v3287, %v4266
    %v4268 = vlaneseq
    %v4269 = vshrl.u32 %v4268, 7
    %v4270 = vsub.s32 1, %v4269
    %v4271 = vrot.slane %v3331, %v4270
    %v4272 = vlaneseq
    %v4273 = vshrl.u32 %v4272, 7
    %v4274 = vsub.s32 1, %v4273
    %v4275 = vrot.slane %v3339, %v4274
    %v4276 = vlaneseq
    %v4277 = vshrl.u32 %v4276, 7
    %v4278 = vsub.s32 1, %v4277
    %v4279 = vrot.slane %v3338, %v4278
    %v4280 = vlaneseq
    %v4281 = vshrl.u32 %v4280, 7
    %v4282 = vsub.s32 1, %v4281
    %v4283 = vrot.slane %v3340, %v4282
    %v4284 = vlaneseq
    %v4285 = vshrl.u32 %v4284, 7
    %v4286 = vsub.s32 1, %v4285
    %v4287 = vrot.slane %v3348, %v4286
    %v4288 = vlaneseq
    %v4289 = vshrl.u32 %v4288, 7
    %v4290 = vsub.s32 1, %v4289
    %v4291 = vrot.slane %v3356, %v4290
    %v4292 = vlaneseq
    %v4293 = vshrl.u32 %v4292, 7
    %v4294 = vsub.s32 1, %v4293
    %v4295 = vrot.slane %v3355, %v4294
    %v4296 = vlaneseq
    %v4297 = vshrl.u32 %v4296, 7
    %v4298 = vsub.s32 1, %v4297
    %v4299 = vrot.slane %v3399, %v4298
    %v4300 = vlaneseq
    %v4301 = vshrl.u32 %v4300, 7
    %v4302 = vsub.s32 1, %v4301
    %v4303 = vrot.slane %v3407, %v4302
    %v4304 = vlaneseq
    %v4305 = vshrl.u32 %v4304, 7
    %v4306 = vsub.s32 1, %v4305
    %v4307 = vrot.slane %v3406, %v4306
    %v4308 = vlaneseq
    %v4309 = vshrl.u32 %v4308, 7
    %v4310 = vsub.s32 1, %v4309
    %v4311 = vrot.slane %v3408, %v4310
    %v4312 = vlaneseq
    %v4313 = vshrl.u32 %v4312, 7
    %v4314 = vsub.s32 1, %v4313
    %v4315 = vrot.slane %v3416, %v4314
    %v4316 = vlaneseq
    %v4317 = vshrl.u32 %v4316, 7
    %v4318 = vsub.s32 1, %v4317
    %v4319 = vrot.slane %v3424, %v4318
    %v4320 = vlaneseq
    %v4321 = vshrl.u32 %v4320, 7
    %v4322 = vsub.s32 1, %v4321
    %v4323 = vrot.slane %v3423, %v4322
    %v4324 = vlaneseq
    %v4325 = vshrl.u32 %v4324, 7
    %v4326 = vsub.s32 1, %v4325
    %v4327 = vrot.slane %v3467, %v4326
    %v4328 = vlaneseq
    %v4329 = vshrl.u32 %v4328, 7
    %v4330 = vsub.s32 1, %v4329
    %v4331 = vrot.slane %v3475, %v4330
    %v4332 = vlaneseq
    %v4333 = vshrl.u32 %v4332, 7
    %v4334 = vsub.s32 1, %v4333
    %v4335 = vrot.slane %v3474, %v4334
    %v4336 = vlaneseq
    %v4337 = vshrl.u32 %v4336, 7
    %v4338 = vsub.s32 1, %v4337
    %v4339 = vrot.slane %v3476, %v4338
    %v4340 = vlaneseq
    %v4341 = vshrl.u32 %v4340, 7
    %v4342 = vsub.s32 1, %v4341
    %v4343 = vrot.slane %v3484, %v4342
    %v4344 = vlaneseq
    %v4345 = vshrl.u32 %v4344, 7
    %v4346 = vsub.s32 1, %v4345
    %v4347 = vrot.slane %v3492, %v4346
    %v4348 = vlaneseq
    %v4349 = vshrl.u32 %v4348, 7
    %v4350 = vsub.s32 1, %v4349
    %v4351 = vrot.slane %v3491, %v4350
    %v4352 = vlaneseq
    %v4353 = vshrl.u32 %v4352, 7
    %v4354 = vsub.s32 1, %v4353
    %v4355 = vrot.slane %v3603, %v4354
    %v4356 = vlaneseq
    %v4357 = vshrl.u32 %v4356, 7
    %v4358 = vsub.s32 1, %v4357
    %v4359 = vrot.slane %v3611, %v4358
    %v4360 = vlaneseq
    %v4361 = vshrl.u32 %v4360, 7
    %v4362 = vsub.s32 1, %v4361
    %v4363 = vrot.slane %v3610, %v4362
    %v4364 = vlaneseq
    %v4365 = vshrl.u32 %v4364, 7
    %v4366 = vsub.s32 1, %v4365
    %v4367 = vrot.slane %v3612, %v4366
    %v4368 = vlaneseq
    %v4369 = vshrl.u32 %v4368, 7
    %v4370 = vsub.s32 1, %v4369
    %v4371 = vrot.slane %v3620, %v4370
    %v4372 = vlaneseq
    %v4373 = vshrl.u32 %v4372, 7
    %v4374 = vsub.s32 1, %v4373
    %v4375 = vrot.slane %v3628, %v4374
    %v4376 = vlaneseq
    %v4377 = vshrl.u32 %v4376, 7
    %v4378 = vsub.s32 1, %v4377
    %v4379 = vrot.slane %v3627, %v4378
    %v4380 = vlaneseq
    %v4381 = vshrl.u32 %v4380, 7
    %v4382 = vsub.s32 1, %v4381
    %v4383 = vrot.slane %v3671, %v4382
    %v4384 = vlaneseq
    %v4385 = vshrl.u32 %v4384, 7
    %v4386 = vsub.s32 1, %v4385
    %v4387 = vrot.slane %v3679, %v4386
    %v4388 = vlaneseq
    %v4389 = vshrl.u32 %v4388, 7
    %v4390 = vsub.s32 1, %v4389
    %v4391 = vrot.slane %v3678, %v4390
    %v4392 = vlaneseq
    %v4393 = vshrl.u32 %v4392, 7
    %v4394 = vsub.s32 1, %v4393
    %v4395 = vrot.slane %v3680, %v4394
    %v4396 = vlaneseq
    %v4397 = vshrl.u32 %v4396, 7
    %v4398 = vsub.s32 1, %v4397
    %v4399 = vrot.slane %v3688, %v4398
    %v4400 = vlaneseq
    %v4401 = vshrl.u32 %v4400, 7
    %v4402 = vsub.s32 1, %v4401
    %v4403 = vrot.slane %v3696, %v4402
    %v4404 = vlaneseq
    %v4405 = vshrl.u32 %v4404, 7
    %v4406 = vsub.s32 1, %v4405
    %v4407 = vrot.slane %v3695, %v4406
    %v4408 = vlaneseq
    %v4409 = vshrl.u32 %v4408, 7
    %v4410 = vsub.s32 1, %v4409
    %v4411 = vrot.slane %v3739, %v4410
    %v4412 = vlaneseq
    %v4413 = vshrl.u32 %v4412, 7
    %v4414 = vsub.s32 1, %v4413
    %v4415 = vrot.slane %v3747, %v4414
    %v4416 = vlaneseq
    %v4417 = vshrl.u32 %v4416, 7
    %v4418 = vsub.s32 1, %v4417
    %v4419 = vrot.slane %v3746, %v4418
    %v4420 = vlaneseq
    %v4421 = vshrl.u32 %v4420, 7
    %v4422 = vsub.s32 1, %v4421
    %v4423 = vrot.slane %v3748, %v4422
    %v4424 = vlaneseq
    %v4425 = vshrl.u32 %v4424, 7
    %v4426 = vsub.s32 1, %v4425
    %v4427 = vrot.slane %v3756, %v4426
    %v4428 = vlaneseq
    %v4429 = vshrl.u32 %v4428, 7
    %v4430 = vsub.s32 1, %v4429
    %v4431 = vrot.slane %v3764, %v4430
    %v4432 = vlaneseq
    %v4433 = vshrl.u32 %v4432, 7
    %v4434 = vsub.s32 1, %v4433
    %v4435 = vrot.slane %v3763, %v4434
    %v4436 = vlaneseq
    %v4437 = vshrl.u32 %v4436, 7
    %v4438 = vsub.s32 1, %v4437
    %v4439 = vrot.slane %v3807, %v4438
    %v4440 = vlaneseq
    %v4441 = vshrl.u32 %v4440, 7
    %v4442 = vsub.s32 1, %v4441
    %v4443 = vrot.slane %v3815, %v4442
    %v4444 = vlaneseq
    %v4445 = vshrl.u32 %v4444, 7
    %v4446 = vsub.s32 1, %v4445
    %v4447 = vrot.slane %v3814, %v4446
    %v4448 = vlaneseq
    %v4449 = vshrl.u32 %v4448, 7
    %v4450 = vsub.s32 1, %v4449
    %v4451 = vrot.slane %v3816, %v4450
    %v4452 = vlaneseq
    %v4453 = vshrl.u32 %v4452, 7
    %v4454 = vsub.s32 1, %v4453
    %v4455 = vrot.slane %v3824, %v4454
    %v4456 = vlaneseq
    %v4457 = vshrl.u32 %v4456, 7
    %v4458 = vsub.s32 1, %v4457
    %v4459 = vrot.slane %v3832, %v4458
    %v4460 = vlaneseq
    %v4461 = vshrl.u32 %v4460, 7
    %v4462 = vsub.s32 1, %v4461
    %v4463 = vrot.slane %v3831, %v4462
    %v4464 = vlaneseq
    %v4465 = vshrl.u32 %v4464, 7
    %v4466 = vsub.s32 1, %v4465
    %v4467 = vrot.slane %v3875, %v4466
    %v4468 = vlaneseq
    %v4469 = vshrl.u32 %v4468, 7
    %v4470 = vsub.s32 1, %v4469
    %v4471 = vrot.slane %v3883, %v4470
    %v4472 = vlaneseq
    %v4473 = vshrl.u32 %v4472, 7
    %v4474 = vsub.s32 1, %v4473
    %v4475 = vrot.slane %v3882, %v4474
    %v4476 = vlaneseq
    %v4477 = vshrl.u32 %v4476, 7
    %v4478 = vsub.s32 1, %v4477
    %v4479 = vrot.slane %v3884, %v4478
    %v4480 = vlaneseq
    %v4481 = vshrl.u32 %v4480, 7
    %v4482 = vsub.s32 1, %v4481
    %v4483 = vrot.slane %v3892, %v4482
    %v4484 = vlaneseq
    %v4485 = vshrl.u32 %v4484, 7
    %v4486 = vsub.s32 1, %v4485
    %v4487 = vrot.slane %v3900, %v4486
    %v4488 = vlaneseq
    %v4489 = vshrl.u32 %v4488, 7
    %v4490 = vsub.s32 1, %v4489
    %v4491 = vrot.slane %v3899, %v4490
    %v4492 = vlaneseq
    %v4493 = vshrl.u32 %v4492, 7
    %v4494 = vsub.s32 1, %v4493
    %v4495 = vrot.slane %v3943, %v4494
    %v4496 = vlaneseq
    %v4497 = vshrl.u32 %v4496, 7
    %v4498 = vsub.s32 1, %v4497
    %v4499 = vrot.slane %v3951, %v4498
    %v4500 = vlaneseq
    %v4501 = vshrl.u32 %v4500, 7
    %v4502 = vsub.s32 1, %v4501
    %v4503 = vrot.slane %v3950, %v4502
    %v4504 = vlaneseq
    %v4505 = vshrl.u32 %v4504, 7
    %v4506 = vsub.s32 1, %v4505
    %v4507 = vrot.slane %v3952, %v4506
    %v4508 = vlaneseq
    %v4509 = vshrl.u32 %v4508, 7
    %v4510 = vsub.s32 1, %v4509
    %v4511 = vrot.slane %v3960, %v4510
    %v4512 = vlaneseq
    %v4513 = vshrl.u32 %v4512, 7
    %v4514 = vsub.s32 1, %v4513
    %v4515 = vrot.slane %v3968, %v4514
    %v4516 = vlaneseq
    %v4517 = vshrl.u32 %v4516, 7
    %v4518 = vsub.s32 1, %v4517
    %v4519 = vrot.slane %v3967, %v4518
    %v4520 = vlaneseq
    %v4521 = vshrl.u32 %v4520, 7
    %v4522 = vsub.s32 1, %v4521
    %v4523 = vrot.slane %v4011, %v4522
    %v4524 = vlaneseq
    %v4525 = vshrl.u32 %v4524, 7
    %v4526 = vsub.s32 1, %v4525
    %v4527 = vrot.slane %v4019, %v4526
    %v4528 = vlaneseq
    %v4529 = vshrl.u32 %v4528, 7
    %v4530 = vsub.s32 1, %v4529
    %v4531 = vrot.slane %v4018, %v4530
    %v4532 = vlaneseq
    %v4533 = vshrl.u32 %v4532, 7
    %v4534 = vsub.s32 1, %v4533
    %v4535 = vrot.slane %v4020, %v4534
    %v4536 = vlaneseq
    %v4537 = vshrl.u32 %v4536, 7
    %v4538 = vsub.s32 1, %v4537
    %v4539 = vrot.slane %v4028, %v4538
    %v4540 = vlaneseq
    %v4541 = vshrl.u32 %v4540, 7
    %v4542 = vsub.s32 1, %v4541
    %v4543 = vrot.slane %v4036, %v4542
    %v4544 = vlaneseq
    %v4545 = vshrl.u32 %v4544, 7
    %v4546 = vsub.s32 1, %v4545
    %v4547 = vrot.slane %v4035, %v4546
    %vm4548 = vcmask 1042434
    %v4549 = vsel %vm4548, %v4163, %v4159
    %vm4550 = vcmask 1043459
    %v4551 = vsel %vm4550, %v4167, %v4549
    %vm4552 = vcmask 1044484
    %v4553 = vsel %vm4552, %v4171, %v4551
    %vm4554 = vcmask 1045509
    %v4555 = vsel %vm4554, %v4175, %v4553
    %vm4556 = vcmask 1046534
    %v4557 = vsel %vm4556, %v4179, %v4555
    %vm4558 = vcmask 1047559
    %v4559 = vsel %vm4558, %v4183, %v4557
    %v4560 = vsel %vm4548, %v4191, %v4187
    %v4561 = vsel %vm4550, %v4195, %v4560
    %v4562 = vsel %vm4552, %v4199, %v4561
    %v4563 = vsel %vm4554, %v4203, %v4562
    %v4564 = vsel %vm4556, %v4207, %v4563
    %v4565 = vsel %vm4558, %v4211, %v4564
    %v4566 = vsel %vm4548, %v4219, %v4215
    %v4567 = vsel %vm4550, %v4223, %v4566
    %v4568 = vsel %vm4552, %v4227, %v4567
    %v4569 = vsel %vm4554, %v4231, %v4568
    %v4570 = vsel %vm4556, %v4235, %v4569
    %v4571 = vsel %vm4558, %v4239, %v4570
    %v4572 = vsel %vm4548, %v4247, %v4243
    %v4573 = vsel %vm4550, %v4251, %v4572
    %v4574 = vsel %vm4552, %v4255, %v4573
    %v4575 = vsel %vm4554, %v4259, %v4574
    %v4576 = vsel %vm4556, %v4263, %v4575
    %v4577 = vsel %vm4558, %v4267, %v4576
    %v4578 = vsel %vm4548, %v4275, %v4271
    %v4579 = vsel %vm4550, %v4279, %v4578
    %v4580 = vsel %vm4552, %v4283, %v4579
    %v4581 = vsel %vm4554, %v4287, %v4580
    %v4582 = vsel %vm4556, %v4291, %v4581
    %v4583 = vsel %vm4558, %v4295, %v4582
    %v4584 = vsel %vm4548, %v4303, %v4299
    %v4585 = vsel %vm4550, %v4307, %v4584
    %v4586 = vsel %vm4552, %v4311, %v4585
    %v4587 = vsel %vm4554, %v4315, %v4586
    %v4588 = vsel %vm4556, %v4319, %v4587
    %v4589 = vsel %vm4558, %v4323, %v4588
    %v4590 = vsel %vm4548, %v4331, %v4327
    %v4591 = vsel %vm4550, %v4335, %v4590
    %v4592 = vsel %vm4552, %v4339, %v4591
    %v4593 = vsel %vm4554, %v4343, %v4592
    %v4594 = vsel %vm4556, %v4347, %v4593
    %v4595 = vsel %vm4558, %v4351, %v4594
    %v4596 = vsel %vm4548, %v4359, %v4355
    %v4597 = vsel %vm4550, %v4363, %v4596
    %v4598 = vsel %vm4552, %v4367, %v4597
    %v4599 = vsel %vm4554, %v4371, %v4598
    %v4600 = vsel %vm4556, %v4375, %v4599
    %v4601 = vsel %vm4558, %v4379, %v4600
    %v4602 = vsel %vm4548, %v4387, %v4383
    %v4603 = vsel %vm4550, %v4391, %v4602
    %v4604 = vsel %vm4552, %v4395, %v4603
    %v4605 = vsel %vm4554, %v4399, %v4604
    %v4606 = vsel %vm4556, %v4403, %v4605
    %v4607 = vsel %vm4558, %v4407, %v4606
    %v4608 = vsel %vm4548, %v4415, %v4411
    %v4609 = vsel %vm4550, %v4419, %v4608
    %v4610 = vsel %vm4552, %v4423, %v4609
    %v4611 = vsel %vm4554, %v4427, %v4610
    %v4612 = vsel %vm4556, %v4431, %v4611
    %v4613 = vsel %vm4558, %v4435, %v4612
    %v4614 = vsel %vm4548, %v4443, %v4439
    %v4615 = vsel %vm4550, %v4447, %v4614
    %v4616 = vsel %vm4552, %v4451, %v4615
    %v4617 = vsel %vm4554, %v4455, %v4616
    %v4618 = vsel %vm4556, %v4459, %v4617
    %v4619 = vsel %vm4558, %v4463, %v4618
    %v4620 = vsel %vm4548, %v4471, %v4467
    %v4621 = vsel %vm4550, %v4475, %v4620
    %v4622 = vsel %vm4552, %v4479, %v4621
    %v4623 = vsel %vm4554, %v4483, %v4622
    %v4624 = vsel %vm4556, %v4487, %v4623
    %v4625 = vsel %vm4558, %v4491, %v4624
    %v4626 = vsel %vm4548, %v4499, %v4495
    %v4627 = vsel %vm4550, %v4503, %v4626
    %v4628 = vsel %vm4552, %v4507, %v4627
    %v4629 = vsel %vm4554, %v4511, %v4628
    %v4630 = vsel %vm4556, %v4515, %v4629
    %v4631 = vsel %vm4558, %v4519, %v4630
    %v4632 = vsel %vm4548, %v4527, %v4523
    %v4633 = vsel %vm4550, %v4531, %v4632
    %v4634 = vsel %vm4552, %v4535, %v4633
    %v4635 = vsel %vm4554, %v4539, %v4634
    %v4636 = vsel %vm4556, %v4543, %v4635
    %v4637 = vsel %vm4558, %v4547, %v4636
    %s4652 = scalar_lea.vmem [#allocation3], 16
    %vm4653 = vcmask 64513
    %4654 = vst.msk [vmem:[%s4652] sm:$0xfe] %vm4653, %v4559
    %4655 = vst.msk [vmem:[%s4652 + $0x10] sm:$0xfe] %vm4653, %v4565
    %4656 = vst.msk [vmem:[%s4652 + $0x20] sm:$0xfe] %vm4653, %v4571
    %4657 = vst.msk [vmem:[%s4652 + $0x30] sm:$0xfe] %vm4653, %v4577
    %4658 = vst.msk [vmem:[%s4652 + $0x40] sm:$0xfe] %vm4653, %v4583
    %4659 = vst.msk [vmem:[%s4652 + $0x50] sm:$0xfe] %vm4653, %v4589
    %4660 = vst.msk [vmem:[%s4652 + $0x60] sm:$0xfe] %vm4653, %v4595
    %4661 = vst.msk [vmem:[%s4652 + $0x80] sm:$0xfe] %vm4653, %v4601
    %4662 = vst.msk [vmem:[%s4652 + $0x90] sm:$0xfe] %vm4653, %v4607
    %4663 = vst.msk [vmem:[%s4652 + $0xa0] sm:$0xfe] %vm4653, %v4613
    %4664 = vst.msk [vmem:[%s4652 + $0xb0] sm:$0xfe] %vm4653, %v4619
    %4665 = vst.msk [vmem:[%s4652 + $0xc0] sm:$0xfe] %vm4653, %v4625
    %4666 = vst.msk [vmem:[%s4652 + $0xd0] sm:$0xfe] %vm4653, %v4631
    %4667 = vst.msk [vmem:[%s4652 + $0xe0] sm:$0xfe] %vm4653, %v4637
    %v4668 = vlaneseq
    %v4669 = vshrl.u32 %v4668, 7
    %v4670 = vsub.s32 0, %v4669
    %v4671 = vrot.slane %v3059, %v4670
    %v4672 = vlaneseq
    %v4673 = vshrl.u32 %v4672, 7
    %v4674 = vsub.s32 0, %v4673
    %v4675 = vrot.slane %v3067, %v4674
    %v4676 = vlaneseq
    %v4677 = vshrl.u32 %v4676, 7
    %v4678 = vsub.s32 0, %v4677
    %v4679 = vrot.slane %v3066, %v4678
    %v4680 = vlaneseq
    %v4681 = vshrl.u32 %v4680, 7
    %v4682 = vsub.s32 0, %v4681
    %v4683 = vrot.slane %v3068, %v4682
    %v4684 = vlaneseq
    %v4685 = vshrl.u32 %v4684, 7
    %v4686 = vsub.s32 0, %v4685
    %v4687 = vrot.slane %v3076, %v4686
    %v4688 = vlaneseq
    %v4689 = vshrl.u32 %v4688, 7
    %v4690 = vsub.s32 0, %v4689
    %v4691 = vrot.slane %v3084, %v4690
    %v4692 = vlaneseq
    %v4693 = vshrl.u32 %v4692, 7
    %v4694 = vsub.s32 0, %v4693
    %v4695 = vrot.slane %v3083, %v4694
    %v4696 = vlaneseq
    %v4697 = vshrl.u32 %v4696, 7
    %v4698 = vsub.s32 0, %v4697
    %v4699 = vrot.slane %v3085, %v4698
    %v4700 = vlaneseq
    %v4701 = vshrl.u32 %v4700, 7
    %v4702 = vsub.s32 0, %v4701
    %v4703 = vrot.slane %v3127, %v4702
    %v4704 = vlaneseq
    %v4705 = vshrl.u32 %v4704, 7
    %v4706 = vsub.s32 0, %v4705
    %v4707 = vrot.slane %v3135, %v4706
    %v4708 = vlaneseq
    %v4709 = vshrl.u32 %v4708, 7
    %v4710 = vsub.s32 0, %v4709
    %v4711 = vrot.slane %v3134, %v4710
    %v4712 = vlaneseq
    %v4713 = vshrl.u32 %v4712, 7
    %v4714 = vsub.s32 0, %v4713
    %v4715 = vrot.slane %v3136, %v4714
    %v4716 = vlaneseq
    %v4717 = vshrl.u32 %v4716, 7
    %v4718 = vsub.s32 0, %v4717
    %v4719 = vrot.slane %v3144, %v4718
    %v4720 = vlaneseq
    %v4721 = vshrl.u32 %v4720, 7
    %v4722 = vsub.s32 0, %v4721
    %v4723 = vrot.slane %v3152, %v4722
    %v4724 = vlaneseq
    %v4725 = vshrl.u32 %v4724, 7
    %v4726 = vsub.s32 0, %v4725
    %v4727 = vrot.slane %v3151, %v4726
    %v4728 = vlaneseq
    %v4729 = vshrl.u32 %v4728, 7
    %v4730 = vsub.s32 0, %v4729
    %v4731 = vrot.slane %v3153, %v4730
    %v4732 = vlaneseq
    %v4733 = vshrl.u32 %v4732, 7
    %v4734 = vsub.s32 0, %v4733
    %v4735 = vrot.slane %v3195, %v4734
    %v4736 = vlaneseq
    %v4737 = vshrl.u32 %v4736, 7
    %v4738 = vsub.s32 0, %v4737
    %v4739 = vrot.slane %v3203, %v4738
    %v4740 = vlaneseq
    %v4741 = vshrl.u32 %v4740, 7
    %v4742 = vsub.s32 0, %v4741
    %v4743 = vrot.slane %v3202, %v4742
    %v4744 = vlaneseq
    %v4745 = vshrl.u32 %v4744, 7
    %v4746 = vsub.s32 0, %v4745
    %v4747 = vrot.slane %v3204, %v4746
    %v4748 = vlaneseq
    %v4749 = vshrl.u32 %v4748, 7
    %v4750 = vsub.s32 0, %v4749
    %v4751 = vrot.slane %v3212, %v4750
    %v4752 = vlaneseq
    %v4753 = vshrl.u32 %v4752, 7
    %v4754 = vsub.s32 0, %v4753
    %v4755 = vrot.slane %v3220, %v4754
    %v4756 = vlaneseq
    %v4757 = vshrl.u32 %v4756, 7
    %v4758 = vsub.s32 0, %v4757
    %v4759 = vrot.slane %v3219, %v4758
    %v4760 = vlaneseq
    %v4761 = vshrl.u32 %v4760, 7
    %v4762 = vsub.s32 0, %v4761
    %v4763 = vrot.slane %v3221, %v4762
    %v4764 = vlaneseq
    %v4765 = vshrl.u32 %v4764, 7
    %v4766 = vsub.s32 0, %v4765
    %v4767 = vrot.slane %v3263, %v4766
    %v4768 = vlaneseq
    %v4769 = vshrl.u32 %v4768, 7
    %v4770 = vsub.s32 0, %v4769
    %v4771 = vrot.slane %v3271, %v4770
    %v4772 = vlaneseq
    %v4773 = vshrl.u32 %v4772, 7
    %v4774 = vsub.s32 0, %v4773
    %v4775 = vrot.slane %v3270, %v4774
    %v4776 = vlaneseq
    %v4777 = vshrl.u32 %v4776, 7
    %v4778 = vsub.s32 0, %v4777
    %v4779 = vrot.slane %v3272, %v4778
    %v4780 = vlaneseq
    %v4781 = vshrl.u32 %v4780, 7
    %v4782 = vsub.s32 0, %v4781
    %v4783 = vrot.slane %v3280, %v4782
    %v4784 = vlaneseq
    %v4785 = vshrl.u32 %v4784, 7
    %v4786 = vsub.s32 0, %v4785
    %v4787 = vrot.slane %v3288, %v4786
    %v4788 = vlaneseq
    %v4789 = vshrl.u32 %v4788, 7
    %v4790 = vsub.s32 0, %v4789
    %v4791 = vrot.slane %v3287, %v4790
    %v4792 = vlaneseq
    %v4793 = vshrl.u32 %v4792, 7
    %v4794 = vsub.s32 0, %v4793
    %v4795 = vrot.slane %v3289, %v4794
    %v4796 = vlaneseq
    %v4797 = vshrl.u32 %v4796, 7
    %v4798 = vsub.s32 0, %v4797
    %v4799 = vrot.slane %v3331, %v4798
    %v4800 = vlaneseq
    %v4801 = vshrl.u32 %v4800, 7
    %v4802 = vsub.s32 0, %v4801
    %v4803 = vrot.slane %v3339, %v4802
    %v4804 = vlaneseq
    %v4805 = vshrl.u32 %v4804, 7
    %v4806 = vsub.s32 0, %v4805
    %v4807 = vrot.slane %v3338, %v4806
    %v4808 = vlaneseq
    %v4809 = vshrl.u32 %v4808, 7
    %v4810 = vsub.s32 0, %v4809
    %v4811 = vrot.slane %v3340, %v4810
    %v4812 = vlaneseq
    %v4813 = vshrl.u32 %v4812, 7
    %v4814 = vsub.s32 0, %v4813
    %v4815 = vrot.slane %v3348, %v4814
    %v4816 = vlaneseq
    %v4817 = vshrl.u32 %v4816, 7
    %v4818 = vsub.s32 0, %v4817
    %v4819 = vrot.slane %v3356, %v4818
    %v4820 = vlaneseq
    %v4821 = vshrl.u32 %v4820, 7
    %v4822 = vsub.s32 0, %v4821
    %v4823 = vrot.slane %v3355, %v4822
    %v4824 = vlaneseq
    %v4825 = vshrl.u32 %v4824, 7
    %v4826 = vsub.s32 0, %v4825
    %v4827 = vrot.slane %v3357, %v4826
    %v4828 = vlaneseq
    %v4829 = vshrl.u32 %v4828, 7
    %v4830 = vsub.s32 0, %v4829
    %v4831 = vrot.slane %v3399, %v4830
    %v4832 = vlaneseq
    %v4833 = vshrl.u32 %v4832, 7
    %v4834 = vsub.s32 0, %v4833
    %v4835 = vrot.slane %v3407, %v4834
    %v4836 = vlaneseq
    %v4837 = vshrl.u32 %v4836, 7
    %v4838 = vsub.s32 0, %v4837
    %v4839 = vrot.slane %v3406, %v4838
    %v4840 = vlaneseq
    %v4841 = vshrl.u32 %v4840, 7
    %v4842 = vsub.s32 0, %v4841
    %v4843 = vrot.slane %v3408, %v4842
    %v4844 = vlaneseq
    %v4845 = vshrl.u32 %v4844, 7
    %v4846 = vsub.s32 0, %v4845
    %v4847 = vrot.slane %v3416, %v4846
    %v4848 = vlaneseq
    %v4849 = vshrl.u32 %v4848, 7
    %v4850 = vsub.s32 0, %v4849
    %v4851 = vrot.slane %v3424, %v4850
    %v4852 = vlaneseq
    %v4853 = vshrl.u32 %v4852, 7
    %v4854 = vsub.s32 0, %v4853
    %v4855 = vrot.slane %v3423, %v4854
    %v4856 = vlaneseq
    %v4857 = vshrl.u32 %v4856, 7
    %v4858 = vsub.s32 0, %v4857
    %v4859 = vrot.slane %v3425, %v4858
    %v4860 = vlaneseq
    %v4861 = vshrl.u32 %v4860, 7
    %v4862 = vsub.s32 0, %v4861
    %v4863 = vrot.slane %v3467, %v4862
    %v4864 = vlaneseq
    %v4865 = vshrl.u32 %v4864, 7
    %v4866 = vsub.s32 0, %v4865
    %v4867 = vrot.slane %v3475, %v4866
    %v4868 = vlaneseq
    %v4869 = vshrl.u32 %v4868, 7
    %v4870 = vsub.s32 0, %v4869
    %v4871 = vrot.slane %v3474, %v4870
    %v4872 = vlaneseq
    %v4873 = vshrl.u32 %v4872, 7
    %v4874 = vsub.s32 0, %v4873
    %v4875 = vrot.slane %v3476, %v4874
    %v4876 = vlaneseq
    %v4877 = vshrl.u32 %v4876, 7
    %v4878 = vsub.s32 0, %v4877
    %v4879 = vrot.slane %v3484, %v4878
    %v4880 = vlaneseq
    %v4881 = vshrl.u32 %v4880, 7
    %v4882 = vsub.s32 0, %v4881
    %v4883 = vrot.slane %v3492, %v4882
    %v4884 = vlaneseq
    %v4885 = vshrl.u32 %v4884, 7
    %v4886 = vsub.s32 0, %v4885
    %v4887 = vrot.slane %v3491, %v4886
    %v4888 = vlaneseq
    %v4889 = vshrl.u32 %v4888, 7
    %v4890 = vsub.s32 0, %v4889
    %v4891 = vrot.slane %v3493, %v4890
    %v4892 = vlaneseq
    %v4893 = vshrl.u32 %v4892, 7
    %v4894 = vsub.s32 0, %v4893
    %v4895 = vrot.slane %v3603, %v4894
    %v4896 = vlaneseq
    %v4897 = vshrl.u32 %v4896, 7
    %v4898 = vsub.s32 0, %v4897
    %v4899 = vrot.slane %v3611, %v4898
    %v4900 = vlaneseq
    %v4901 = vshrl.u32 %v4900, 7
    %v4902 = vsub.s32 0, %v4901
    %v4903 = vrot.slane %v3610, %v4902
    %v4904 = vlaneseq
    %v4905 = vshrl.u32 %v4904, 7
    %v4906 = vsub.s32 0, %v4905
    %v4907 = vrot.slane %v3612, %v4906
    %v4908 = vlaneseq
    %v4909 = vshrl.u32 %v4908, 7
    %v4910 = vsub.s32 0, %v4909
    %v4911 = vrot.slane %v3620, %v4910
    %v4912 = vlaneseq
    %v4913 = vshrl.u32 %v4912, 7
    %v4914 = vsub.s32 0, %v4913
    %v4915 = vrot.slane %v3628, %v4914
    %v4916 = vlaneseq
    %v4917 = vshrl.u32 %v4916, 7
    %v4918 = vsub.s32 0, %v4917
    %v4919 = vrot.slane %v3627, %v4918
    %v4920 = vlaneseq
    %v4921 = vshrl.u32 %v4920, 7
    %v4922 = vsub.s32 0, %v4921
    %v4923 = vrot.slane %v3629, %v4922
    %v4924 = vlaneseq
    %v4925 = vshrl.u32 %v4924, 7
    %v4926 = vsub.s32 0, %v4925
    %v4927 = vrot.slane %v3671, %v4926
    %v4928 = vlaneseq
    %v4929 = vshrl.u32 %v4928, 7
    %v4930 = vsub.s32 0, %v4929
    %v4931 = vrot.slane %v3679, %v4930
    %v4932 = vlaneseq
    %v4933 = vshrl.u32 %v4932, 7
    %v4934 = vsub.s32 0, %v4933
    %v4935 = vrot.slane %v3678, %v4934
    %v4936 = vlaneseq
    %v4937 = vshrl.u32 %v4936, 7
    %v4938 = vsub.s32 0, %v4937
    %v4939 = vrot.slane %v3680, %v4938
    %v4940 = vlaneseq
    %v4941 = vshrl.u32 %v4940, 7
    %v4942 = vsub.s32 0, %v4941
    %v4943 = vrot.slane %v3688, %v4942
    %v4944 = vlaneseq
    %v4945 = vshrl.u32 %v4944, 7
    %v4946 = vsub.s32 0, %v4945
    %v4947 = vrot.slane %v3696, %v4946
    %v4948 = vlaneseq
    %v4949 = vshrl.u32 %v4948, 7
    %v4950 = vsub.s32 0, %v4949
    %v4951 = vrot.slane %v3695, %v4950
    %v4952 = vlaneseq
    %v4953 = vshrl.u32 %v4952, 7
    %v4954 = vsub.s32 0, %v4953
    %v4955 = vrot.slane %v3697, %v4954
    %v4956 = vlaneseq
    %v4957 = vshrl.u32 %v4956, 7
    %v4958 = vsub.s32 0, %v4957
    %v4959 = vrot.slane %v3739, %v4958
    %v4960 = vlaneseq
    %v4961 = vshrl.u32 %v4960, 7
    %v4962 = vsub.s32 0, %v4961
    %v4963 = vrot.slane %v3747, %v4962
    %v4964 = vlaneseq
    %v4965 = vshrl.u32 %v4964, 7
    %v4966 = vsub.s32 0, %v4965
    %v4967 = vrot.slane %v3746, %v4966
    %v4968 = vlaneseq
    %v4969 = vshrl.u32 %v4968, 7
    %v4970 = vsub.s32 0, %v4969
    %v4971 = vrot.slane %v3748, %v4970
    %v4972 = vlaneseq
    %v4973 = vshrl.u32 %v4972, 7
    %v4974 = vsub.s32 0, %v4973
    %v4975 = vrot.slane %v3756, %v4974
    %v4976 = vlaneseq
    %v4977 = vshrl.u32 %v4976, 7
    %v4978 = vsub.s32 0, %v4977
    %v4979 = vrot.slane %v3764, %v4978
    %v4980 = vlaneseq
    %v4981 = vshrl.u32 %v4980, 7
    %v4982 = vsub.s32 0, %v4981
    %v4983 = vrot.slane %v3763, %v4982
    %v4984 = vlaneseq
    %v4985 = vshrl.u32 %v4984, 7
    %v4986 = vsub.s32 0, %v4985
    %v4987 = vrot.slane %v3765, %v4986
    %v4988 = vlaneseq
    %v4989 = vshrl.u32 %v4988, 7
    %v4990 = vsub.s32 0, %v4989
    %v4991 = vrot.slane %v3807, %v4990
    %v4992 = vlaneseq
    %v4993 = vshrl.u32 %v4992, 7
    %v4994 = vsub.s32 0, %v4993
    %v4995 = vrot.slane %v3815, %v4994
    %v4996 = vlaneseq
    %v4997 = vshrl.u32 %v4996, 7
    %v4998 = vsub.s32 0, %v4997
    %v4999 = vrot.slane %v3814, %v4998
    %v5000 = vlaneseq
    %v5001 = vshrl.u32 %v5000, 7
    %v5002 = vsub.s32 0, %v5001
    %v5003 = vrot.slane %v3816, %v5002
    %v5004 = vlaneseq
    %v5005 = vshrl.u32 %v5004, 7
    %v5006 = vsub.s32 0, %v5005
    %v5007 = vrot.slane %v3824, %v5006
    %v5008 = vlaneseq
    %v5009 = vshrl.u32 %v5008, 7
    %v5010 = vsub.s32 0, %v5009
    %v5011 = vrot.slane %v3832, %v5010
    %v5012 = vlaneseq
    %v5013 = vshrl.u32 %v5012, 7
    %v5014 = vsub.s32 0, %v5013
    %v5015 = vrot.slane %v3831, %v5014
    %v5016 = vlaneseq
    %v5017 = vshrl.u32 %v5016, 7
    %v5018 = vsub.s32 0, %v5017
    %v5019 = vrot.slane %v3833, %v5018
    %v5020 = vlaneseq
    %v5021 = vshrl.u32 %v5020, 7
    %v5022 = vsub.s32 0, %v5021
    %v5023 = vrot.slane %v3875, %v5022
    %v5024 = vlaneseq
    %v5025 = vshrl.u32 %v5024, 7
    %v5026 = vsub.s32 0, %v5025
    %v5027 = vrot.slane %v3883, %v5026
    %v5028 = vlaneseq
    %v5029 = vshrl.u32 %v5028, 7
    %v5030 = vsub.s32 0, %v5029
    %v5031 = vrot.slane %v3882, %v5030
    %v5032 = vlaneseq
    %v5033 = vshrl.u32 %v5032, 7
    %v5034 = vsub.s32 0, %v5033
    %v5035 = vrot.slane %v3884, %v5034
    %v5036 = vlaneseq
    %v5037 = vshrl.u32 %v5036, 7
    %v5038 = vsub.s32 0, %v5037
    %v5039 = vrot.slane %v3892, %v5038
    %v5040 = vlaneseq
    %v5041 = vshrl.u32 %v5040, 7
    %v5042 = vsub.s32 0, %v5041
    %v5043 = vrot.slane %v3900, %v5042
    %v5044 = vlaneseq
    %v5045 = vshrl.u32 %v5044, 7
    %v5046 = vsub.s32 0, %v5045
    %v5047 = vrot.slane %v3899, %v5046
    %v5048 = vlaneseq
    %v5049 = vshrl.u32 %v5048, 7
    %v5050 = vsub.s32 0, %v5049
    %v5051 = vrot.slane %v3901, %v5050
    %v5052 = vlaneseq
    %v5053 = vshrl.u32 %v5052, 7
    %v5054 = vsub.s32 0, %v5053
    %v5055 = vrot.slane %v3943, %v5054
    %v5056 = vlaneseq
    %v5057 = vshrl.u32 %v5056, 7
    %v5058 = vsub.s32 0, %v5057
    %v5059 = vrot.slane %v3951, %v5058
    %v5060 = vlaneseq
    %v5061 = vshrl.u32 %v5060, 7
    %v5062 = vsub.s32 0, %v5061
    %v5063 = vrot.slane %v3950, %v5062
    %v5064 = vlaneseq
    %v5065 = vshrl.u32 %v5064, 7
    %v5066 = vsub.s32 0, %v5065
    %v5067 = vrot.slane %v3952, %v5066
    %v5068 = vlaneseq
    %v5069 = vshrl.u32 %v5068, 7
    %v5070 = vsub.s32 0, %v5069
    %v5071 = vrot.slane %v3960, %v5070
    %v5072 = vlaneseq
    %v5073 = vshrl.u32 %v5072, 7
    %v5074 = vsub.s32 0, %v5073
    %v5075 = vrot.slane %v3968, %v5074
    %v5076 = vlaneseq
    %v5077 = vshrl.u32 %v5076, 7
    %v5078 = vsub.s32 0, %v5077
    %v5079 = vrot.slane %v3967, %v5078
    %v5080 = vlaneseq
    %v5081 = vshrl.u32 %v5080, 7
    %v5082 = vsub.s32 0, %v5081
    %v5083 = vrot.slane %v3969, %v5082
    %v5084 = vlaneseq
    %v5085 = vshrl.u32 %v5084, 7
    %v5086 = vsub.s32 0, %v5085
    %v5087 = vrot.slane %v4011, %v5086
    %v5088 = vlaneseq
    %v5089 = vshrl.u32 %v5088, 7
    %v5090 = vsub.s32 0, %v5089
    %v5091 = vrot.slane %v4019, %v5090
    %v5092 = vlaneseq
    %v5093 = vshrl.u32 %v5092, 7
    %v5094 = vsub.s32 0, %v5093
    %v5095 = vrot.slane %v4018, %v5094
    %v5096 = vlaneseq
    %v5097 = vshrl.u32 %v5096, 7
    %v5098 = vsub.s32 0, %v5097
    %v5099 = vrot.slane %v4020, %v5098
    %v5100 = vlaneseq
    %v5101 = vshrl.u32 %v5100, 7
    %v5102 = vsub.s32 0, %v5101
    %v5103 = vrot.slane %v4028, %v5102
    %v5104 = vlaneseq
    %v5105 = vshrl.u32 %v5104, 7
    %v5106 = vsub.s32 0, %v5105
    %v5107 = vrot.slane %v4036, %v5106
    %v5108 = vlaneseq
    %v5109 = vshrl.u32 %v5108, 7
    %v5110 = vsub.s32 0, %v5109
    %v5111 = vrot.slane %v4035, %v5110
    %v5112 = vlaneseq
    %v5113 = vshrl.u32 %v5112, 7
    %v5114 = vsub.s32 0, %v5113
    %v5115 = vrot.slane %v4037, %v5114
    %vm5116 = vcmask 1041409
    %v5117 = vsel %vm5116, %v4675, %v4671
    %v5118 = vsel %vm4548, %v4679, %v5117
    %v5119 = vsel %vm4550, %v4683, %v5118
    %v5120 = vsel %vm4552, %v4687, %v5119
    %v5121 = vsel %vm4554, %v4691, %v5120
    %v5122 = vsel %vm4556, %v4695, %v5121
    %v5123 = vsel %vm4558, %v4699, %v5122
    %v5124 = vsel %vm5116, %v4707, %v4703
    %v5125 = vsel %vm4548, %v4711, %v5124
    %v5126 = vsel %vm4550, %v4715, %v5125
    %v5127 = vsel %vm4552, %v4719, %v5126
    %v5128 = vsel %vm4554, %v4723, %v5127
    %v5129 = vsel %vm4556, %v4727, %v5128
    %v5130 = vsel %vm4558, %v4731, %v5129
    %v5131 = vsel %vm5116, %v4739, %v4735
    %v5132 = vsel %vm4548, %v4743, %v5131
    %v5133 = vsel %vm4550, %v4747, %v5132
    %v5134 = vsel %vm4552, %v4751, %v5133
    %v5135 = vsel %vm4554, %v4755, %v5134
    %v5136 = vsel %vm4556, %v4759, %v5135
    %v5137 = vsel %vm4558, %v4763, %v5136
    %v5138 = vsel %vm5116, %v4771, %v4767
    %v5139 = vsel %vm4548, %v4775, %v5138
    %v5140 = vsel %vm4550, %v4779, %v5139
    %v5141 = vsel %vm4552, %v4783, %v5140
    %v5142 = vsel %vm4554, %v4787, %v5141
    %v5143 = vsel %vm4556, %v4791, %v5142
    %v5144 = vsel %vm4558, %v4795, %v5143
    %v5145 = vsel %vm5116, %v4803, %v4799
    %v5146 = vsel %vm4548, %v4807, %v5145
    %v5147 = vsel %vm4550, %v4811, %v5146
    %v5148 = vsel %vm4552, %v4815, %v5147
    %v5149 = vsel %vm4554, %v4819, %v5148
    %v5150 = vsel %vm4556, %v4823, %v5149
    %v5151 = vsel %vm4558, %v4827, %v5150
    %v5152 = vsel %vm5116, %v4835, %v4831
    %v5153 = vsel %vm4548, %v4839, %v5152
    %v5154 = vsel %vm4550, %v4843, %v5153
    %v5155 = vsel %vm4552, %v4847, %v5154
    %v5156 = vsel %vm4554, %v4851, %v5155
    %v5157 = vsel %vm4556, %v4855, %v5156
    %v5158 = vsel %vm4558, %v4859, %v5157
    %v5159 = vsel %vm5116, %v4867, %v4863
    %v5160 = vsel %vm4548, %v4871, %v5159
    %v5161 = vsel %vm4550, %v4875, %v5160
    %v5162 = vsel %vm4552, %v4879, %v5161
    %v5163 = vsel %vm4554, %v4883, %v5162
    %v5164 = vsel %vm4556, %v4887, %v5163
    %v5165 = vsel %vm4558, %v4891, %v5164
    %v5166 = vsel %vm5116, %v4899, %v4895
    %v5167 = vsel %vm4548, %v4903, %v5166
    %v5168 = vsel %vm4550, %v4907, %v5167
    %v5169 = vsel %vm4552, %v4911, %v5168
    %v5170 = vsel %vm4554, %v4915, %v5169
    %v5171 = vsel %vm4556, %v4919, %v5170
    %v5172 = vsel %vm4558, %v4923, %v5171
    %v5173 = vsel %vm5116, %v4931, %v4927
    %v5174 = vsel %vm4548, %v4935, %v5173
    %v5175 = vsel %vm4550, %v4939, %v5174
    %v5176 = vsel %vm4552, %v4943, %v5175
    %v5177 = vsel %vm4554, %v4947, %v5176
    %v5178 = vsel %vm4556, %v4951, %v5177
    %v5179 = vsel %vm4558, %v4955, %v5178
    %v5180 = vsel %vm5116, %v4963, %v4959
    %v5181 = vsel %vm4548, %v4967, %v5180
    %v5182 = vsel %vm4550, %v4971, %v5181
    %v5183 = vsel %vm4552, %v4975, %v5182
    %v5184 = vsel %vm4554, %v4979, %v5183
    %v5185 = vsel %vm4556, %v4983, %v5184
    %v5186 = vsel %vm4558, %v4987, %v5185
    %v5187 = vsel %vm5116, %v4995, %v4991
    %v5188 = vsel %vm4548, %v4999, %v5187
    %v5189 = vsel %vm4550, %v5003, %v5188
    %v5190 = vsel %vm4552, %v5007, %v5189
    %v5191 = vsel %vm4554, %v5011, %v5190
    %v5192 = vsel %vm4556, %v5015, %v5191
    %v5193 = vsel %vm4558, %v5019, %v5192
    %v5194 = vsel %vm5116, %v5027, %v5023
    %v5195 = vsel %vm4548, %v5031, %v5194
    %v5196 = vsel %vm4550, %v5035, %v5195
    %v5197 = vsel %vm4552, %v5039, %v5196
    %v5198 = vsel %vm4554, %v5043, %v5197
    %v5199 = vsel %vm4556, %v5047, %v5198
    %v5200 = vsel %vm4558, %v5051, %v5199
    %v5201 = vsel %vm5116, %v5059, %v5055
    %v5202 = vsel %vm4548, %v5063, %v5201
    %v5203 = vsel %vm4550, %v5067, %v5202
    %v5204 = vsel %vm4552, %v5071, %v5203
    %v5205 = vsel %vm4554, %v5075, %v5204
    %v5206 = vsel %vm4556, %v5079, %v5205
    %v5207 = vsel %vm4558, %v5083, %v5206
    %v5208 = vsel %vm5116, %v5091, %v5087
    %v5209 = vsel %vm4548, %v5095, %v5208
    %v5210 = vsel %vm4550, %v5099, %v5209
    %v5211 = vsel %vm4552, %v5103, %v5210
    %v5212 = vsel %vm4554, %v5107, %v5211
    %v5213 = vsel %vm4556, %v5111, %v5212
    %v5214 = vsel %vm4558, %v5115, %v5213
    %5215 = vrot.lane.b32.xlu0 %v5123, 8
    %v5216 = vpop.permute.xlu0 %5215
    %5217 = vrot.lane.b32.xlu0 %v5130, 8
    %v5218 = vpop.permute.xlu0 %5217
    %5219 = vrot.lane.b32.xlu0 %v5137, 8
    %v5220 = vpop.permute.xlu0 %5219
    %5221 = vrot.lane.b32.xlu0 %v5144, 8
    %v5222 = vpop.permute.xlu0 %5221
    %5223 = vrot.lane.b32.xlu0 %v5151, 8
    %v5224 = vpop.permute.xlu0 %5223
    %5225 = vrot.lane.b32.xlu0 %v5158, 8
    %v5226 = vpop.permute.xlu0 %5225
    %5227 = vrot.lane.b32.xlu0 %v5165, 8
    %v5228 = vpop.permute.xlu0 %5227
    %5229 = vrot.lane.b32.xlu0 %v5172, 8
    %v5230 = vpop.permute.xlu0 %5229
    %5231 = vrot.lane.b32.xlu0 %v5179, 8
    %v5232 = vpop.permute.xlu0 %5231
    %5233 = vrot.lane.b32.xlu0 %v5186, 8
    %v5234 = vpop.permute.xlu0 %5233
    %5235 = vrot.lane.b32.xlu0 %v5193, 8
    %v5236 = vpop.permute.xlu0 %5235
    %5237 = vrot.lane.b32.xlu0 %v5200, 8
    %v5238 = vpop.permute.xlu0 %5237
    %5239 = vrot.lane.b32.xlu0 %v5207, 8
    %v5240 = vpop.permute.xlu0 %5239
    %5241 = vrot.lane.b32.xlu0 %v5214, 8
    %v5242 = vpop.permute.xlu0 %5241
    %vm5257 = vcmask 130112
    %5258 = vst.msk [vmem:[%s4652] sm:$0xff] %vm5257, %v5216
    %5259 = vst.msk [vmem:[%s4652 + $0x10] sm:$0xff] %vm5257, %v5218
    %5260 = vst.msk [vmem:[%s4652 + $0x20] sm:$0xff] %vm5257, %v5220
    %5261 = vst.msk [vmem:[%s4652 + $0x30] sm:$0xff] %vm5257, %v5222
    %5262 = vst.msk [vmem:[%s4652 + $0x40] sm:$0xff] %vm5257, %v5224
    %5263 = vst.msk [vmem:[%s4652 + $0x50] sm:$0xff] %vm5257, %v5226
    %5264 = vst.msk [vmem:[%s4652 + $0x60] sm:$0xff] %vm5257, %v5228
    %5265 = vst.msk [vmem:[%s4652 + $0x80] sm:$0xff] %vm5257, %v5230
    %5266 = vst.msk [vmem:[%s4652 + $0x90] sm:$0xff] %vm5257, %v5232
    %5267 = vst.msk [vmem:[%s4652 + $0xa0] sm:$0xff] %vm5257, %v5234
    %5268 = vst.msk [vmem:[%s4652 + $0xb0] sm:$0xff] %vm5257, %v5236
    %5269 = vst.msk [vmem:[%s4652 + $0xc0] sm:$0xff] %vm5257, %v5238
    %5270 = vst.msk [vmem:[%s4652 + $0xd0] sm:$0xff] %vm5257, %v5240
    %5271 = vst.msk [vmem:[%s4652 + $0xe0] sm:$0xff] %vm5257, %v5242
    %v5272 = vlaneseq
    %v5273 = vshrl.u32 %v5272, 7
    %v5274 = vsub.s32 1, %v5273
    %v5275 = vrot.slane %v3085, %v5274
    %v5276 = vlaneseq
    %v5277 = vshrl.u32 %v5276, 7
    %v5278 = vsub.s32 1, %v5277
    %v5279 = vrot.slane %v3153, %v5278
    %v5280 = vlaneseq
    %v5281 = vshrl.u32 %v5280, 7
    %v5282 = vsub.s32 1, %v5281
    %v5283 = vrot.slane %v3221, %v5282
    %v5284 = vlaneseq
    %v5285 = vshrl.u32 %v5284, 7
    %v5286 = vsub.s32 1, %v5285
    %v5287 = vrot.slane %v3289, %v5286
    %v5288 = vlaneseq
    %v5289 = vshrl.u32 %v5288, 7
    %v5290 = vsub.s32 1, %v5289
    %v5291 = vrot.slane %v3357, %v5290
    %v5292 = vlaneseq
    %v5293 = vshrl.u32 %v5292, 7
    %v5294 = vsub.s32 1, %v5293
    %v5295 = vrot.slane %v3425, %v5294
    %v5296 = vlaneseq
    %v5297 = vshrl.u32 %v5296, 7
    %v5298 = vsub.s32 1, %v5297
    %v5299 = vrot.slane %v3493, %v5298
    %v5300 = vlaneseq
    %v5301 = vshrl.u32 %v5300, 7
    %v5302 = vsub.s32 1, %v5301
    %v5303 = vrot.slane %v3629, %v5302
    %v5304 = vlaneseq
    %v5305 = vshrl.u32 %v5304, 7
    %v5306 = vsub.s32 1, %v5305
    %v5307 = vrot.slane %v3697, %v5306
    %v5308 = vlaneseq
    %v5309 = vshrl.u32 %v5308, 7
    %v5310 = vsub.s32 1, %v5309
    %v5311 = vrot.slane %v3765, %v5310
    %v5312 = vlaneseq
    %v5313 = vshrl.u32 %v5312, 7
    %v5314 = vsub.s32 1, %v5313
    %v5315 = vrot.slane %v3833, %v5314
    %v5316 = vlaneseq
    %v5317 = vshrl.u32 %v5316, 7
    %v5318 = vsub.s32 1, %v5317
    %v5319 = vrot.slane %v3901, %v5318
    %v5320 = vlaneseq
    %v5321 = vshrl.u32 %v5320, 7
    %v5322 = vsub.s32 1, %v5321
    %v5323 = vrot.slane %v3969, %v5322
    %v5324 = vlaneseq
    %v5325 = vshrl.u32 %v5324, 7
    %v5326 = vsub.s32 1, %v5325
    %v5327 = vrot.slane %v4037, %v5326
    %v5328 = vsel %vm5116, %v4163, %v4159
    %v5329 = vsel %vm4548, %v4167, %v5328
    %v5330 = vsel %vm4550, %v4171, %v5329
    %v5331 = vsel %vm4552, %v4175, %v5330
    %v5332 = vsel %vm4554, %v4179, %v5331
    %v5333 = vsel %vm4556, %v4183, %v5332
    %v5334 = vsel %vm4558, %v5275, %v5333
    %v5335 = vsel %vm5116, %v4191, %v4187
    %v5336 = vsel %vm4548, %v4195, %v5335
    %v5337 = vsel %vm4550, %v4199, %v5336
    %v5338 = vsel %vm4552, %v4203, %v5337
    %v5339 = vsel %vm4554, %v4207, %v5338
    %v5340 = vsel %vm4556, %v4211, %v5339
    %v5341 = vsel %vm4558, %v5279, %v5340
    %v5342 = vsel %vm5116, %v4219, %v4215
    %v5343 = vsel %vm4548, %v4223, %v5342
    %v5344 = vsel %vm4550, %v4227, %v5343
    %v5345 = vsel %vm4552, %v4231, %v5344
    %v5346 = vsel %vm4554, %v4235, %v5345
    %v5347 = vsel %vm4556, %v4239, %v5346
    %v5348 = vsel %vm4558, %v5283, %v5347
    %v5349 = vsel %vm5116, %v4247, %v4243
    %v5350 = vsel %vm4548, %v4251, %v5349
    %v5351 = vsel %vm4550, %v4255, %v5350
    %v5352 = vsel %vm4552, %v4259, %v5351
    %v5353 = vsel %vm4554, %v4263, %v5352
    %v5354 = vsel %vm4556, %v4267, %v5353
    %v5355 = vsel %vm4558, %v5287, %v5354
    %v5356 = vsel %vm5116, %v4275, %v4271
    %v5357 = vsel %vm4548, %v4279, %v5356
    %v5358 = vsel %vm4550, %v4283, %v5357
    %v5359 = vsel %vm4552, %v4287, %v5358
    %v5360 = vsel %vm4554, %v4291, %v5359
    %v5361 = vsel %vm4556, %v4295, %v5360
    %v5362 = vsel %vm4558, %v5291, %v5361
    %v5363 = vsel %vm5116, %v4303, %v4299
    %v5364 = vsel %vm4548, %v4307, %v5363
    %v5365 = vsel %vm4550, %v4311, %v5364
    %v5366 = vsel %vm4552, %v4315, %v5365
    %v5367 = vsel %vm4554, %v4319, %v5366
    %v5368 = vsel %vm4556, %v4323, %v5367
    %v5369 = vsel %vm4558, %v5295, %v5368
    %v5370 = vsel %vm5116, %v4331, %v4327
    %v5371 = vsel %vm4548, %v4335, %v5370
    %v5372 = vsel %vm4550, %v4339, %v5371
    %v5373 = vsel %vm4552, %v4343, %v5372
    %v5374 = vsel %vm4554, %v4347, %v5373
    %v5375 = vsel %vm4556, %v4351, %v5374
    %v5376 = vsel %vm4558, %v5299, %v5375
    %v5377 = vsel %vm5116, %v4359, %v4355
    %v5378 = vsel %vm4548, %v4363, %v5377
    %v5379 = vsel %vm4550, %v4367, %v5378
    %v5380 = vsel %vm4552, %v4371, %v5379
    %v5381 = vsel %vm4554, %v4375, %v5380
    %v5382 = vsel %vm4556, %v4379, %v5381
    %v5383 = vsel %vm4558, %v5303, %v5382
    %v5384 = vsel %vm5116, %v4387, %v4383
    %v5385 = vsel %vm4548, %v4391, %v5384
    %v5386 = vsel %vm4550, %v4395, %v5385
    %v5387 = vsel %vm4552, %v4399, %v5386
    %v5388 = vsel %vm4554, %v4403, %v5387
    %v5389 = vsel %vm4556, %v4407, %v5388
    %v5390 = vsel %vm4558, %v5307, %v5389
    %v5391 = vsel %vm5116, %v4415, %v4411
    %v5392 = vsel %vm4548, %v4419, %v5391
    %v5393 = vsel %vm4550, %v4423, %v5392
    %v5394 = vsel %vm4552, %v4427, %v5393
    %v5395 = vsel %vm4554, %v4431, %v5394
    %v5396 = vsel %vm4556, %v4435, %v5395
    %v5397 = vsel %vm4558, %v5311, %v5396
    %v5398 = vsel %vm5116, %v4443, %v4439
    %v5399 = vsel %vm4548, %v4447, %v5398
    %v5400 = vsel %vm4550, %v4451, %v5399
    %v5401 = vsel %vm4552, %v4455, %v5400
    %v5402 = vsel %vm4554, %v4459, %v5401
    %v5403 = vsel %vm4556, %v4463, %v5402
    %v5404 = vsel %vm4558, %v5315, %v5403
    %v5405 = vsel %vm5116, %v4471, %v4467
    %v5406 = vsel %vm4548, %v4475, %v5405
    %v5407 = vsel %vm4550, %v4479, %v5406
    %v5408 = vsel %vm4552, %v4483, %v5407
    %v5409 = vsel %vm4554, %v4487, %v5408
    %v5410 = vsel %vm4556, %v4491, %v5409
    %v5411 = vsel %vm4558, %v5319, %v5410
    %v5412 = vsel %vm5116, %v4499, %v4495
    %v5413 = vsel %vm4548, %v4503, %v5412
    %v5414 = vsel %vm4550, %v4507, %v5413
    %v5415 = vsel %vm4552, %v4511, %v5414
    %v5416 = vsel %vm4554, %v4515, %v5415
    %v5417 = vsel %vm4556, %v4519, %v5416
    %v5418 = vsel %vm4558, %v5323, %v5417
    %v5419 = vsel %vm5116, %v4527, %v4523
    %v5420 = vsel %vm4548, %v4531, %v5419
    %v5421 = vsel %vm4550, %v4535, %v5420
    %v5422 = vsel %vm4552, %v4539, %v5421
    %v5423 = vsel %vm4554, %v4543, %v5422
    %v5424 = vsel %vm4556, %v4547, %v5423
    %v5425 = vsel %vm4558, %v5327, %v5424
    %5426 = vrot.lane.b32.xlu0 %v5334, 16
    %v5427 = vpop.permute.xlu0 %5426
    %5428 = vrot.lane.b32.xlu0 %v5341, 16
    %v5429 = vpop.permute.xlu0 %5428
    %5430 = vrot.lane.b32.xlu0 %v5348, 16
    %v5431 = vpop.permute.xlu0 %5430
    %5432 = vrot.lane.b32.xlu0 %v5355, 16
    %v5433 = vpop.permute.xlu0 %5432
    %5434 = vrot.lane.b32.xlu0 %v5362, 16
    %v5435 = vpop.permute.xlu0 %5434
    %5436 = vrot.lane.b32.xlu0 %v5369, 16
    %v5437 = vpop.permute.xlu0 %5436
    %5438 = vrot.lane.b32.xlu0 %v5376, 16
    %v5439 = vpop.permute.xlu0 %5438
    %5440 = vrot.lane.b32.xlu0 %v5383, 16
    %v5441 = vpop.permute.xlu0 %5440
    %5442 = vrot.lane.b32.xlu0 %v5390, 16
    %v5443 = vpop.permute.xlu0 %5442
    %5444 = vrot.lane.b32.xlu0 %v5397, 16
    %v5445 = vpop.permute.xlu0 %5444
    %5446 = vrot.lane.b32.xlu0 %v5404, 16
    %v5447 = vpop.permute.xlu0 %5446
    %5448 = vrot.lane.b32.xlu0 %v5411, 16
    %v5449 = vpop.permute.xlu0 %5448
    %5450 = vrot.lane.b32.xlu0 %v5418, 16
    %v5451 = vpop.permute.xlu0 %5450
    %5452 = vrot.lane.b32.xlu0 %v5425, 16
    %v5453 = vpop.permute.xlu0 %5452
    %vm5468 = vcmask 195712
    %5469 = vst.msk [vmem:[%s4652] sm:$0xff] %vm5468, %v5427
    %5470 = vst.msk [vmem:[%s4652 + $0x10] sm:$0xff] %vm5468, %v5429
    %5471 = vst.msk [vmem:[%s4652 + $0x20] sm:$0xff] %vm5468, %v5431
    %5472 = vst.msk [vmem:[%s4652 + $0x30] sm:$0xff] %vm5468, %v5433
    %5473 = vst.msk [vmem:[%s4652 + $0x40] sm:$0xff] %vm5468, %v5435
    %5474 = vst.msk [vmem:[%s4652 + $0x50] sm:$0xff] %vm5468, %v5437
    %5475 = vst.msk [vmem:[%s4652 + $0x60] sm:$0xff] %vm5468, %v5439
    %5476 = vst.msk [vmem:[%s4652 + $0x80] sm:$0xff] %vm5468, %v5441
    %5477 = vst.msk [vmem:[%s4652 + $0x90] sm:$0xff] %vm5468, %v5443
    %5478 = vst.msk [vmem:[%s4652 + $0xa0] sm:$0xff] %vm5468, %v5445
    %5479 = vst.msk [vmem:[%s4652 + $0xb0] sm:$0xff] %vm5468, %v5447
    %5480 = vst.msk [vmem:[%s4652 + $0xc0] sm:$0xff] %vm5468, %v5449
    %5481 = vst.msk [vmem:[%s4652 + $0xd0] sm:$0xff] %vm5468, %v5451
    %5482 = vst.msk [vmem:[%s4652 + $0xe0] sm:$0xff] %vm5468, %v5453
    %v5483 = vsel %vm5116, %v4679, %v4675
    %v5484 = vsel %vm4548, %v4683, %v5483
    %v5485 = vsel %vm4550, %v4687, %v5484
    %v5486 = vsel %vm4552, %v4691, %v5485
    %v5487 = vsel %vm4554, %v4695, %v5486
    %v5488 = vsel %vm4556, %v4699, %v5487
    %v5489 = vsel %vm5116, %v4711, %v4707
    %v5490 = vsel %vm4548, %v4715, %v5489
    %v5491 = vsel %vm4550, %v4719, %v5490
    %v5492 = vsel %vm4552, %v4723, %v5491
    %v5493 = vsel %vm4554, %v4727, %v5492
    %v5494 = vsel %vm4556, %v4731, %v5493
    %v5495 = vsel %vm5116, %v4743, %v4739
    %v5496 = vsel %vm4548, %v4747, %v5495
    %v5497 = vsel %vm4550, %v4751, %v5496
    %v5498 = vsel %vm4552, %v4755, %v5497
    %v5499 = vsel %vm4554, %v4759, %v5498
    %v5500 = vsel %vm4556, %v4763, %v5499
    %v5501 = vsel %vm5116, %v4775, %v4771
    %v5502 = vsel %vm4548, %v4779, %v5501
    %v5503 = vsel %vm4550, %v4783, %v5502
    %v5504 = vsel %vm4552, %v4787, %v5503
    %v5505 = vsel %vm4554, %v4791, %v5504
    %v5506 = vsel %vm4556, %v4795, %v5505
    %v5507 = vsel %vm5116, %v4807, %v4803
    %v5508 = vsel %vm4548, %v4811, %v5507
    %v5509 = vsel %vm4550, %v4815, %v5508
    %v5510 = vsel %vm4552, %v4819, %v5509
    %v5511 = vsel %vm4554, %v4823, %v5510
    %v5512 = vsel %vm4556, %v4827, %v5511
    %v5513 = vsel %vm5116, %v4839, %v4835
    %v5514 = vsel %vm4548, %v4843, %v5513
    %v5515 = vsel %vm4550, %v4847, %v5514
    %v5516 = vsel %vm4552, %v4851, %v5515
    %v5517 = vsel %vm4554, %v4855, %v5516
    %v5518 = vsel %vm4556, %v4859, %v5517
    %v5519 = vsel %vm5116, %v4871, %v4867
    %v5520 = vsel %vm4548, %v4875, %v5519
    %v5521 = vsel %vm4550, %v4879, %v5520
    %v5522 = vsel %vm4552, %v4883, %v5521
    %v5523 = vsel %vm4554, %v4887, %v5522
    %v5524 = vsel %vm4556, %v4891, %v5523
    %v5525 = vsel %vm5116, %v4903, %v4899
    %v5526 = vsel %vm4548, %v4907, %v5525
    %v5527 = vsel %vm4550, %v4911, %v5526
    %v5528 = vsel %vm4552, %v4915, %v5527
    %v5529 = vsel %vm4554, %v4919, %v5528
    %v5530 = vsel %vm4556, %v4923, %v5529
    %v5531 = vsel %vm5116, %v4935, %v4931
    %v5532 = vsel %vm4548, %v4939, %v5531
    %v5533 = vsel %vm4550, %v4943, %v5532
    %v5534 = vsel %vm4552, %v4947, %v5533
    %v5535 = vsel %vm4554, %v4951, %v5534
    %v5536 = vsel %vm4556, %v4955, %v5535
    %v5537 = vsel %vm5116, %v4967, %v4963
    %v5538 = vsel %vm4548, %v4971, %v5537
    %v5539 = vsel %vm4550, %v4975, %v5538
    %v5540 = vsel %vm4552, %v4979, %v5539
    %v5541 = vsel %vm4554, %v4983, %v5540
    %v5542 = vsel %vm4556, %v4987, %v5541
    %v5543 = vsel %vm5116, %v4999, %v4995
    %v5544 = vsel %vm4548, %v5003, %v5543
    %v5545 = vsel %vm4550, %v5007, %v5544
    %v5546 = vsel %vm4552, %v5011, %v5545
    %v5547 = vsel %vm4554, %v5015, %v5546
    %v5548 = vsel %vm4556, %v5019, %v5547
    %v5549 = vsel %vm5116, %v5031, %v5027
    %v5550 = vsel %vm4548, %v5035, %v5549
    %v5551 = vsel %vm4550, %v5039, %v5550
    %v5552 = vsel %vm4552, %v5043, %v5551
    %v5553 = vsel %vm4554, %v5047, %v5552
    %v5554 = vsel %vm4556, %v5051, %v5553
    %v5555 = vsel %vm5116, %v5063, %v5059
    %v5556 = vsel %vm4548, %v5067, %v5555
    %v5557 = vsel %vm4550, %v5071, %v5556
    %v5558 = vsel %vm4552, %v5075, %v5557
    %v5559 = vsel %vm4554, %v5079, %v5558
    %v5560 = vsel %vm4556, %v5083, %v5559
    %v5561 = vsel %vm5116, %v5095, %v5091
    %v5562 = vsel %vm4548, %v5099, %v5561
    %v5563 = vsel %vm4550, %v5103, %v5562
    %v5564 = vsel %vm4552, %v5107, %v5563
    %v5565 = vsel %vm4554, %v5111, %v5564
    %v5566 = vsel %vm4556, %v5115, %v5565
    %5567 = vrot.lane.b32.xlu0 %v5488, 24
    %v5568 = vpop.permute.xlu0 %5567
    %5569 = vrot.lane.b32.xlu0 %v5494, 24
    %v5570 = vpop.permute.xlu0 %5569
    %5571 = vrot.lane.b32.xlu0 %v5500, 24
    %v5572 = vpop.permute.xlu0 %5571
    %5573 = vrot.lane.b32.xlu0 %v5506, 24
    %v5574 = vpop.permute.xlu0 %5573
    %5575 = vrot.lane.b32.xlu0 %v5512, 24
    %v5576 = vpop.permute.xlu0 %5575
    %5577 = vrot.lane.b32.xlu0 %v5518, 24
    %v5578 = vpop.permute.xlu0 %5577
    %5579 = vrot.lane.b32.xlu0 %v5524, 24
    %v5580 = vpop.permute.xlu0 %5579
    %5581 = vrot.lane.b32.xlu0 %v5530, 24
    %v5582 = vpop.permute.xlu0 %5581
    %5583 = vrot.lane.b32.xlu0 %v5536, 24
    %v5584 = vpop.permute.xlu0 %5583
    %5585 = vrot.lane.b32.xlu0 %v5542, 24
    %v5586 = vpop.permute.xlu0 %5585
    %5587 = vrot.lane.b32.xlu0 %v5548, 24
    %v5588 = vpop.permute.xlu0 %5587
    %5589 = vrot.lane.b32.xlu0 %v5554, 24
    %v5590 = vpop.permute.xlu0 %5589
    %5591 = vrot.lane.b32.xlu0 %v5560, 24
    %v5592 = vpop.permute.xlu0 %5591
    %5593 = vrot.lane.b32.xlu0 %v5566, 24
    %v5594 = vpop.permute.xlu0 %5593
    %vm5609 = vcmask 260288
    %5610 = vst.msk [vmem:[%s4652] sm:$0x7f] %vm5609, %v5568
    %5611 = vst.msk [vmem:[%s4652 + $0x10] sm:$0x7f] %vm5609, %v5570
    %5612 = vst.msk [vmem:[%s4652 + $0x20] sm:$0x7f] %vm5609, %v5572
    %5613 = vst.msk [vmem:[%s4652 + $0x30] sm:$0x7f] %vm5609, %v5574
    %5614 = vst.msk [vmem:[%s4652 + $0x40] sm:$0x7f] %vm5609, %v5576
    %5615 = vst.msk [vmem:[%s4652 + $0x50] sm:$0x7f] %vm5609, %v5578
    %5616 = vst.msk [vmem:[%s4652 + $0x60] sm:$0x7f] %vm5609, %v5580
    %5617 = vst.msk [vmem:[%s4652 + $0x80] sm:$0x7f] %vm5609, %v5582
    %5618 = vst.msk [vmem:[%s4652 + $0x90] sm:$0x7f] %vm5609, %v5584
    %5619 = vst.msk [vmem:[%s4652 + $0xa0] sm:$0x7f] %vm5609, %v5586
    %5620 = vst.msk [vmem:[%s4652 + $0xb0] sm:$0x7f] %vm5609, %v5588
    %5621 = vst.msk [vmem:[%s4652 + $0xc0] sm:$0x7f] %vm5609, %v5590
    %5622 = vst.msk [vmem:[%s4652 + $0xd0] sm:$0x7f] %vm5609, %v5592
    %5623 = vst.msk [vmem:[%s4652 + $0xe0] sm:$0x7f] %vm5609, %v5594
    %v5624 = vlaneseq
    %v5625 = vshrl.u32 %v5624, 7
    %v5626 = vsub.s32 1, %v5625
    %v5627 = vrot.slane %v3025, %v5626
    %v5628 = vlaneseq
    %v5629 = vshrl.u32 %v5628, 7
    %v5630 = vsub.s32 1, %v5629
    %v5631 = vrot.slane %v3033, %v5630
    %v5632 = vlaneseq
    %v5633 = vshrl.u32 %v5632, 7
    %v5634 = vsub.s32 1, %v5633
    %v5635 = vrot.slane %v3032, %v5634
    %v5636 = vlaneseq
    %v5637 = vshrl.u32 %v5636, 7
    %v5638 = vsub.s32 1, %v5637
    %v5639 = vrot.slane %v3034, %v5638
    %v5640 = vlaneseq
    %v5641 = vshrl.u32 %v5640, 7
    %v5642 = vsub.s32 1, %v5641
    %v5643 = vrot.slane %v3042, %v5642
    %v5644 = vlaneseq
    %v5645 = vshrl.u32 %v5644, 7
    %v5646 = vsub.s32 1, %v5645
    %v5647 = vrot.slane %v3050, %v5646
    %v5648 = vlaneseq
    %v5649 = vshrl.u32 %v5648, 7
    %v5650 = vsub.s32 1, %v5649
    %v5651 = vrot.slane %v3049, %v5650
    %v5652 = vlaneseq
    %v5653 = vshrl.u32 %v5652, 7
    %v5654 = vsub.s32 1, %v5653
    %v5655 = vrot.slane %v3093, %v5654
    %v5656 = vlaneseq
    %v5657 = vshrl.u32 %v5656, 7
    %v5658 = vsub.s32 1, %v5657
    %v5659 = vrot.slane %v3101, %v5658
    %v5660 = vlaneseq
    %v5661 = vshrl.u32 %v5660, 7
    %v5662 = vsub.s32 1, %v5661
    %v5663 = vrot.slane %v3100, %v5662
    %v5664 = vlaneseq
    %v5665 = vshrl.u32 %v5664, 7
    %v5666 = vsub.s32 1, %v5665
    %v5667 = vrot.slane %v3102, %v5666
    %v5668 = vlaneseq
    %v5669 = vshrl.u32 %v5668, 7
    %v5670 = vsub.s32 1, %v5669
    %v5671 = vrot.slane %v3110, %v5670
    %v5672 = vlaneseq
    %v5673 = vshrl.u32 %v5672, 7
    %v5674 = vsub.s32 1, %v5673
    %v5675 = vrot.slane %v3118, %v5674
    %v5676 = vlaneseq
    %v5677 = vshrl.u32 %v5676, 7
    %v5678 = vsub.s32 1, %v5677
    %v5679 = vrot.slane %v3117, %v5678
    %v5680 = vlaneseq
    %v5681 = vshrl.u32 %v5680, 7
    %v5682 = vsub.s32 1, %v5681
    %v5683 = vrot.slane %v3161, %v5682
    %v5684 = vlaneseq
    %v5685 = vshrl.u32 %v5684, 7
    %v5686 = vsub.s32 1, %v5685
    %v5687 = vrot.slane %v3169, %v5686
    %v5688 = vlaneseq
    %v5689 = vshrl.u32 %v5688, 7
    %v5690 = vsub.s32 1, %v5689
    %v5691 = vrot.slane %v3168, %v5690
    %v5692 = vlaneseq
    %v5693 = vshrl.u32 %v5692, 7
    %v5694 = vsub.s32 1, %v5693
    %v5695 = vrot.slane %v3170, %v5694
    %v5696 = vlaneseq
    %v5697 = vshrl.u32 %v5696, 7
    %v5698 = vsub.s32 1, %v5697
    %v5699 = vrot.slane %v3178, %v5698
    %v5700 = vlaneseq
    %v5701 = vshrl.u32 %v5700, 7
    %v5702 = vsub.s32 1, %v5701
    %v5703 = vrot.slane %v3186, %v5702
    %v5704 = vlaneseq
    %v5705 = vshrl.u32 %v5704, 7
    %v5706 = vsub.s32 1, %v5705
    %v5707 = vrot.slane %v3185, %v5706
    %v5708 = vlaneseq
    %v5709 = vshrl.u32 %v5708, 7
    %v5710 = vsub.s32 1, %v5709
    %v5711 = vrot.slane %v3229, %v5710
    %v5712 = vlaneseq
    %v5713 = vshrl.u32 %v5712, 7
    %v5714 = vsub.s32 1, %v5713
    %v5715 = vrot.slane %v3237, %v5714
    %v5716 = vlaneseq
    %v5717 = vshrl.u32 %v5716, 7
    %v5718 = vsub.s32 1, %v5717
    %v5719 = vrot.slane %v3236, %v5718
    %v5720 = vlaneseq
    %v5721 = vshrl.u32 %v5720, 7
    %v5722 = vsub.s32 1, %v5721
    %v5723 = vrot.slane %v3238, %v5722
    %v5724 = vlaneseq
    %v5725 = vshrl.u32 %v5724, 7
    %v5726 = vsub.s32 1, %v5725
    %v5727 = vrot.slane %v3246, %v5726
    %v5728 = vlaneseq
    %v5729 = vshrl.u32 %v5728, 7
    %v5730 = vsub.s32 1, %v5729
    %v5731 = vrot.slane %v3254, %v5730
    %v5732 = vlaneseq
    %v5733 = vshrl.u32 %v5732, 7
    %v5734 = vsub.s32 1, %v5733
    %v5735 = vrot.slane %v3253, %v5734
    %v5736 = vlaneseq
    %v5737 = vshrl.u32 %v5736, 7
    %v5738 = vsub.s32 1, %v5737
    %v5739 = vrot.slane %v3297, %v5738
    %v5740 = vlaneseq
    %v5741 = vshrl.u32 %v5740, 7
    %v5742 = vsub.s32 1, %v5741
    %v5743 = vrot.slane %v3305, %v5742
    %v5744 = vlaneseq
    %v5745 = vshrl.u32 %v5744, 7
    %v5746 = vsub.s32 1, %v5745
    %v5747 = vrot.slane %v3304, %v5746
    %v5748 = vlaneseq
    %v5749 = vshrl.u32 %v5748, 7
    %v5750 = vsub.s32 1, %v5749
    %v5751 = vrot.slane %v3306, %v5750
    %v5752 = vlaneseq
    %v5753 = vshrl.u32 %v5752, 7
    %v5754 = vsub.s32 1, %v5753
    %v5755 = vrot.slane %v3314, %v5754
    %v5756 = vlaneseq
    %v5757 = vshrl.u32 %v5756, 7
    %v5758 = vsub.s32 1, %v5757
    %v5759 = vrot.slane %v3322, %v5758
    %v5760 = vlaneseq
    %v5761 = vshrl.u32 %v5760, 7
    %v5762 = vsub.s32 1, %v5761
    %v5763 = vrot.slane %v3321, %v5762
    %v5764 = vlaneseq
    %v5765 = vshrl.u32 %v5764, 7
    %v5766 = vsub.s32 1, %v5765
    %v5767 = vrot.slane %v3365, %v5766
    %v5768 = vlaneseq
    %v5769 = vshrl.u32 %v5768, 7
    %v5770 = vsub.s32 1, %v5769
    %v5771 = vrot.slane %v3373, %v5770
    %v5772 = vlaneseq
    %v5773 = vshrl.u32 %v5772, 7
    %v5774 = vsub.s32 1, %v5773
    %v5775 = vrot.slane %v3372, %v5774
    %v5776 = vlaneseq
    %v5777 = vshrl.u32 %v5776, 7
    %v5778 = vsub.s32 1, %v5777
    %v5779 = vrot.slane %v3374, %v5778
    %v5780 = vlaneseq
    %v5781 = vshrl.u32 %v5780, 7
    %v5782 = vsub.s32 1, %v5781
    %v5783 = vrot.slane %v3382, %v5782
    %v5784 = vlaneseq
    %v5785 = vshrl.u32 %v5784, 7
    %v5786 = vsub.s32 1, %v5785
    %v5787 = vrot.slane %v3390, %v5786
    %v5788 = vlaneseq
    %v5789 = vshrl.u32 %v5788, 7
    %v5790 = vsub.s32 1, %v5789
    %v5791 = vrot.slane %v3389, %v5790
    %v5792 = vlaneseq
    %v5793 = vshrl.u32 %v5792, 7
    %v5794 = vsub.s32 1, %v5793
    %v5795 = vrot.slane %v3433, %v5794
    %v5796 = vlaneseq
    %v5797 = vshrl.u32 %v5796, 7
    %v5798 = vsub.s32 1, %v5797
    %v5799 = vrot.slane %v3441, %v5798
    %v5800 = vlaneseq
    %v5801 = vshrl.u32 %v5800, 7
    %v5802 = vsub.s32 1, %v5801
    %v5803 = vrot.slane %v3440, %v5802
    %v5804 = vlaneseq
    %v5805 = vshrl.u32 %v5804, 7
    %v5806 = vsub.s32 1, %v5805
    %v5807 = vrot.slane %v3442, %v5806
    %v5808 = vlaneseq
    %v5809 = vshrl.u32 %v5808, 7
    %v5810 = vsub.s32 1, %v5809
    %v5811 = vrot.slane %v3450, %v5810
    %v5812 = vlaneseq
    %v5813 = vshrl.u32 %v5812, 7
    %v5814 = vsub.s32 1, %v5813
    %v5815 = vrot.slane %v3458, %v5814
    %v5816 = vlaneseq
    %v5817 = vshrl.u32 %v5816, 7
    %v5818 = vsub.s32 1, %v5817
    %v5819 = vrot.slane %v3457, %v5818
    %v5820 = vlaneseq
    %v5821 = vshrl.u32 %v5820, 7
    %v5822 = vsub.s32 1, %v5821
    %v5823 = vrot.slane %v3501, %v5822
    %v5824 = vlaneseq
    %v5825 = vshrl.u32 %v5824, 7
    %v5826 = vsub.s32 1, %v5825
    %v5827 = vrot.slane %v3509, %v5826
    %v5828 = vlaneseq
    %v5829 = vshrl.u32 %v5828, 7
    %v5830 = vsub.s32 1, %v5829
    %v5831 = vrot.slane %v3508, %v5830
    %v5832 = vlaneseq
    %v5833 = vshrl.u32 %v5832, 7
    %v5834 = vsub.s32 1, %v5833
    %v5835 = vrot.slane %v3510, %v5834
    %v5836 = vlaneseq
    %v5837 = vshrl.u32 %v5836, 7
    %v5838 = vsub.s32 1, %v5837
    %v5839 = vrot.slane %v3518, %v5838
    %v5840 = vlaneseq
    %v5841 = vshrl.u32 %v5840, 7
    %v5842 = vsub.s32 1, %v5841
    %v5843 = vrot.slane %v3526, %v5842
    %v5844 = vlaneseq
    %v5845 = vshrl.u32 %v5844, 7
    %v5846 = vsub.s32 1, %v5845
    %v5847 = vrot.slane %v3525, %v5846
    %v5848 = vlaneseq
    %v5849 = vshrl.u32 %v5848, 7
    %v5850 = vsub.s32 1, %v5849
    %v5851 = vrot.slane %v3569, %v5850
    %v5852 = vlaneseq
    %v5853 = vshrl.u32 %v5852, 7
    %v5854 = vsub.s32 1, %v5853
    %v5855 = vrot.slane %v3577, %v5854
    %v5856 = vlaneseq
    %v5857 = vshrl.u32 %v5856, 7
    %v5858 = vsub.s32 1, %v5857
    %v5859 = vrot.slane %v3576, %v5858
    %v5860 = vlaneseq
    %v5861 = vshrl.u32 %v5860, 7
    %v5862 = vsub.s32 1, %v5861
    %v5863 = vrot.slane %v3578, %v5862
    %v5864 = vlaneseq
    %v5865 = vshrl.u32 %v5864, 7
    %v5866 = vsub.s32 1, %v5865
    %v5867 = vrot.slane %v3586, %v5866
    %v5868 = vlaneseq
    %v5869 = vshrl.u32 %v5868, 7
    %v5870 = vsub.s32 1, %v5869
    %v5871 = vrot.slane %v3594, %v5870
    %v5872 = vlaneseq
    %v5873 = vshrl.u32 %v5872, 7
    %v5874 = vsub.s32 1, %v5873
    %v5875 = vrot.slane %v3593, %v5874
    %v5876 = vlaneseq
    %v5877 = vshrl.u32 %v5876, 7
    %v5878 = vsub.s32 1, %v5877
    %v5879 = vrot.slane %v3637, %v5878
    %v5880 = vlaneseq
    %v5881 = vshrl.u32 %v5880, 7
    %v5882 = vsub.s32 1, %v5881
    %v5883 = vrot.slane %v3645, %v5882
    %v5884 = vlaneseq
    %v5885 = vshrl.u32 %v5884, 7
    %v5886 = vsub.s32 1, %v5885
    %v5887 = vrot.slane %v3644, %v5886
    %v5888 = vlaneseq
    %v5889 = vshrl.u32 %v5888, 7
    %v5890 = vsub.s32 1, %v5889
    %v5891 = vrot.slane %v3646, %v5890
    %v5892 = vlaneseq
    %v5893 = vshrl.u32 %v5892, 7
    %v5894 = vsub.s32 1, %v5893
    %v5895 = vrot.slane %v3654, %v5894
    %v5896 = vlaneseq
    %v5897 = vshrl.u32 %v5896, 7
    %v5898 = vsub.s32 1, %v5897
    %v5899 = vrot.slane %v3662, %v5898
    %v5900 = vlaneseq
    %v5901 = vshrl.u32 %v5900, 7
    %v5902 = vsub.s32 1, %v5901
    %v5903 = vrot.slane %v3661, %v5902
    %v5904 = vlaneseq
    %v5905 = vshrl.u32 %v5904, 7
    %v5906 = vsub.s32 1, %v5905
    %v5907 = vrot.slane %v3705, %v5906
    %v5908 = vlaneseq
    %v5909 = vshrl.u32 %v5908, 7
    %v5910 = vsub.s32 1, %v5909
    %v5911 = vrot.slane %v3713, %v5910
    %v5912 = vlaneseq
    %v5913 = vshrl.u32 %v5912, 7
    %v5914 = vsub.s32 1, %v5913
    %v5915 = vrot.slane %v3712, %v5914
    %v5916 = vlaneseq
    %v5917 = vshrl.u32 %v5916, 7
    %v5918 = vsub.s32 1, %v5917
    %v5919 = vrot.slane %v3714, %v5918
    %v5920 = vlaneseq
    %v5921 = vshrl.u32 %v5920, 7
    %v5922 = vsub.s32 1, %v5921
    %v5923 = vrot.slane %v3722, %v5922
    %v5924 = vlaneseq
    %v5925 = vshrl.u32 %v5924, 7
    %v5926 = vsub.s32 1, %v5925
    %v5927 = vrot.slane %v3730, %v5926
    %v5928 = vlaneseq
    %v5929 = vshrl.u32 %v5928, 7
    %v5930 = vsub.s32 1, %v5929
    %v5931 = vrot.slane %v3729, %v5930
    %v5932 = vlaneseq
    %v5933 = vshrl.u32 %v5932, 7
    %v5934 = vsub.s32 1, %v5933
    %v5935 = vrot.slane %v3773, %v5934
    %v5936 = vlaneseq
    %v5937 = vshrl.u32 %v5936, 7
    %v5938 = vsub.s32 1, %v5937
    %v5939 = vrot.slane %v3781, %v5938
    %v5940 = vlaneseq
    %v5941 = vshrl.u32 %v5940, 7
    %v5942 = vsub.s32 1, %v5941
    %v5943 = vrot.slane %v3780, %v5942
    %v5944 = vlaneseq
    %v5945 = vshrl.u32 %v5944, 7
    %v5946 = vsub.s32 1, %v5945
    %v5947 = vrot.slane %v3782, %v5946
    %v5948 = vlaneseq
    %v5949 = vshrl.u32 %v5948, 7
    %v5950 = vsub.s32 1, %v5949
    %v5951 = vrot.slane %v3790, %v5950
    %v5952 = vlaneseq
    %v5953 = vshrl.u32 %v5952, 7
    %v5954 = vsub.s32 1, %v5953
    %v5955 = vrot.slane %v3798, %v5954
    %v5956 = vlaneseq
    %v5957 = vshrl.u32 %v5956, 7
    %v5958 = vsub.s32 1, %v5957
    %v5959 = vrot.slane %v3797, %v5958
    %v5960 = vlaneseq
    %v5961 = vshrl.u32 %v5960, 7
    %v5962 = vsub.s32 1, %v5961
    %v5963 = vrot.slane %v3841, %v5962
    %v5964 = vlaneseq
    %v5965 = vshrl.u32 %v5964, 7
    %v5966 = vsub.s32 1, %v5965
    %v5967 = vrot.slane %v3849, %v5966
    %v5968 = vlaneseq
    %v5969 = vshrl.u32 %v5968, 7
    %v5970 = vsub.s32 1, %v5969
    %v5971 = vrot.slane %v3848, %v5970
    %v5972 = vlaneseq
    %v5973 = vshrl.u32 %v5972, 7
    %v5974 = vsub.s32 1, %v5973
    %v5975 = vrot.slane %v3850, %v5974
    %v5976 = vlaneseq
    %v5977 = vshrl.u32 %v5976, 7
    %v5978 = vsub.s32 1, %v5977
    %v5979 = vrot.slane %v3858, %v5978
    %v5980 = vlaneseq
    %v5981 = vshrl.u32 %v5980, 7
    %v5982 = vsub.s32 1, %v5981
    %v5983 = vrot.slane %v3866, %v5982
    %v5984 = vlaneseq
    %v5985 = vshrl.u32 %v5984, 7
    %v5986 = vsub.s32 1, %v5985
    %v5987 = vrot.slane %v3865, %v5986
    %v5988 = vlaneseq
    %v5989 = vshrl.u32 %v5988, 7
    %v5990 = vsub.s32 1, %v5989
    %v5991 = vrot.slane %v3909, %v5990
    %v5992 = vlaneseq
    %v5993 = vshrl.u32 %v5992, 7
    %v5994 = vsub.s32 1, %v5993
    %v5995 = vrot.slane %v3917, %v5994
    %v5996 = vlaneseq
    %v5997 = vshrl.u32 %v5996, 7
    %v5998 = vsub.s32 1, %v5997
    %v5999 = vrot.slane %v3916, %v5998
    %v6000 = vlaneseq
    %v6001 = vshrl.u32 %v6000, 7
    %v6002 = vsub.s32 1, %v6001
    %v6003 = vrot.slane %v3918, %v6002
    %v6004 = vlaneseq
    %v6005 = vshrl.u32 %v6004, 7
    %v6006 = vsub.s32 1, %v6005
    %v6007 = vrot.slane %v3926, %v6006
    %v6008 = vlaneseq
    %v6009 = vshrl.u32 %v6008, 7
    %v6010 = vsub.s32 1, %v6009
    %v6011 = vrot.slane %v3934, %v6010
    %v6012 = vlaneseq
    %v6013 = vshrl.u32 %v6012, 7
    %v6014 = vsub.s32 1, %v6013
    %v6015 = vrot.slane %v3933, %v6014
    %v6016 = vlaneseq
    %v6017 = vshrl.u32 %v6016, 7
    %v6018 = vsub.s32 1, %v6017
    %v6019 = vrot.slane %v3977, %v6018
    %v6020 = vlaneseq
    %v6021 = vshrl.u32 %v6020, 7
    %v6022 = vsub.s32 1, %v6021
    %v6023 = vrot.slane %v3985, %v6022
    %v6024 = vlaneseq
    %v6025 = vshrl.u32 %v6024, 7
    %v6026 = vsub.s32 1, %v6025
    %v6027 = vrot.slane %v3984, %v6026
    %v6028 = vlaneseq
    %v6029 = vshrl.u32 %v6028, 7
    %v6030 = vsub.s32 1, %v6029
    %v6031 = vrot.slane %v3986, %v6030
    %v6032 = vlaneseq
    %v6033 = vshrl.u32 %v6032, 7
    %v6034 = vsub.s32 1, %v6033
    %v6035 = vrot.slane %v3994, %v6034
    %v6036 = vlaneseq
    %v6037 = vshrl.u32 %v6036, 7
    %v6038 = vsub.s32 1, %v6037
    %v6039 = vrot.slane %v4002, %v6038
    %v6040 = vlaneseq
    %v6041 = vshrl.u32 %v6040, 7
    %v6042 = vsub.s32 1, %v6041
    %v6043 = vrot.slane %v4001, %v6042
    %v6044 = vlaneseq
    %v6045 = vshrl.u32 %v6044, 7
    %v6046 = vsub.s32 1, %v6045
    %v6047 = vrot.slane %v4045, %v6046
    %v6048 = vlaneseq
    %v6049 = vshrl.u32 %v6048, 7
    %v6050 = vsub.s32 1, %v6049
    %v6051 = vrot.slane %v4053, %v6050
    %v6052 = vlaneseq
    %v6053 = vshrl.u32 %v6052, 7
    %v6054 = vsub.s32 1, %v6053
    %v6055 = vrot.slane %v4052, %v6054
    %v6056 = vlaneseq
    %v6057 = vshrl.u32 %v6056, 7
    %v6058 = vsub.s32 1, %v6057
    %v6059 = vrot.slane %v4054, %v6058
    %v6060 = vlaneseq
    %v6061 = vshrl.u32 %v6060, 7
    %v6062 = vsub.s32 1, %v6061
    %v6063 = vrot.slane %v4062, %v6062
    %v6064 = vlaneseq
    %v6065 = vshrl.u32 %v6064, 7
    %v6066 = vsub.s32 1, %v6065
    %v6067 = vrot.slane %v4070, %v6066
    %v6068 = vlaneseq
    %v6069 = vshrl.u32 %v6068, 7
    %v6070 = vsub.s32 1, %v6069
    %v6071 = vrot.slane %v4069, %v6070
    %v6072 = vsel %vm4548, %v5631, %v5627
    %v6073 = vsel %vm4550, %v5635, %v6072
    %v6074 = vsel %vm4552, %v5639, %v6073
    %v6075 = vsel %vm4554, %v5643, %v6074
    %v6076 = vsel %vm4556, %v5647, %v6075
    %v6077 = vsel %vm4558, %v5651, %v6076
    %v6078 = vsel %vm4548, %v5659, %v5655
    %v6079 = vsel %vm4550, %v5663, %v6078
    %v6080 = vsel %vm4552, %v5667, %v6079
    %v6081 = vsel %vm4554, %v5671, %v6080
    %v6082 = vsel %vm4556, %v5675, %v6081
    %v6083 = vsel %vm4558, %v5679, %v6082
    %v6084 = vsel %vm4548, %v5687, %v5683
    %v6085 = vsel %vm4550, %v5691, %v6084
    %v6086 = vsel %vm4552, %v5695, %v6085
    %v6087 = vsel %vm4554, %v5699, %v6086
    %v6088 = vsel %vm4556, %v5703, %v6087
    %v6089 = vsel %vm4558, %v5707, %v6088
    %v6090 = vsel %vm4548, %v5715, %v5711
    %v6091 = vsel %vm4550, %v5719, %v6090
    %v6092 = vsel %vm4552, %v5723, %v6091
    %v6093 = vsel %vm4554, %v5727, %v6092
    %v6094 = vsel %vm4556, %v5731, %v6093
    %v6095 = vsel %vm4558, %v5735, %v6094
    %v6096 = vsel %vm4548, %v5743, %v5739
    %v6097 = vsel %vm4550, %v5747, %v6096
    %v6098 = vsel %vm4552, %v5751, %v6097
    %v6099 = vsel %vm4554, %v5755, %v6098
    %v6100 = vsel %vm4556, %v5759, %v6099
    %v6101 = vsel %vm4558, %v5763, %v6100
    %v6102 = vsel %vm4548, %v5771, %v5767
    %v6103 = vsel %vm4550, %v5775, %v6102
    %v6104 = vsel %vm4552, %v5779, %v6103
    %v6105 = vsel %vm4554, %v5783, %v6104
    %v6106 = vsel %vm4556, %v5787, %v6105
    %v6107 = vsel %vm4558, %v5791, %v6106
    %v6108 = vsel %vm4548, %v5799, %v5795
    %v6109 = vsel %vm4550, %v5803, %v6108
    %v6110 = vsel %vm4552, %v5807, %v6109
    %v6111 = vsel %vm4554, %v5811, %v6110
    %v6112 = vsel %vm4556, %v5815, %v6111
    %v6113 = vsel %vm4558, %v5819, %v6112
    %v6114 = vsel %vm4548, %v5827, %v5823
    %v6115 = vsel %vm4550, %v5831, %v6114
    %v6116 = vsel %vm4552, %v5835, %v6115
    %v6117 = vsel %vm4554, %v5839, %v6116
    %v6118 = vsel %vm4556, %v5843, %v6117
    %v6119 = vsel %vm4558, %v5847, %v6118
    %v6120 = vsel %vm4548, %v5855, %v5851
    %v6121 = vsel %vm4550, %v5859, %v6120
    %v6122 = vsel %vm4552, %v5863, %v6121
    %v6123 = vsel %vm4554, %v5867, %v6122
    %v6124 = vsel %vm4556, %v5871, %v6123
    %v6125 = vsel %vm4558, %v5875, %v6124
    %v6126 = vsel %vm4548, %v5883, %v5879
    %v6127 = vsel %vm4550, %v5887, %v6126
    %v6128 = vsel %vm4552, %v5891, %v6127
    %v6129 = vsel %vm4554, %v5895, %v6128
    %v6130 = vsel %vm4556, %v5899, %v6129
    %v6131 = vsel %vm4558, %v5903, %v6130
    %v6132 = vsel %vm4548, %v5911, %v5907
    %v6133 = vsel %vm4550, %v5915, %v6132
    %v6134 = vsel %vm4552, %v5919, %v6133
    %v6135 = vsel %vm4554, %v5923, %v6134
    %v6136 = vsel %vm4556, %v5927, %v6135
    %v6137 = vsel %vm4558, %v5931, %v6136
    %v6138 = vsel %vm4548, %v5939, %v5935
    %v6139 = vsel %vm4550, %v5943, %v6138
    %v6140 = vsel %vm4552, %v5947, %v6139
    %v6141 = vsel %vm4554, %v5951, %v6140
    %v6142 = vsel %vm4556, %v5955, %v6141
    %v6143 = vsel %vm4558, %v5959, %v6142
    %v6144 = vsel %vm4548, %v5967, %v5963
    %v6145 = vsel %vm4550, %v5971, %v6144
    %v6146 = vsel %vm4552, %v5975, %v6145
    %v6147 = vsel %vm4554, %v5979, %v6146
    %v6148 = vsel %vm4556, %v5983, %v6147
    %v6149 = vsel %vm4558, %v5987, %v6148
    %v6150 = vsel %vm4548, %v5995, %v5991
    %v6151 = vsel %vm4550, %v5999, %v6150
    %v6152 = vsel %vm4552, %v6003, %v6151
    %v6153 = vsel %vm4554, %v6007, %v6152
    %v6154 = vsel %vm4556, %v6011, %v6153
    %v6155 = vsel %vm4558, %v6015, %v6154
    %v6156 = vsel %vm4548, %v6023, %v6019
    %v6157 = vsel %vm4550, %v6027, %v6156
    %v6158 = vsel %vm4552, %v6031, %v6157
    %v6159 = vsel %vm4554, %v6035, %v6158
    %v6160 = vsel %vm4556, %v6039, %v6159
    %v6161 = vsel %vm4558, %v6043, %v6160
    %v6162 = vsel %vm4548, %v6051, %v6047
    %v6163 = vsel %vm4550, %v6055, %v6162
    %v6164 = vsel %vm4552, %v6059, %v6163
    %v6165 = vsel %vm4554, %v6063, %v6164
    %v6166 = vsel %vm4556, %v6067, %v6165
    %v6167 = vsel %vm4558, %v6071, %v6166
    %6168 = vrot.lane.b32.xlu0 %v6077, 32
    %v6169 = vpop.permute.xlu0 %6168
    %6170 = vrot.lane.b32.xlu0 %v6083, 32
    %v6171 = vpop.permute.xlu0 %6170
    %6172 = vrot.lane.b32.xlu0 %v6089, 32
    %v6173 = vpop.permute.xlu0 %6172
    %6174 = vrot.lane.b32.xlu0 %v6095, 32
    %v6175 = vpop.permute.xlu0 %6174
    %6176 = vrot.lane.b32.xlu0 %v6101, 32
    %v6177 = vpop.permute.xlu0 %6176
    %6178 = vrot.lane.b32.xlu0 %v6107, 32
    %v6179 = vpop.permute.xlu0 %6178
    %6180 = vrot.lane.b32.xlu0 %v6113, 32
    %v6181 = vpop.permute.xlu0 %6180
    %6182 = vrot.lane.b32.xlu0 %v6119, 32
    %v6183 = vpop.permute.xlu0 %6182
    %6184 = vrot.lane.b32.xlu0 %v6125, 32
    %v6185 = vpop.permute.xlu0 %6184
    %6186 = vrot.lane.b32.xlu0 %v6131, 32
    %v6187 = vpop.permute.xlu0 %6186
    %6188 = vrot.lane.b32.xlu0 %v6137, 32
    %v6189 = vpop.permute.xlu0 %6188
    %6190 = vrot.lane.b32.xlu0 %v6143, 32
    %v6191 = vpop.permute.xlu0 %6190
    %6192 = vrot.lane.b32.xlu0 %v6149, 32
    %v6193 = vpop.permute.xlu0 %6192
    %6194 = vrot.lane.b32.xlu0 %v6155, 32
    %v6195 = vpop.permute.xlu0 %6194
    %6196 = vrot.lane.b32.xlu0 %v6161, 32
    %v6197 = vpop.permute.xlu0 %6196
    %6198 = vrot.lane.b32.xlu0 %v6167, 32
    %v6199 = vpop.permute.xlu0 %6198
    %vm6216 = vcmask 326913
    %6217 = vst.msk [vmem:[#allocation3] sm:$0xfe] %vm6216, %v6169
    %6218 = vst.msk [vmem:[#allocation3 + $0x10] sm:$0xfe] %vm6216, %v6171
    %6219 = vst.msk [vmem:[#allocation3 + $0x20] sm:$0xfe] %vm6216, %v6173
    %6220 = vst.msk [vmem:[#allocation3 + $0x30] sm:$0xfe] %vm6216, %v6175
    %6221 = vst.msk [vmem:[#allocation3 + $0x40] sm:$0xfe] %vm6216, %v6177
    %6222 = vst.msk [vmem:[#allocation3 + $0x50] sm:$0xfe] %vm6216, %v6179
    %6223 = vst.msk [vmem:[#allocation3 + $0x60] sm:$0xfe] %vm6216, %v6181
    %6224 = vst.msk [vmem:[#allocation3 + $0x70] sm:$0xfe] %vm6216, %v6183
    %6225 = vst.msk [vmem:[#allocation3 + $0x80] sm:$0xfe] %vm6216, %v6185
    %6226 = vst.msk [vmem:[#allocation3 + $0x90] sm:$0xfe] %vm6216, %v6187
    %6227 = vst.msk [vmem:[#allocation3 + $0xa0] sm:$0xfe] %vm6216, %v6189
    %6228 = vst.msk [vmem:[#allocation3 + $0xb0] sm:$0xfe] %vm6216, %v6191
    %6229 = vst.msk [vmem:[#allocation3 + $0xc0] sm:$0xfe] %vm6216, %v6193
    %6230 = vst.msk [vmem:[#allocation3 + $0xd0] sm:$0xfe] %vm6216, %v6195
    %6231 = vst.msk [vmem:[#allocation3 + $0xe0] sm:$0xfe] %vm6216, %v6197
    %6232 = vst.msk [vmem:[#allocation3 + $0xf0] sm:$0xfe] %vm6216, %v6199
    %v6233 = vlaneseq
    %v6234 = vshrl.u32 %v6233, 7
    %v6235 = vsub.s32 0, %v6234
    %v6236 = vrot.slane %v3025, %v6235
    %v6237 = vlaneseq
    %v6238 = vshrl.u32 %v6237, 7
    %v6239 = vsub.s32 0, %v6238
    %v6240 = vrot.slane %v3033, %v6239
    %v6241 = vlaneseq
    %v6242 = vshrl.u32 %v6241, 7
    %v6243 = vsub.s32 0, %v6242
    %v6244 = vrot.slane %v3032, %v6243
    %v6245 = vlaneseq
    %v6246 = vshrl.u32 %v6245, 7
    %v6247 = vsub.s32 0, %v6246
    %v6248 = vrot.slane %v3034, %v6247
    %v6249 = vlaneseq
    %v6250 = vshrl.u32 %v6249, 7
    %v6251 = vsub.s32 0, %v6250
    %v6252 = vrot.slane %v3042, %v6251
    %v6253 = vlaneseq
    %v6254 = vshrl.u32 %v6253, 7
    %v6255 = vsub.s32 0, %v6254
    %v6256 = vrot.slane %v3050, %v6255
    %v6257 = vlaneseq
    %v6258 = vshrl.u32 %v6257, 7
    %v6259 = vsub.s32 0, %v6258
    %v6260 = vrot.slane %v3049, %v6259
    %v6261 = vlaneseq
    %v6262 = vshrl.u32 %v6261, 7
    %v6263 = vsub.s32 0, %v6262
    %v6264 = vrot.slane %v3051, %v6263
    %v6265 = vlaneseq
    %v6266 = vshrl.u32 %v6265, 7
    %v6267 = vsub.s32 0, %v6266
    %v6268 = vrot.slane %v3093, %v6267
    %v6269 = vlaneseq
    %v6270 = vshrl.u32 %v6269, 7
    %v6271 = vsub.s32 0, %v6270
    %v6272 = vrot.slane %v3101, %v6271
    %v6273 = vlaneseq
    %v6274 = vshrl.u32 %v6273, 7
    %v6275 = vsub.s32 0, %v6274
    %v6276 = vrot.slane %v3100, %v6275
    %v6277 = vlaneseq
    %v6278 = vshrl.u32 %v6277, 7
    %v6279 = vsub.s32 0, %v6278
    %v6280 = vrot.slane %v3102, %v6279
    %v6281 = vlaneseq
    %v6282 = vshrl.u32 %v6281, 7
    %v6283 = vsub.s32 0, %v6282
    %v6284 = vrot.slane %v3110, %v6283
    %v6285 = vlaneseq
    %v6286 = vshrl.u32 %v6285, 7
    %v6287 = vsub.s32 0, %v6286
    %v6288 = vrot.slane %v3118, %v6287
    %v6289 = vlaneseq
    %v6290 = vshrl.u32 %v6289, 7
    %v6291 = vsub.s32 0, %v6290
    %v6292 = vrot.slane %v3117, %v6291
    %v6293 = vlaneseq
    %v6294 = vshrl.u32 %v6293, 7
    %v6295 = vsub.s32 0, %v6294
    %v6296 = vrot.slane %v3119, %v6295
    %v6297 = vlaneseq
    %v6298 = vshrl.u32 %v6297, 7
    %v6299 = vsub.s32 0, %v6298
    %v6300 = vrot.slane %v3161, %v6299
    %v6301 = vlaneseq
    %v6302 = vshrl.u32 %v6301, 7
    %v6303 = vsub.s32 0, %v6302
    %v6304 = vrot.slane %v3169, %v6303
    %v6305 = vlaneseq
    %v6306 = vshrl.u32 %v6305, 7
    %v6307 = vsub.s32 0, %v6306
    %v6308 = vrot.slane %v3168, %v6307
    %v6309 = vlaneseq
    %v6310 = vshrl.u32 %v6309, 7
    %v6311 = vsub.s32 0, %v6310
    %v6312 = vrot.slane %v3170, %v6311
    %v6313 = vlaneseq
    %v6314 = vshrl.u32 %v6313, 7
    %v6315 = vsub.s32 0, %v6314
    %v6316 = vrot.slane %v3178, %v6315
    %v6317 = vlaneseq
    %v6318 = vshrl.u32 %v6317, 7
    %v6319 = vsub.s32 0, %v6318
    %v6320 = vrot.slane %v3186, %v6319
    %v6321 = vlaneseq
    %v6322 = vshrl.u32 %v6321, 7
    %v6323 = vsub.s32 0, %v6322
    %v6324 = vrot.slane %v3185, %v6323
    %v6325 = vlaneseq
    %v6326 = vshrl.u32 %v6325, 7
    %v6327 = vsub.s32 0, %v6326
    %v6328 = vrot.slane %v3187, %v6327
    %v6329 = vlaneseq
    %v6330 = vshrl.u32 %v6329, 7
    %v6331 = vsub.s32 0, %v6330
    %v6332 = vrot.slane %v3229, %v6331
    %v6333 = vlaneseq
    %v6334 = vshrl.u32 %v6333, 7
    %v6335 = vsub.s32 0, %v6334
    %v6336 = vrot.slane %v3237, %v6335
    %v6337 = vlaneseq
    %v6338 = vshrl.u32 %v6337, 7
    %v6339 = vsub.s32 0, %v6338
    %v6340 = vrot.slane %v3236, %v6339
    %v6341 = vlaneseq
    %v6342 = vshrl.u32 %v6341, 7
    %v6343 = vsub.s32 0, %v6342
    %v6344 = vrot.slane %v3238, %v6343
    %v6345 = vlaneseq
    %v6346 = vshrl.u32 %v6345, 7
    %v6347 = vsub.s32 0, %v6346
    %v6348 = vrot.slane %v3246, %v6347
    %v6349 = vlaneseq
    %v6350 = vshrl.u32 %v6349, 7
    %v6351 = vsub.s32 0, %v6350
    %v6352 = vrot.slane %v3254, %v6351
    %v6353 = vlaneseq
    %v6354 = vshrl.u32 %v6353, 7
    %v6355 = vsub.s32 0, %v6354
    %v6356 = vrot.slane %v3253, %v6355
    %v6357 = vlaneseq
    %v6358 = vshrl.u32 %v6357, 7
    %v6359 = vsub.s32 0, %v6358
    %v6360 = vrot.slane %v3255, %v6359
    %v6361 = vlaneseq
    %v6362 = vshrl.u32 %v6361, 7
    %v6363 = vsub.s32 0, %v6362
    %v6364 = vrot.slane %v3297, %v6363
    %v6365 = vlaneseq
    %v6366 = vshrl.u32 %v6365, 7
    %v6367 = vsub.s32 0, %v6366
    %v6368 = vrot.slane %v3305, %v6367
    %v6369 = vlaneseq
    %v6370 = vshrl.u32 %v6369, 7
    %v6371 = vsub.s32 0, %v6370
    %v6372 = vrot.slane %v3304, %v6371
    %v6373 = vlaneseq
    %v6374 = vshrl.u32 %v6373, 7
    %v6375 = vsub.s32 0, %v6374
    %v6376 = vrot.slane %v3306, %v6375
    %v6377 = vlaneseq
    %v6378 = vshrl.u32 %v6377, 7
    %v6379 = vsub.s32 0, %v6378
    %v6380 = vrot.slane %v3314, %v6379
    %v6381 = vlaneseq
    %v6382 = vshrl.u32 %v6381, 7
    %v6383 = vsub.s32 0, %v6382
    %v6384 = vrot.slane %v3322, %v6383
    %v6385 = vlaneseq
    %v6386 = vshrl.u32 %v6385, 7
    %v6387 = vsub.s32 0, %v6386
    %v6388 = vrot.slane %v3321, %v6387
    %v6389 = vlaneseq
    %v6390 = vshrl.u32 %v6389, 7
    %v6391 = vsub.s32 0, %v6390
    %v6392 = vrot.slane %v3323, %v6391
    %v6393 = vlaneseq
    %v6394 = vshrl.u32 %v6393, 7
    %v6395 = vsub.s32 0, %v6394
    %v6396 = vrot.slane %v3365, %v6395
    %v6397 = vlaneseq
    %v6398 = vshrl.u32 %v6397, 7
    %v6399 = vsub.s32 0, %v6398
    %v6400 = vrot.slane %v3373, %v6399
    %v6401 = vlaneseq
    %v6402 = vshrl.u32 %v6401, 7
    %v6403 = vsub.s32 0, %v6402
    %v6404 = vrot.slane %v3372, %v6403
    %v6405 = vlaneseq
    %v6406 = vshrl.u32 %v6405, 7
    %v6407 = vsub.s32 0, %v6406
    %v6408 = vrot.slane %v3374, %v6407
    %v6409 = vlaneseq
    %v6410 = vshrl.u32 %v6409, 7
    %v6411 = vsub.s32 0, %v6410
    %v6412 = vrot.slane %v3382, %v6411
    %v6413 = vlaneseq
    %v6414 = vshrl.u32 %v6413, 7
    %v6415 = vsub.s32 0, %v6414
    %v6416 = vrot.slane %v3390, %v6415
    %v6417 = vlaneseq
    %v6418 = vshrl.u32 %v6417, 7
    %v6419 = vsub.s32 0, %v6418
    %v6420 = vrot.slane %v3389, %v6419
    %v6421 = vlaneseq
    %v6422 = vshrl.u32 %v6421, 7
    %v6423 = vsub.s32 0, %v6422
    %v6424 = vrot.slane %v3391, %v6423
    %v6425 = vlaneseq
    %v6426 = vshrl.u32 %v6425, 7
    %v6427 = vsub.s32 0, %v6426
    %v6428 = vrot.slane %v3433, %v6427
    %v6429 = vlaneseq
    %v6430 = vshrl.u32 %v6429, 7
    %v6431 = vsub.s32 0, %v6430
    %v6432 = vrot.slane %v3441, %v6431
    %v6433 = vlaneseq
    %v6434 = vshrl.u32 %v6433, 7
    %v6435 = vsub.s32 0, %v6434
    %v6436 = vrot.slane %v3440, %v6435
    %v6437 = vlaneseq
    %v6438 = vshrl.u32 %v6437, 7
    %v6439 = vsub.s32 0, %v6438
    %v6440 = vrot.slane %v3442, %v6439
    %v6441 = vlaneseq
    %v6442 = vshrl.u32 %v6441, 7
    %v6443 = vsub.s32 0, %v6442
    %v6444 = vrot.slane %v3450, %v6443
    %v6445 = vlaneseq
    %v6446 = vshrl.u32 %v6445, 7
    %v6447 = vsub.s32 0, %v6446
    %v6448 = vrot.slane %v3458, %v6447
    %v6449 = vlaneseq
    %v6450 = vshrl.u32 %v6449, 7
    %v6451 = vsub.s32 0, %v6450
    %v6452 = vrot.slane %v3457, %v6451
    %v6453 = vlaneseq
    %v6454 = vshrl.u32 %v6453, 7
    %v6455 = vsub.s32 0, %v6454
    %v6456 = vrot.slane %v3459, %v6455
    %v6457 = vlaneseq
    %v6458 = vshrl.u32 %v6457, 7
    %v6459 = vsub.s32 0, %v6458
    %v6460 = vrot.slane %v3501, %v6459
    %v6461 = vlaneseq
    %v6462 = vshrl.u32 %v6461, 7
    %v6463 = vsub.s32 0, %v6462
    %v6464 = vrot.slane %v3509, %v6463
    %v6465 = vlaneseq
    %v6466 = vshrl.u32 %v6465, 7
    %v6467 = vsub.s32 0, %v6466
    %v6468 = vrot.slane %v3508, %v6467
    %v6469 = vlaneseq
    %v6470 = vshrl.u32 %v6469, 7
    %v6471 = vsub.s32 0, %v6470
    %v6472 = vrot.slane %v3510, %v6471
    %v6473 = vlaneseq
    %v6474 = vshrl.u32 %v6473, 7
    %v6475 = vsub.s32 0, %v6474
    %v6476 = vrot.slane %v3518, %v6475
    %v6477 = vlaneseq
    %v6478 = vshrl.u32 %v6477, 7
    %v6479 = vsub.s32 0, %v6478
    %v6480 = vrot.slane %v3526, %v6479
    %v6481 = vlaneseq
    %v6482 = vshrl.u32 %v6481, 7
    %v6483 = vsub.s32 0, %v6482
    %v6484 = vrot.slane %v3525, %v6483
    %v6485 = vlaneseq
    %v6486 = vshrl.u32 %v6485, 7
    %v6487 = vsub.s32 0, %v6486
    %v6488 = vrot.slane %v3527, %v6487
    %v6489 = vlaneseq
    %v6490 = vshrl.u32 %v6489, 7
    %v6491 = vsub.s32 0, %v6490
    %v6492 = vrot.slane %v3569, %v6491
    %v6493 = vlaneseq
    %v6494 = vshrl.u32 %v6493, 7
    %v6495 = vsub.s32 0, %v6494
    %v6496 = vrot.slane %v3577, %v6495
    %v6497 = vlaneseq
    %v6498 = vshrl.u32 %v6497, 7
    %v6499 = vsub.s32 0, %v6498
    %v6500 = vrot.slane %v3576, %v6499
    %v6501 = vlaneseq
    %v6502 = vshrl.u32 %v6501, 7
    %v6503 = vsub.s32 0, %v6502
    %v6504 = vrot.slane %v3578, %v6503
    %v6505 = vlaneseq
    %v6506 = vshrl.u32 %v6505, 7
    %v6507 = vsub.s32 0, %v6506
    %v6508 = vrot.slane %v3586, %v6507
    %v6509 = vlaneseq
    %v6510 = vshrl.u32 %v6509, 7
    %v6511 = vsub.s32 0, %v6510
    %v6512 = vrot.slane %v3594, %v6511
    %v6513 = vlaneseq
    %v6514 = vshrl.u32 %v6513, 7
    %v6515 = vsub.s32 0, %v6514
    %v6516 = vrot.slane %v3593, %v6515
    %v6517 = vlaneseq
    %v6518 = vshrl.u32 %v6517, 7
    %v6519 = vsub.s32 0, %v6518
    %v6520 = vrot.slane %v3595, %v6519
    %v6521 = vlaneseq
    %v6522 = vshrl.u32 %v6521, 7
    %v6523 = vsub.s32 0, %v6522
    %v6524 = vrot.slane %v3637, %v6523
    %v6525 = vlaneseq
    %v6526 = vshrl.u32 %v6525, 7
    %v6527 = vsub.s32 0, %v6526
    %v6528 = vrot.slane %v3645, %v6527
    %v6529 = vlaneseq
    %v6530 = vshrl.u32 %v6529, 7
    %v6531 = vsub.s32 0, %v6530
    %v6532 = vrot.slane %v3644, %v6531
    %v6533 = vlaneseq
    %v6534 = vshrl.u32 %v6533, 7
    %v6535 = vsub.s32 0, %v6534
    %v6536 = vrot.slane %v3646, %v6535
    %v6537 = vlaneseq
    %v6538 = vshrl.u32 %v6537, 7
    %v6539 = vsub.s32 0, %v6538
    %v6540 = vrot.slane %v3654, %v6539
    %v6541 = vlaneseq
    %v6542 = vshrl.u32 %v6541, 7
    %v6543 = vsub.s32 0, %v6542
    %v6544 = vrot.slane %v3662, %v6543
    %v6545 = vlaneseq
    %v6546 = vshrl.u32 %v6545, 7
    %v6547 = vsub.s32 0, %v6546
    %v6548 = vrot.slane %v3661, %v6547
    %v6549 = vlaneseq
    %v6550 = vshrl.u32 %v6549, 7
    %v6551 = vsub.s32 0, %v6550
    %v6552 = vrot.slane %v3663, %v6551
    %v6553 = vlaneseq
    %v6554 = vshrl.u32 %v6553, 7
    %v6555 = vsub.s32 0, %v6554
    %v6556 = vrot.slane %v3705, %v6555
    %v6557 = vlaneseq
    %v6558 = vshrl.u32 %v6557, 7
    %v6559 = vsub.s32 0, %v6558
    %v6560 = vrot.slane %v3713, %v6559
    %v6561 = vlaneseq
    %v6562 = vshrl.u32 %v6561, 7
    %v6563 = vsub.s32 0, %v6562
    %v6564 = vrot.slane %v3712, %v6563
    %v6565 = vlaneseq
    %v6566 = vshrl.u32 %v6565, 7
    %v6567 = vsub.s32 0, %v6566
    %v6568 = vrot.slane %v3714, %v6567
    %v6569 = vlaneseq
    %v6570 = vshrl.u32 %v6569, 7
    %v6571 = vsub.s32 0, %v6570
    %v6572 = vrot.slane %v3722, %v6571
    %v6573 = vlaneseq
    %v6574 = vshrl.u32 %v6573, 7
    %v6575 = vsub.s32 0, %v6574
    %v6576 = vrot.slane %v3730, %v6575
    %v6577 = vlaneseq
    %v6578 = vshrl.u32 %v6577, 7
    %v6579 = vsub.s32 0, %v6578
    %v6580 = vrot.slane %v3729, %v6579
    %v6581 = vlaneseq
    %v6582 = vshrl.u32 %v6581, 7
    %v6583 = vsub.s32 0, %v6582
    %v6584 = vrot.slane %v3731, %v6583
    %v6585 = vlaneseq
    %v6586 = vshrl.u32 %v6585, 7
    %v6587 = vsub.s32 0, %v6586
    %v6588 = vrot.slane %v3773, %v6587
    %v6589 = vlaneseq
    %v6590 = vshrl.u32 %v6589, 7
    %v6591 = vsub.s32 0, %v6590
    %v6592 = vrot.slane %v3781, %v6591
    %v6593 = vlaneseq
    %v6594 = vshrl.u32 %v6593, 7
    %v6595 = vsub.s32 0, %v6594
    %v6596 = vrot.slane %v3780, %v6595
    %v6597 = vlaneseq
    %v6598 = vshrl.u32 %v6597, 7
    %v6599 = vsub.s32 0, %v6598
    %v6600 = vrot.slane %v3782, %v6599
    %v6601 = vlaneseq
    %v6602 = vshrl.u32 %v6601, 7
    %v6603 = vsub.s32 0, %v6602
    %v6604 = vrot.slane %v3790, %v6603
    %v6605 = vlaneseq
    %v6606 = vshrl.u32 %v6605, 7
    %v6607 = vsub.s32 0, %v6606
    %v6608 = vrot.slane %v3798, %v6607
    %v6609 = vlaneseq
    %v6610 = vshrl.u32 %v6609, 7
    %v6611 = vsub.s32 0, %v6610
    %v6612 = vrot.slane %v3797, %v6611
    %v6613 = vlaneseq
    %v6614 = vshrl.u32 %v6613, 7
    %v6615 = vsub.s32 0, %v6614
    %v6616 = vrot.slane %v3799, %v6615
    %v6617 = vlaneseq
    %v6618 = vshrl.u32 %v6617, 7
    %v6619 = vsub.s32 0, %v6618
    %v6620 = vrot.slane %v3841, %v6619
    %v6621 = vlaneseq
    %v6622 = vshrl.u32 %v6621, 7
    %v6623 = vsub.s32 0, %v6622
    %v6624 = vrot.slane %v3849, %v6623
    %v6625 = vlaneseq
    %v6626 = vshrl.u32 %v6625, 7
    %v6627 = vsub.s32 0, %v6626
    %v6628 = vrot.slane %v3848, %v6627
    %v6629 = vlaneseq
    %v6630 = vshrl.u32 %v6629, 7
    %v6631 = vsub.s32 0, %v6630
    %v6632 = vrot.slane %v3850, %v6631
    %v6633 = vlaneseq
    %v6634 = vshrl.u32 %v6633, 7
    %v6635 = vsub.s32 0, %v6634
    %v6636 = vrot.slane %v3858, %v6635
    %v6637 = vlaneseq
    %v6638 = vshrl.u32 %v6637, 7
    %v6639 = vsub.s32 0, %v6638
    %v6640 = vrot.slane %v3866, %v6639
    %v6641 = vlaneseq
    %v6642 = vshrl.u32 %v6641, 7
    %v6643 = vsub.s32 0, %v6642
    %v6644 = vrot.slane %v3865, %v6643
    %v6645 = vlaneseq
    %v6646 = vshrl.u32 %v6645, 7
    %v6647 = vsub.s32 0, %v6646
    %v6648 = vrot.slane %v3867, %v6647
    %v6649 = vlaneseq
    %v6650 = vshrl.u32 %v6649, 7
    %v6651 = vsub.s32 0, %v6650
    %v6652 = vrot.slane %v3909, %v6651
    %v6653 = vlaneseq
    %v6654 = vshrl.u32 %v6653, 7
    %v6655 = vsub.s32 0, %v6654
    %v6656 = vrot.slane %v3917, %v6655
    %v6657 = vlaneseq
    %v6658 = vshrl.u32 %v6657, 7
    %v6659 = vsub.s32 0, %v6658
    %v6660 = vrot.slane %v3916, %v6659
    %v6661 = vlaneseq
    %v6662 = vshrl.u32 %v6661, 7
    %v6663 = vsub.s32 0, %v6662
    %v6664 = vrot.slane %v3918, %v6663
    %v6665 = vlaneseq
    %v6666 = vshrl.u32 %v6665, 7
    %v6667 = vsub.s32 0, %v6666
    %v6668 = vrot.slane %v3926, %v6667
    %v6669 = vlaneseq
    %v6670 = vshrl.u32 %v6669, 7
    %v6671 = vsub.s32 0, %v6670
    %v6672 = vrot.slane %v3934, %v6671
    %v6673 = vlaneseq
    %v6674 = vshrl.u32 %v6673, 7
    %v6675 = vsub.s32 0, %v6674
    %v6676 = vrot.slane %v3933, %v6675
    %v6677 = vlaneseq
    %v6678 = vshrl.u32 %v6677, 7
    %v6679 = vsub.s32 0, %v6678
    %v6680 = vrot.slane %v3935, %v6679
    %v6681 = vlaneseq
    %v6682 = vshrl.u32 %v6681, 7
    %v6683 = vsub.s32 0, %v6682
    %v6684 = vrot.slane %v3977, %v6683
    %v6685 = vlaneseq
    %v6686 = vshrl.u32 %v6685, 7
    %v6687 = vsub.s32 0, %v6686
    %v6688 = vrot.slane %v3985, %v6687
    %v6689 = vlaneseq
    %v6690 = vshrl.u32 %v6689, 7
    %v6691 = vsub.s32 0, %v6690
    %v6692 = vrot.slane %v3984, %v6691
    %v6693 = vlaneseq
    %v6694 = vshrl.u32 %v6693, 7
    %v6695 = vsub.s32 0, %v6694
    %v6696 = vrot.slane %v3986, %v6695
    %v6697 = vlaneseq
    %v6698 = vshrl.u32 %v6697, 7
    %v6699 = vsub.s32 0, %v6698
    %v6700 = vrot.slane %v3994, %v6699
    %v6701 = vlaneseq
    %v6702 = vshrl.u32 %v6701, 7
    %v6703 = vsub.s32 0, %v6702
    %v6704 = vrot.slane %v4002, %v6703
    %v6705 = vlaneseq
    %v6706 = vshrl.u32 %v6705, 7
    %v6707 = vsub.s32 0, %v6706
    %v6708 = vrot.slane %v4001, %v6707
    %v6709 = vlaneseq
    %v6710 = vshrl.u32 %v6709, 7
    %v6711 = vsub.s32 0, %v6710
    %v6712 = vrot.slane %v4003, %v6711
    %v6713 = vlaneseq
    %v6714 = vshrl.u32 %v6713, 7
    %v6715 = vsub.s32 0, %v6714
    %v6716 = vrot.slane %v4045, %v6715
    %v6717 = vlaneseq
    %v6718 = vshrl.u32 %v6717, 7
    %v6719 = vsub.s32 0, %v6718
    %v6720 = vrot.slane %v4053, %v6719
    %v6721 = vlaneseq
    %v6722 = vshrl.u32 %v6721, 7
    %v6723 = vsub.s32 0, %v6722
    %v6724 = vrot.slane %v4052, %v6723
    %v6725 = vlaneseq
    %v6726 = vshrl.u32 %v6725, 7
    %v6727 = vsub.s32 0, %v6726
    %v6728 = vrot.slane %v4054, %v6727
    %v6729 = vlaneseq
    %v6730 = vshrl.u32 %v6729, 7
    %v6731 = vsub.s32 0, %v6730
    %v6732 = vrot.slane %v4062, %v6731
    %v6733 = vlaneseq
    %v6734 = vshrl.u32 %v6733, 7
    %v6735 = vsub.s32 0, %v6734
    %v6736 = vrot.slane %v4070, %v6735
    %v6737 = vlaneseq
    %v6738 = vshrl.u32 %v6737, 7
    %v6739 = vsub.s32 0, %v6738
    %v6740 = vrot.slane %v4069, %v6739
    %v6741 = vlaneseq
    %v6742 = vshrl.u32 %v6741, 7
    %v6743 = vsub.s32 0, %v6742
    %v6744 = vrot.slane %v4071, %v6743
    %v6745 = vsel %vm5116, %v6240, %v6236
    %v6746 = vsel %vm4548, %v6244, %v6745
    %v6747 = vsel %vm4550, %v6248, %v6746
    %v6748 = vsel %vm4552, %v6252, %v6747
    %v6749 = vsel %vm4554, %v6256, %v6748
    %v6750 = vsel %vm4556, %v6260, %v6749
    %v6751 = vsel %vm4558, %v6264, %v6750
    %v6752 = vsel %vm5116, %v6272, %v6268
    %v6753 = vsel %vm4548, %v6276, %v6752
    %v6754 = vsel %vm4550, %v6280, %v6753
    %v6755 = vsel %vm4552, %v6284, %v6754
    %v6756 = vsel %vm4554, %v6288, %v6755
    %v6757 = vsel %vm4556, %v6292, %v6756
    %v6758 = vsel %vm4558, %v6296, %v6757
    %v6759 = vsel %vm5116, %v6304, %v6300
    %v6760 = vsel %vm4548, %v6308, %v6759
    %v6761 = vsel %vm4550, %v6312, %v6760
    %v6762 = vsel %vm4552, %v6316, %v6761
    %v6763 = vsel %vm4554, %v6320, %v6762
    %v6764 = vsel %vm4556, %v6324, %v6763
    %v6765 = vsel %vm4558, %v6328, %v6764
    %v6766 = vsel %vm5116, %v6336, %v6332
    %v6767 = vsel %vm4548, %v6340, %v6766
    %v6768 = vsel %vm4550, %v6344, %v6767
    %v6769 = vsel %vm4552, %v6348, %v6768
    %v6770 = vsel %vm4554, %v6352, %v6769
    %v6771 = vsel %vm4556, %v6356, %v6770
    %v6772 = vsel %vm4558, %v6360, %v6771
    %v6773 = vsel %vm5116, %v6368, %v6364
    %v6774 = vsel %vm4548, %v6372, %v6773
    %v6775 = vsel %vm4550, %v6376, %v6774
    %v6776 = vsel %vm4552, %v6380, %v6775
    %v6777 = vsel %vm4554, %v6384, %v6776
    %v6778 = vsel %vm4556, %v6388, %v6777
    %v6779 = vsel %vm4558, %v6392, %v6778
    %v6780 = vsel %vm5116, %v6400, %v6396
    %v6781 = vsel %vm4548, %v6404, %v6780
    %v6782 = vsel %vm4550, %v6408, %v6781
    %v6783 = vsel %vm4552, %v6412, %v6782
    %v6784 = vsel %vm4554, %v6416, %v6783
    %v6785 = vsel %vm4556, %v6420, %v6784
    %v6786 = vsel %vm4558, %v6424, %v6785
    %v6787 = vsel %vm5116, %v6432, %v6428
    %v6788 = vsel %vm4548, %v6436, %v6787
    %v6789 = vsel %vm4550, %v6440, %v6788
    %v6790 = vsel %vm4552, %v6444, %v6789
    %v6791 = vsel %vm4554, %v6448, %v6790
    %v6792 = vsel %vm4556, %v6452, %v6791
    %v6793 = vsel %vm4558, %v6456, %v6792
    %v6794 = vsel %vm5116, %v6464, %v6460
    %v6795 = vsel %vm4548, %v6468, %v6794
    %v6796 = vsel %vm4550, %v6472, %v6795
    %v6797 = vsel %vm4552, %v6476, %v6796
    %v6798 = vsel %vm4554, %v6480, %v6797
    %v6799 = vsel %vm4556, %v6484, %v6798
    %v6800 = vsel %vm4558, %v6488, %v6799
    %v6801 = vsel %vm5116, %v6496, %v6492
    %v6802 = vsel %vm4548, %v6500, %v6801
    %v6803 = vsel %vm4550, %v6504, %v6802
    %v6804 = vsel %vm4552, %v6508, %v6803
    %v6805 = vsel %vm4554, %v6512, %v6804
    %v6806 = vsel %vm4556, %v6516, %v6805
    %v6807 = vsel %vm4558, %v6520, %v6806
    %v6808 = vsel %vm5116, %v6528, %v6524
    %v6809 = vsel %vm4548, %v6532, %v6808
    %v6810 = vsel %vm4550, %v6536, %v6809
    %v6811 = vsel %vm4552, %v6540, %v6810
    %v6812 = vsel %vm4554, %v6544, %v6811
    %v6813 = vsel %vm4556, %v6548, %v6812
    %v6814 = vsel %vm4558, %v6552, %v6813
    %v6815 = vsel %vm5116, %v6560, %v6556
    %v6816 = vsel %vm4548, %v6564, %v6815
    %v6817 = vsel %vm4550, %v6568, %v6816
    %v6818 = vsel %vm4552, %v6572, %v6817
    %v6819 = vsel %vm4554, %v6576, %v6818
    %v6820 = vsel %vm4556, %v6580, %v6819
    %v6821 = vsel %vm4558, %v6584, %v6820
    %v6822 = vsel %vm5116, %v6592, %v6588
    %v6823 = vsel %vm4548, %v6596, %v6822
    %v6824 = vsel %vm4550, %v6600, %v6823
    %v6825 = vsel %vm4552, %v6604, %v6824
    %v6826 = vsel %vm4554, %v6608, %v6825
    %v6827 = vsel %vm4556, %v6612, %v6826
    %v6828 = vsel %vm4558, %v6616, %v6827
    %v6829 = vsel %vm5116, %v6624, %v6620
    %v6830 = vsel %vm4548, %v6628, %v6829
    %v6831 = vsel %vm4550, %v6632, %v6830
    %v6832 = vsel %vm4552, %v6636, %v6831
    %v6833 = vsel %vm4554, %v6640, %v6832
    %v6834 = vsel %vm4556, %v6644, %v6833
    %v6835 = vsel %vm4558, %v6648, %v6834
    %v6836 = vsel %vm5116, %v6656, %v6652
    %v6837 = vsel %vm4548, %v6660, %v6836
    %v6838 = vsel %vm4550, %v6664, %v6837
    %v6839 = vsel %vm4552, %v6668, %v6838
    %v6840 = vsel %vm4554, %v6672, %v6839
    %v6841 = vsel %vm4556, %v6676, %v6840
    %v6842 = vsel %vm4558, %v6680, %v6841
    %v6843 = vsel %vm5116, %v6688, %v6684
    %v6844 = vsel %vm4548, %v6692, %v6843
    %v6845 = vsel %vm4550, %v6696, %v6844
    %v6846 = vsel %vm4552, %v6700, %v6845
    %v6847 = vsel %vm4554, %v6704, %v6846
    %v6848 = vsel %vm4556, %v6708, %v6847
    %v6849 = vsel %vm4558, %v6712, %v6848
    %v6850 = vsel %vm5116, %v6720, %v6716
    %v6851 = vsel %vm4548, %v6724, %v6850
    %v6852 = vsel %vm4550, %v6728, %v6851
    %v6853 = vsel %vm4552, %v6732, %v6852
    %v6854 = vsel %vm4554, %v6736, %v6853
    %v6855 = vsel %vm4556, %v6740, %v6854
    %v6856 = vsel %vm4558, %v6744, %v6855
    %6857 = vrot.lane.b32.xlu0 %v6751, 40
    %v6858 = vpop.permute.xlu0 %6857
    %6859 = vrot.lane.b32.xlu0 %v6758, 40
    %v6860 = vpop.permute.xlu0 %6859
    %6861 = vrot.lane.b32.xlu0 %v6765, 40
    %v6862 = vpop.permute.xlu0 %6861
    %6863 = vrot.lane.b32.xlu0 %v6772, 40
    %v6864 = vpop.permute.xlu0 %6863
    %6865 = vrot.lane.b32.xlu0 %v6779, 40
    %v6866 = vpop.permute.xlu0 %6865
    %6867 = vrot.lane.b32.xlu0 %v6786, 40
    %v6868 = vpop.permute.xlu0 %6867
    %6869 = vrot.lane.b32.xlu0 %v6793, 40
    %v6870 = vpop.permute.xlu0 %6869
    %6871 = vrot.lane.b32.xlu0 %v6800, 40
    %v6872 = vpop.permute.xlu0 %6871
    %6873 = vrot.lane.b32.xlu0 %v6807, 40
    %v6874 = vpop.permute.xlu0 %6873
    %6875 = vrot.lane.b32.xlu0 %v6814, 40
    %v6876 = vpop.permute.xlu0 %6875
    %6877 = vrot.lane.b32.xlu0 %v6821, 40
    %v6878 = vpop.permute.xlu0 %6877
    %6879 = vrot.lane.b32.xlu0 %v6828, 40
    %v6880 = vpop.permute.xlu0 %6879
    %6881 = vrot.lane.b32.xlu0 %v6835, 40
    %v6882 = vpop.permute.xlu0 %6881
    %6883 = vrot.lane.b32.xlu0 %v6842, 40
    %v6884 = vpop.permute.xlu0 %6883
    %6885 = vrot.lane.b32.xlu0 %v6849, 40
    %v6886 = vpop.permute.xlu0 %6885
    %6887 = vrot.lane.b32.xlu0 %v6856, 40
    %v6888 = vpop.permute.xlu0 %6887
    %vm6905 = vcmask 392512
    %6906 = vst.msk [vmem:[#allocation3] sm:$0xff] %vm6905, %v6858
    %6907 = vst.msk [vmem:[#allocation3 + $0x10] sm:$0xff] %vm6905, %v6860
    %6908 = vst.msk [vmem:[#allocation3 + $0x20] sm:$0xff] %vm6905, %v6862
    %6909 = vst.msk [vmem:[#allocation3 + $0x30] sm:$0xff] %vm6905, %v6864
    %6910 = vst.msk [vmem:[#allocation3 + $0x40] sm:$0xff] %vm6905, %v6866
    %6911 = vst.msk [vmem:[#allocation3 + $0x50] sm:$0xff] %vm6905, %v6868
    %6912 = vst.msk [vmem:[#allocation3 + $0x60] sm:$0xff] %vm6905, %v6870
    %6913 = vst.msk [vmem:[#allocation3 + $0x70] sm:$0xff] %vm6905, %v6872
    %6914 = vst.msk [vmem:[#allocation3 + $0x80] sm:$0xff] %vm6905, %v6874
    %6915 = vst.msk [vmem:[#allocation3 + $0x90] sm:$0xff] %vm6905, %v6876
    %6916 = vst.msk [vmem:[#allocation3 + $0xa0] sm:$0xff] %vm6905, %v6878
    %6917 = vst.msk [vmem:[#allocation3 + $0xb0] sm:$0xff] %vm6905, %v6880
    %6918 = vst.msk [vmem:[#allocation3 + $0xc0] sm:$0xff] %vm6905, %v6882
    %6919 = vst.msk [vmem:[#allocation3 + $0xd0] sm:$0xff] %vm6905, %v6884
    %6920 = vst.msk [vmem:[#allocation3 + $0xe0] sm:$0xff] %vm6905, %v6886
    %6921 = vst.msk [vmem:[#allocation3 + $0xf0] sm:$0xff] %vm6905, %v6888
    %v6922 = vlaneseq
    %v6923 = vshrl.u32 %v6922, 7
    %v6924 = vsub.s32 1, %v6923
    %v6925 = vrot.slane %v3051, %v6924
    %v6926 = vlaneseq
    %v6927 = vshrl.u32 %v6926, 7
    %v6928 = vsub.s32 1, %v6927
    %v6929 = vrot.slane %v3119, %v6928
    %v6930 = vlaneseq
    %v6931 = vshrl.u32 %v6930, 7
    %v6932 = vsub.s32 1, %v6931
    %v6933 = vrot.slane %v3187, %v6932
    %v6934 = vlaneseq
    %v6935 = vshrl.u32 %v6934, 7
    %v6936 = vsub.s32 1, %v6935
    %v6937 = vrot.slane %v3255, %v6936
    %v6938 = vlaneseq
    %v6939 = vshrl.u32 %v6938, 7
    %v6940 = vsub.s32 1, %v6939
    %v6941 = vrot.slane %v3323, %v6940
    %v6942 = vlaneseq
    %v6943 = vshrl.u32 %v6942, 7
    %v6944 = vsub.s32 1, %v6943
    %v6945 = vrot.slane %v3391, %v6944
    %v6946 = vlaneseq
    %v6947 = vshrl.u32 %v6946, 7
    %v6948 = vsub.s32 1, %v6947
    %v6949 = vrot.slane %v3459, %v6948
    %v6950 = vlaneseq
    %v6951 = vshrl.u32 %v6950, 7
    %v6952 = vsub.s32 1, %v6951
    %v6953 = vrot.slane %v3527, %v6952
    %v6954 = vlaneseq
    %v6955 = vshrl.u32 %v6954, 7
    %v6956 = vsub.s32 1, %v6955
    %v6957 = vrot.slane %v3595, %v6956
    %v6958 = vlaneseq
    %v6959 = vshrl.u32 %v6958, 7
    %v6960 = vsub.s32 1, %v6959
    %v6961 = vrot.slane %v3663, %v6960
    %v6962 = vlaneseq
    %v6963 = vshrl.u32 %v6962, 7
    %v6964 = vsub.s32 1, %v6963
    %v6965 = vrot.slane %v3731, %v6964
    %v6966 = vlaneseq
    %v6967 = vshrl.u32 %v6966, 7
    %v6968 = vsub.s32 1, %v6967
    %v6969 = vrot.slane %v3799, %v6968
    %v6970 = vlaneseq
    %v6971 = vshrl.u32 %v6970, 7
    %v6972 = vsub.s32 1, %v6971
    %v6973 = vrot.slane %v3867, %v6972
    %v6974 = vlaneseq
    %v6975 = vshrl.u32 %v6974, 7
    %v6976 = vsub.s32 1, %v6975
    %v6977 = vrot.slane %v3935, %v6976
    %v6978 = vlaneseq
    %v6979 = vshrl.u32 %v6978, 7
    %v6980 = vsub.s32 1, %v6979
    %v6981 = vrot.slane %v4003, %v6980
    %v6982 = vlaneseq
    %v6983 = vshrl.u32 %v6982, 7
    %v6984 = vsub.s32 1, %v6983
    %v6985 = vrot.slane %v4071, %v6984
    %v6986 = vsel %vm5116, %v5631, %v5627
    %v6987 = vsel %vm4548, %v5635, %v6986
    %v6988 = vsel %vm4550, %v5639, %v6987
    %v6989 = vsel %vm4552, %v5643, %v6988
    %v6990 = vsel %vm4554, %v5647, %v6989
    %v6991 = vsel %vm4556, %v5651, %v6990
    %v6992 = vsel %vm4558, %v6925, %v6991
    %v6993 = vsel %vm5116, %v5659, %v5655
    %v6994 = vsel %vm4548, %v5663, %v6993
    %v6995 = vsel %vm4550, %v5667, %v6994
    %v6996 = vsel %vm4552, %v5671, %v6995
    %v6997 = vsel %vm4554, %v5675, %v6996
    %v6998 = vsel %vm4556, %v5679, %v6997
    %v6999 = vsel %vm4558, %v6929, %v6998
    %v7000 = vsel %vm5116, %v5687, %v5683
    %v7001 = vsel %vm4548, %v5691, %v7000
    %v7002 = vsel %vm4550, %v5695, %v7001
    %v7003 = vsel %vm4552, %v5699, %v7002
    %v7004 = vsel %vm4554, %v5703, %v7003
    %v7005 = vsel %vm4556, %v5707, %v7004
    %v7006 = vsel %vm4558, %v6933, %v7005
    %v7007 = vsel %vm5116, %v5715, %v5711
    %v7008 = vsel %vm4548, %v5719, %v7007
    %v7009 = vsel %vm4550, %v5723, %v7008
    %v7010 = vsel %vm4552, %v5727, %v7009
    %v7011 = vsel %vm4554, %v5731, %v7010
    %v7012 = vsel %vm4556, %v5735, %v7011
    %v7013 = vsel %vm4558, %v6937, %v7012
    %v7014 = vsel %vm5116, %v5743, %v5739
    %v7015 = vsel %vm4548, %v5747, %v7014
    %v7016 = vsel %vm4550, %v5751, %v7015
    %v7017 = vsel %vm4552, %v5755, %v7016
    %v7018 = vsel %vm4554, %v5759, %v7017
    %v7019 = vsel %vm4556, %v5763, %v7018
    %v7020 = vsel %vm4558, %v6941, %v7019
    %v7021 = vsel %vm5116, %v5771, %v5767
    %v7022 = vsel %vm4548, %v5775, %v7021
    %v7023 = vsel %vm4550, %v5779, %v7022
    %v7024 = vsel %vm4552, %v5783, %v7023
    %v7025 = vsel %vm4554, %v5787, %v7024
    %v7026 = vsel %vm4556, %v5791, %v7025
    %v7027 = vsel %vm4558, %v6945, %v7026
    %v7028 = vsel %vm5116, %v5799, %v5795
    %v7029 = vsel %vm4548, %v5803, %v7028
    %v7030 = vsel %vm4550, %v5807, %v7029
    %v7031 = vsel %vm4552, %v5811, %v7030
    %v7032 = vsel %vm4554, %v5815, %v7031
    %v7033 = vsel %vm4556, %v5819, %v7032
    %v7034 = vsel %vm4558, %v6949, %v7033
    %v7035 = vsel %vm5116, %v5827, %v5823
    %v7036 = vsel %vm4548, %v5831, %v7035
    %v7037 = vsel %vm4550, %v5835, %v7036
    %v7038 = vsel %vm4552, %v5839, %v7037
    %v7039 = vsel %vm4554, %v5843, %v7038
    %v7040 = vsel %vm4556, %v5847, %v7039
    %v7041 = vsel %vm4558, %v6953, %v7040
    %v7042 = vsel %vm5116, %v5855, %v5851
    %v7043 = vsel %vm4548, %v5859, %v7042
    %v7044 = vsel %vm4550, %v5863, %v7043
    %v7045 = vsel %vm4552, %v5867, %v7044
    %v7046 = vsel %vm4554, %v5871, %v7045
    %v7047 = vsel %vm4556, %v5875, %v7046
    %v7048 = vsel %vm4558, %v6957, %v7047
    %v7049 = vsel %vm5116, %v5883, %v5879
    %v7050 = vsel %vm4548, %v5887, %v7049
    %v7051 = vsel %vm4550, %v5891, %v7050
    %v7052 = vsel %vm4552, %v5895, %v7051
    %v7053 = vsel %vm4554, %v5899, %v7052
    %v7054 = vsel %vm4556, %v5903, %v7053
    %v7055 = vsel %vm4558, %v6961, %v7054
    %v7056 = vsel %vm5116, %v5911, %v5907
    %v7057 = vsel %vm4548, %v5915, %v7056
    %v7058 = vsel %vm4550, %v5919, %v7057
    %v7059 = vsel %vm4552, %v5923, %v7058
    %v7060 = vsel %vm4554, %v5927, %v7059
    %v7061 = vsel %vm4556, %v5931, %v7060
    %v7062 = vsel %vm4558, %v6965, %v7061
    %v7063 = vsel %vm5116, %v5939, %v5935
    %v7064 = vsel %vm4548, %v5943, %v7063
    %v7065 = vsel %vm4550, %v5947, %v7064
    %v7066 = vsel %vm4552, %v5951, %v7065
    %v7067 = vsel %vm4554, %v5955, %v7066
    %v7068 = vsel %vm4556, %v5959, %v7067
    %v7069 = vsel %vm4558, %v6969, %v7068
    %v7070 = vsel %vm5116, %v5967, %v5963
    %v7071 = vsel %vm4548, %v5971, %v7070
    %v7072 = vsel %vm4550, %v5975, %v7071
    %v7073 = vsel %vm4552, %v5979, %v7072
    %v7074 = vsel %vm4554, %v5983, %v7073
    %v7075 = vsel %vm4556, %v5987, %v7074
    %v7076 = vsel %vm4558, %v6973, %v7075
    %v7077 = vsel %vm5116, %v5995, %v5991
    %v7078 = vsel %vm4548, %v5999, %v7077
    %v7079 = vsel %vm4550, %v6003, %v7078
    %v7080 = vsel %vm4552, %v6007, %v7079
    %v7081 = vsel %vm4554, %v6011, %v7080
    %v7082 = vsel %vm4556, %v6015, %v7081
    %v7083 = vsel %vm4558, %v6977, %v7082
    %v7084 = vsel %vm5116, %v6023, %v6019
    %v7085 = vsel %vm4548, %v6027, %v7084
    %v7086 = vsel %vm4550, %v6031, %v7085
    %v7087 = vsel %vm4552, %v6035, %v7086
    %v7088 = vsel %vm4554, %v6039, %v7087
    %v7089 = vsel %vm4556, %v6043, %v7088
    %v7090 = vsel %vm4558, %v6981, %v7089
    %v7091 = vsel %vm5116, %v6051, %v6047
    %v7092 = vsel %vm4548, %v6055, %v7091
    %v7093 = vsel %vm4550, %v6059, %v7092
    %v7094 = vsel %vm4552, %v6063, %v7093
    %v7095 = vsel %vm4554, %v6067, %v7094
    %v7096 = vsel %vm4556, %v6071, %v7095
    %v7097 = vsel %vm4558, %v6985, %v7096
    %7098 = vrot.lane.b32.xlu0 %v6992, 48
    %v7099 = vpop.permute.xlu0 %7098
    %7100 = vrot.lane.b32.xlu0 %v6999, 48
    %v7101 = vpop.permute.xlu0 %7100
    %7102 = vrot.lane.b32.xlu0 %v7006, 48
    %v7103 = vpop.permute.xlu0 %7102
    %7104 = vrot.lane.b32.xlu0 %v7013, 48
    %v7105 = vpop.permute.xlu0 %7104
    %7106 = vrot.lane.b32.xlu0 %v7020, 48
    %v7107 = vpop.permute.xlu0 %7106
    %7108 = vrot.lane.b32.xlu0 %v7027, 48
    %v7109 = vpop.permute.xlu0 %7108
    %7110 = vrot.lane.b32.xlu0 %v7034, 48
    %v7111 = vpop.permute.xlu0 %7110
    %7112 = vrot.lane.b32.xlu0 %v7041, 48
    %v7113 = vpop.permute.xlu0 %7112
    %7114 = vrot.lane.b32.xlu0 %v7048, 48
    %v7115 = vpop.permute.xlu0 %7114
    %7116 = vrot.lane.b32.xlu0 %v7055, 48
    %v7117 = vpop.permute.xlu0 %7116
    %7118 = vrot.lane.b32.xlu0 %v7062, 48
    %v7119 = vpop.permute.xlu0 %7118
    %7120 = vrot.lane.b32.xlu0 %v7069, 48
    %v7121 = vpop.permute.xlu0 %7120
    %7122 = vrot.lane.b32.xlu0 %v7076, 48
    %v7123 = vpop.permute.xlu0 %7122
    %7124 = vrot.lane.b32.xlu0 %v7083, 48
    %v7125 = vpop.permute.xlu0 %7124
    %7126 = vrot.lane.b32.xlu0 %v7090, 48
    %v7127 = vpop.permute.xlu0 %7126
    %7128 = vrot.lane.b32.xlu0 %v7097, 48
    %v7129 = vpop.permute.xlu0 %7128
    %vm7146 = vcmask 458112
    %7147 = vst.msk [vmem:[#allocation3] sm:$0xff] %vm7146, %v7099
    %7148 = vst.msk [vmem:[#allocation3 + $0x10] sm:$0xff] %vm7146, %v7101
    %7149 = vst.msk [vmem:[#allocation3 + $0x20] sm:$0xff] %vm7146, %v7103
    %7150 = vst.msk [vmem:[#allocation3 + $0x30] sm:$0xff] %vm7146, %v7105
    %7151 = vst.msk [vmem:[#allocation3 + $0x40] sm:$0xff] %vm7146, %v7107
    %7152 = vst.msk [vmem:[#allocation3 + $0x50] sm:$0xff] %vm7146, %v7109
    %7153 = vst.msk [vmem:[#allocation3 + $0x60] sm:$0xff] %vm7146, %v7111
    %7154 = vst.msk [vmem:[#allocation3 + $0x70] sm:$0xff] %vm7146, %v7113
    %7155 = vst.msk [vmem:[#allocation3 + $0x80] sm:$0xff] %vm7146, %v7115
    %7156 = vst.msk [vmem:[#allocation3 + $0x90] sm:$0xff] %vm7146, %v7117
    %7157 = vst.msk [vmem:[#allocation3 + $0xa0] sm:$0xff] %vm7146, %v7119
    %7158 = vst.msk [vmem:[#allocation3 + $0xb0] sm:$0xff] %vm7146, %v7121
    %7159 = vst.msk [vmem:[#allocation3 + $0xc0] sm:$0xff] %vm7146, %v7123
    %7160 = vst.msk [vmem:[#allocation3 + $0xd0] sm:$0xff] %vm7146, %v7125
    %7161 = vst.msk [vmem:[#allocation3 + $0xe0] sm:$0xff] %vm7146, %v7127
    %7162 = vst.msk [vmem:[#allocation3 + $0xf0] sm:$0xff] %vm7146, %v7129
    %v7163 = vsel %vm5116, %v6244, %v6240
    %v7164 = vsel %vm4548, %v6248, %v7163
    %v7165 = vsel %vm4550, %v6252, %v7164
    %v7166 = vsel %vm4552, %v6256, %v7165
    %v7167 = vsel %vm4554, %v6260, %v7166
    %v7168 = vsel %vm4556, %v6264, %v7167
    %v7169 = vsel %vm5116, %v6276, %v6272
    %v7170 = vsel %vm4548, %v6280, %v7169
    %v7171 = vsel %vm4550, %v6284, %v7170
    %v7172 = vsel %vm4552, %v6288, %v7171
    %v7173 = vsel %vm4554, %v6292, %v7172
    %v7174 = vsel %vm4556, %v6296, %v7173
    %v7175 = vsel %vm5116, %v6308, %v6304
    %v7176 = vsel %vm4548, %v6312, %v7175
    %v7177 = vsel %vm4550, %v6316, %v7176
    %v7178 = vsel %vm4552, %v6320, %v7177
    %v7179 = vsel %vm4554, %v6324, %v7178
    %v7180 = vsel %vm4556, %v6328, %v7179
    %v7181 = vsel %vm5116, %v6340, %v6336
    %v7182 = vsel %vm4548, %v6344, %v7181
    %v7183 = vsel %vm4550, %v6348, %v7182
    %v7184 = vsel %vm4552, %v6352, %v7183
    %v7185 = vsel %vm4554, %v6356, %v7184
    %v7186 = vsel %vm4556, %v6360, %v7185
    %v7187 = vsel %vm5116, %v6372, %v6368
    %v7188 = vsel %vm4548, %v6376, %v7187
    %v7189 = vsel %vm4550, %v6380, %v7188
    %v7190 = vsel %vm4552, %v6384, %v7189
    %v7191 = vsel %vm4554, %v6388, %v7190
    %v7192 = vsel %vm4556, %v6392, %v7191
    %v7193 = vsel %vm5116, %v6404, %v6400
    %v7194 = vsel %vm4548, %v6408, %v7193
    %v7195 = vsel %vm4550, %v6412, %v7194
    %v7196 = vsel %vm4552, %v6416, %v7195
    %v7197 = vsel %vm4554, %v6420, %v7196
    %v7198 = vsel %vm4556, %v6424, %v7197
    %v7199 = vsel %vm5116, %v6436, %v6432
    %v7200 = vsel %vm4548, %v6440, %v7199
    %v7201 = vsel %vm4550, %v6444, %v7200
    %v7202 = vsel %vm4552, %v6448, %v7201
    %v7203 = vsel %vm4554, %v6452, %v7202
    %v7204 = vsel %vm4556, %v6456, %v7203
    %v7205 = vsel %vm5116, %v6468, %v6464
    %v7206 = vsel %vm4548, %v6472, %v7205
    %v7207 = vsel %vm4550, %v6476, %v7206
    %v7208 = vsel %vm4552, %v6480, %v7207
    %v7209 = vsel %vm4554, %v6484, %v7208
    %v7210 = vsel %vm4556, %v6488, %v7209
    %v7211 = vsel %vm5116, %v6500, %v6496
    %v7212 = vsel %vm4548, %v6504, %v7211
    %v7213 = vsel %vm4550, %v6508, %v7212
    %v7214 = vsel %vm4552, %v6512, %v7213
    %v7215 = vsel %vm4554, %v6516, %v7214
    %v7216 = vsel %vm4556, %v6520, %v7215
    %v7217 = vsel %vm5116, %v6532, %v6528
    %v7218 = vsel %vm4548, %v6536, %v7217
    %v7219 = vsel %vm4550, %v6540, %v7218
    %v7220 = vsel %vm4552, %v6544, %v7219
    %v7221 = vsel %vm4554, %v6548, %v7220
    %v7222 = vsel %vm4556, %v6552, %v7221
    %v7223 = vsel %vm5116, %v6564, %v6560
    %v7224 = vsel %vm4548, %v6568, %v7223
    %v7225 = vsel %vm4550, %v6572, %v7224
    %v7226 = vsel %vm4552, %v6576, %v7225
    %v7227 = vsel %vm4554, %v6580, %v7226
    %v7228 = vsel %vm4556, %v6584, %v7227
    %v7229 = vsel %vm5116, %v6596, %v6592
    %v7230 = vsel %vm4548, %v6600, %v7229
    %v7231 = vsel %vm4550, %v6604, %v7230
    %v7232 = vsel %vm4552, %v6608, %v7231
    %v7233 = vsel %vm4554, %v6612, %v7232
    %v7234 = vsel %vm4556, %v6616, %v7233
    %v7235 = vsel %vm5116, %v6628, %v6624
    %v7236 = vsel %vm4548, %v6632, %v7235
    %v7237 = vsel %vm4550, %v6636, %v7236
    %v7238 = vsel %vm4552, %v6640, %v7237
    %v7239 = vsel %vm4554, %v6644, %v7238
    %v7240 = vsel %vm4556, %v6648, %v7239
    %v7241 = vsel %vm5116, %v6660, %v6656
    %v7242 = vsel %vm4548, %v6664, %v7241
    %v7243 = vsel %vm4550, %v6668, %v7242
    %v7244 = vsel %vm4552, %v6672, %v7243
    %v7245 = vsel %vm4554, %v6676, %v7244
    %v7246 = vsel %vm4556, %v6680, %v7245
    %v7247 = vsel %vm5116, %v6692, %v6688
    %v7248 = vsel %vm4548, %v6696, %v7247
    %v7249 = vsel %vm4550, %v6700, %v7248
    %v7250 = vsel %vm4552, %v6704, %v7249
    %v7251 = vsel %vm4554, %v6708, %v7250
    %v7252 = vsel %vm4556, %v6712, %v7251
    %v7253 = vsel %vm5116, %v6724, %v6720
    %v7254 = vsel %vm4548, %v6728, %v7253
    %v7255 = vsel %vm4550, %v6732, %v7254
    %v7256 = vsel %vm4552, %v6736, %v7255
    %v7257 = vsel %vm4554, %v6740, %v7256
    %v7258 = vsel %vm4556, %v6744, %v7257
    %7259 = vrot.lane.b32.xlu0 %v7168, 56
    %v7260 = vpop.permute.xlu0 %7259
    %7261 = vrot.lane.b32.xlu0 %v7174, 56
    %v7262 = vpop.permute.xlu0 %7261
    %7263 = vrot.lane.b32.xlu0 %v7180, 56
    %v7264 = vpop.permute.xlu0 %7263
    %7265 = vrot.lane.b32.xlu0 %v7186, 56
    %v7266 = vpop.permute.xlu0 %7265
    %7267 = vrot.lane.b32.xlu0 %v7192, 56
    %v7268 = vpop.permute.xlu0 %7267
    %7269 = vrot.lane.b32.xlu0 %v7198, 56
    %v7270 = vpop.permute.xlu0 %7269
    %7271 = vrot.lane.b32.xlu0 %v7204, 56
    %v7272 = vpop.permute.xlu0 %7271
    %7273 = vrot.lane.b32.xlu0 %v7210, 56
    %v7274 = vpop.permute.xlu0 %7273
    %7275 = vrot.lane.b32.xlu0 %v7216, 56
    %v7276 = vpop.permute.xlu0 %7275
    %7277 = vrot.lane.b32.xlu0 %v7222, 56
    %v7278 = vpop.permute.xlu0 %7277
    %7279 = vrot.lane.b32.xlu0 %v7228, 56
    %v7280 = vpop.permute.xlu0 %7279
    %7281 = vrot.lane.b32.xlu0 %v7234, 56
    %v7282 = vpop.permute.xlu0 %7281
    %7283 = vrot.lane.b32.xlu0 %v7240, 56
    %v7284 = vpop.permute.xlu0 %7283
    %7285 = vrot.lane.b32.xlu0 %v7246, 56
    %v7286 = vpop.permute.xlu0 %7285
    %7287 = vrot.lane.b32.xlu0 %v7252, 56
    %v7288 = vpop.permute.xlu0 %7287
    %7289 = vrot.lane.b32.xlu0 %v7258, 56
    %v7290 = vpop.permute.xlu0 %7289
    %vm7307 = vcmask 522688
    %7308 = vst.msk [vmem:[#allocation3] sm:$0x7f] %vm7307, %v7260
    %7309 = vst.msk [vmem:[#allocation3 + $0x10] sm:$0x7f] %vm7307, %v7262
    %7310 = vst.msk [vmem:[#allocation3 + $0x20] sm:$0x7f] %vm7307, %v7264
    %7311 = vst.msk [vmem:[#allocation3 + $0x30] sm:$0x7f] %vm7307, %v7266
    %7312 = vst.msk [vmem:[#allocation3 + $0x40] sm:$0x7f] %vm7307, %v7268
    %7313 = vst.msk [vmem:[#allocation3 + $0x50] sm:$0x7f] %vm7307, %v7270
    %7314 = vst.msk [vmem:[#allocation3 + $0x60] sm:$0x7f] %vm7307, %v7272
    %7315 = vst.msk [vmem:[#allocation3 + $0x70] sm:$0x7f] %vm7307, %v7274
    %7316 = vst.msk [vmem:[#allocation3 + $0x80] sm:$0x7f] %vm7307, %v7276
    %7317 = vst.msk [vmem:[#allocation3 + $0x90] sm:$0x7f] %vm7307, %v7278
    %7318 = vst.msk [vmem:[#allocation3 + $0xa0] sm:$0x7f] %vm7307, %v7280
    %7319 = vst.msk [vmem:[#allocation3 + $0xb0] sm:$0x7f] %vm7307, %v7282
    %7320 = vst.msk [vmem:[#allocation3 + $0xc0] sm:$0x7f] %vm7307, %v7284
    %7321 = vst.msk [vmem:[#allocation3 + $0xd0] sm:$0x7f] %vm7307, %v7286
    %7322 = vst.msk [vmem:[#allocation3 + $0xe0] sm:$0x7f] %vm7307, %v7288
    %7323 = vst.msk [vmem:[#allocation3 + $0xf0] sm:$0x7f] %vm7307, %v7290
    %v7324 = vlaneseq
    %v7325 = vshrl.u32 %v7324, 7
    %v7326 = vsub.s32 1, %v7325
    %v7327 = vrot.slane %v3535, %v7326
    %v7328 = vlaneseq
    %v7329 = vshrl.u32 %v7328, 7
    %v7330 = vsub.s32 1, %v7329
    %v7331 = vrot.slane %v3543, %v7330
    %v7332 = vlaneseq
    %v7333 = vshrl.u32 %v7332, 7
    %v7334 = vsub.s32 1, %v7333
    %v7335 = vrot.slane %v3542, %v7334
    %v7336 = vlaneseq
    %v7337 = vshrl.u32 %v7336, 7
    %v7338 = vsub.s32 1, %v7337
    %v7339 = vrot.slane %v3544, %v7338
    %v7340 = vlaneseq
    %v7341 = vshrl.u32 %v7340, 7
    %v7342 = vsub.s32 1, %v7341
    %v7343 = vrot.slane %v3552, %v7342
    %v7344 = vlaneseq
    %v7345 = vshrl.u32 %v7344, 7
    %v7346 = vsub.s32 1, %v7345
    %v7347 = vrot.slane %v3560, %v7346
    %v7348 = vlaneseq
    %v7349 = vshrl.u32 %v7348, 7
    %v7350 = vsub.s32 1, %v7349
    %v7351 = vrot.slane %v3559, %v7350
    %v7352 = vlaneseq
    %v7353 = vshrl.u32 %v7352, 7
    %v7354 = vsub.s32 1, %v7353
    %v7355 = vrot.slane %v4079, %v7354
    %v7356 = vlaneseq
    %v7357 = vshrl.u32 %v7356, 7
    %v7358 = vsub.s32 1, %v7357
    %v7359 = vrot.slane %v4087, %v7358
    %v7360 = vlaneseq
    %v7361 = vshrl.u32 %v7360, 7
    %v7362 = vsub.s32 1, %v7361
    %v7363 = vrot.slane %v4086, %v7362
    %v7364 = vlaneseq
    %v7365 = vshrl.u32 %v7364, 7
    %v7366 = vsub.s32 1, %v7365
    %v7367 = vrot.slane %v4088, %v7366
    %v7368 = vlaneseq
    %v7369 = vshrl.u32 %v7368, 7
    %v7370 = vsub.s32 1, %v7369
    %v7371 = vrot.slane %v4096, %v7370
    %v7372 = vlaneseq
    %v7373 = vshrl.u32 %v7372, 7
    %v7374 = vsub.s32 1, %v7373
    %v7375 = vrot.slane %v4104, %v7374
    %v7376 = vlaneseq
    %v7377 = vshrl.u32 %v7376, 7
    %v7378 = vsub.s32 1, %v7377
    %v7379 = vrot.slane %v4103, %v7378
    %v7380 = vsel %vm4548, %v7331, %v7327
    %v7381 = vsel %vm4550, %v7335, %v7380
    %v7382 = vsel %vm4552, %v7339, %v7381
    %v7383 = vsel %vm4554, %v7343, %v7382
    %v7384 = vsel %vm4556, %v7347, %v7383
    %v7385 = vsel %vm4558, %v7351, %v7384
    %v7386 = vsel %vm4548, %v7359, %v7355
    %v7387 = vsel %vm4550, %v7363, %v7386
    %v7388 = vsel %vm4552, %v7367, %v7387
    %v7389 = vsel %vm4554, %v7371, %v7388
    %v7390 = vsel %vm4556, %v7375, %v7389
    %v7391 = vsel %vm4558, %v7379, %v7390
    %7392 = vrot.lane.b32.xlu0 %v4559, 64
    %v7393 = vpop.permute.xlu0 %7392
    %7394 = vrot.lane.b32.xlu0 %v4565, 64
    %v7395 = vpop.permute.xlu0 %7394
    %7396 = vrot.lane.b32.xlu0 %v4571, 64
    %v7397 = vpop.permute.xlu0 %7396
    %7398 = vrot.lane.b32.xlu0 %v4577, 64
    %v7399 = vpop.permute.xlu0 %7398
    %7400 = vrot.lane.b32.xlu0 %v4583, 64
    %v7401 = vpop.permute.xlu0 %7400
    %7402 = vrot.lane.b32.xlu0 %v4589, 64
    %v7403 = vpop.permute.xlu0 %7402
    %7404 = vrot.lane.b32.xlu0 %v4595, 64
    %v7405 = vpop.permute.xlu0 %7404
    %7406 = vrot.lane.b32.xlu0 %v7385, 64
    %v7407 = vpop.permute.xlu0 %7406
    %7408 = vrot.lane.b32.xlu0 %v4601, 64
    %v7409 = vpop.permute.xlu0 %7408
    %7410 = vrot.lane.b32.xlu0 %v4607, 64
    %v7411 = vpop.permute.xlu0 %7410
    %7412 = vrot.lane.b32.xlu0 %v4613, 64
    %v7413 = vpop.permute.xlu0 %7412
    %7414 = vrot.lane.b32.xlu0 %v4619, 64
    %v7415 = vpop.permute.xlu0 %7414
    %7416 = vrot.lane.b32.xlu0 %v4625, 64
    %v7417 = vpop.permute.xlu0 %7416
    %7418 = vrot.lane.b32.xlu0 %v4631, 64
    %v7419 = vpop.permute.xlu0 %7418
    %7420 = vrot.lane.b32.xlu0 %v4637, 64
    %v7421 = vpop.permute.xlu0 %7420
    %7422 = vrot.lane.b32.xlu0 %v7391, 64
    %v7423 = vpop.permute.xlu0 %7422
    %vm7440 = vcmask 589313
    %7441 = vst.msk [vmem:[#allocation3] sm:$0xfe] %vm7440, %v7393
    %7442 = vst.msk [vmem:[#allocation3 + $0x10] sm:$0xfe] %vm7440, %v7395
    %7443 = vst.msk [vmem:[#allocation3 + $0x20] sm:$0xfe] %vm7440, %v7397
    %7444 = vst.msk [vmem:[#allocation3 + $0x30] sm:$0xfe] %vm7440, %v7399
    %7445 = vst.msk [vmem:[#allocation3 + $0x40] sm:$0xfe] %vm7440, %v7401
    %7446 = vst.msk [vmem:[#allocation3 + $0x50] sm:$0xfe] %vm7440, %v7403
    %7447 = vst.msk [vmem:[#allocation3 + $0x60] sm:$0xfe] %vm7440, %v7405
    %7448 = vst.msk [vmem:[#allocation3 + $0x70] sm:$0xfe] %vm7440, %v7407
    %7449 = vst.msk [vmem:[#allocation3 + $0x80] sm:$0xfe] %vm7440, %v7409
    %7450 = vst.msk [vmem:[#allocation3 + $0x90] sm:$0xfe] %vm7440, %v7411
    %7451 = vst.msk [vmem:[#allocation3 + $0xa0] sm:$0xfe] %vm7440, %v7413
    %7452 = vst.msk [vmem:[#allocation3 + $0xb0] sm:$0xfe] %vm7440, %v7415
    %7453 = vst.msk [vmem:[#allocation3 + $0xc0] sm:$0xfe] %vm7440, %v7417
    %7454 = vst.msk [vmem:[#allocation3 + $0xd0] sm:$0xfe] %vm7440, %v7419
    %7455 = vst.msk [vmem:[#allocation3 + $0xe0] sm:$0xfe] %vm7440, %v7421
    %7456 = vst.msk [vmem:[#allocation3 + $0xf0] sm:$0xfe] %vm7440, %v7423
    %v7457 = vlaneseq
    %v7458 = vshrl.u32 %v7457, 7
    %v7459 = vsub.s32 0, %v7458
    %v7460 = vrot.slane %v3535, %v7459
    %v7461 = vlaneseq
    %v7462 = vshrl.u32 %v7461, 7
    %v7463 = vsub.s32 0, %v7462
    %v7464 = vrot.slane %v3543, %v7463
    %v7465 = vlaneseq
    %v7466 = vshrl.u32 %v7465, 7
    %v7467 = vsub.s32 0, %v7466
    %v7468 = vrot.slane %v3542, %v7467
    %v7469 = vlaneseq
    %v7470 = vshrl.u32 %v7469, 7
    %v7471 = vsub.s32 0, %v7470
    %v7472 = vrot.slane %v3544, %v7471
    %v7473 = vlaneseq
    %v7474 = vshrl.u32 %v7473, 7
    %v7475 = vsub.s32 0, %v7474
    %v7476 = vrot.slane %v3552, %v7475
    %v7477 = vlaneseq
    %v7478 = vshrl.u32 %v7477, 7
    %v7479 = vsub.s32 0, %v7478
    %v7480 = vrot.slane %v3560, %v7479
    %v7481 = vlaneseq
    %v7482 = vshrl.u32 %v7481, 7
    %v7483 = vsub.s32 0, %v7482
    %v7484 = vrot.slane %v3559, %v7483
    %v7485 = vlaneseq
    %v7486 = vshrl.u32 %v7485, 7
    %v7487 = vsub.s32 0, %v7486
    %v7488 = vrot.slane %v3561, %v7487
    %v7489 = vlaneseq
    %v7490 = vshrl.u32 %v7489, 7
    %v7491 = vsub.s32 0, %v7490
    %v7492 = vrot.slane %v4079, %v7491
    %v7493 = vlaneseq
    %v7494 = vshrl.u32 %v7493, 7
    %v7495 = vsub.s32 0, %v7494
    %v7496 = vrot.slane %v4087, %v7495
    %v7497 = vlaneseq
    %v7498 = vshrl.u32 %v7497, 7
    %v7499 = vsub.s32 0, %v7498
    %v7500 = vrot.slane %v4086, %v7499
    %v7501 = vlaneseq
    %v7502 = vshrl.u32 %v7501, 7
    %v7503 = vsub.s32 0, %v7502
    %v7504 = vrot.slane %v4088, %v7503
    %v7505 = vlaneseq
    %v7506 = vshrl.u32 %v7505, 7
    %v7507 = vsub.s32 0, %v7506
    %v7508 = vrot.slane %v4096, %v7507
    %v7509 = vlaneseq
    %v7510 = vshrl.u32 %v7509, 7
    %v7511 = vsub.s32 0, %v7510
    %v7512 = vrot.slane %v4104, %v7511
    %v7513 = vlaneseq
    %v7514 = vshrl.u32 %v7513, 7
    %v7515 = vsub.s32 0, %v7514
    %v7516 = vrot.slane %v4103, %v7515
    %v7517 = vlaneseq
    %v7518 = vshrl.u32 %v7517, 7
    %v7519 = vsub.s32 0, %v7518
    %v7520 = vrot.slane %v4105, %v7519
    %v7521 = vsel %vm5116, %v7464, %v7460
    %v7522 = vsel %vm4548, %v7468, %v7521
    %v7523 = vsel %vm4550, %v7472, %v7522
    %v7524 = vsel %vm4552, %v7476, %v7523
    %v7525 = vsel %vm4554, %v7480, %v7524
    %v7526 = vsel %vm4556, %v7484, %v7525
    %v7527 = vsel %vm4558, %v7488, %v7526
    %v7528 = vsel %vm5116, %v7496, %v7492
    %v7529 = vsel %vm4548, %v7500, %v7528
    %v7530 = vsel %vm4550, %v7504, %v7529
    %v7531 = vsel %vm4552, %v7508, %v7530
    %v7532 = vsel %vm4554, %v7512, %v7531
    %v7533 = vsel %vm4556, %v7516, %v7532
    %v7534 = vsel %vm4558, %v7520, %v7533
    %7535 = vrot.lane.b32.xlu0 %v5123, 72
    %v7536 = vpop.permute.xlu0 %7535
    %7537 = vrot.lane.b32.xlu0 %v5130, 72
    %v7538 = vpop.permute.xlu0 %7537
    %7539 = vrot.lane.b32.xlu0 %v5137, 72
    %v7540 = vpop.permute.xlu0 %7539
    %7541 = vrot.lane.b32.xlu0 %v5144, 72
    %v7542 = vpop.permute.xlu0 %7541
    %7543 = vrot.lane.b32.xlu0 %v5151, 72
    %v7544 = vpop.permute.xlu0 %7543
    %7545 = vrot.lane.b32.xlu0 %v5158, 72
    %v7546 = vpop.permute.xlu0 %7545
    %7547 = vrot.lane.b32.xlu0 %v5165, 72
    %v7548 = vpop.permute.xlu0 %7547
    %7549 = vrot.lane.b32.xlu0 %v7527, 72
    %v7550 = vpop.permute.xlu0 %7549
    %7551 = vrot.lane.b32.xlu0 %v5172, 72
    %v7552 = vpop.permute.xlu0 %7551
    %7553 = vrot.lane.b32.xlu0 %v5179, 72
    %v7554 = vpop.permute.xlu0 %7553
    %7555 = vrot.lane.b32.xlu0 %v5186, 72
    %v7556 = vpop.permute.xlu0 %7555
    %7557 = vrot.lane.b32.xlu0 %v5193, 72
    %v7558 = vpop.permute.xlu0 %7557
    %7559 = vrot.lane.b32.xlu0 %v5200, 72
    %v7560 = vpop.permute.xlu0 %7559
    %7561 = vrot.lane.b32.xlu0 %v5207, 72
    %v7562 = vpop.permute.xlu0 %7561
    %7563 = vrot.lane.b32.xlu0 %v5214, 72
    %v7564 = vpop.permute.xlu0 %7563
    %7565 = vrot.lane.b32.xlu0 %v7534, 72
    %v7566 = vpop.permute.xlu0 %7565
    %vm7583 = vcmask 654912
    %7584 = vst.msk [vmem:[#allocation3] sm:$0xff] %vm7583, %v7536
    %7585 = vst.msk [vmem:[#allocation3 + $0x10] sm:$0xff] %vm7583, %v7538
    %7586 = vst.msk [vmem:[#allocation3 + $0x20] sm:$0xff] %vm7583, %v7540
    %7587 = vst.msk [vmem:[#allocation3 + $0x30] sm:$0xff] %vm7583, %v7542
    %7588 = vst.msk [vmem:[#allocation3 + $0x40] sm:$0xff] %vm7583, %v7544
    %7589 = vst.msk [vmem:[#allocation3 + $0x50] sm:$0xff] %vm7583, %v7546
    %7590 = vst.msk [vmem:[#allocation3 + $0x60] sm:$0xff] %vm7583, %v7548
    %7591 = vst.msk [vmem:[#allocation3 + $0x70] sm:$0xff] %vm7583, %v7550
    %7592 = vst.msk [vmem:[#allocation3 + $0x80] sm:$0xff] %vm7583, %v7552
    %7593 = vst.msk [vmem:[#allocation3 + $0x90] sm:$0xff] %vm7583, %v7554
    %7594 = vst.msk [vmem:[#allocation3 + $0xa0] sm:$0xff] %vm7583, %v7556
    %7595 = vst.msk [vmem:[#allocation3 + $0xb0] sm:$0xff] %vm7583, %v7558
    %7596 = vst.msk [vmem:[#allocation3 + $0xc0] sm:$0xff] %vm7583, %v7560
    %7597 = vst.msk [vmem:[#allocation3 + $0xd0] sm:$0xff] %vm7583, %v7562
    %7598 = vst.msk [vmem:[#allocation3 + $0xe0] sm:$0xff] %vm7583, %v7564
    %7599 = vst.msk [vmem:[#allocation3 + $0xf0] sm:$0xff] %vm7583, %v7566
    %v7600 = vlaneseq
    %v7601 = vshrl.u32 %v7600, 7
    %v7602 = vsub.s32 1, %v7601
    %v7603 = vrot.slane %v3561, %v7602
    %v7604 = vlaneseq
    %v7605 = vshrl.u32 %v7604, 7
    %v7606 = vsub.s32 1, %v7605
    %v7607 = vrot.slane %v4105, %v7606
    %v7608 = vsel %vm5116, %v7331, %v7327
    %v7609 = vsel %vm4548, %v7335, %v7608
    %v7610 = vsel %vm4550, %v7339, %v7609
    %v7611 = vsel %vm4552, %v7343, %v7610
    %v7612 = vsel %vm4554, %v7347, %v7611
    %v7613 = vsel %vm4556, %v7351, %v7612
    %v7614 = vsel %vm4558, %v7603, %v7613
    %v7615 = vsel %vm5116, %v7359, %v7355
    %v7616 = vsel %vm4548, %v7363, %v7615
    %v7617 = vsel %vm4550, %v7367, %v7616
    %v7618 = vsel %vm4552, %v7371, %v7617
    %v7619 = vsel %vm4554, %v7375, %v7618
    %v7620 = vsel %vm4556, %v7379, %v7619
    %v7621 = vsel %vm4558, %v7607, %v7620
    %7622 = vrot.lane.b32.xlu0 %v5334, 80
    %v7623 = vpop.permute.xlu0 %7622
    %7624 = vrot.lane.b32.xlu0 %v5341, 80
    %v7625 = vpop.permute.xlu0 %7624
    %7626 = vrot.lane.b32.xlu0 %v5348, 80
    %v7627 = vpop.permute.xlu0 %7626
    %7628 = vrot.lane.b32.xlu0 %v5355, 80
    %v7629 = vpop.permute.xlu0 %7628
    %7630 = vrot.lane.b32.xlu0 %v5362, 80
    %v7631 = vpop.permute.xlu0 %7630
    %7632 = vrot.lane.b32.xlu0 %v5369, 80
    %v7633 = vpop.permute.xlu0 %7632
    %7634 = vrot.lane.b32.xlu0 %v5376, 80
    %v7635 = vpop.permute.xlu0 %7634
    %7636 = vrot.lane.b32.xlu0 %v7614, 80
    %v7637 = vpop.permute.xlu0 %7636
    %7638 = vrot.lane.b32.xlu0 %v5383, 80
    %v7639 = vpop.permute.xlu0 %7638
    %7640 = vrot.lane.b32.xlu0 %v5390, 80
    %v7641 = vpop.permute.xlu0 %7640
    %7642 = vrot.lane.b32.xlu0 %v5397, 80
    %v7643 = vpop.permute.xlu0 %7642
    %7644 = vrot.lane.b32.xlu0 %v5404, 80
    %v7645 = vpop.permute.xlu0 %7644
    %7646 = vrot.lane.b32.xlu0 %v5411, 80
    %v7647 = vpop.permute.xlu0 %7646
    %7648 = vrot.lane.b32.xlu0 %v5418, 80
    %v7649 = vpop.permute.xlu0 %7648
    %7650 = vrot.lane.b32.xlu0 %v5425, 80
    %v7651 = vpop.permute.xlu0 %7650
    %7652 = vrot.lane.b32.xlu0 %v7621, 80
    %v7653 = vpop.permute.xlu0 %7652
    %vm7670 = vcmask 720512
    %7671 = vst.msk [vmem:[#allocation3] sm:$0xff] %vm7670, %v7623
    %7672 = vst.msk [vmem:[#allocation3 + $0x10] sm:$0xff] %vm7670, %v7625
    %7673 = vst.msk [vmem:[#allocation3 + $0x20] sm:$0xff] %vm7670, %v7627
    %7674 = vst.msk [vmem:[#allocation3 + $0x30] sm:$0xff] %vm7670, %v7629
    %7675 = vst.msk [vmem:[#allocation3 + $0x40] sm:$0xff] %vm7670, %v7631
    %7676 = vst.msk [vmem:[#allocation3 + $0x50] sm:$0xff] %vm7670, %v7633
    %7677 = vst.msk [vmem:[#allocation3 + $0x60] sm:$0xff] %vm7670, %v7635
    %7678 = vst.msk [vmem:[#allocation3 + $0x70] sm:$0xff] %vm7670, %v7637
    %7679 = vst.msk [vmem:[#allocation3 + $0x80] sm:$0xff] %vm7670, %v7639
    %7680 = vst.msk [vmem:[#allocation3 + $0x90] sm:$0xff] %vm7670, %v7641
    %7681 = vst.msk [vmem:[#allocation3 + $0xa0] sm:$0xff] %vm7670, %v7643
    %7682 = vst.msk [vmem:[#allocation3 + $0xb0] sm:$0xff] %vm7670, %v7645
    %7683 = vst.msk [vmem:[#allocation3 + $0xc0] sm:$0xff] %vm7670, %v7647
    %7684 = vst.msk [vmem:[#allocation3 + $0xd0] sm:$0xff] %vm7670, %v7649
    %7685 = vst.msk [vmem:[#allocation3 + $0xe0] sm:$0xff] %vm7670, %v7651
    %7686 = vst.msk [vmem:[#allocation3 + $0xf0] sm:$0xff] %vm7670, %v7653
    %v7687 = vsel %vm5116, %v7468, %v7464
    %v7688 = vsel %vm4548, %v7472, %v7687
    %v7689 = vsel %vm4550, %v7476, %v7688
    %v7690 = vsel %vm4552, %v7480, %v7689
    %v7691 = vsel %vm4554, %v7484, %v7690
    %v7692 = vsel %vm4556, %v7488, %v7691
    %v7693 = vsel %vm5116, %v7500, %v7496
    %v7694 = vsel %vm4548, %v7504, %v7693
    %v7695 = vsel %vm4550, %v7508, %v7694
    %v7696 = vsel %vm4552, %v7512, %v7695
    %v7697 = vsel %vm4554, %v7516, %v7696
    %v7698 = vsel %vm4556, %v7520, %v7697
    %7699 = vrot.lane.b32.xlu0 %v5488, 88
    %v7700 = vpop.permute.xlu0 %7699
    %7701 = vrot.lane.b32.xlu0 %v5494, 88
    %v7702 = vpop.permute.xlu0 %7701
    %7703 = vrot.lane.b32.xlu0 %v5500, 88
    %v7704 = vpop.permute.xlu0 %7703
    %7705 = vrot.lane.b32.xlu0 %v5506, 88
    %v7706 = vpop.permute.xlu0 %7705
    %7707 = vrot.lane.b32.xlu0 %v5512, 88
    %v7708 = vpop.permute.xlu0 %7707
    %7709 = vrot.lane.b32.xlu0 %v5518, 88
    %v7710 = vpop.permute.xlu0 %7709
    %7711 = vrot.lane.b32.xlu0 %v5524, 88
    %v7712 = vpop.permute.xlu0 %7711
    %7713 = vrot.lane.b32.xlu0 %v7692, 88
    %v7714 = vpop.permute.xlu0 %7713
    %7715 = vrot.lane.b32.xlu0 %v5530, 88
    %v7716 = vpop.permute.xlu0 %7715
    %7717 = vrot.lane.b32.xlu0 %v5536, 88
    %v7718 = vpop.permute.xlu0 %7717
    %7719 = vrot.lane.b32.xlu0 %v5542, 88
    %v7720 = vpop.permute.xlu0 %7719
    %7721 = vrot.lane.b32.xlu0 %v5548, 88
    %v7722 = vpop.permute.xlu0 %7721
    %7723 = vrot.lane.b32.xlu0 %v5554, 88
    %v7724 = vpop.permute.xlu0 %7723
    %7725 = vrot.lane.b32.xlu0 %v5560, 88
    %v7726 = vpop.permute.xlu0 %7725
    %7727 = vrot.lane.b32.xlu0 %v5566, 88
    %v7728 = vpop.permute.xlu0 %7727
    %7729 = vrot.lane.b32.xlu0 %v7698, 88
    %v7730 = vpop.permute.xlu0 %7729
    %vm7747 = vcmask 785088
    %7748 = vst.msk [vmem:[#allocation3] sm:$0x7f] %vm7747, %v7700
    %7749 = vst.msk [vmem:[#allocation3 + $0x10] sm:$0x7f] %vm7747, %v7702
    %7750 = vst.msk [vmem:[#allocation3 + $0x20] sm:$0x7f] %vm7747, %v7704
    %7751 = vst.msk [vmem:[#allocation3 + $0x30] sm:$0x7f] %vm7747, %v7706
    %7752 = vst.msk [vmem:[#allocation3 + $0x40] sm:$0x7f] %vm7747, %v7708
    %7753 = vst.msk [vmem:[#allocation3 + $0x50] sm:$0x7f] %vm7747, %v7710
    %7754 = vst.msk [vmem:[#allocation3 + $0x60] sm:$0x7f] %vm7747, %v7712
    %7755 = vst.msk [vmem:[#allocation3 + $0x70] sm:$0x7f] %vm7747, %v7714
    %7756 = vst.msk [vmem:[#allocation3 + $0x80] sm:$0x7f] %vm7747, %v7716
    %7757 = vst.msk [vmem:[#allocation3 + $0x90] sm:$0x7f] %vm7747, %v7718
    %7758 = vst.msk [vmem:[#allocation3 + $0xa0] sm:$0x7f] %vm7747, %v7720
    %7759 = vst.msk [vmem:[#allocation3 + $0xb0] sm:$0x7f] %vm7747, %v7722
    %7760 = vst.msk [vmem:[#allocation3 + $0xc0] sm:$0x7f] %vm7747, %v7724
    %7761 = vst.msk [vmem:[#allocation3 + $0xd0] sm:$0x7f] %vm7747, %v7726
    %7762 = vst.msk [vmem:[#allocation3 + $0xe0] sm:$0x7f] %vm7747, %v7728
    %7763 = vst.msk [vmem:[#allocation3 + $0xf0] sm:$0x7f] %vm7747, %v7730
    %7764 = vrot.lane.b32.xlu0 %v6083, 96
    %v7765 = vpop.permute.xlu0 %7764
    %7766 = vrot.lane.b32.xlu0 %v6089, 96
    %v7767 = vpop.permute.xlu0 %7766
    %7768 = vrot.lane.b32.xlu0 %v6095, 96
    %v7769 = vpop.permute.xlu0 %7768
    %7770 = vrot.lane.b32.xlu0 %v6101, 96
    %v7771 = vpop.permute.xlu0 %7770
    %7772 = vrot.lane.b32.xlu0 %v6107, 96
    %v7773 = vpop.permute.xlu0 %7772
    %7774 = vrot.lane.b32.xlu0 %v6113, 96
    %v7775 = vpop.permute.xlu0 %7774
    %7776 = vrot.lane.b32.xlu0 %v6119, 96
    %v7777 = vpop.permute.xlu0 %7776
    %7778 = vrot.lane.b32.xlu0 %v6131, 96
    %v7779 = vpop.permute.xlu0 %7778
    %7780 = vrot.lane.b32.xlu0 %v6137, 96
    %v7781 = vpop.permute.xlu0 %7780
    %7782 = vrot.lane.b32.xlu0 %v6143, 96
    %v7783 = vpop.permute.xlu0 %7782
    %7784 = vrot.lane.b32.xlu0 %v6149, 96
    %v7785 = vpop.permute.xlu0 %7784
    %7786 = vrot.lane.b32.xlu0 %v6155, 96
    %v7787 = vpop.permute.xlu0 %7786
    %7788 = vrot.lane.b32.xlu0 %v6161, 96
    %v7789 = vpop.permute.xlu0 %7788
    %7790 = vrot.lane.b32.xlu0 %v6167, 96
    %v7791 = vpop.permute.xlu0 %7790
    %vm7806 = vcmask 851713
    %7807 = vst.msk [vmem:[#allocation3] sm:$0xfe] %vm7806, %v7765
    %7808 = vst.msk [vmem:[#allocation3 + $0x10] sm:$0xfe] %vm7806, %v7767
    %7809 = vst.msk [vmem:[#allocation3 + $0x20] sm:$0xfe] %vm7806, %v7769
    %7810 = vst.msk [vmem:[#allocation3 + $0x30] sm:$0xfe] %vm7806, %v7771
    %7811 = vst.msk [vmem:[#allocation3 + $0x40] sm:$0xfe] %vm7806, %v7773
    %7812 = vst.msk [vmem:[#allocation3 + $0x50] sm:$0xfe] %vm7806, %v7775
    %7813 = vst.msk [vmem:[#allocation3 + $0x60] sm:$0xfe] %vm7806, %v7777
    %7814 = vst.msk [vmem:[#allocation3 + $0x80] sm:$0xfe] %vm7806, %v7779
    %7815 = vst.msk [vmem:[#allocation3 + $0x90] sm:$0xfe] %vm7806, %v7781
    %7816 = vst.msk [vmem:[#allocation3 + $0xa0] sm:$0xfe] %vm7806, %v7783
    %7817 = vst.msk [vmem:[#allocation3 + $0xb0] sm:$0xfe] %vm7806, %v7785
    %7818 = vst.msk [vmem:[#allocation3 + $0xc0] sm:$0xfe] %vm7806, %v7787
    %7819 = vst.msk [vmem:[#allocation3 + $0xd0] sm:$0xfe] %vm7806, %v7789
    %7820 = vst.msk [vmem:[#allocation3 + $0xe0] sm:$0xfe] %vm7806, %v7791
    %7821 = vrot.lane.b32.xlu0 %v6758, 104
    %v7822 = vpop.permute.xlu0 %7821
    %7823 = vrot.lane.b32.xlu0 %v6765, 104
    %v7824 = vpop.permute.xlu0 %7823
    %7825 = vrot.lane.b32.xlu0 %v6772, 104
    %v7826 = vpop.permute.xlu0 %7825
    %7827 = vrot.lane.b32.xlu0 %v6779, 104
    %v7828 = vpop.permute.xlu0 %7827
    %7829 = vrot.lane.b32.xlu0 %v6786, 104
    %v7830 = vpop.permute.xlu0 %7829
    %7831 = vrot.lane.b32.xlu0 %v6793, 104
    %v7832 = vpop.permute.xlu0 %7831
    %7833 = vrot.lane.b32.xlu0 %v6800, 104
    %v7834 = vpop.permute.xlu0 %7833
    %7835 = vrot.lane.b32.xlu0 %v6814, 104
    %v7836 = vpop.permute.xlu0 %7835
    %7837 = vrot.lane.b32.xlu0 %v6821, 104
    %v7838 = vpop.permute.xlu0 %7837
    %7839 = vrot.lane.b32.xlu0 %v6828, 104
    %v7840 = vpop.permute.xlu0 %7839
    %7841 = vrot.lane.b32.xlu0 %v6835, 104
    %v7842 = vpop.permute.xlu0 %7841
    %7843 = vrot.lane.b32.xlu0 %v6842, 104
    %v7844 = vpop.permute.xlu0 %7843
    %7845 = vrot.lane.b32.xlu0 %v6849, 104
    %v7846 = vpop.permute.xlu0 %7845
    %7847 = vrot.lane.b32.xlu0 %v6856, 104
    %v7848 = vpop.permute.xlu0 %7847
    %vm7863 = vcmask 917312
    %7864 = vst.msk [vmem:[#allocation3] sm:$0xff] %vm7863, %v7822
    %7865 = vst.msk [vmem:[#allocation3 + $0x10] sm:$0xff] %vm7863, %v7824
    %7866 = vst.msk [vmem:[#allocation3 + $0x20] sm:$0xff] %vm7863, %v7826
    %7867 = vst.msk [vmem:[#allocation3 + $0x30] sm:$0xff] %vm7863, %v7828
    %7868 = vst.msk [vmem:[#allocation3 + $0x40] sm:$0xff] %vm7863, %v7830
    %7869 = vst.msk [vmem:[#allocation3 + $0x50] sm:$0xff] %vm7863, %v7832
    %7870 = vst.msk [vmem:[#allocation3 + $0x60] sm:$0xff] %vm7863, %v7834
    %7871 = vst.msk [vmem:[#allocation3 + $0x80] sm:$0xff] %vm7863, %v7836
    %7872 = vst.msk [vmem:[#allocation3 + $0x90] sm:$0xff] %vm7863, %v7838
    %7873 = vst.msk [vmem:[#allocation3 + $0xa0] sm:$0xff] %vm7863, %v7840
    %7874 = vst.msk [vmem:[#allocation3 + $0xb0] sm:$0xff] %vm7863, %v7842
    %7875 = vst.msk [vmem:[#allocation3 + $0xc0] sm:$0xff] %vm7863, %v7844
    %7876 = vst.msk [vmem:[#allocation3 + $0xd0] sm:$0xff] %vm7863, %v7846
    %7877 = vst.msk [vmem:[#allocation3 + $0xe0] sm:$0xff] %vm7863, %v7848
    %7878 = vrot.lane.b32.xlu0 %v6999, 112
    %v7879 = vpop.permute.xlu0 %7878
    %7880 = vrot.lane.b32.xlu0 %v7006, 112
    %v7881 = vpop.permute.xlu0 %7880
    %7882 = vrot.lane.b32.xlu0 %v7013, 112
    %v7883 = vpop.permute.xlu0 %7882
    %7884 = vrot.lane.b32.xlu0 %v7020, 112
    %v7885 = vpop.permute.xlu0 %7884
    %7886 = vrot.lane.b32.xlu0 %v7027, 112
    %v7887 = vpop.permute.xlu0 %7886
    %7888 = vrot.lane.b32.xlu0 %v7034, 112
    %v7889 = vpop.permute.xlu0 %7888
    %7890 = vrot.lane.b32.xlu0 %v7041, 112
    %v7891 = vpop.permute.xlu0 %7890
    %7892 = vrot.lane.b32.xlu0 %v7055, 112
    %v7893 = vpop.permute.xlu0 %7892
    %7894 = vrot.lane.b32.xlu0 %v7062, 112
    %v7895 = vpop.permute.xlu0 %7894
    %7896 = vrot.lane.b32.xlu0 %v7069, 112
    %v7897 = vpop.permute.xlu0 %7896
    %7898 = vrot.lane.b32.xlu0 %v7076, 112
    %v7899 = vpop.permute.xlu0 %7898
    %7900 = vrot.lane.b32.xlu0 %v7083, 112
    %v7901 = vpop.permute.xlu0 %7900
    %7902 = vrot.lane.b32.xlu0 %v7090, 112
    %v7903 = vpop.permute.xlu0 %7902
    %7904 = vrot.lane.b32.xlu0 %v7097, 112
    %v7905 = vpop.permute.xlu0 %7904
    %vm7920 = vcmask 982912
    %7921 = vst.msk [vmem:[#allocation3] sm:$0xff] %vm7920, %v7879
    %7922 = vst.msk [vmem:[#allocation3 + $0x10] sm:$0xff] %vm7920, %v7881
    %7923 = vst.msk [vmem:[#allocation3 + $0x20] sm:$0xff] %vm7920, %v7883
    %7924 = vst.msk [vmem:[#allocation3 + $0x30] sm:$0xff] %vm7920, %v7885
    %7925 = vst.msk [vmem:[#allocation3 + $0x40] sm:$0xff] %vm7920, %v7887
    %7926 = vst.msk [vmem:[#allocation3 + $0x50] sm:$0xff] %vm7920, %v7889
    %7927 = vst.msk [vmem:[#allocation3 + $0x60] sm:$0xff] %vm7920, %v7891
    %7928 = vst.msk [vmem:[#allocation3 + $0x80] sm:$0xff] %vm7920, %v7893
    %7929 = vst.msk [vmem:[#allocation3 + $0x90] sm:$0xff] %vm7920, %v7895
    %7930 = vst.msk [vmem:[#allocation3 + $0xa0] sm:$0xff] %vm7920, %v7897
    %7931 = vst.msk [vmem:[#allocation3 + $0xb0] sm:$0xff] %vm7920, %v7899
    %7932 = vst.msk [vmem:[#allocation3 + $0xc0] sm:$0xff] %vm7920, %v7901
    %7933 = vst.msk [vmem:[#allocation3 + $0xd0] sm:$0xff] %vm7920, %v7903
    %7934 = vst.msk [vmem:[#allocation3 + $0xe0] sm:$0xff] %vm7920, %v7905
    %7935 = vrot.lane.b32.xlu0 %v7174, 120
    %v7936 = vpop.permute.xlu0 %7935
    %7937 = vrot.lane.b32.xlu0 %v7180, 120
    %v7938 = vpop.permute.xlu0 %7937
    %7939 = vrot.lane.b32.xlu0 %v7186, 120
    %v7940 = vpop.permute.xlu0 %7939
    %7941 = vrot.lane.b32.xlu0 %v7192, 120
    %v7942 = vpop.permute.xlu0 %7941
    %7943 = vrot.lane.b32.xlu0 %v7198, 120
    %v7944 = vpop.permute.xlu0 %7943
    %7945 = vrot.lane.b32.xlu0 %v7204, 120
    %v7946 = vpop.permute.xlu0 %7945
    %7947 = vrot.lane.b32.xlu0 %v7210, 120
    %v7948 = vpop.permute.xlu0 %7947
    %7949 = vrot.lane.b32.xlu0 %v7222, 120
    %v7950 = vpop.permute.xlu0 %7949
    %7951 = vrot.lane.b32.xlu0 %v7228, 120
    %v7952 = vpop.permute.xlu0 %7951
    %7953 = vrot.lane.b32.xlu0 %v7234, 120
    %v7954 = vpop.permute.xlu0 %7953
    %7955 = vrot.lane.b32.xlu0 %v7240, 120
    %v7956 = vpop.permute.xlu0 %7955
    %7957 = vrot.lane.b32.xlu0 %v7246, 120
    %v7958 = vpop.permute.xlu0 %7957
    %7959 = vrot.lane.b32.xlu0 %v7252, 120
    %v7960 = vpop.permute.xlu0 %7959
    %7961 = vrot.lane.b32.xlu0 %v7258, 120
    %v7962 = vpop.permute.xlu0 %7961
    %vm7977 = vcmask 1047488
    %7978 = vst.msk [vmem:[#allocation3] sm:$0x7f] %vm7977, %v7936
    %7979 = vst.msk [vmem:[#allocation3 + $0x10] sm:$0x7f] %vm7977, %v7938
    %7980 = vst.msk [vmem:[#allocation3 + $0x20] sm:$0x7f] %vm7977, %v7940
    %7981 = vst.msk [vmem:[#allocation3 + $0x30] sm:$0x7f] %vm7977, %v7942
    %7982 = vst.msk [vmem:[#allocation3 + $0x40] sm:$0x7f] %vm7977, %v7944
    %7983 = vst.msk [vmem:[#allocation3 + $0x50] sm:$0x7f] %vm7977, %v7946
    %7984 = vst.msk [vmem:[#allocation3 + $0x60] sm:$0x7f] %vm7977, %v7948
    %7985 = vst.msk [vmem:[#allocation3 + $0x80] sm:$0x7f] %vm7977, %v7950
    %7986 = vst.msk [vmem:[#allocation3 + $0x90] sm:$0x7f] %vm7977, %v7952
    %7987 = vst.msk [vmem:[#allocation3 + $0xa0] sm:$0x7f] %vm7977, %v7954
    %7988 = vst.msk [vmem:[#allocation3 + $0xb0] sm:$0x7f] %vm7977, %v7956
    %7989 = vst.msk [vmem:[#allocation3 + $0xc0] sm:$0x7f] %vm7977, %v7958
    %7990 = vst.msk [vmem:[#allocation3 + $0xd0] sm:$0x7f] %vm7977, %v7960
    %7991 = vst.msk [vmem:[#allocation3 + $0xe0] sm:$0x7f] %vm7977, %v7962
    %v7992 = vcombine.high %v80, %v80
    %v7994 = vunpack.c.l.s4 1983009808
    %v7995 = vunpack.c.0.s8 %v7994
    %v7996 = vlaneseq
    %v7997 = vshrl.u32 %v7996, 7
    %v7998 = vsub.s32 %v7995, %v7997
    %v7999 = vrot.slane %v80, %v7998
    %v8001 = vunpack.c.l.s4 1983009808
    %v8002 = vunpack.c.0.s8 %v8001
    %v8003 = vlaneseq
    %v8004 = vshrl.u32 %v8003, 7
    %v8005 = vsub.s32 %v8002, %v8004
    %v8006 = vrot.slane %v7992, %v8005
    %v8007 = vcombine.high %v7999, %v7999
    %v8008 = vcombine.high %v8006, %v8006
    %v8009 = vcombine.high %v81, %v81
    %v8011 = vunpack.c.l.s4 1983009808
    %v8012 = vunpack.c.0.s8 %v8011
    %v8013 = vlaneseq
    %v8014 = vshrl.u32 %v8013, 7
    %v8015 = vsub.s32 %v8012, %v8014
    %v8016 = vrot.slane %v81, %v8015
    %v8018 = vunpack.c.l.s4 1983009808
    %v8019 = vunpack.c.0.s8 %v8018
    %v8020 = vlaneseq
    %v8021 = vshrl.u32 %v8020, 7
    %v8022 = vsub.s32 %v8019, %v8021
    %v8023 = vrot.slane %v8009, %v8022
    %v8024 = vcombine.high %v8016, %v8016
    %v8025 = vcombine.high %v8023, %v8023
    %v8026 = vcombine.high %v82, %v82
    %v8028 = vunpack.c.l.s4 1983009808
    %v8029 = vunpack.c.0.s8 %v8028
    %v8030 = vlaneseq
    %v8031 = vshrl.u32 %v8030, 7
    %v8032 = vsub.s32 %v8029, %v8031
    %v8033 = vrot.slane %v82, %v8032
    %v8035 = vunpack.c.l.s4 1983009808
    %v8036 = vunpack.c.0.s8 %v8035
    %v8037 = vlaneseq
    %v8038 = vshrl.u32 %v8037, 7
    %v8039 = vsub.s32 %v8036, %v8038
    %v8040 = vrot.slane %v8026, %v8039
    %v8041 = vcombine.high %v8033, %v8033
    %v8042 = vcombine.high %v8040, %v8040
    %v8043 = vcombine.high %v83, %v83
    %v8045 = vunpack.c.l.s4 1983009808
    %v8046 = vunpack.c.0.s8 %v8045
    %v8047 = vlaneseq
    %v8048 = vshrl.u32 %v8047, 7
    %v8049 = vsub.s32 %v8046, %v8048
    %v8050 = vrot.slane %v83, %v8049
    %v8052 = vunpack.c.l.s4 1983009808
    %v8053 = vunpack.c.0.s8 %v8052
    %v8054 = vlaneseq
    %v8055 = vshrl.u32 %v8054, 7
    %v8056 = vsub.s32 %v8053, %v8055
    %v8057 = vrot.slane %v8043, %v8056
    %v8058 = vcombine.high %v8050, %v8050
    %v8059 = vcombine.high %v8057, %v8057
    %v8060 = vcombine.high %v84, %v84
    %v8062 = vunpack.c.l.s4 1983009808
    %v8063 = vunpack.c.0.s8 %v8062
    %v8064 = vlaneseq
    %v8065 = vshrl.u32 %v8064, 7
    %v8066 = vsub.s32 %v8063, %v8065
    %v8067 = vrot.slane %v84, %v8066
    %v8069 = vunpack.c.l.s4 1983009808
    %v8070 = vunpack.c.0.s8 %v8069
    %v8071 = vlaneseq
    %v8072 = vshrl.u32 %v8071, 7
    %v8073 = vsub.s32 %v8070, %v8072
    %v8074 = vrot.slane %v8060, %v8073
    %v8075 = vcombine.high %v8067, %v8067
    %v8076 = vcombine.high %v8074, %v8074
    %v8077 = vcombine.high %v85, %v85
    %v8079 = vunpack.c.l.s4 1983009808
    %v8080 = vunpack.c.0.s8 %v8079
    %v8081 = vlaneseq
    %v8082 = vshrl.u32 %v8081, 7
    %v8083 = vsub.s32 %v8080, %v8082
    %v8084 = vrot.slane %v85, %v8083
    %v8086 = vunpack.c.l.s4 1983009808
    %v8087 = vunpack.c.0.s8 %v8086
    %v8088 = vlaneseq
    %v8089 = vshrl.u32 %v8088, 7
    %v8090 = vsub.s32 %v8087, %v8089
    %v8091 = vrot.slane %v8077, %v8090
    %v8092 = vcombine.high %v8084, %v8084
    %v8093 = vcombine.high %v8091, %v8091
    %v8094 = vcombine.high %v86, %v86
    %v8096 = vunpack.c.l.s4 1983009808
    %v8097 = vunpack.c.0.s8 %v8096
    %v8098 = vlaneseq
    %v8099 = vshrl.u32 %v8098, 7
    %v8100 = vsub.s32 %v8097, %v8099
    %v8101 = vrot.slane %v86, %v8100
    %v8103 = vunpack.c.l.s4 1983009808
    %v8104 = vunpack.c.0.s8 %v8103
    %v8105 = vlaneseq
    %v8106 = vshrl.u32 %v8105, 7
    %v8107 = vsub.s32 %v8104, %v8106
    %v8108 = vrot.slane %v8094, %v8107
    %v8109 = vcombine.high %v8101, %v8101
    %v8110 = vcombine.high %v8108, %v8108
    %v8111 = vcombine.high %v87, %v87
    %v8113 = vunpack.c.l.s4 1983009808
    %v8114 = vunpack.c.0.s8 %v8113
    %v8115 = vlaneseq
    %v8116 = vshrl.u32 %v8115, 7
    %v8117 = vsub.s32 %v8114, %v8116
    %v8118 = vrot.slane %v87, %v8117
    %v8120 = vunpack.c.l.s4 1983009808
    %v8121 = vunpack.c.0.s8 %v8120
    %v8122 = vlaneseq
    %v8123 = vshrl.u32 %v8122, 7
    %v8124 = vsub.s32 %v8121, %v8123
    %v8125 = vrot.slane %v8111, %v8124
    %v8126 = vcombine.high %v8118, %v8118
    %v8127 = vcombine.high %v8125, %v8125
    %v8128 = vcombine.high %v88, %v88
    %v8130 = vunpack.c.l.s4 1983009808
    %v8131 = vunpack.c.0.s8 %v8130
    %v8132 = vlaneseq
    %v8133 = vshrl.u32 %v8132, 7
    %v8134 = vsub.s32 %v8131, %v8133
    %v8135 = vrot.slane %v88, %v8134
    %v8137 = vunpack.c.l.s4 1983009808
    %v8138 = vunpack.c.0.s8 %v8137
    %v8139 = vlaneseq
    %v8140 = vshrl.u32 %v8139, 7
    %v8141 = vsub.s32 %v8138, %v8140
    %v8142 = vrot.slane %v8128, %v8141
    %v8143 = vcombine.high %v8135, %v8135
    %v8144 = vcombine.high %v8142, %v8142
    %v8145 = vcombine.high %v89, %v89
    %v8147 = vunpack.c.l.s4 1983009808
    %v8148 = vunpack.c.0.s8 %v8147
    %v8149 = vlaneseq
    %v8150 = vshrl.u32 %v8149, 7
    %v8151 = vsub.s32 %v8148, %v8150
    %v8152 = vrot.slane %v89, %v8151
    %v8154 = vunpack.c.l.s4 1983009808
    %v8155 = vunpack.c.0.s8 %v8154
    %v8156 = vlaneseq
    %v8157 = vshrl.u32 %v8156, 7
    %v8158 = vsub.s32 %v8155, %v8157
    %v8159 = vrot.slane %v8145, %v8158
    %v8160 = vcombine.high %v8152, %v8152
    %v8161 = vcombine.high %v8159, %v8159
    %v8162 = vcombine.high %v90, %v90
    %v8164 = vunpack.c.l.s4 1983009808
    %v8165 = vunpack.c.0.s8 %v8164
    %v8166 = vlaneseq
    %v8167 = vshrl.u32 %v8166, 7
    %v8168 = vsub.s32 %v8165, %v8167
    %v8169 = vrot.slane %v90, %v8168
    %v8171 = vunpack.c.l.s4 1983009808
    %v8172 = vunpack.c.0.s8 %v8171
    %v8173 = vlaneseq
    %v8174 = vshrl.u32 %v8173, 7
    %v8175 = vsub.s32 %v8172, %v8174
    %v8176 = vrot.slane %v8162, %v8175
    %v8177 = vcombine.high %v8169, %v8169
    %v8178 = vcombine.high %v8176, %v8176
    %v8179 = vcombine.high %v91, %v91
    %v8181 = vunpack.c.l.s4 1983009808
    %v8182 = vunpack.c.0.s8 %v8181
    %v8183 = vlaneseq
    %v8184 = vshrl.u32 %v8183, 7
    %v8185 = vsub.s32 %v8182, %v8184
    %v8186 = vrot.slane %v91, %v8185
    %v8188 = vunpack.c.l.s4 1983009808
    %v8189 = vunpack.c.0.s8 %v8188
    %v8190 = vlaneseq
    %v8191 = vshrl.u32 %v8190, 7
    %v8192 = vsub.s32 %v8189, %v8191
    %v8193 = vrot.slane %v8179, %v8192
    %v8194 = vcombine.high %v8186, %v8186
    %v8195 = vcombine.high %v8193, %v8193
    %v8196 = vcombine.high %v92, %v92
    %v8198 = vunpack.c.l.s4 1983009808
    %v8199 = vunpack.c.0.s8 %v8198
    %v8200 = vlaneseq
    %v8201 = vshrl.u32 %v8200, 7
    %v8202 = vsub.s32 %v8199, %v8201
    %v8203 = vrot.slane %v92, %v8202
    %v8205 = vunpack.c.l.s4 1983009808
    %v8206 = vunpack.c.0.s8 %v8205
    %v8207 = vlaneseq
    %v8208 = vshrl.u32 %v8207, 7
    %v8209 = vsub.s32 %v8206, %v8208
    %v8210 = vrot.slane %v8196, %v8209
    %v8211 = vcombine.high %v8203, %v8203
    %v8212 = vcombine.high %v8210, %v8210
    %v8213 = vcombine.high %v93, %v93
    %v8215 = vunpack.c.l.s4 1983009808
    %v8216 = vunpack.c.0.s8 %v8215
    %v8217 = vlaneseq
    %v8218 = vshrl.u32 %v8217, 7
    %v8219 = vsub.s32 %v8216, %v8218
    %v8220 = vrot.slane %v93, %v8219
    %v8222 = vunpack.c.l.s4 1983009808
    %v8223 = vunpack.c.0.s8 %v8222
    %v8224 = vlaneseq
    %v8225 = vshrl.u32 %v8224, 7
    %v8226 = vsub.s32 %v8223, %v8225
    %v8227 = vrot.slane %v8213, %v8226
    %v8228 = vcombine.high %v8220, %v8220
    %v8229 = vcombine.high %v8227, %v8227
    %v8230 = vcombine.high %v94, %v94
    %v8232 = vunpack.c.l.s4 1983009808
    %v8233 = vunpack.c.0.s8 %v8232
    %v8234 = vlaneseq
    %v8235 = vshrl.u32 %v8234, 7
    %v8236 = vsub.s32 %v8233, %v8235
    %v8237 = vrot.slane %v94, %v8236
    %v8239 = vunpack.c.l.s4 1983009808
    %v8240 = vunpack.c.0.s8 %v8239
    %v8241 = vlaneseq
    %v8242 = vshrl.u32 %v8241, 7
    %v8243 = vsub.s32 %v8240, %v8242
    %v8244 = vrot.slane %v8230, %v8243
    %v8245 = vcombine.high %v8237, %v8237
    %v8246 = vcombine.high %v8244, %v8244
    %v8247 = vcombine.high %v95, %v95
    %v8249 = vunpack.c.l.s4 1983009808
    %v8250 = vunpack.c.0.s8 %v8249
    %v8251 = vlaneseq
    %v8252 = vshrl.u32 %v8251, 7
    %v8253 = vsub.s32 %v8250, %v8252
    %v8254 = vrot.slane %v95, %v8253
    %v8256 = vunpack.c.l.s4 1983009808
    %v8257 = vunpack.c.0.s8 %v8256
    %v8258 = vlaneseq
    %v8259 = vshrl.u32 %v8258, 7
    %v8260 = vsub.s32 %v8257, %v8259
    %v8261 = vrot.slane %v8247, %v8260
    %v8262 = vcombine.high %v8254, %v8254
    %v8263 = vcombine.high %v8261, %v8261
    %v8264 = vcombine.high %v96, %v96
    %v8266 = vunpack.c.l.s4 1983009808
    %v8267 = vunpack.c.0.s8 %v8266
    %v8268 = vlaneseq
    %v8269 = vshrl.u32 %v8268, 7
    %v8270 = vsub.s32 %v8267, %v8269
    %v8271 = vrot.slane %v96, %v8270
    %v8273 = vunpack.c.l.s4 1983009808
    %v8274 = vunpack.c.0.s8 %v8273
    %v8275 = vlaneseq
    %v8276 = vshrl.u32 %v8275, 7
    %v8277 = vsub.s32 %v8274, %v8276
    %v8278 = vrot.slane %v8264, %v8277
    %v8279 = vcombine.high %v8271, %v8271
    %v8280 = vcombine.high %v8278, %v8278
    %v8281 = vcombine.high %v97, %v97
    %v8283 = vunpack.c.l.s4 1983009808
    %v8284 = vunpack.c.0.s8 %v8283
    %v8285 = vlaneseq
    %v8286 = vshrl.u32 %v8285, 7
    %v8287 = vsub.s32 %v8284, %v8286
    %v8288 = vrot.slane %v97, %v8287
    %v8290 = vunpack.c.l.s4 1983009808
    %v8291 = vunpack.c.0.s8 %v8290
    %v8292 = vlaneseq
    %v8293 = vshrl.u32 %v8292, 7
    %v8294 = vsub.s32 %v8291, %v8293
    %v8295 = vrot.slane %v8281, %v8294
    %v8296 = vcombine.high %v8288, %v8288
    %v8297 = vcombine.high %v8295, %v8295
    %v8298 = vcombine.high %v98, %v98
    %v8300 = vunpack.c.l.s4 1983009808
    %v8301 = vunpack.c.0.s8 %v8300
    %v8302 = vlaneseq
    %v8303 = vshrl.u32 %v8302, 7
    %v8304 = vsub.s32 %v8301, %v8303
    %v8305 = vrot.slane %v98, %v8304
    %v8307 = vunpack.c.l.s4 1983009808
    %v8308 = vunpack.c.0.s8 %v8307
    %v8309 = vlaneseq
    %v8310 = vshrl.u32 %v8309, 7
    %v8311 = vsub.s32 %v8308, %v8310
    %v8312 = vrot.slane %v8298, %v8311
    %v8313 = vcombine.high %v8305, %v8305
    %v8314 = vcombine.high %v8312, %v8312
    %v8315 = vcombine.high %v99, %v99
    %v8317 = vunpack.c.l.s4 1983009808
    %v8318 = vunpack.c.0.s8 %v8317
    %v8319 = vlaneseq
    %v8320 = vshrl.u32 %v8319, 7
    %v8321 = vsub.s32 %v8318, %v8320
    %v8322 = vrot.slane %v99, %v8321
    %v8324 = vunpack.c.l.s4 1983009808
    %v8325 = vunpack.c.0.s8 %v8324
    %v8326 = vlaneseq
    %v8327 = vshrl.u32 %v8326, 7
    %v8328 = vsub.s32 %v8325, %v8327
    %v8329 = vrot.slane %v8315, %v8328
    %v8330 = vcombine.high %v8322, %v8322
    %v8331 = vcombine.high %v8329, %v8329
    %v8332 = vcombine.high %v100, %v100
    %v8334 = vunpack.c.l.s4 1983009808
    %v8335 = vunpack.c.0.s8 %v8334
    %v8336 = vlaneseq
    %v8337 = vshrl.u32 %v8336, 7
    %v8338 = vsub.s32 %v8335, %v8337
    %v8339 = vrot.slane %v100, %v8338
    %v8341 = vunpack.c.l.s4 1983009808
    %v8342 = vunpack.c.0.s8 %v8341
    %v8343 = vlaneseq
    %v8344 = vshrl.u32 %v8343, 7
    %v8345 = vsub.s32 %v8342, %v8344
    %v8346 = vrot.slane %v8332, %v8345
    %v8347 = vcombine.high %v8339, %v8339
    %v8348 = vcombine.high %v8346, %v8346
    %v8349 = vcombine.high %v101, %v101
    %v8351 = vunpack.c.l.s4 1983009808
    %v8352 = vunpack.c.0.s8 %v8351
    %v8353 = vlaneseq
    %v8354 = vshrl.u32 %v8353, 7
    %v8355 = vsub.s32 %v8352, %v8354
    %v8356 = vrot.slane %v101, %v8355
    %v8358 = vunpack.c.l.s4 1983009808
    %v8359 = vunpack.c.0.s8 %v8358
    %v8360 = vlaneseq
    %v8361 = vshrl.u32 %v8360, 7
    %v8362 = vsub.s32 %v8359, %v8361
    %v8363 = vrot.slane %v8349, %v8362
    %v8364 = vcombine.high %v8356, %v8356
    %v8365 = vcombine.high %v8363, %v8363
    %v8366 = vcombine.high %v102, %v102
    %v8368 = vunpack.c.l.s4 1983009808
    %v8369 = vunpack.c.0.s8 %v8368
    %v8370 = vlaneseq
    %v8371 = vshrl.u32 %v8370, 7
    %v8372 = vsub.s32 %v8369, %v8371
    %v8373 = vrot.slane %v102, %v8372
    %v8375 = vunpack.c.l.s4 1983009808
    %v8376 = vunpack.c.0.s8 %v8375
    %v8377 = vlaneseq
    %v8378 = vshrl.u32 %v8377, 7
    %v8379 = vsub.s32 %v8376, %v8378
    %v8380 = vrot.slane %v8366, %v8379
    %v8381 = vcombine.high %v8373, %v8373
    %v8382 = vcombine.high %v8380, %v8380
    %v8383 = vcombine.high %v103, %v103
    %v8385 = vunpack.c.l.s4 1983009808
    %v8386 = vunpack.c.0.s8 %v8385
    %v8387 = vlaneseq
    %v8388 = vshrl.u32 %v8387, 7
    %v8389 = vsub.s32 %v8386, %v8388
    %v8390 = vrot.slane %v103, %v8389
    %v8392 = vunpack.c.l.s4 1983009808
    %v8393 = vunpack.c.0.s8 %v8392
    %v8394 = vlaneseq
    %v8395 = vshrl.u32 %v8394, 7
    %v8396 = vsub.s32 %v8393, %v8395
    %v8397 = vrot.slane %v8383, %v8396
    %v8398 = vcombine.high %v8390, %v8390
    %v8399 = vcombine.high %v8397, %v8397
    %v8400 = vcombine.high %v104, %v104
    %v8402 = vunpack.c.l.s4 1983009808
    %v8403 = vunpack.c.0.s8 %v8402
    %v8404 = vlaneseq
    %v8405 = vshrl.u32 %v8404, 7
    %v8406 = vsub.s32 %v8403, %v8405
    %v8407 = vrot.slane %v104, %v8406
    %v8409 = vunpack.c.l.s4 1983009808
    %v8410 = vunpack.c.0.s8 %v8409
    %v8411 = vlaneseq
    %v8412 = vshrl.u32 %v8411, 7
    %v8413 = vsub.s32 %v8410, %v8412
    %v8414 = vrot.slane %v8400, %v8413
    %v8415 = vcombine.high %v8407, %v8407
    %v8416 = vcombine.high %v8414, %v8414
    %v8417 = vcombine.high %v105, %v105
    %v8419 = vunpack.c.l.s4 1983009808
    %v8420 = vunpack.c.0.s8 %v8419
    %v8421 = vlaneseq
    %v8422 = vshrl.u32 %v8421, 7
    %v8423 = vsub.s32 %v8420, %v8422
    %v8424 = vrot.slane %v105, %v8423
    %v8426 = vunpack.c.l.s4 1983009808
    %v8427 = vunpack.c.0.s8 %v8426
    %v8428 = vlaneseq
    %v8429 = vshrl.u32 %v8428, 7
    %v8430 = vsub.s32 %v8427, %v8429
    %v8431 = vrot.slane %v8417, %v8430
    %v8432 = vcombine.high %v8424, %v8424
    %v8433 = vcombine.high %v8431, %v8431
    %v8434 = vcombine.high %v106, %v106
    %v8436 = vunpack.c.l.s4 1983009808
    %v8437 = vunpack.c.0.s8 %v8436
    %v8438 = vlaneseq
    %v8439 = vshrl.u32 %v8438, 7
    %v8440 = vsub.s32 %v8437, %v8439
    %v8441 = vrot.slane %v106, %v8440
    %v8443 = vunpack.c.l.s4 1983009808
    %v8444 = vunpack.c.0.s8 %v8443
    %v8445 = vlaneseq
    %v8446 = vshrl.u32 %v8445, 7
    %v8447 = vsub.s32 %v8444, %v8446
    %v8448 = vrot.slane %v8434, %v8447
    %v8449 = vcombine.high %v8441, %v8441
    %v8450 = vcombine.high %v8448, %v8448
    %v8451 = vcombine.high %v107, %v107
    %v8453 = vunpack.c.l.s4 1983009808
    %v8454 = vunpack.c.0.s8 %v8453
    %v8455 = vlaneseq
    %v8456 = vshrl.u32 %v8455, 7
    %v8457 = vsub.s32 %v8454, %v8456
    %v8458 = vrot.slane %v107, %v8457
    %v8460 = vunpack.c.l.s4 1983009808
    %v8461 = vunpack.c.0.s8 %v8460
    %v8462 = vlaneseq
    %v8463 = vshrl.u32 %v8462, 7
    %v8464 = vsub.s32 %v8461, %v8463
    %v8465 = vrot.slane %v8451, %v8464
    %v8466 = vcombine.high %v8458, %v8458
    %v8467 = vcombine.high %v8465, %v8465
    %v8468 = vcombine.high %v108, %v108
    %v8470 = vunpack.c.l.s4 1983009808
    %v8471 = vunpack.c.0.s8 %v8470
    %v8472 = vlaneseq
    %v8473 = vshrl.u32 %v8472, 7
    %v8474 = vsub.s32 %v8471, %v8473
    %v8475 = vrot.slane %v108, %v8474
    %v8477 = vunpack.c.l.s4 1983009808
    %v8478 = vunpack.c.0.s8 %v8477
    %v8479 = vlaneseq
    %v8480 = vshrl.u32 %v8479, 7
    %v8481 = vsub.s32 %v8478, %v8480
    %v8482 = vrot.slane %v8468, %v8481
    %v8483 = vcombine.high %v8475, %v8475
    %v8484 = vcombine.high %v8482, %v8482
    %v8485 = vcombine.high %v109, %v109
    %v8487 = vunpack.c.l.s4 1983009808
    %v8488 = vunpack.c.0.s8 %v8487
    %v8489 = vlaneseq
    %v8490 = vshrl.u32 %v8489, 7
    %v8491 = vsub.s32 %v8488, %v8490
    %v8492 = vrot.slane %v109, %v8491
    %v8494 = vunpack.c.l.s4 1983009808
    %v8495 = vunpack.c.0.s8 %v8494
    %v8496 = vlaneseq
    %v8497 = vshrl.u32 %v8496, 7
    %v8498 = vsub.s32 %v8495, %v8497
    %v8499 = vrot.slane %v8485, %v8498
    %v8500 = vcombine.high %v8492, %v8492
    %v8501 = vcombine.high %v8499, %v8499
    %v8502 = vcombine.high %v110, %v110
    %v8504 = vunpack.c.l.s4 1983009808
    %v8505 = vunpack.c.0.s8 %v8504
    %v8506 = vlaneseq
    %v8507 = vshrl.u32 %v8506, 7
    %v8508 = vsub.s32 %v8505, %v8507
    %v8509 = vrot.slane %v110, %v8508
    %v8511 = vunpack.c.l.s4 1983009808
    %v8512 = vunpack.c.0.s8 %v8511
    %v8513 = vlaneseq
    %v8514 = vshrl.u32 %v8513, 7
    %v8515 = vsub.s32 %v8512, %v8514
    %v8516 = vrot.slane %v8502, %v8515
    %v8517 = vcombine.high %v8509, %v8509
    %v8518 = vcombine.high %v8516, %v8516
    %v8519 = vcombine.high %v111, %v111
    %v8521 = vunpack.c.l.s4 1983009808
    %v8522 = vunpack.c.0.s8 %v8521
    %v8523 = vlaneseq
    %v8524 = vshrl.u32 %v8523, 7
    %v8525 = vsub.s32 %v8522, %v8524
    %v8526 = vrot.slane %v111, %v8525
    %v8528 = vunpack.c.l.s4 1983009808
    %v8529 = vunpack.c.0.s8 %v8528
    %v8530 = vlaneseq
    %v8531 = vshrl.u32 %v8530, 7
    %v8532 = vsub.s32 %v8529, %v8531
    %v8533 = vrot.slane %v8519, %v8532
    %v8534 = vcombine.high %v8526, %v8526
    %v8535 = vcombine.high %v8533, %v8533
    %v8536 = vcombine.high %v112, %v112
    %v8538 = vunpack.c.l.s4 1983009808
    %v8539 = vunpack.c.0.s8 %v8538
    %v8540 = vlaneseq
    %v8541 = vshrl.u32 %v8540, 7
    %v8542 = vsub.s32 %v8539, %v8541
    %v8543 = vrot.slane %v112, %v8542
    %v8545 = vunpack.c.l.s4 1983009808
    %v8546 = vunpack.c.0.s8 %v8545
    %v8547 = vlaneseq
    %v8548 = vshrl.u32 %v8547, 7
    %v8549 = vsub.s32 %v8546, %v8548
    %v8550 = vrot.slane %v8536, %v8549
    %v8551 = vcombine.high %v8543, %v8543
    %v8552 = vcombine.high %v8550, %v8550
    %v8553 = vcombine.high %v113, %v113
    %v8555 = vunpack.c.l.s4 1983009808
    %v8556 = vunpack.c.0.s8 %v8555
    %v8557 = vlaneseq
    %v8558 = vshrl.u32 %v8557, 7
    %v8559 = vsub.s32 %v8556, %v8558
    %v8560 = vrot.slane %v113, %v8559
    %v8562 = vunpack.c.l.s4 1983009808
    %v8563 = vunpack.c.0.s8 %v8562
    %v8564 = vlaneseq
    %v8565 = vshrl.u32 %v8564, 7
    %v8566 = vsub.s32 %v8563, %v8565
    %v8567 = vrot.slane %v8553, %v8566
    %v8568 = vcombine.high %v8560, %v8560
    %v8569 = vcombine.high %v8567, %v8567
    %v8570 = vcombine.high %v114, %v114
    %v8572 = vunpack.c.l.s4 1983009808
    %v8573 = vunpack.c.0.s8 %v8572
    %v8574 = vlaneseq
    %v8575 = vshrl.u32 %v8574, 7
    %v8576 = vsub.s32 %v8573, %v8575
    %v8577 = vrot.slane %v114, %v8576
    %v8579 = vunpack.c.l.s4 1983009808
    %v8580 = vunpack.c.0.s8 %v8579
    %v8581 = vlaneseq
    %v8582 = vshrl.u32 %v8581, 7
    %v8583 = vsub.s32 %v8580, %v8582
    %v8584 = vrot.slane %v8570, %v8583
    %v8585 = vcombine.high %v8577, %v8577
    %v8586 = vcombine.high %v8584, %v8584
    %v8587 = vcombine.high %v115, %v115
    %v8589 = vunpack.c.l.s4 1983009808
    %v8590 = vunpack.c.0.s8 %v8589
    %v8591 = vlaneseq
    %v8592 = vshrl.u32 %v8591, 7
    %v8593 = vsub.s32 %v8590, %v8592
    %v8594 = vrot.slane %v115, %v8593
    %v8596 = vunpack.c.l.s4 1983009808
    %v8597 = vunpack.c.0.s8 %v8596
    %v8598 = vlaneseq
    %v8599 = vshrl.u32 %v8598, 7
    %v8600 = vsub.s32 %v8597, %v8599
    %v8601 = vrot.slane %v8587, %v8600
    %v8602 = vcombine.high %v8594, %v8594
    %v8603 = vcombine.high %v8601, %v8601
    %v8604 = vcombine.high %v116, %v116
    %v8606 = vunpack.c.l.s4 1983009808
    %v8607 = vunpack.c.0.s8 %v8606
    %v8608 = vlaneseq
    %v8609 = vshrl.u32 %v8608, 7
    %v8610 = vsub.s32 %v8607, %v8609
    %v8611 = vrot.slane %v116, %v8610
    %v8613 = vunpack.c.l.s4 1983009808
    %v8614 = vunpack.c.0.s8 %v8613
    %v8615 = vlaneseq
    %v8616 = vshrl.u32 %v8615, 7
    %v8617 = vsub.s32 %v8614, %v8616
    %v8618 = vrot.slane %v8604, %v8617
    %v8619 = vcombine.high %v8611, %v8611
    %v8620 = vcombine.high %v8618, %v8618
    %v8621 = vcombine.high %v117, %v117
    %v8623 = vunpack.c.l.s4 1983009808
    %v8624 = vunpack.c.0.s8 %v8623
    %v8625 = vlaneseq
    %v8626 = vshrl.u32 %v8625, 7
    %v8627 = vsub.s32 %v8624, %v8626
    %v8628 = vrot.slane %v117, %v8627
    %v8630 = vunpack.c.l.s4 1983009808
    %v8631 = vunpack.c.0.s8 %v8630
    %v8632 = vlaneseq
    %v8633 = vshrl.u32 %v8632, 7
    %v8634 = vsub.s32 %v8631, %v8633
    %v8635 = vrot.slane %v8621, %v8634
    %v8636 = vcombine.high %v8628, %v8628
    %v8637 = vcombine.high %v8635, %v8635
    %v8638 = vcombine.high %v118, %v118
    %v8640 = vunpack.c.l.s4 1983009808
    %v8641 = vunpack.c.0.s8 %v8640
    %v8642 = vlaneseq
    %v8643 = vshrl.u32 %v8642, 7
    %v8644 = vsub.s32 %v8641, %v8643
    %v8645 = vrot.slane %v118, %v8644
    %v8647 = vunpack.c.l.s4 1983009808
    %v8648 = vunpack.c.0.s8 %v8647
    %v8649 = vlaneseq
    %v8650 = vshrl.u32 %v8649, 7
    %v8651 = vsub.s32 %v8648, %v8650
    %v8652 = vrot.slane %v8638, %v8651
    %v8653 = vcombine.high %v8645, %v8645
    %v8654 = vcombine.high %v8652, %v8652
    %v8655 = vcombine.high %v119, %v119
    %v8657 = vunpack.c.l.s4 1983009808
    %v8658 = vunpack.c.0.s8 %v8657
    %v8659 = vlaneseq
    %v8660 = vshrl.u32 %v8659, 7
    %v8661 = vsub.s32 %v8658, %v8660
    %v8662 = vrot.slane %v119, %v8661
    %v8664 = vunpack.c.l.s4 1983009808
    %v8665 = vunpack.c.0.s8 %v8664
    %v8666 = vlaneseq
    %v8667 = vshrl.u32 %v8666, 7
    %v8668 = vsub.s32 %v8665, %v8667
    %v8669 = vrot.slane %v8655, %v8668
    %v8670 = vcombine.high %v8662, %v8662
    %v8671 = vcombine.high %v8669, %v8669
    %v8672 = vcombine.high %v120, %v120
    %v8674 = vunpack.c.l.s4 1983009808
    %v8675 = vunpack.c.0.s8 %v8674
    %v8676 = vlaneseq
    %v8677 = vshrl.u32 %v8676, 7
    %v8678 = vsub.s32 %v8675, %v8677
    %v8679 = vrot.slane %v120, %v8678
    %v8681 = vunpack.c.l.s4 1983009808
    %v8682 = vunpack.c.0.s8 %v8681
    %v8683 = vlaneseq
    %v8684 = vshrl.u32 %v8683, 7
    %v8685 = vsub.s32 %v8682, %v8684
    %v8686 = vrot.slane %v8672, %v8685
    %v8687 = vcombine.high %v8679, %v8679
    %v8688 = vcombine.high %v8686, %v8686
    %v8689 = vcombine.high %v121, %v121
    %v8691 = vunpack.c.l.s4 1983009808
    %v8692 = vunpack.c.0.s8 %v8691
    %v8693 = vlaneseq
    %v8694 = vshrl.u32 %v8693, 7
    %v8695 = vsub.s32 %v8692, %v8694
    %v8696 = vrot.slane %v121, %v8695
    %v8698 = vunpack.c.l.s4 1983009808
    %v8699 = vunpack.c.0.s8 %v8698
    %v8700 = vlaneseq
    %v8701 = vshrl.u32 %v8700, 7
    %v8702 = vsub.s32 %v8699, %v8701
    %v8703 = vrot.slane %v8689, %v8702
    %v8704 = vcombine.high %v8696, %v8696
    %v8705 = vcombine.high %v8703, %v8703
    %v8706 = vcombine.high %v122, %v122
    %v8708 = vunpack.c.l.s4 1983009808
    %v8709 = vunpack.c.0.s8 %v8708
    %v8710 = vlaneseq
    %v8711 = vshrl.u32 %v8710, 7
    %v8712 = vsub.s32 %v8709, %v8711
    %v8713 = vrot.slane %v122, %v8712
    %v8715 = vunpack.c.l.s4 1983009808
    %v8716 = vunpack.c.0.s8 %v8715
    %v8717 = vlaneseq
    %v8718 = vshrl.u32 %v8717, 7
    %v8719 = vsub.s32 %v8716, %v8718
    %v8720 = vrot.slane %v8706, %v8719
    %v8721 = vcombine.high %v8713, %v8713
    %v8722 = vcombine.high %v8720, %v8720
    %v8723 = vcombine.high %v123, %v123
    %v8725 = vunpack.c.l.s4 1983009808
    %v8726 = vunpack.c.0.s8 %v8725
    %v8727 = vlaneseq
    %v8728 = vshrl.u32 %v8727, 7
    %v8729 = vsub.s32 %v8726, %v8728
    %v8730 = vrot.slane %v123, %v8729
    %v8732 = vunpack.c.l.s4 1983009808
    %v8733 = vunpack.c.0.s8 %v8732
    %v8734 = vlaneseq
    %v8735 = vshrl.u32 %v8734, 7
    %v8736 = vsub.s32 %v8733, %v8735
    %v8737 = vrot.slane %v8723, %v8736
    %v8738 = vcombine.high %v8730, %v8730
    %v8739 = vcombine.high %v8737, %v8737
    %v8740 = vcombine.high %v124, %v124
    %v8742 = vunpack.c.l.s4 1983009808
    %v8743 = vunpack.c.0.s8 %v8742
    %v8744 = vlaneseq
    %v8745 = vshrl.u32 %v8744, 7
    %v8746 = vsub.s32 %v8743, %v8745
    %v8747 = vrot.slane %v124, %v8746
    %v8749 = vunpack.c.l.s4 1983009808
    %v8750 = vunpack.c.0.s8 %v8749
    %v8751 = vlaneseq
    %v8752 = vshrl.u32 %v8751, 7
    %v8753 = vsub.s32 %v8750, %v8752
    %v8754 = vrot.slane %v8740, %v8753
    %v8755 = vcombine.high %v8747, %v8747
    %v8756 = vcombine.high %v8754, %v8754
    %v8757 = vcombine.high %v125, %v125
    %v8759 = vunpack.c.l.s4 1983009808
    %v8760 = vunpack.c.0.s8 %v8759
    %v8761 = vlaneseq
    %v8762 = vshrl.u32 %v8761, 7
    %v8763 = vsub.s32 %v8760, %v8762
    %v8764 = vrot.slane %v125, %v8763
    %v8766 = vunpack.c.l.s4 1983009808
    %v8767 = vunpack.c.0.s8 %v8766
    %v8768 = vlaneseq
    %v8769 = vshrl.u32 %v8768, 7
    %v8770 = vsub.s32 %v8767, %v8769
    %v8771 = vrot.slane %v8757, %v8770
    %v8772 = vcombine.high %v8764, %v8764
    %v8773 = vcombine.high %v8771, %v8771
    %v8774 = vcombine.high %v126, %v126
    %v8776 = vunpack.c.l.s4 1983009808
    %v8777 = vunpack.c.0.s8 %v8776
    %v8778 = vlaneseq
    %v8779 = vshrl.u32 %v8778, 7
    %v8780 = vsub.s32 %v8777, %v8779
    %v8781 = vrot.slane %v126, %v8780
    %v8783 = vunpack.c.l.s4 1983009808
    %v8784 = vunpack.c.0.s8 %v8783
    %v8785 = vlaneseq
    %v8786 = vshrl.u32 %v8785, 7
    %v8787 = vsub.s32 %v8784, %v8786
    %v8788 = vrot.slane %v8774, %v8787
    %v8789 = vcombine.high %v8781, %v8781
    %v8790 = vcombine.high %v8788, %v8788
    %v8791 = vcombine.high %v127, %v127
    %v8793 = vunpack.c.l.s4 1983009808
    %v8794 = vunpack.c.0.s8 %v8793
    %v8795 = vlaneseq
    %v8796 = vshrl.u32 %v8795, 7
    %v8797 = vsub.s32 %v8794, %v8796
    %v8798 = vrot.slane %v127, %v8797
    %v8800 = vunpack.c.l.s4 1983009808
    %v8801 = vunpack.c.0.s8 %v8800
    %v8802 = vlaneseq
    %v8803 = vshrl.u32 %v8802, 7
    %v8804 = vsub.s32 %v8801, %v8803
    %v8805 = vrot.slane %v8791, %v8804
    %v8806 = vcombine.high %v8798, %v8798
    %v8807 = vcombine.high %v8805, %v8805
    %v8808 = vcombine.high %v128, %v128
    %v8810 = vunpack.c.l.s4 1983009808
    %v8811 = vunpack.c.0.s8 %v8810
    %v8812 = vlaneseq
    %v8813 = vshrl.u32 %v8812, 7
    %v8814 = vsub.s32 %v8811, %v8813
    %v8815 = vrot.slane %v128, %v8814
    %v8817 = vunpack.c.l.s4 1983009808
    %v8818 = vunpack.c.0.s8 %v8817
    %v8819 = vlaneseq
    %v8820 = vshrl.u32 %v8819, 7
    %v8821 = vsub.s32 %v8818, %v8820
    %v8822 = vrot.slane %v8808, %v8821
    %v8823 = vcombine.high %v8815, %v8815
    %v8824 = vcombine.high %v8822, %v8822
    %v8825 = vcombine.high %v129, %v129
    %v8827 = vunpack.c.l.s4 1983009808
    %v8828 = vunpack.c.0.s8 %v8827
    %v8829 = vlaneseq
    %v8830 = vshrl.u32 %v8829, 7
    %v8831 = vsub.s32 %v8828, %v8830
    %v8832 = vrot.slane %v129, %v8831
    %v8834 = vunpack.c.l.s4 1983009808
    %v8835 = vunpack.c.0.s8 %v8834
    %v8836 = vlaneseq
    %v8837 = vshrl.u32 %v8836, 7
    %v8838 = vsub.s32 %v8835, %v8837
    %v8839 = vrot.slane %v8825, %v8838
    %v8840 = vcombine.high %v8832, %v8832
    %v8841 = vcombine.high %v8839, %v8839
    %v8842 = vcombine.high %v130, %v130
    %v8844 = vunpack.c.l.s4 1983009808
    %v8845 = vunpack.c.0.s8 %v8844
    %v8846 = vlaneseq
    %v8847 = vshrl.u32 %v8846, 7
    %v8848 = vsub.s32 %v8845, %v8847
    %v8849 = vrot.slane %v130, %v8848
    %v8851 = vunpack.c.l.s4 1983009808
    %v8852 = vunpack.c.0.s8 %v8851
    %v8853 = vlaneseq
    %v8854 = vshrl.u32 %v8853, 7
    %v8855 = vsub.s32 %v8852, %v8854
    %v8856 = vrot.slane %v8842, %v8855
    %v8857 = vcombine.high %v8849, %v8849
    %v8858 = vcombine.high %v8856, %v8856
    %v8859 = vcombine.high %v131, %v131
    %v8861 = vunpack.c.l.s4 1983009808
    %v8862 = vunpack.c.0.s8 %v8861
    %v8863 = vlaneseq
    %v8864 = vshrl.u32 %v8863, 7
    %v8865 = vsub.s32 %v8862, %v8864
    %v8866 = vrot.slane %v131, %v8865
    %v8868 = vunpack.c.l.s4 1983009808
    %v8869 = vunpack.c.0.s8 %v8868
    %v8870 = vlaneseq
    %v8871 = vshrl.u32 %v8870, 7
    %v8872 = vsub.s32 %v8869, %v8871
    %v8873 = vrot.slane %v8859, %v8872
    %v8874 = vcombine.high %v8866, %v8866
    %v8875 = vcombine.high %v8873, %v8873
    %v8876 = vcombine.high %v132, %v132
    %v8878 = vunpack.c.l.s4 1983009808
    %v8879 = vunpack.c.0.s8 %v8878
    %v8880 = vlaneseq
    %v8881 = vshrl.u32 %v8880, 7
    %v8882 = vsub.s32 %v8879, %v8881
    %v8883 = vrot.slane %v132, %v8882
    %v8885 = vunpack.c.l.s4 1983009808
    %v8886 = vunpack.c.0.s8 %v8885
    %v8887 = vlaneseq
    %v8888 = vshrl.u32 %v8887, 7
    %v8889 = vsub.s32 %v8886, %v8888
    %v8890 = vrot.slane %v8876, %v8889
    %v8891 = vcombine.high %v8883, %v8883
    %v8892 = vcombine.high %v8890, %v8890
    %v8893 = vcombine.high %v133, %v133
    %v8895 = vunpack.c.l.s4 1983009808
    %v8896 = vunpack.c.0.s8 %v8895
    %v8897 = vlaneseq
    %v8898 = vshrl.u32 %v8897, 7
    %v8899 = vsub.s32 %v8896, %v8898
    %v8900 = vrot.slane %v133, %v8899
    %v8902 = vunpack.c.l.s4 1983009808
    %v8903 = vunpack.c.0.s8 %v8902
    %v8904 = vlaneseq
    %v8905 = vshrl.u32 %v8904, 7
    %v8906 = vsub.s32 %v8903, %v8905
    %v8907 = vrot.slane %v8893, %v8906
    %v8908 = vcombine.high %v8900, %v8900
    %v8909 = vcombine.high %v8907, %v8907
    %v8910 = vcombine.high %v134, %v134
    %v8912 = vunpack.c.l.s4 1983009808
    %v8913 = vunpack.c.0.s8 %v8912
    %v8914 = vlaneseq
    %v8915 = vshrl.u32 %v8914, 7
    %v8916 = vsub.s32 %v8913, %v8915
    %v8917 = vrot.slane %v134, %v8916
    %v8919 = vunpack.c.l.s4 1983009808
    %v8920 = vunpack.c.0.s8 %v8919
    %v8921 = vlaneseq
    %v8922 = vshrl.u32 %v8921, 7
    %v8923 = vsub.s32 %v8920, %v8922
    %v8924 = vrot.slane %v8910, %v8923
    %v8925 = vcombine.high %v8917, %v8917
    %v8926 = vcombine.high %v8924, %v8924
    %v8927 = vcombine.high %v135, %v135
    %v8929 = vunpack.c.l.s4 1983009808
    %v8930 = vunpack.c.0.s8 %v8929
    %v8931 = vlaneseq
    %v8932 = vshrl.u32 %v8931, 7
    %v8933 = vsub.s32 %v8930, %v8932
    %v8934 = vrot.slane %v135, %v8933
    %v8936 = vunpack.c.l.s4 1983009808
    %v8937 = vunpack.c.0.s8 %v8936
    %v8938 = vlaneseq
    %v8939 = vshrl.u32 %v8938, 7
    %v8940 = vsub.s32 %v8937, %v8939
    %v8941 = vrot.slane %v8927, %v8940
    %v8942 = vcombine.high %v8934, %v8934
    %v8943 = vcombine.high %v8941, %v8941
    %v8944 = vcombine.high %v136, %v136
    %v8946 = vunpack.c.l.s4 1983009808
    %v8947 = vunpack.c.0.s8 %v8946
    %v8948 = vlaneseq
    %v8949 = vshrl.u32 %v8948, 7
    %v8950 = vsub.s32 %v8947, %v8949
    %v8951 = vrot.slane %v136, %v8950
    %v8953 = vunpack.c.l.s4 1983009808
    %v8954 = vunpack.c.0.s8 %v8953
    %v8955 = vlaneseq
    %v8956 = vshrl.u32 %v8955, 7
    %v8957 = vsub.s32 %v8954, %v8956
    %v8958 = vrot.slane %v8944, %v8957
    %v8959 = vcombine.high %v8951, %v8951
    %v8960 = vcombine.high %v8958, %v8958
    %v8961 = vcombine.high %v137, %v137
    %v8963 = vunpack.c.l.s4 1983009808
    %v8964 = vunpack.c.0.s8 %v8963
    %v8965 = vlaneseq
    %v8966 = vshrl.u32 %v8965, 7
    %v8967 = vsub.s32 %v8964, %v8966
    %v8968 = vrot.slane %v137, %v8967
    %v8970 = vunpack.c.l.s4 1983009808
    %v8971 = vunpack.c.0.s8 %v8970
    %v8972 = vlaneseq
    %v8973 = vshrl.u32 %v8972, 7
    %v8974 = vsub.s32 %v8971, %v8973
    %v8975 = vrot.slane %v8961, %v8974
    %v8976 = vcombine.high %v8968, %v8968
    %v8977 = vcombine.high %v8975, %v8975
    %v8978 = vcombine.high %v138, %v138
    %v8980 = vunpack.c.l.s4 1983009808
    %v8981 = vunpack.c.0.s8 %v8980
    %v8982 = vlaneseq
    %v8983 = vshrl.u32 %v8982, 7
    %v8984 = vsub.s32 %v8981, %v8983
    %v8985 = vrot.slane %v138, %v8984
    %v8987 = vunpack.c.l.s4 1983009808
    %v8988 = vunpack.c.0.s8 %v8987
    %v8989 = vlaneseq
    %v8990 = vshrl.u32 %v8989, 7
    %v8991 = vsub.s32 %v8988, %v8990
    %v8992 = vrot.slane %v8978, %v8991
    %v8993 = vcombine.high %v8985, %v8985
    %v8994 = vcombine.high %v8992, %v8992
    %v8995 = vcombine.high %v139, %v139
    %v8997 = vunpack.c.l.s4 1983009808
    %v8998 = vunpack.c.0.s8 %v8997
    %v8999 = vlaneseq
    %v9000 = vshrl.u32 %v8999, 7
    %v9001 = vsub.s32 %v8998, %v9000
    %v9002 = vrot.slane %v139, %v9001
    %v9004 = vunpack.c.l.s4 1983009808
    %v9005 = vunpack.c.0.s8 %v9004
    %v9006 = vlaneseq
    %v9007 = vshrl.u32 %v9006, 7
    %v9008 = vsub.s32 %v9005, %v9007
    %v9009 = vrot.slane %v8995, %v9008
    %v9010 = vcombine.high %v9002, %v9002
    %v9011 = vcombine.high %v9009, %v9009
    %v9012 = vcombine.high %v140, %v140
    %v9014 = vunpack.c.l.s4 1983009808
    %v9015 = vunpack.c.0.s8 %v9014
    %v9016 = vlaneseq
    %v9017 = vshrl.u32 %v9016, 7
    %v9018 = vsub.s32 %v9015, %v9017
    %v9019 = vrot.slane %v140, %v9018
    %v9021 = vunpack.c.l.s4 1983009808
    %v9022 = vunpack.c.0.s8 %v9021
    %v9023 = vlaneseq
    %v9024 = vshrl.u32 %v9023, 7
    %v9025 = vsub.s32 %v9022, %v9024
    %v9026 = vrot.slane %v9012, %v9025
    %v9027 = vcombine.high %v9019, %v9019
    %v9028 = vcombine.high %v9026, %v9026
    %v9029 = vcombine.high %v141, %v141
    %v9031 = vunpack.c.l.s4 1983009808
    %v9032 = vunpack.c.0.s8 %v9031
    %v9033 = vlaneseq
    %v9034 = vshrl.u32 %v9033, 7
    %v9035 = vsub.s32 %v9032, %v9034
    %v9036 = vrot.slane %v141, %v9035
    %v9038 = vunpack.c.l.s4 1983009808
    %v9039 = vunpack.c.0.s8 %v9038
    %v9040 = vlaneseq
    %v9041 = vshrl.u32 %v9040, 7
    %v9042 = vsub.s32 %v9039, %v9041
    %v9043 = vrot.slane %v9029, %v9042
    %v9044 = vcombine.high %v9036, %v9036
    %v9045 = vcombine.high %v9043, %v9043
    %v9046 = vcombine.high %v142, %v142
    %v9048 = vunpack.c.l.s4 1983009808
    %v9049 = vunpack.c.0.s8 %v9048
    %v9050 = vlaneseq
    %v9051 = vshrl.u32 %v9050, 7
    %v9052 = vsub.s32 %v9049, %v9051
    %v9053 = vrot.slane %v142, %v9052
    %v9055 = vunpack.c.l.s4 1983009808
    %v9056 = vunpack.c.0.s8 %v9055
    %v9057 = vlaneseq
    %v9058 = vshrl.u32 %v9057, 7
    %v9059 = vsub.s32 %v9056, %v9058
    %v9060 = vrot.slane %v9046, %v9059
    %v9061 = vcombine.high %v9053, %v9053
    %v9062 = vcombine.high %v9060, %v9060
    %v9063 = vcombine.high %v143, %v143
    %v9065 = vunpack.c.l.s4 1983009808
    %v9066 = vunpack.c.0.s8 %v9065
    %v9067 = vlaneseq
    %v9068 = vshrl.u32 %v9067, 7
    %v9069 = vsub.s32 %v9066, %v9068
    %v9070 = vrot.slane %v143, %v9069
    %v9072 = vunpack.c.l.s4 1983009808
    %v9073 = vunpack.c.0.s8 %v9072
    %v9074 = vlaneseq
    %v9075 = vshrl.u32 %v9074, 7
    %v9076 = vsub.s32 %v9073, %v9075
    %v9077 = vrot.slane %v9063, %v9076
    %v9078 = vcombine.high %v9070, %v9070
    %v9079 = vcombine.high %v9077, %v9077
    %v9336 = vrot.slane %v7999, 7
    %v9337 = vrot.slane %v9336, 2
    %v9338 = vrot.slane %v8007, 7
    %v9339 = vrot.slane %v9338, 2
    %v9340 = vrot.slane %v8006, 7
    %v9341 = vrot.slane %v9340, 2
    %v9342 = vrot.slane %v8008, 7
    %v9343 = vrot.slane %v9342, 2
    %v9344 = vrot.slane %v8016, 7
    %v9345 = vrot.slane %v9344, 2
    %v9346 = vrot.slane %v8024, 7
    %v9347 = vrot.slane %v9346, 2
    %v9348 = vrot.slane %v8023, 7
    %v9349 = vrot.slane %v9348, 2
    %v9350 = vrot.slane %v8025, 7
    %v9351 = vrot.slane %v9350, 2
    %v9352 = vrot.slane %v8033, 7
    %v9353 = vrot.slane %v9352, 2
    %v9354 = vrot.slane %v8041, 7
    %v9355 = vrot.slane %v9354, 2
    %v9356 = vrot.slane %v8040, 7
    %v9357 = vrot.slane %v9356, 2
    %v9358 = vrot.slane %v8042, 7
    %v9359 = vrot.slane %v9358, 2
    %v9360 = vrot.slane %v8050, 7
    %v9361 = vrot.slane %v9360, 2
    %v9362 = vrot.slane %v8058, 7
    %v9363 = vrot.slane %v9362, 2
    %v9364 = vrot.slane %v8057, 7
    %v9365 = vrot.slane %v9364, 2
    %v9366 = vrot.slane %v8059, 7
    %v9367 = vrot.slane %v9366, 2
    %v9368 = vrot.slane %v8067, 7
    %v9369 = vrot.slane %v9368, 2
    %v9370 = vrot.slane %v8075, 7
    %v9371 = vrot.slane %v9370, 2
    %v9372 = vrot.slane %v8074, 7
    %v9373 = vrot.slane %v9372, 2
    %v9374 = vrot.slane %v8076, 7
    %v9375 = vrot.slane %v9374, 2
    %v9376 = vrot.slane %v8084, 7
    %v9377 = vrot.slane %v9376, 2
    %v9378 = vrot.slane %v8092, 7
    %v9379 = vrot.slane %v9378, 2
    %v9380 = vrot.slane %v8091, 7
    %v9381 = vrot.slane %v9380, 2
    %v9382 = vrot.slane %v8093, 7
    %v9383 = vrot.slane %v9382, 2
    %v9384 = vrot.slane %v8101, 7
    %v9385 = vrot.slane %v9384, 2
    %v9386 = vrot.slane %v8109, 7
    %v9387 = vrot.slane %v9386, 2
    %v9388 = vrot.slane %v8108, 7
    %v9389 = vrot.slane %v9388, 2
    %v9390 = vrot.slane %v8110, 7
    %v9391 = vrot.slane %v9390, 2
    %v9392 = vrot.slane %v8118, 7
    %v9393 = vrot.slane %v9392, 2
    %v9394 = vrot.slane %v8126, 7
    %v9395 = vrot.slane %v9394, 2
    %v9396 = vrot.slane %v8125, 7
    %v9397 = vrot.slane %v9396, 2
    %v9398 = vrot.slane %v8127, 7
    %v9399 = vrot.slane %v9398, 2
    %v9400 = vrot.slane %v8135, 7
    %v9401 = vrot.slane %v9400, 2
    %v9402 = vrot.slane %v8143, 7
    %v9403 = vrot.slane %v9402, 2
    %v9404 = vrot.slane %v8142, 7
    %v9405 = vrot.slane %v9404, 2
    %v9406 = vrot.slane %v8144, 7
    %v9407 = vrot.slane %v9406, 2
    %v9408 = vrot.slane %v8152, 7
    %v9409 = vrot.slane %v9408, 2
    %v9410 = vrot.slane %v8160, 7
    %v9411 = vrot.slane %v9410, 2
    %v9412 = vrot.slane %v8159, 7
    %v9413 = vrot.slane %v9412, 2
    %v9414 = vrot.slane %v8161, 7
    %v9415 = vrot.slane %v9414, 2
    %v9416 = vrot.slane %v8169, 7
    %v9417 = vrot.slane %v9416, 2
    %v9418 = vrot.slane %v8177, 7
    %v9419 = vrot.slane %v9418, 2
    %v9420 = vrot.slane %v8176, 7
    %v9421 = vrot.slane %v9420, 2
    %v9422 = vrot.slane %v8178, 7
    %v9423 = vrot.slane %v9422, 2
    %v9424 = vrot.slane %v8186, 7
    %v9425 = vrot.slane %v9424, 2
    %v9426 = vrot.slane %v8194, 7
    %v9427 = vrot.slane %v9426, 2
    %v9428 = vrot.slane %v8193, 7
    %v9429 = vrot.slane %v9428, 2
    %v9430 = vrot.slane %v8195, 7
    %v9431 = vrot.slane %v9430, 2
    %v9432 = vrot.slane %v8203, 7
    %v9433 = vrot.slane %v9432, 2
    %v9434 = vrot.slane %v8211, 7
    %v9435 = vrot.slane %v9434, 2
    %v9436 = vrot.slane %v8210, 7
    %v9437 = vrot.slane %v9436, 2
    %v9438 = vrot.slane %v8212, 7
    %v9439 = vrot.slane %v9438, 2
    %v9440 = vrot.slane %v8220, 7
    %v9441 = vrot.slane %v9440, 2
    %v9442 = vrot.slane %v8228, 7
    %v9443 = vrot.slane %v9442, 2
    %v9444 = vrot.slane %v8227, 7
    %v9445 = vrot.slane %v9444, 2
    %v9446 = vrot.slane %v8229, 7
    %v9447 = vrot.slane %v9446, 2
    %v9448 = vrot.slane %v8237, 7
    %v9449 = vrot.slane %v9448, 2
    %v9450 = vrot.slane %v8245, 7
    %v9451 = vrot.slane %v9450, 2
    %v9452 = vrot.slane %v8244, 7
    %v9453 = vrot.slane %v9452, 2
    %v9454 = vrot.slane %v8246, 7
    %v9455 = vrot.slane %v9454, 2
    %v9456 = vrot.slane %v8254, 7
    %v9457 = vrot.slane %v9456, 2
    %v9458 = vrot.slane %v8262, 7
    %v9459 = vrot.slane %v9458, 2
    %v9460 = vrot.slane %v8261, 7
    %v9461 = vrot.slane %v9460, 2
    %v9462 = vrot.slane %v8263, 7
    %v9463 = vrot.slane %v9462, 2
    %v9464 = vrot.slane %v8271, 7
    %v9465 = vrot.slane %v9464, 2
    %v9466 = vrot.slane %v8279, 7
    %v9467 = vrot.slane %v9466, 2
    %v9468 = vrot.slane %v8278, 7
    %v9469 = vrot.slane %v9468, 2
    %v9470 = vrot.slane %v8280, 7
    %v9471 = vrot.slane %v9470, 2
    %v9472 = vrot.slane %v8288, 7
    %v9473 = vrot.slane %v9472, 2
    %v9474 = vrot.slane %v8296, 7
    %v9475 = vrot.slane %v9474, 2
    %v9476 = vrot.slane %v8295, 7
    %v9477 = vrot.slane %v9476, 2
    %v9478 = vrot.slane %v8297, 7
    %v9479 = vrot.slane %v9478, 2
    %v9480 = vrot.slane %v8305, 7
    %v9481 = vrot.slane %v9480, 2
    %v9482 = vrot.slane %v8313, 7
    %v9483 = vrot.slane %v9482, 2
    %v9484 = vrot.slane %v8312, 7
    %v9485 = vrot.slane %v9484, 2
    %v9486 = vrot.slane %v8314, 7
    %v9487 = vrot.slane %v9486, 2
    %v9488 = vrot.slane %v8322, 7
    %v9489 = vrot.slane %v9488, 2
    %v9490 = vrot.slane %v8330, 7
    %v9491 = vrot.slane %v9490, 2
    %v9492 = vrot.slane %v8329, 7
    %v9493 = vrot.slane %v9492, 2
    %v9494 = vrot.slane %v8331, 7
    %v9495 = vrot.slane %v9494, 2
    %v9496 = vrot.slane %v8339, 7
    %v9497 = vrot.slane %v9496, 2
    %v9498 = vrot.slane %v8347, 7
    %v9499 = vrot.slane %v9498, 2
    %v9500 = vrot.slane %v8346, 7
    %v9501 = vrot.slane %v9500, 2
    %v9502 = vrot.slane %v8348, 7
    %v9503 = vrot.slane %v9502, 2
    %v9504 = vrot.slane %v8356, 7
    %v9505 = vrot.slane %v9504, 2
    %v9506 = vrot.slane %v8364, 7
    %v9507 = vrot.slane %v9506, 2
    %v9508 = vrot.slane %v8363, 7
    %v9509 = vrot.slane %v9508, 2
    %v9510 = vrot.slane %v8365, 7
    %v9511 = vrot.slane %v9510, 2
    %v9512 = vrot.slane %v8373, 7
    %v9513 = vrot.slane %v9512, 2
    %v9514 = vrot.slane %v8381, 7
    %v9515 = vrot.slane %v9514, 2
    %v9516 = vrot.slane %v8380, 7
    %v9517 = vrot.slane %v9516, 2
    %v9518 = vrot.slane %v8382, 7
    %v9519 = vrot.slane %v9518, 2
    %v9520 = vrot.slane %v8390, 7
    %v9521 = vrot.slane %v9520, 2
    %v9522 = vrot.slane %v8398, 7
    %v9523 = vrot.slane %v9522, 2
    %v9524 = vrot.slane %v8397, 7
    %v9525 = vrot.slane %v9524, 2
    %v9526 = vrot.slane %v8399, 7
    %v9527 = vrot.slane %v9526, 2
    %v9528 = vrot.slane %v8407, 7
    %v9529 = vrot.slane %v9528, 2
    %v9530 = vrot.slane %v8415, 7
    %v9531 = vrot.slane %v9530, 2
    %v9532 = vrot.slane %v8414, 7
    %v9533 = vrot.slane %v9532, 2
    %v9534 = vrot.slane %v8416, 7
    %v9535 = vrot.slane %v9534, 2
    %v9536 = vrot.slane %v8424, 7
    %v9537 = vrot.slane %v9536, 2
    %v9538 = vrot.slane %v8432, 7
    %v9539 = vrot.slane %v9538, 2
    %v9540 = vrot.slane %v8431, 7
    %v9541 = vrot.slane %v9540, 2
    %v9542 = vrot.slane %v8433, 7
    %v9543 = vrot.slane %v9542, 2
    %v9544 = vrot.slane %v8441, 7
    %v9545 = vrot.slane %v9544, 2
    %v9546 = vrot.slane %v8449, 7
    %v9547 = vrot.slane %v9546, 2
    %v9548 = vrot.slane %v8448, 7
    %v9549 = vrot.slane %v9548, 2
    %v9550 = vrot.slane %v8450, 7
    %v9551 = vrot.slane %v9550, 2
    %v9552 = vrot.slane %v8458, 7
    %v9553 = vrot.slane %v9552, 2
    %v9554 = vrot.slane %v8466, 7
    %v9555 = vrot.slane %v9554, 2
    %v9556 = vrot.slane %v8465, 7
    %v9557 = vrot.slane %v9556, 2
    %v9558 = vrot.slane %v8467, 7
    %v9559 = vrot.slane %v9558, 2
    %v9560 = vrot.slane %v8475, 7
    %v9561 = vrot.slane %v9560, 2
    %v9562 = vrot.slane %v8483, 7
    %v9563 = vrot.slane %v9562, 2
    %v9564 = vrot.slane %v8482, 7
    %v9565 = vrot.slane %v9564, 2
    %v9566 = vrot.slane %v8484, 7
    %v9567 = vrot.slane %v9566, 2
    %v9568 = vrot.slane %v8492, 7
    %v9569 = vrot.slane %v9568, 2
    %v9570 = vrot.slane %v8500, 7
    %v9571 = vrot.slane %v9570, 2
    %v9572 = vrot.slane %v8499, 7
    %v9573 = vrot.slane %v9572, 2
    %v9574 = vrot.slane %v8501, 7
    %v9575 = vrot.slane %v9574, 2
    %v9576 = vrot.slane %v8509, 7
    %v9577 = vrot.slane %v9576, 2
    %v9578 = vrot.slane %v8517, 7
    %v9579 = vrot.slane %v9578, 2
    %v9580 = vrot.slane %v8516, 7
    %v9581 = vrot.slane %v9580, 2
    %v9582 = vrot.slane %v8518, 7
    %v9583 = vrot.slane %v9582, 2
    %v9584 = vrot.slane %v8526, 7
    %v9585 = vrot.slane %v9584, 2
    %v9586 = vrot.slane %v8534, 7
    %v9587 = vrot.slane %v9586, 2
    %v9588 = vrot.slane %v8533, 7
    %v9589 = vrot.slane %v9588, 2
    %v9590 = vrot.slane %v8535, 7
    %v9591 = vrot.slane %v9590, 2
    %v9592 = vrot.slane %v8543, 7
    %v9593 = vrot.slane %v9592, 2
    %v9594 = vrot.slane %v8551, 7
    %v9595 = vrot.slane %v9594, 2
    %v9596 = vrot.slane %v8550, 7
    %v9597 = vrot.slane %v9596, 2
    %v9598 = vrot.slane %v8552, 7
    %v9599 = vrot.slane %v9598, 2
    %v9600 = vrot.slane %v8560, 7
    %v9601 = vrot.slane %v9600, 2
    %v9602 = vrot.slane %v8568, 7
    %v9603 = vrot.slane %v9602, 2
    %v9604 = vrot.slane %v8567, 7
    %v9605 = vrot.slane %v9604, 2
    %v9606 = vrot.slane %v8569, 7
    %v9607 = vrot.slane %v9606, 2
    %v9608 = vrot.slane %v8577, 7
    %v9609 = vrot.slane %v9608, 2
    %v9610 = vrot.slane %v8585, 7
    %v9611 = vrot.slane %v9610, 2
    %v9612 = vrot.slane %v8584, 7
    %v9613 = vrot.slane %v9612, 2
    %v9614 = vrot.slane %v8586, 7
    %v9615 = vrot.slane %v9614, 2
    %v9616 = vrot.slane %v8594, 7
    %v9617 = vrot.slane %v9616, 2
    %v9618 = vrot.slane %v8602, 7
    %v9619 = vrot.slane %v9618, 2
    %v9620 = vrot.slane %v8601, 7
    %v9621 = vrot.slane %v9620, 2
    %v9622 = vrot.slane %v8603, 7
    %v9623 = vrot.slane %v9622, 2
    %v9624 = vrot.slane %v8611, 7
    %v9625 = vrot.slane %v9624, 2
    %v9626 = vrot.slane %v8619, 7
    %v9627 = vrot.slane %v9626, 2
    %v9628 = vrot.slane %v8618, 7
    %v9629 = vrot.slane %v9628, 2
    %v9630 = vrot.slane %v8620, 7
    %v9631 = vrot.slane %v9630, 2
    %v9632 = vrot.slane %v8628, 7
    %v9633 = vrot.slane %v9632, 2
    %v9634 = vrot.slane %v8636, 7
    %v9635 = vrot.slane %v9634, 2
    %v9636 = vrot.slane %v8635, 7
    %v9637 = vrot.slane %v9636, 2
    %v9638 = vrot.slane %v8637, 7
    %v9639 = vrot.slane %v9638, 2
    %v9640 = vrot.slane %v8645, 7
    %v9641 = vrot.slane %v9640, 2
    %v9642 = vrot.slane %v8653, 7
    %v9643 = vrot.slane %v9642, 2
    %v9644 = vrot.slane %v8652, 7
    %v9645 = vrot.slane %v9644, 2
    %v9646 = vrot.slane %v8654, 7
    %v9647 = vrot.slane %v9646, 2
    %v9648 = vrot.slane %v8662, 7
    %v9649 = vrot.slane %v9648, 2
    %v9650 = vrot.slane %v8670, 7
    %v9651 = vrot.slane %v9650, 2
    %v9652 = vrot.slane %v8669, 7
    %v9653 = vrot.slane %v9652, 2
    %v9654 = vrot.slane %v8671, 7
    %v9655 = vrot.slane %v9654, 2
    %v9656 = vrot.slane %v8679, 7
    %v9657 = vrot.slane %v9656, 2
    %v9658 = vrot.slane %v8687, 7
    %v9659 = vrot.slane %v9658, 2
    %v9660 = vrot.slane %v8686, 7
    %v9661 = vrot.slane %v9660, 2
    %v9662 = vrot.slane %v8688, 7
    %v9663 = vrot.slane %v9662, 2
    %v9664 = vrot.slane %v8696, 7
    %v9665 = vrot.slane %v9664, 2
    %v9666 = vrot.slane %v8704, 7
    %v9667 = vrot.slane %v9666, 2
    %v9668 = vrot.slane %v8703, 7
    %v9669 = vrot.slane %v9668, 2
    %v9670 = vrot.slane %v8705, 7
    %v9671 = vrot.slane %v9670, 2
    %v9672 = vrot.slane %v8713, 7
    %v9673 = vrot.slane %v9672, 2
    %v9674 = vrot.slane %v8721, 7
    %v9675 = vrot.slane %v9674, 2
    %v9676 = vrot.slane %v8720, 7
    %v9677 = vrot.slane %v9676, 2
    %v9678 = vrot.slane %v8722, 7
    %v9679 = vrot.slane %v9678, 2
    %v9680 = vrot.slane %v8730, 7
    %v9681 = vrot.slane %v9680, 2
    %v9682 = vrot.slane %v8738, 7
    %v9683 = vrot.slane %v9682, 2
    %v9684 = vrot.slane %v8737, 7
    %v9685 = vrot.slane %v9684, 2
    %v9686 = vrot.slane %v8739, 7
    %v9687 = vrot.slane %v9686, 2
    %v9688 = vrot.slane %v8747, 7
    %v9689 = vrot.slane %v9688, 2
    %v9690 = vrot.slane %v8755, 7
    %v9691 = vrot.slane %v9690, 2
    %v9692 = vrot.slane %v8754, 7
    %v9693 = vrot.slane %v9692, 2
    %v9694 = vrot.slane %v8756, 7
    %v9695 = vrot.slane %v9694, 2
    %v9696 = vrot.slane %v8764, 7
    %v9697 = vrot.slane %v9696, 2
    %v9698 = vrot.slane %v8772, 7
    %v9699 = vrot.slane %v9698, 2
    %v9700 = vrot.slane %v8771, 7
    %v9701 = vrot.slane %v9700, 2
    %v9702 = vrot.slane %v8773, 7
    %v9703 = vrot.slane %v9702, 2
    %v9704 = vrot.slane %v8781, 7
    %v9705 = vrot.slane %v9704, 2
    %v9706 = vrot.slane %v8789, 7
    %v9707 = vrot.slane %v9706, 2
    %v9708 = vrot.slane %v8788, 7
    %v9709 = vrot.slane %v9708, 2
    %v9710 = vrot.slane %v8790, 7
    %v9711 = vrot.slane %v9710, 2
    %v9712 = vrot.slane %v8798, 7
    %v9713 = vrot.slane %v9712, 2
    %v9714 = vrot.slane %v8806, 7
    %v9715 = vrot.slane %v9714, 2
    %v9716 = vrot.slane %v8805, 7
    %v9717 = vrot.slane %v9716, 2
    %v9718 = vrot.slane %v8807, 7
    %v9719 = vrot.slane %v9718, 2
    %v9720 = vrot.slane %v8815, 7
    %v9721 = vrot.slane %v9720, 2
    %v9722 = vrot.slane %v8823, 7
    %v9723 = vrot.slane %v9722, 2
    %v9724 = vrot.slane %v8822, 7
    %v9725 = vrot.slane %v9724, 2
    %v9726 = vrot.slane %v8824, 7
    %v9727 = vrot.slane %v9726, 2
    %v9728 = vrot.slane %v8832, 7
    %v9729 = vrot.slane %v9728, 2
    %v9730 = vrot.slane %v8840, 7
    %v9731 = vrot.slane %v9730, 2
    %v9732 = vrot.slane %v8839, 7
    %v9733 = vrot.slane %v9732, 2
    %v9734 = vrot.slane %v8841, 7
    %v9735 = vrot.slane %v9734, 2
    %v9736 = vrot.slane %v8849, 7
    %v9737 = vrot.slane %v9736, 2
    %v9738 = vrot.slane %v8857, 7
    %v9739 = vrot.slane %v9738, 2
    %v9740 = vrot.slane %v8856, 7
    %v9741 = vrot.slane %v9740, 2
    %v9742 = vrot.slane %v8858, 7
    %v9743 = vrot.slane %v9742, 2
    %v9744 = vrot.slane %v8866, 7
    %v9745 = vrot.slane %v9744, 2
    %v9746 = vrot.slane %v8874, 7
    %v9747 = vrot.slane %v9746, 2
    %v9748 = vrot.slane %v8873, 7
    %v9749 = vrot.slane %v9748, 2
    %v9750 = vrot.slane %v8875, 7
    %v9751 = vrot.slane %v9750, 2
    %v9752 = vrot.slane %v8883, 7
    %v9753 = vrot.slane %v9752, 2
    %v9754 = vrot.slane %v8891, 7
    %v9755 = vrot.slane %v9754, 2
    %v9756 = vrot.slane %v8890, 7
    %v9757 = vrot.slane %v9756, 2
    %v9758 = vrot.slane %v8892, 7
    %v9759 = vrot.slane %v9758, 2
    %v9760 = vrot.slane %v8900, 7
    %v9761 = vrot.slane %v9760, 2
    %v9762 = vrot.slane %v8908, 7
    %v9763 = vrot.slane %v9762, 2
    %v9764 = vrot.slane %v8907, 7
    %v9765 = vrot.slane %v9764, 2
    %v9766 = vrot.slane %v8909, 7
    %v9767 = vrot.slane %v9766, 2
    %v9768 = vrot.slane %v8917, 7
    %v9769 = vrot.slane %v9768, 2
    %v9770 = vrot.slane %v8925, 7
    %v9771 = vrot.slane %v9770, 2
    %v9772 = vrot.slane %v8924, 7
    %v9773 = vrot.slane %v9772, 2
    %v9774 = vrot.slane %v8926, 7
    %v9775 = vrot.slane %v9774, 2
    %v9776 = vrot.slane %v8934, 7
    %v9777 = vrot.slane %v9776, 2
    %v9778 = vrot.slane %v8942, 7
    %v9779 = vrot.slane %v9778, 2
    %v9780 = vrot.slane %v8941, 7
    %v9781 = vrot.slane %v9780, 2
    %v9782 = vrot.slane %v8943, 7
    %v9783 = vrot.slane %v9782, 2
    %v9784 = vrot.slane %v8951, 7
    %v9785 = vrot.slane %v9784, 2
    %v9786 = vrot.slane %v8959, 7
    %v9787 = vrot.slane %v9786, 2
    %v9788 = vrot.slane %v8958, 7
    %v9789 = vrot.slane %v9788, 2
    %v9790 = vrot.slane %v8960, 7
    %v9791 = vrot.slane %v9790, 2
    %v9792 = vrot.slane %v8968, 7
    %v9793 = vrot.slane %v9792, 2
    %v9794 = vrot.slane %v8976, 7
    %v9795 = vrot.slane %v9794, 2
    %v9796 = vrot.slane %v8975, 7
    %v9797 = vrot.slane %v9796, 2
    %v9798 = vrot.slane %v8977, 7
    %v9799 = vrot.slane %v9798, 2
    %v9800 = vrot.slane %v8985, 7
    %v9801 = vrot.slane %v9800, 2
    %v9802 = vrot.slane %v8993, 7
    %v9803 = vrot.slane %v9802, 2
    %v9804 = vrot.slane %v8992, 7
    %v9805 = vrot.slane %v9804, 2
    %v9806 = vrot.slane %v8994, 7
    %v9807 = vrot.slane %v9806, 2
    %v9808 = vrot.slane %v9002, 7
    %v9809 = vrot.slane %v9808, 2
    %v9810 = vrot.slane %v9010, 7
    %v9811 = vrot.slane %v9810, 2
    %v9812 = vrot.slane %v9009, 7
    %v9813 = vrot.slane %v9812, 2
    %v9814 = vrot.slane %v9011, 7
    %v9815 = vrot.slane %v9814, 2
    %v9816 = vrot.slane %v9019, 7
    %v9817 = vrot.slane %v9816, 2
    %v9818 = vrot.slane %v9027, 7
    %v9819 = vrot.slane %v9818, 2
    %v9820 = vrot.slane %v9026, 7
    %v9821 = vrot.slane %v9820, 2
    %v9822 = vrot.slane %v9028, 7
    %v9823 = vrot.slane %v9822, 2
    %v9824 = vrot.slane %v9036, 7
    %v9825 = vrot.slane %v9824, 2
    %v9826 = vrot.slane %v9044, 7
    %v9827 = vrot.slane %v9826, 2
    %v9828 = vrot.slane %v9043, 7
    %v9829 = vrot.slane %v9828, 2
    %v9830 = vrot.slane %v9045, 7
    %v9831 = vrot.slane %v9830, 2
    %v9832 = vrot.slane %v9053, 7
    %v9833 = vrot.slane %v9832, 2
    %v9834 = vrot.slane %v9061, 7
    %v9835 = vrot.slane %v9834, 2
    %v9836 = vrot.slane %v9060, 7
    %v9837 = vrot.slane %v9836, 2
    %v9838 = vrot.slane %v9062, 7
    %v9839 = vrot.slane %v9838, 2
    %v9840 = vrot.slane %v9070, 7
    %v9841 = vrot.slane %v9840, 2
    %v9842 = vrot.slane %v9078, 7
    %v9843 = vrot.slane %v9842, 2
    %v9844 = vrot.slane %v9077, 7
    %v9845 = vrot.slane %v9844, 2
    %v9846 = vrot.slane %v9079, 7
    %v9847 = vrot.slane %v9846, 2
    %v10104 = vadd.f32 %v7999, %v9337
    %v10105 = vadd.f32 %v8007, %v9339
    %v10106 = vadd.f32 %v8006, %v9341
    %v10107 = vadd.f32 %v8008, %v9343
    %v10108 = vadd.f32 %v8016, %v9345
    %v10109 = vadd.f32 %v8024, %v9347
    %v10110 = vadd.f32 %v8023, %v9349
    %v10111 = vadd.f32 %v8025, %v9351
    %v10112 = vadd.f32 %v8033, %v9353
    %v10113 = vadd.f32 %v8041, %v9355
    %v10114 = vadd.f32 %v8040, %v9357
    %v10115 = vadd.f32 %v8042, %v9359
    %v10116 = vadd.f32 %v8050, %v9361
    %v10117 = vadd.f32 %v8058, %v9363
    %v10118 = vadd.f32 %v8057, %v9365
    %v10119 = vadd.f32 %v8059, %v9367
    %v10120 = vadd.f32 %v8067, %v9369
    %v10121 = vadd.f32 %v8075, %v9371
    %v10122 = vadd.f32 %v8074, %v9373
    %v10123 = vadd.f32 %v8076, %v9375
    %v10124 = vadd.f32 %v8084, %v9377
    %v10125 = vadd.f32 %v8092, %v9379
    %v10126 = vadd.f32 %v8091, %v9381
    %v10127 = vadd.f32 %v8093, %v9383
    %v10128 = vadd.f32 %v8101, %v9385
    %v10129 = vadd.f32 %v8109, %v9387
    %v10130 = vadd.f32 %v8108, %v9389
    %v10131 = vadd.f32 %v8110, %v9391
    %v10132 = vadd.f32 %v8118, %v9393
    %v10133 = vadd.f32 %v8126, %v9395
    %v10134 = vadd.f32 %v8125, %v9397
    %v10135 = vadd.f32 %v8127, %v9399
    %v10136 = vadd.f32 %v8135, %v9401
    %v10137 = vadd.f32 %v8143, %v9403
    %v10138 = vadd.f32 %v8142, %v9405
    %v10139 = vadd.f32 %v8144, %v9407
    %v10140 = vadd.f32 %v8152, %v9409
    %v10141 = vadd.f32 %v8160, %v9411
    %v10142 = vadd.f32 %v8159, %v9413
    %v10143 = vadd.f32 %v8161, %v9415
    %v10144 = vadd.f32 %v8169, %v9417
    %v10145 = vadd.f32 %v8177, %v9419
    %v10146 = vadd.f32 %v8176, %v9421
    %v10147 = vadd.f32 %v8178, %v9423
    %v10148 = vadd.f32 %v8186, %v9425
    %v10149 = vadd.f32 %v8194, %v9427
    %v10150 = vadd.f32 %v8193, %v9429
    %v10151 = vadd.f32 %v8195, %v9431
    %v10152 = vadd.f32 %v8203, %v9433
    %v10153 = vadd.f32 %v8211, %v9435
    %v10154 = vadd.f32 %v8210, %v9437
    %v10155 = vadd.f32 %v8212, %v9439
    %v10156 = vadd.f32 %v8220, %v9441
    %v10157 = vadd.f32 %v8228, %v9443
    %v10158 = vadd.f32 %v8227, %v9445
    %v10159 = vadd.f32 %v8229, %v9447
    %v10160 = vadd.f32 %v8237, %v9449
    %v10161 = vadd.f32 %v8245, %v9451
    %v10162 = vadd.f32 %v8244, %v9453
    %v10163 = vadd.f32 %v8246, %v9455
    %v10164 = vadd.f32 %v8254, %v9457
    %v10165 = vadd.f32 %v8262, %v9459
    %v10166 = vadd.f32 %v8261, %v9461
    %v10167 = vadd.f32 %v8263, %v9463
    %v10168 = vadd.f32 %v8271, %v9465
    %v10169 = vadd.f32 %v8279, %v9467
    %v10170 = vadd.f32 %v8278, %v9469
    %v10171 = vadd.f32 %v8280, %v9471
    %v10172 = vadd.f32 %v8288, %v9473
    %v10173 = vadd.f32 %v8296, %v9475
    %v10174 = vadd.f32 %v8295, %v9477
    %v10175 = vadd.f32 %v8297, %v9479
    %v10176 = vadd.f32 %v8305, %v9481
    %v10177 = vadd.f32 %v8313, %v9483
    %v10178 = vadd.f32 %v8312, %v9485
    %v10179 = vadd.f32 %v8314, %v9487
    %v10180 = vadd.f32 %v8322, %v9489
    %v10181 = vadd.f32 %v8330, %v9491
    %v10182 = vadd.f32 %v8329, %v9493
    %v10183 = vadd.f32 %v8331, %v9495
    %v10184 = vadd.f32 %v8339, %v9497
    %v10185 = vadd.f32 %v8347, %v9499
    %v10186 = vadd.f32 %v8346, %v9501
    %v10187 = vadd.f32 %v8348, %v9503
    %v10188 = vadd.f32 %v8356, %v9505
    %v10189 = vadd.f32 %v8364, %v9507
    %v10190 = vadd.f32 %v8363, %v9509
    %v10191 = vadd.f32 %v8365, %v9511
    %v10192 = vadd.f32 %v8373, %v9513
    %v10193 = vadd.f32 %v8381, %v9515
    %v10194 = vadd.f32 %v8380, %v9517
    %v10195 = vadd.f32 %v8382, %v9519
    %v10196 = vadd.f32 %v8390, %v9521
    %v10197 = vadd.f32 %v8398, %v9523
    %v10198 = vadd.f32 %v8397, %v9525
    %v10199 = vadd.f32 %v8399, %v9527
    %v10200 = vadd.f32 %v8407, %v9529
    %v10201 = vadd.f32 %v8415, %v9531
    %v10202 = vadd.f32 %v8414, %v9533
    %v10203 = vadd.f32 %v8416, %v9535
    %v10204 = vadd.f32 %v8424, %v9537
    %v10205 = vadd.f32 %v8432, %v9539
    %v10206 = vadd.f32 %v8431, %v9541
    %v10207 = vadd.f32 %v8433, %v9543
    %v10208 = vadd.f32 %v8441, %v9545
    %v10209 = vadd.f32 %v8449, %v9547
    %v10210 = vadd.f32 %v8448, %v9549
    %v10211 = vadd.f32 %v8450, %v9551
    %v10212 = vadd.f32 %v8458, %v9553
    %v10213 = vadd.f32 %v8466, %v9555
    %v10214 = vadd.f32 %v8465, %v9557
    %v10215 = vadd.f32 %v8467, %v9559
    %v10216 = vadd.f32 %v8475, %v9561
    %v10217 = vadd.f32 %v8483, %v9563
    %v10218 = vadd.f32 %v8482, %v9565
    %v10219 = vadd.f32 %v8484, %v9567
    %v10220 = vadd.f32 %v8492, %v9569
    %v10221 = vadd.f32 %v8500, %v9571
    %v10222 = vadd.f32 %v8499, %v9573
    %v10223 = vadd.f32 %v8501, %v9575
    %v10224 = vadd.f32 %v8509, %v9577
    %v10225 = vadd.f32 %v8517, %v9579
    %v10226 = vadd.f32 %v8516, %v9581
    %v10227 = vadd.f32 %v8518, %v9583
    %v10228 = vadd.f32 %v8526, %v9585
    %v10229 = vadd.f32 %v8534, %v9587
    %v10230 = vadd.f32 %v8533, %v9589
    %v10231 = vadd.f32 %v8535, %v9591
    %v10232 = vadd.f32 %v8543, %v9593
    %v10233 = vadd.f32 %v8551, %v9595
    %v10234 = vadd.f32 %v8550, %v9597
    %v10235 = vadd.f32 %v8552, %v9599
    %v10236 = vadd.f32 %v8560, %v9601
    %v10237 = vadd.f32 %v8568, %v9603
    %v10238 = vadd.f32 %v8567, %v9605
    %v10239 = vadd.f32 %v8569, %v9607
    %v10240 = vadd.f32 %v8577, %v9609
    %v10241 = vadd.f32 %v8585, %v9611
    %v10242 = vadd.f32 %v8584, %v9613
    %v10243 = vadd.f32 %v8586, %v9615
    %v10244 = vadd.f32 %v8594, %v9617
    %v10245 = vadd.f32 %v8602, %v9619
    %v10246 = vadd.f32 %v8601, %v9621
    %v10247 = vadd.f32 %v8603, %v9623
    %v10248 = vadd.f32 %v8611, %v9625
    %v10249 = vadd.f32 %v8619, %v9627
    %v10250 = vadd.f32 %v8618, %v9629
    %v10251 = vadd.f32 %v8620, %v9631
    %v10252 = vadd.f32 %v8628, %v9633
    %v10253 = vadd.f32 %v8636, %v9635
    %v10254 = vadd.f32 %v8635, %v9637
    %v10255 = vadd.f32 %v8637, %v9639
    %v10256 = vadd.f32 %v8645, %v9641
    %v10257 = vadd.f32 %v8653, %v9643
    %v10258 = vadd.f32 %v8652, %v9645
    %v10259 = vadd.f32 %v8654, %v9647
    %v10260 = vadd.f32 %v8662, %v9649
    %v10261 = vadd.f32 %v8670, %v9651
    %v10262 = vadd.f32 %v8669, %v9653
    %v10263 = vadd.f32 %v8671, %v9655
    %v10264 = vadd.f32 %v8679, %v9657
    %v10265 = vadd.f32 %v8687, %v9659
    %v10266 = vadd.f32 %v8686, %v9661
    %v10267 = vadd.f32 %v8688, %v9663
    %v10268 = vadd.f32 %v8696, %v9665
    %v10269 = vadd.f32 %v8704, %v9667
    %v10270 = vadd.f32 %v8703, %v9669
    %v10271 = vadd.f32 %v8705, %v9671
    %v10272 = vadd.f32 %v8713, %v9673
    %v10273 = vadd.f32 %v8721, %v9675
    %v10274 = vadd.f32 %v8720, %v9677
    %v10275 = vadd.f32 %v8722, %v9679
    %v10276 = vadd.f32 %v8730, %v9681
    %v10277 = vadd.f32 %v8738, %v9683
    %v10278 = vadd.f32 %v8737, %v9685
    %v10279 = vadd.f32 %v8739, %v9687
    %v10280 = vadd.f32 %v8747, %v9689
    %v10281 = vadd.f32 %v8755, %v9691
    %v10282 = vadd.f32 %v8754, %v9693
    %v10283 = vadd.f32 %v8756, %v9695
    %v10284 = vadd.f32 %v8764, %v9697
    %v10285 = vadd.f32 %v8772, %v9699
    %v10286 = vadd.f32 %v8771, %v9701
    %v10287 = vadd.f32 %v8773, %v9703
    %v10288 = vadd.f32 %v8781, %v9705
    %v10289 = vadd.f32 %v8789, %v9707
    %v10290 = vadd.f32 %v8788, %v9709
    %v10291 = vadd.f32 %v8790, %v9711
    %v10292 = vadd.f32 %v8798, %v9713
    %v10293 = vadd.f32 %v8806, %v9715
    %v10294 = vadd.f32 %v8805, %v9717
    %v10295 = vadd.f32 %v8807, %v9719
    %v10296 = vadd.f32 %v8815, %v9721
    %v10297 = vadd.f32 %v8823, %v9723
    %v10298 = vadd.f32 %v8822, %v9725
    %v10299 = vadd.f32 %v8824, %v9727
    %v10300 = vadd.f32 %v8832, %v9729
    %v10301 = vadd.f32 %v8840, %v9731
    %v10302 = vadd.f32 %v8839, %v9733
    %v10303 = vadd.f32 %v8841, %v9735
    %v10304 = vadd.f32 %v8849, %v9737
    %v10305 = vadd.f32 %v8857, %v9739
    %v10306 = vadd.f32 %v8856, %v9741
    %v10307 = vadd.f32 %v8858, %v9743
    %v10308 = vadd.f32 %v8866, %v9745
    %v10309 = vadd.f32 %v8874, %v9747
    %v10310 = vadd.f32 %v8873, %v9749
    %v10311 = vadd.f32 %v8875, %v9751
    %v10312 = vadd.f32 %v8883, %v9753
    %v10313 = vadd.f32 %v8891, %v9755
    %v10314 = vadd.f32 %v8890, %v9757
    %v10315 = vadd.f32 %v8892, %v9759
    %v10316 = vadd.f32 %v8900, %v9761
    %v10317 = vadd.f32 %v8908, %v9763
    %v10318 = vadd.f32 %v8907, %v9765
    %v10319 = vadd.f32 %v8909, %v9767
    %v10320 = vadd.f32 %v8917, %v9769
    %v10321 = vadd.f32 %v8925, %v9771
    %v10322 = vadd.f32 %v8924, %v9773
    %v10323 = vadd.f32 %v8926, %v9775
    %v10324 = vadd.f32 %v8934, %v9777
    %v10325 = vadd.f32 %v8942, %v9779
    %v10326 = vadd.f32 %v8941, %v9781
    %v10327 = vadd.f32 %v8943, %v9783
    %v10328 = vadd.f32 %v8951, %v9785
    %v10329 = vadd.f32 %v8959, %v9787
    %v10330 = vadd.f32 %v8958, %v9789
    %v10331 = vadd.f32 %v8960, %v9791
    %v10332 = vadd.f32 %v8968, %v9793
    %v10333 = vadd.f32 %v8976, %v9795
    %v10334 = vadd.f32 %v8975, %v9797
    %v10335 = vadd.f32 %v8977, %v9799
    %v10336 = vadd.f32 %v8985, %v9801
    %v10337 = vadd.f32 %v8993, %v9803
    %v10338 = vadd.f32 %v8992, %v9805
    %v10339 = vadd.f32 %v8994, %v9807
    %v10340 = vadd.f32 %v9002, %v9809
    %v10341 = vadd.f32 %v9010, %v9811
    %v10342 = vadd.f32 %v9009, %v9813
    %v10343 = vadd.f32 %v9011, %v9815
    %v10344 = vadd.f32 %v9019, %v9817
    %v10345 = vadd.f32 %v9027, %v9819
    %v10346 = vadd.f32 %v9026, %v9821
    %v10347 = vadd.f32 %v9028, %v9823
    %v10348 = vadd.f32 %v9036, %v9825
    %v10349 = vadd.f32 %v9044, %v9827
    %v10350 = vadd.f32 %v9043, %v9829
    %v10351 = vadd.f32 %v9045, %v9831
    %v10352 = vadd.f32 %v9053, %v9833
    %v10353 = vadd.f32 %v9061, %v9835
    %v10354 = vadd.f32 %v9060, %v9837
    %v10355 = vadd.f32 %v9062, %v9839
    %v10356 = vadd.f32 %v9070, %v9841
    %v10357 = vadd.f32 %v9078, %v9843
    %v10358 = vadd.f32 %v9077, %v9845
    %v10359 = vadd.f32 %v9079, %v9847
    %v10360 = vadd.f32 %v10104, %v10112
    %v10361 = vadd.f32 %v10105, %v10113
    %v10362 = vadd.f32 %v10106, %v10114
    %v10363 = vadd.f32 %v10107, %v10115
    %v10364 = vadd.f32 %v10108, %v10116
    %v10365 = vadd.f32 %v10109, %v10117
    %v10366 = vadd.f32 %v10110, %v10118
    %v10367 = vadd.f32 %v10111, %v10119
    %v10368 = vadd.f32 %v10120, %v10128
    %v10369 = vadd.f32 %v10121, %v10129
    %v10370 = vadd.f32 %v10122, %v10130
    %v10371 = vadd.f32 %v10123, %v10131
    %v10372 = vadd.f32 %v10124, %v10132
    %v10373 = vadd.f32 %v10125, %v10133
    %v10374 = vadd.f32 %v10126, %v10134
    %v10375 = vadd.f32 %v10127, %v10135
    %v10376 = vadd.f32 %v10136, %v10144
    %v10377 = vadd.f32 %v10137, %v10145
    %v10378 = vadd.f32 %v10138, %v10146
    %v10379 = vadd.f32 %v10139, %v10147
    %v10380 = vadd.f32 %v10140, %v10148
    %v10381 = vadd.f32 %v10141, %v10149
    %v10382 = vadd.f32 %v10142, %v10150
    %v10383 = vadd.f32 %v10143, %v10151
    %v10384 = vadd.f32 %v10152, %v10160
    %v10385 = vadd.f32 %v10153, %v10161
    %v10386 = vadd.f32 %v10154, %v10162
    %v10387 = vadd.f32 %v10155, %v10163
    %v10388 = vadd.f32 %v10156, %v10164
    %v10389 = vadd.f32 %v10157, %v10165
    %v10390 = vadd.f32 %v10158, %v10166
    %v10391 = vadd.f32 %v10159, %v10167
    %v10392 = vadd.f32 %v10168, %v10176
    %v10393 = vadd.f32 %v10169, %v10177
    %v10394 = vadd.f32 %v10170, %v10178
    %v10395 = vadd.f32 %v10171, %v10179
    %v10396 = vadd.f32 %v10172, %v10180
    %v10397 = vadd.f32 %v10173, %v10181
    %v10398 = vadd.f32 %v10174, %v10182
    %v10399 = vadd.f32 %v10175, %v10183
    %v10400 = vadd.f32 %v10184, %v10192
    %v10401 = vadd.f32 %v10185, %v10193
    %v10402 = vadd.f32 %v10186, %v10194
    %v10403 = vadd.f32 %v10187, %v10195
    %v10404 = vadd.f32 %v10188, %v10196
    %v10405 = vadd.f32 %v10189, %v10197
    %v10406 = vadd.f32 %v10190, %v10198
    %v10407 = vadd.f32 %v10191, %v10199
    %v10408 = vadd.f32 %v10200, %v10208
    %v10409 = vadd.f32 %v10201, %v10209
    %v10410 = vadd.f32 %v10202, %v10210
    %v10411 = vadd.f32 %v10203, %v10211
    %v10412 = vadd.f32 %v10204, %v10212
    %v10413 = vadd.f32 %v10205, %v10213
    %v10414 = vadd.f32 %v10206, %v10214
    %v10415 = vadd.f32 %v10207, %v10215
    %v10416 = vadd.f32 %v10216, %v10224
    %v10417 = vadd.f32 %v10217, %v10225
    %v10418 = vadd.f32 %v10218, %v10226
    %v10419 = vadd.f32 %v10219, %v10227
    %v10420 = vadd.f32 %v10220, %v10228
    %v10421 = vadd.f32 %v10221, %v10229
    %v10422 = vadd.f32 %v10222, %v10230
    %v10423 = vadd.f32 %v10223, %v10231
    %v10424 = vadd.f32 %v10232, %v10240
    %v10425 = vadd.f32 %v10233, %v10241
    %v10426 = vadd.f32 %v10234, %v10242
    %v10427 = vadd.f32 %v10235, %v10243
    %v10428 = vadd.f32 %v10236, %v10244
    %v10429 = vadd.f32 %v10237, %v10245
    %v10430 = vadd.f32 %v10238, %v10246
    %v10431 = vadd.f32 %v10239, %v10247
    %v10432 = vadd.f32 %v10248, %v10256
    %v10433 = vadd.f32 %v10249, %v10257
    %v10434 = vadd.f32 %v10250, %v10258
    %v10435 = vadd.f32 %v10251, %v10259
    %v10436 = vadd.f32 %v10252, %v10260
    %v10437 = vadd.f32 %v10253, %v10261
    %v10438 = vadd.f32 %v10254, %v10262
    %v10439 = vadd.f32 %v10255, %v10263
    %v10440 = vadd.f32 %v10264, %v10272
    %v10441 = vadd.f32 %v10265, %v10273
    %v10442 = vadd.f32 %v10266, %v10274
    %v10443 = vadd.f32 %v10267, %v10275
    %v10444 = vadd.f32 %v10268, %v10276
    %v10445 = vadd.f32 %v10269, %v10277
    %v10446 = vadd.f32 %v10270, %v10278
    %v10447 = vadd.f32 %v10271, %v10279
    %v10448 = vadd.f32 %v10280, %v10288
    %v10449 = vadd.f32 %v10281, %v10289
    %v10450 = vadd.f32 %v10282, %v10290
    %v10451 = vadd.f32 %v10283, %v10291
    %v10452 = vadd.f32 %v10284, %v10292
    %v10453 = vadd.f32 %v10285, %v10293
    %v10454 = vadd.f32 %v10286, %v10294
    %v10455 = vadd.f32 %v10287, %v10295
    %v10456 = vadd.f32 %v10296, %v10304
    %v10457 = vadd.f32 %v10297, %v10305
    %v10458 = vadd.f32 %v10298, %v10306
    %v10459 = vadd.f32 %v10299, %v10307
    %v10460 = vadd.f32 %v10300, %v10308
    %v10461 = vadd.f32 %v10301, %v10309
    %v10462 = vadd.f32 %v10302, %v10310
    %v10463 = vadd.f32 %v10303, %v10311
    %v10464 = vadd.f32 %v10312, %v10320
    %v10465 = vadd.f32 %v10313, %v10321
    %v10466 = vadd.f32 %v10314, %v10322
    %v10467 = vadd.f32 %v10315, %v10323
    %v10468 = vadd.f32 %v10316, %v10324
    %v10469 = vadd.f32 %v10317, %v10325
    %v10470 = vadd.f32 %v10318, %v10326
    %v10471 = vadd.f32 %v10319, %v10327
    %v10472 = vadd.f32 %v10328, %v10336
    %v10473 = vadd.f32 %v10329, %v10337
    %v10474 = vadd.f32 %v10330, %v10338
    %v10475 = vadd.f32 %v10331, %v10339
    %v10476 = vadd.f32 %v10332, %v10340
    %v10477 = vadd.f32 %v10333, %v10341
    %v10478 = vadd.f32 %v10334, %v10342
    %v10479 = vadd.f32 %v10335, %v10343
    %v10480 = vadd.f32 %v10344, %v10352
    %v10481 = vadd.f32 %v10345, %v10353
    %v10482 = vadd.f32 %v10346, %v10354
    %v10483 = vadd.f32 %v10347, %v10355
    %v10484 = vadd.f32 %v10348, %v10356
    %v10485 = vadd.f32 %v10349, %v10357
    %v10486 = vadd.f32 %v10350, %v10358
    %v10487 = vadd.f32 %v10351, %v10359
    %v10488 = vmul.f32 %v10360, 0.25
    %v10489 = vmul.f32 %v10361, 0.25
    %v10490 = vmul.f32 %v10362, 0.25
    %v10491 = vmul.f32 %v10363, 0.25
    %v10492 = vmul.f32 %v10364, 0.25
    %v10493 = vmul.f32 %v10365, 0.25
    %v10494 = vmul.f32 %v10366, 0.25
    %v10495 = vmul.f32 %v10367, 0.25
    %v10496 = vmul.f32 %v10368, 0.25
    %v10497 = vmul.f32 %v10369, 0.25
    %v10498 = vmul.f32 %v10370, 0.25
    %v10499 = vmul.f32 %v10371, 0.25
    %v10500 = vmul.f32 %v10372, 0.25
    %v10501 = vmul.f32 %v10373, 0.25
    %v10502 = vmul.f32 %v10374, 0.25
    %v10503 = vmul.f32 %v10375, 0.25
    %v10504 = vmul.f32 %v10376, 0.25
    %v10505 = vmul.f32 %v10377, 0.25
    %v10506 = vmul.f32 %v10378, 0.25
    %v10507 = vmul.f32 %v10379, 0.25
    %v10508 = vmul.f32 %v10380, 0.25
    %v10509 = vmul.f32 %v10381, 0.25
    %v10510 = vmul.f32 %v10382, 0.25
    %v10511 = vmul.f32 %v10383, 0.25
    %v10512 = vmul.f32 %v10384, 0.25
    %v10513 = vmul.f32 %v10385, 0.25
    %v10514 = vmul.f32 %v10386, 0.25
    %v10515 = vmul.f32 %v10387, 0.25
    %v10516 = vmul.f32 %v10388, 0.25
    %v10517 = vmul.f32 %v10389, 0.25
    %v10518 = vmul.f32 %v10390, 0.25
    %v10519 = vmul.f32 %v10391, 0.25
    %v10520 = vmul.f32 %v10392, 0.25
    %v10521 = vmul.f32 %v10393, 0.25
    %v10522 = vmul.f32 %v10394, 0.25
    %v10523 = vmul.f32 %v10395, 0.25
    %v10524 = vmul.f32 %v10396, 0.25
    %v10525 = vmul.f32 %v10397, 0.25
    %v10526 = vmul.f32 %v10398, 0.25
    %v10527 = vmul.f32 %v10399, 0.25
    %v10528 = vmul.f32 %v10400, 0.25
    %v10529 = vmul.f32 %v10401, 0.25
    %v10530 = vmul.f32 %v10402, 0.25
    %v10531 = vmul.f32 %v10403, 0.25
    %v10532 = vmul.f32 %v10404, 0.25
    %v10533 = vmul.f32 %v10405, 0.25
    %v10534 = vmul.f32 %v10406, 0.25
    %v10535 = vmul.f32 %v10407, 0.25
    %v10536 = vmul.f32 %v10408, 0.25
    %v10537 = vmul.f32 %v10409, 0.25
    %v10538 = vmul.f32 %v10410, 0.25
    %v10539 = vmul.f32 %v10411, 0.25
    %v10540 = vmul.f32 %v10412, 0.25
    %v10541 = vmul.f32 %v10413, 0.25
    %v10542 = vmul.f32 %v10414, 0.25
    %v10543 = vmul.f32 %v10415, 0.25
    %v10544 = vmul.f32 %v10416, 0.25
    %v10545 = vmul.f32 %v10417, 0.25
    %v10546 = vmul.f32 %v10418, 0.25
    %v10547 = vmul.f32 %v10419, 0.25
    %v10548 = vmul.f32 %v10420, 0.25
    %v10549 = vmul.f32 %v10421, 0.25
    %v10550 = vmul.f32 %v10422, 0.25
    %v10551 = vmul.f32 %v10423, 0.25
    %v10552 = vmul.f32 %v10424, 0.25
    %v10553 = vmul.f32 %v10425, 0.25
    %v10554 = vmul.f32 %v10426, 0.25
    %v10555 = vmul.f32 %v10427, 0.25
    %v10556 = vmul.f32 %v10428, 0.25
    %v10557 = vmul.f32 %v10429, 0.25
    %v10558 = vmul.f32 %v10430, 0.25
    %v10559 = vmul.f32 %v10431, 0.25
    %v10560 = vmul.f32 %v10432, 0.25
    %v10561 = vmul.f32 %v10433, 0.25
    %v10562 = vmul.f32 %v10434, 0.25
    %v10563 = vmul.f32 %v10435, 0.25
    %v10564 = vmul.f32 %v10436, 0.25
    %v10565 = vmul.f32 %v10437, 0.25
    %v10566 = vmul.f32 %v10438, 0.25
    %v10567 = vmul.f32 %v10439, 0.25
    %v10568 = vmul.f32 %v10440, 0.25
    %v10569 = vmul.f32 %v10441, 0.25
    %v10570 = vmul.f32 %v10442, 0.25
    %v10571 = vmul.f32 %v10443, 0.25
    %v10572 = vmul.f32 %v10444, 0.25
    %v10573 = vmul.f32 %v10445, 0.25
    %v10574 = vmul.f32 %v10446, 0.25
    %v10575 = vmul.f32 %v10447, 0.25
    %v10576 = vmul.f32 %v10448, 0.25
    %v10577 = vmul.f32 %v10449, 0.25
    %v10578 = vmul.f32 %v10450, 0.25
    %v10579 = vmul.f32 %v10451, 0.25
    %v10580 = vmul.f32 %v10452, 0.25
    %v10581 = vmul.f32 %v10453, 0.25
    %v10582 = vmul.f32 %v10454, 0.25
    %v10583 = vmul.f32 %v10455, 0.25
    %v10584 = vmul.f32 %v10456, 0.25
    %v10585 = vmul.f32 %v10457, 0.25
    %v10586 = vmul.f32 %v10458, 0.25
    %v10587 = vmul.f32 %v10459, 0.25
    %v10588 = vmul.f32 %v10460, 0.25
    %v10589 = vmul.f32 %v10461, 0.25
    %v10590 = vmul.f32 %v10462, 0.25
    %v10591 = vmul.f32 %v10463, 0.25
    %v10592 = vmul.f32 %v10464, 0.25
    %v10593 = vmul.f32 %v10465, 0.25
    %v10594 = vmul.f32 %v10466, 0.25
    %v10595 = vmul.f32 %v10467, 0.25
    %v10596 = vmul.f32 %v10468, 0.25
    %v10597 = vmul.f32 %v10469, 0.25
    %v10598 = vmul.f32 %v10470, 0.25
    %v10599 = vmul.f32 %v10471, 0.25
    %v10600 = vmul.f32 %v10472, 0.25
    %v10601 = vmul.f32 %v10473, 0.25
    %v10602 = vmul.f32 %v10474, 0.25
    %v10603 = vmul.f32 %v10475, 0.25
    %v10604 = vmul.f32 %v10476, 0.25
    %v10605 = vmul.f32 %v10477, 0.25
    %v10606 = vmul.f32 %v10478, 0.25
    %v10607 = vmul.f32 %v10479, 0.25
    %v10608 = vmul.f32 %v10480, 0.25
    %v10609 = vmul.f32 %v10481, 0.25
    %v10610 = vmul.f32 %v10482, 0.25
    %v10611 = vmul.f32 %v10483, 0.25
    %v10612 = vmul.f32 %v10484, 0.25
    %v10613 = vmul.f32 %v10485, 0.25
    %v10614 = vmul.f32 %v10486, 0.25
    %v10615 = vmul.f32 %v10487, 0.25
    %v10744 = vlaneseq
    %v10745 = vshrl.u32 %v10744, 7
    %v10746 = vsub.s32 0, %v10745
    %v10747 = vrot.slane %v10488, %v10746
    %v10748 = vlaneseq
    %v10749 = vshrl.u32 %v10748, 7
    %v10750 = vsub.s32 0, %v10749
    %v10751 = vrot.slane %v10489, %v10750
    %v10752 = vlaneseq
    %v10753 = vshrl.u32 %v10752, 7
    %v10754 = vsub.s32 0, %v10753
    %v10755 = vrot.slane %v10490, %v10754
    %v10756 = vlaneseq
    %v10757 = vshrl.u32 %v10756, 7
    %v10758 = vsub.s32 0, %v10757
    %v10759 = vrot.slane %v10491, %v10758
    %v10760 = vlaneseq
    %v10761 = vshrl.u32 %v10760, 7
    %v10762 = vsub.s32 0, %v10761
    %v10763 = vrot.slane %v10492, %v10762
    %v10764 = vlaneseq
    %v10765 = vshrl.u32 %v10764, 7
    %v10766 = vsub.s32 0, %v10765
    %v10767 = vrot.slane %v10493, %v10766
    %v10768 = vlaneseq
    %v10769 = vshrl.u32 %v10768, 7
    %v10770 = vsub.s32 0, %v10769
    %v10771 = vrot.slane %v10494, %v10770
    %v10772 = vlaneseq
    %v10773 = vshrl.u32 %v10772, 7
    %v10774 = vsub.s32 0, %v10773
    %v10775 = vrot.slane %v10495, %v10774
    %v10776 = vlaneseq
    %v10777 = vshrl.u32 %v10776, 7
    %v10778 = vsub.s32 0, %v10777
    %v10779 = vrot.slane %v10496, %v10778
    %v10780 = vlaneseq
    %v10781 = vshrl.u32 %v10780, 7
    %v10782 = vsub.s32 0, %v10781
    %v10783 = vrot.slane %v10497, %v10782
    %v10784 = vlaneseq
    %v10785 = vshrl.u32 %v10784, 7
    %v10786 = vsub.s32 0, %v10785
    %v10787 = vrot.slane %v10498, %v10786
    %v10788 = vlaneseq
    %v10789 = vshrl.u32 %v10788, 7
    %v10790 = vsub.s32 0, %v10789
    %v10791 = vrot.slane %v10499, %v10790
    %v10792 = vlaneseq
    %v10793 = vshrl.u32 %v10792, 7
    %v10794 = vsub.s32 0, %v10793
    %v10795 = vrot.slane %v10500, %v10794
    %v10796 = vlaneseq
    %v10797 = vshrl.u32 %v10796, 7
    %v10798 = vsub.s32 0, %v10797
    %v10799 = vrot.slane %v10501, %v10798
    %v10800 = vlaneseq
    %v10801 = vshrl.u32 %v10800, 7
    %v10802 = vsub.s32 0, %v10801
    %v10803 = vrot.slane %v10502, %v10802
    %v10804 = vlaneseq
    %v10805 = vshrl.u32 %v10804, 7
    %v10806 = vsub.s32 0, %v10805
    %v10807 = vrot.slane %v10503, %v10806
    %v10808 = vlaneseq
    %v10809 = vshrl.u32 %v10808, 7
    %v10810 = vsub.s32 0, %v10809
    %v10811 = vrot.slane %v10504, %v10810
    %v10812 = vlaneseq
    %v10813 = vshrl.u32 %v10812, 7
    %v10814 = vsub.s32 0, %v10813
    %v10815 = vrot.slane %v10505, %v10814
    %v10816 = vlaneseq
    %v10817 = vshrl.u32 %v10816, 7
    %v10818 = vsub.s32 0, %v10817
    %v10819 = vrot.slane %v10506, %v10818
    %v10820 = vlaneseq
    %v10821 = vshrl.u32 %v10820, 7
    %v10822 = vsub.s32 0, %v10821
    %v10823 = vrot.slane %v10507, %v10822
    %v10824 = vlaneseq
    %v10825 = vshrl.u32 %v10824, 7
    %v10826 = vsub.s32 0, %v10825
    %v10827 = vrot.slane %v10508, %v10826
    %v10828 = vlaneseq
    %v10829 = vshrl.u32 %v10828, 7
    %v10830 = vsub.s32 0, %v10829
    %v10831 = vrot.slane %v10509, %v10830
    %v10832 = vlaneseq
    %v10833 = vshrl.u32 %v10832, 7
    %v10834 = vsub.s32 0, %v10833
    %v10835 = vrot.slane %v10510, %v10834
    %v10836 = vlaneseq
    %v10837 = vshrl.u32 %v10836, 7
    %v10838 = vsub.s32 0, %v10837
    %v10839 = vrot.slane %v10511, %v10838
    %v10840 = vlaneseq
    %v10841 = vshrl.u32 %v10840, 7
    %v10842 = vsub.s32 0, %v10841
    %v10843 = vrot.slane %v10512, %v10842
    %v10844 = vlaneseq
    %v10845 = vshrl.u32 %v10844, 7
    %v10846 = vsub.s32 0, %v10845
    %v10847 = vrot.slane %v10513, %v10846
    %v10848 = vlaneseq
    %v10849 = vshrl.u32 %v10848, 7
    %v10850 = vsub.s32 0, %v10849
    %v10851 = vrot.slane %v10514, %v10850
    %v10852 = vlaneseq
    %v10853 = vshrl.u32 %v10852, 7
    %v10854 = vsub.s32 0, %v10853
    %v10855 = vrot.slane %v10515, %v10854
    %v10856 = vlaneseq
    %v10857 = vshrl.u32 %v10856, 7
    %v10858 = vsub.s32 0, %v10857
    %v10859 = vrot.slane %v10516, %v10858
    %v10860 = vlaneseq
    %v10861 = vshrl.u32 %v10860, 7
    %v10862 = vsub.s32 0, %v10861
    %v10863 = vrot.slane %v10517, %v10862
    %v10864 = vlaneseq
    %v10865 = vshrl.u32 %v10864, 7
    %v10866 = vsub.s32 0, %v10865
    %v10867 = vrot.slane %v10518, %v10866
    %v10868 = vlaneseq
    %v10869 = vshrl.u32 %v10868, 7
    %v10870 = vsub.s32 0, %v10869
    %v10871 = vrot.slane %v10519, %v10870
    %v10872 = vlaneseq
    %v10873 = vshrl.u32 %v10872, 7
    %v10874 = vsub.s32 0, %v10873
    %v10875 = vrot.slane %v10520, %v10874
    %v10876 = vlaneseq
    %v10877 = vshrl.u32 %v10876, 7
    %v10878 = vsub.s32 0, %v10877
    %v10879 = vrot.slane %v10521, %v10878
    %v10880 = vlaneseq
    %v10881 = vshrl.u32 %v10880, 7
    %v10882 = vsub.s32 0, %v10881
    %v10883 = vrot.slane %v10522, %v10882
    %v10884 = vlaneseq
    %v10885 = vshrl.u32 %v10884, 7
    %v10886 = vsub.s32 0, %v10885
    %v10887 = vrot.slane %v10523, %v10886
    %v10888 = vlaneseq
    %v10889 = vshrl.u32 %v10888, 7
    %v10890 = vsub.s32 0, %v10889
    %v10891 = vrot.slane %v10524, %v10890
    %v10892 = vlaneseq
    %v10893 = vshrl.u32 %v10892, 7
    %v10894 = vsub.s32 0, %v10893
    %v10895 = vrot.slane %v10525, %v10894
    %v10896 = vlaneseq
    %v10897 = vshrl.u32 %v10896, 7
    %v10898 = vsub.s32 0, %v10897
    %v10899 = vrot.slane %v10526, %v10898
    %v10900 = vlaneseq
    %v10901 = vshrl.u32 %v10900, 7
    %v10902 = vsub.s32 0, %v10901
    %v10903 = vrot.slane %v10527, %v10902
    %v10904 = vlaneseq
    %v10905 = vshrl.u32 %v10904, 7
    %v10906 = vsub.s32 0, %v10905
    %v10907 = vrot.slane %v10528, %v10906
    %v10908 = vlaneseq
    %v10909 = vshrl.u32 %v10908, 7
    %v10910 = vsub.s32 0, %v10909
    %v10911 = vrot.slane %v10529, %v10910
    %v10912 = vlaneseq
    %v10913 = vshrl.u32 %v10912, 7
    %v10914 = vsub.s32 0, %v10913
    %v10915 = vrot.slane %v10530, %v10914
    %v10916 = vlaneseq
    %v10917 = vshrl.u32 %v10916, 7
    %v10918 = vsub.s32 0, %v10917
    %v10919 = vrot.slane %v10531, %v10918
    %v10920 = vlaneseq
    %v10921 = vshrl.u32 %v10920, 7
    %v10922 = vsub.s32 0, %v10921
    %v10923 = vrot.slane %v10532, %v10922
    %v10924 = vlaneseq
    %v10925 = vshrl.u32 %v10924, 7
    %v10926 = vsub.s32 0, %v10925
    %v10927 = vrot.slane %v10533, %v10926
    %v10928 = vlaneseq
    %v10929 = vshrl.u32 %v10928, 7
    %v10930 = vsub.s32 0, %v10929
    %v10931 = vrot.slane %v10534, %v10930
    %v10932 = vlaneseq
    %v10933 = vshrl.u32 %v10932, 7
    %v10934 = vsub.s32 0, %v10933
    %v10935 = vrot.slane %v10535, %v10934
    %v10936 = vlaneseq
    %v10937 = vshrl.u32 %v10936, 7
    %v10938 = vsub.s32 0, %v10937
    %v10939 = vrot.slane %v10536, %v10938
    %v10940 = vlaneseq
    %v10941 = vshrl.u32 %v10940, 7
    %v10942 = vsub.s32 0, %v10941
    %v10943 = vrot.slane %v10537, %v10942
    %v10944 = vlaneseq
    %v10945 = vshrl.u32 %v10944, 7
    %v10946 = vsub.s32 0, %v10945
    %v10947 = vrot.slane %v10538, %v10946
    %v10948 = vlaneseq
    %v10949 = vshrl.u32 %v10948, 7
    %v10950 = vsub.s32 0, %v10949
    %v10951 = vrot.slane %v10539, %v10950
    %v10952 = vlaneseq
    %v10953 = vshrl.u32 %v10952, 7
    %v10954 = vsub.s32 0, %v10953
    %v10955 = vrot.slane %v10540, %v10954
    %v10956 = vlaneseq
    %v10957 = vshrl.u32 %v10956, 7
    %v10958 = vsub.s32 0, %v10957
    %v10959 = vrot.slane %v10541, %v10958
    %v10960 = vlaneseq
    %v10961 = vshrl.u32 %v10960, 7
    %v10962 = vsub.s32 0, %v10961
    %v10963 = vrot.slane %v10542, %v10962
    %v10964 = vlaneseq
    %v10965 = vshrl.u32 %v10964, 7
    %v10966 = vsub.s32 0, %v10965
    %v10967 = vrot.slane %v10543, %v10966
    %v10968 = vlaneseq
    %v10969 = vshrl.u32 %v10968, 7
    %v10970 = vsub.s32 0, %v10969
    %v10971 = vrot.slane %v10544, %v10970
    %v10972 = vlaneseq
    %v10973 = vshrl.u32 %v10972, 7
    %v10974 = vsub.s32 0, %v10973
    %v10975 = vrot.slane %v10545, %v10974
    %v10976 = vlaneseq
    %v10977 = vshrl.u32 %v10976, 7
    %v10978 = vsub.s32 0, %v10977
    %v10979 = vrot.slane %v10546, %v10978
    %v10980 = vlaneseq
    %v10981 = vshrl.u32 %v10980, 7
    %v10982 = vsub.s32 0, %v10981
    %v10983 = vrot.slane %v10547, %v10982
    %v10984 = vlaneseq
    %v10985 = vshrl.u32 %v10984, 7
    %v10986 = vsub.s32 0, %v10985
    %v10987 = vrot.slane %v10548, %v10986
    %v10988 = vlaneseq
    %v10989 = vshrl.u32 %v10988, 7
    %v10990 = vsub.s32 0, %v10989
    %v10991 = vrot.slane %v10549, %v10990
    %v10992 = vlaneseq
    %v10993 = vshrl.u32 %v10992, 7
    %v10994 = vsub.s32 0, %v10993
    %v10995 = vrot.slane %v10550, %v10994
    %v10996 = vlaneseq
    %v10997 = vshrl.u32 %v10996, 7
    %v10998 = vsub.s32 0, %v10997
    %v10999 = vrot.slane %v10551, %v10998
    %v11000 = vlaneseq
    %v11001 = vshrl.u32 %v11000, 7
    %v11002 = vsub.s32 0, %v11001
    %v11003 = vrot.slane %v10552, %v11002
    %v11004 = vlaneseq
    %v11005 = vshrl.u32 %v11004, 7
    %v11006 = vsub.s32 0, %v11005
    %v11007 = vrot.slane %v10553, %v11006
    %v11008 = vlaneseq
    %v11009 = vshrl.u32 %v11008, 7
    %v11010 = vsub.s32 0, %v11009
    %v11011 = vrot.slane %v10554, %v11010
    %v11012 = vlaneseq
    %v11013 = vshrl.u32 %v11012, 7
    %v11014 = vsub.s32 0, %v11013
    %v11015 = vrot.slane %v10555, %v11014
    %v11016 = vlaneseq
    %v11017 = vshrl.u32 %v11016, 7
    %v11018 = vsub.s32 0, %v11017
    %v11019 = vrot.slane %v10556, %v11018
    %v11020 = vlaneseq
    %v11021 = vshrl.u32 %v11020, 7
    %v11022 = vsub.s32 0, %v11021
    %v11023 = vrot.slane %v10557, %v11022
    %v11024 = vlaneseq
    %v11025 = vshrl.u32 %v11024, 7
    %v11026 = vsub.s32 0, %v11025
    %v11027 = vrot.slane %v10558, %v11026
    %v11028 = vlaneseq
    %v11029 = vshrl.u32 %v11028, 7
    %v11030 = vsub.s32 0, %v11029
    %v11031 = vrot.slane %v10559, %v11030
    %v11032 = vlaneseq
    %v11033 = vshrl.u32 %v11032, 7
    %v11034 = vsub.s32 0, %v11033
    %v11035 = vrot.slane %v10560, %v11034
    %v11036 = vlaneseq
    %v11037 = vshrl.u32 %v11036, 7
    %v11038 = vsub.s32 0, %v11037
    %v11039 = vrot.slane %v10561, %v11038
    %v11040 = vlaneseq
    %v11041 = vshrl.u32 %v11040, 7
    %v11042 = vsub.s32 0, %v11041
    %v11043 = vrot.slane %v10562, %v11042
    %v11044 = vlaneseq
    %v11045 = vshrl.u32 %v11044, 7
    %v11046 = vsub.s32 0, %v11045
    %v11047 = vrot.slane %v10563, %v11046
    %v11048 = vlaneseq
    %v11049 = vshrl.u32 %v11048, 7
    %v11050 = vsub.s32 0, %v11049
    %v11051 = vrot.slane %v10564, %v11050
    %v11052 = vlaneseq
    %v11053 = vshrl.u32 %v11052, 7
    %v11054 = vsub.s32 0, %v11053
    %v11055 = vrot.slane %v10565, %v11054
    %v11056 = vlaneseq
    %v11057 = vshrl.u32 %v11056, 7
    %v11058 = vsub.s32 0, %v11057
    %v11059 = vrot.slane %v10566, %v11058
    %v11060 = vlaneseq
    %v11061 = vshrl.u32 %v11060, 7
    %v11062 = vsub.s32 0, %v11061
    %v11063 = vrot.slane %v10567, %v11062
    %v11064 = vlaneseq
    %v11065 = vshrl.u32 %v11064, 7
    %v11066 = vsub.s32 0, %v11065
    %v11067 = vrot.slane %v10568, %v11066
    %v11068 = vlaneseq
    %v11069 = vshrl.u32 %v11068, 7
    %v11070 = vsub.s32 0, %v11069
    %v11071 = vrot.slane %v10569, %v11070
    %v11072 = vlaneseq
    %v11073 = vshrl.u32 %v11072, 7
    %v11074 = vsub.s32 0, %v11073
    %v11075 = vrot.slane %v10570, %v11074
    %v11076 = vlaneseq
    %v11077 = vshrl.u32 %v11076, 7
    %v11078 = vsub.s32 0, %v11077
    %v11079 = vrot.slane %v10571, %v11078
    %v11080 = vlaneseq
    %v11081 = vshrl.u32 %v11080, 7
    %v11082 = vsub.s32 0, %v11081
    %v11083 = vrot.slane %v10572, %v11082
    %v11084 = vlaneseq
    %v11085 = vshrl.u32 %v11084, 7
    %v11086 = vsub.s32 0, %v11085
    %v11087 = vrot.slane %v10573, %v11086
    %v11088 = vlaneseq
    %v11089 = vshrl.u32 %v11088, 7
    %v11090 = vsub.s32 0, %v11089
    %v11091 = vrot.slane %v10574, %v11090
    %v11092 = vlaneseq
    %v11093 = vshrl.u32 %v11092, 7
    %v11094 = vsub.s32 0, %v11093
    %v11095 = vrot.slane %v10575, %v11094
    %v11096 = vlaneseq
    %v11097 = vshrl.u32 %v11096, 7
    %v11098 = vsub.s32 0, %v11097
    %v11099 = vrot.slane %v10576, %v11098
    %v11100 = vlaneseq
    %v11101 = vshrl.u32 %v11100, 7
    %v11102 = vsub.s32 0, %v11101
    %v11103 = vrot.slane %v10577, %v11102
    %v11104 = vlaneseq
    %v11105 = vshrl.u32 %v11104, 7
    %v11106 = vsub.s32 0, %v11105
    %v11107 = vrot.slane %v10578, %v11106
    %v11108 = vlaneseq
    %v11109 = vshrl.u32 %v11108, 7
    %v11110 = vsub.s32 0, %v11109
    %v11111 = vrot.slane %v10579, %v11110
    %v11112 = vlaneseq
    %v11113 = vshrl.u32 %v11112, 7
    %v11114 = vsub.s32 0, %v11113
    %v11115 = vrot.slane %v10580, %v11114
    %v11116 = vlaneseq
    %v11117 = vshrl.u32 %v11116, 7
    %v11118 = vsub.s32 0, %v11117
    %v11119 = vrot.slane %v10581, %v11118
    %v11120 = vlaneseq
    %v11121 = vshrl.u32 %v11120, 7
    %v11122 = vsub.s32 0, %v11121
    %v11123 = vrot.slane %v10582, %v11122
    %v11124 = vlaneseq
    %v11125 = vshrl.u32 %v11124, 7
    %v11126 = vsub.s32 0, %v11125
    %v11127 = vrot.slane %v10583, %v11126
    %v11128 = vlaneseq
    %v11129 = vshrl.u32 %v11128, 7
    %v11130 = vsub.s32 0, %v11129
    %v11131 = vrot.slane %v10584, %v11130
    %v11132 = vlaneseq
    %v11133 = vshrl.u32 %v11132, 7
    %v11134 = vsub.s32 0, %v11133
    %v11135 = vrot.slane %v10585, %v11134
    %v11136 = vlaneseq
    %v11137 = vshrl.u32 %v11136, 7
    %v11138 = vsub.s32 0, %v11137
    %v11139 = vrot.slane %v10586, %v11138
    %v11140 = vlaneseq
    %v11141 = vshrl.u32 %v11140, 7
    %v11142 = vsub.s32 0, %v11141
    %v11143 = vrot.slane %v10587, %v11142
    %v11144 = vlaneseq
    %v11145 = vshrl.u32 %v11144, 7
    %v11146 = vsub.s32 0, %v11145
    %v11147 = vrot.slane %v10588, %v11146
    %v11148 = vlaneseq
    %v11149 = vshrl.u32 %v11148, 7
    %v11150 = vsub.s32 0, %v11149
    %v11151 = vrot.slane %v10589, %v11150
    %v11152 = vlaneseq
    %v11153 = vshrl.u32 %v11152, 7
    %v11154 = vsub.s32 0, %v11153
    %v11155 = vrot.slane %v10590, %v11154
    %v11156 = vlaneseq
    %v11157 = vshrl.u32 %v11156, 7
    %v11158 = vsub.s32 0, %v11157
    %v11159 = vrot.slane %v10591, %v11158
    %v11160 = vlaneseq
    %v11161 = vshrl.u32 %v11160, 7
    %v11162 = vsub.s32 0, %v11161
    %v11163 = vrot.slane %v10592, %v11162
    %v11164 = vlaneseq
    %v11165 = vshrl.u32 %v11164, 7
    %v11166 = vsub.s32 0, %v11165
    %v11167 = vrot.slane %v10593, %v11166
    %v11168 = vlaneseq
    %v11169 = vshrl.u32 %v11168, 7
    %v11170 = vsub.s32 0, %v11169
    %v11171 = vrot.slane %v10594, %v11170
    %v11172 = vlaneseq
    %v11173 = vshrl.u32 %v11172, 7
    %v11174 = vsub.s32 0, %v11173
    %v11175 = vrot.slane %v10595, %v11174
    %v11176 = vlaneseq
    %v11177 = vshrl.u32 %v11176, 7
    %v11178 = vsub.s32 0, %v11177
    %v11179 = vrot.slane %v10596, %v11178
    %v11180 = vlaneseq
    %v11181 = vshrl.u32 %v11180, 7
    %v11182 = vsub.s32 0, %v11181
    %v11183 = vrot.slane %v10597, %v11182
    %v11184 = vlaneseq
    %v11185 = vshrl.u32 %v11184, 7
    %v11186 = vsub.s32 0, %v11185
    %v11187 = vrot.slane %v10598, %v11186
    %v11188 = vlaneseq
    %v11189 = vshrl.u32 %v11188, 7
    %v11190 = vsub.s32 0, %v11189
    %v11191 = vrot.slane %v10599, %v11190
    %v11192 = vlaneseq
    %v11193 = vshrl.u32 %v11192, 7
    %v11194 = vsub.s32 0, %v11193
    %v11195 = vrot.slane %v10600, %v11194
    %v11196 = vlaneseq
    %v11197 = vshrl.u32 %v11196, 7
    %v11198 = vsub.s32 0, %v11197
    %v11199 = vrot.slane %v10601, %v11198
    %v11200 = vlaneseq
    %v11201 = vshrl.u32 %v11200, 7
    %v11202 = vsub.s32 0, %v11201
    %v11203 = vrot.slane %v10602, %v11202
    %v11204 = vlaneseq
    %v11205 = vshrl.u32 %v11204, 7
    %v11206 = vsub.s32 0, %v11205
    %v11207 = vrot.slane %v10603, %v11206
    %v11208 = vlaneseq
    %v11209 = vshrl.u32 %v11208, 7
    %v11210 = vsub.s32 0, %v11209
    %v11211 = vrot.slane %v10604, %v11210
    %v11212 = vlaneseq
    %v11213 = vshrl.u32 %v11212, 7
    %v11214 = vsub.s32 0, %v11213
    %v11215 = vrot.slane %v10605, %v11214
    %v11216 = vlaneseq
    %v11217 = vshrl.u32 %v11216, 7
    %v11218 = vsub.s32 0, %v11217
    %v11219 = vrot.slane %v10606, %v11218
    %v11220 = vlaneseq
    %v11221 = vshrl.u32 %v11220, 7
    %v11222 = vsub.s32 0, %v11221
    %v11223 = vrot.slane %v10607, %v11222
    %v11224 = vlaneseq
    %v11225 = vshrl.u32 %v11224, 7
    %v11226 = vsub.s32 0, %v11225
    %v11227 = vrot.slane %v10608, %v11226
    %v11228 = vlaneseq
    %v11229 = vshrl.u32 %v11228, 7
    %v11230 = vsub.s32 0, %v11229
    %v11231 = vrot.slane %v10609, %v11230
    %v11232 = vlaneseq
    %v11233 = vshrl.u32 %v11232, 7
    %v11234 = vsub.s32 0, %v11233
    %v11235 = vrot.slane %v10610, %v11234
    %v11236 = vlaneseq
    %v11237 = vshrl.u32 %v11236, 7
    %v11238 = vsub.s32 0, %v11237
    %v11239 = vrot.slane %v10611, %v11238
    %v11240 = vlaneseq
    %v11241 = vshrl.u32 %v11240, 7
    %v11242 = vsub.s32 0, %v11241
    %v11243 = vrot.slane %v10612, %v11242
    %v11244 = vlaneseq
    %v11245 = vshrl.u32 %v11244, 7
    %v11246 = vsub.s32 0, %v11245
    %v11247 = vrot.slane %v10613, %v11246
    %v11248 = vlaneseq
    %v11249 = vshrl.u32 %v11248, 7
    %v11250 = vsub.s32 0, %v11249
    %v11251 = vrot.slane %v10614, %v11250
    %v11252 = vlaneseq
    %v11253 = vshrl.u32 %v11252, 7
    %v11254 = vsub.s32 0, %v11253
    %v11255 = vrot.slane %v10615, %v11254
    %v11256 = vsel %vm5116, %v10751, %v10747
    %v11257 = vsel %vm4548, %v10755, %v11256
    %v11258 = vsel %vm4550, %v10759, %v11257
    %v11259 = vsel %vm4552, %v10763, %v11258
    %v11260 = vsel %vm4554, %v10767, %v11259
    %v11261 = vsel %vm4556, %v10771, %v11260
    %v11262 = vsel %vm4558, %v10775, %v11261
    %v11263 = vsel %vm5116, %v10783, %v10779
    %v11264 = vsel %vm4548, %v10787, %v11263
    %v11265 = vsel %vm4550, %v10791, %v11264
    %v11266 = vsel %vm4552, %v10795, %v11265
    %v11267 = vsel %vm4554, %v10799, %v11266
    %v11268 = vsel %vm4556, %v10803, %v11267
    %v11269 = vsel %vm4558, %v10807, %v11268
    %v11270 = vsel %vm5116, %v10815, %v10811
    %v11271 = vsel %vm4548, %v10819, %v11270
    %v11272 = vsel %vm4550, %v10823, %v11271
    %v11273 = vsel %vm4552, %v10827, %v11272
    %v11274 = vsel %vm4554, %v10831, %v11273
    %v11275 = vsel %vm4556, %v10835, %v11274
    %v11276 = vsel %vm4558, %v10839, %v11275
    %v11277 = vsel %vm5116, %v10847, %v10843
    %v11278 = vsel %vm4548, %v10851, %v11277
    %v11279 = vsel %vm4550, %v10855, %v11278
    %v11280 = vsel %vm4552, %v10859, %v11279
    %v11281 = vsel %vm4554, %v10863, %v11280
    %v11282 = vsel %vm4556, %v10867, %v11281
    %v11283 = vsel %vm4558, %v10871, %v11282
    %v11284 = vsel %vm5116, %v10879, %v10875
    %v11285 = vsel %vm4548, %v10883, %v11284
    %v11286 = vsel %vm4550, %v10887, %v11285
    %v11287 = vsel %vm4552, %v10891, %v11286
    %v11288 = vsel %vm4554, %v10895, %v11287
    %v11289 = vsel %vm4556, %v10899, %v11288
    %v11290 = vsel %vm4558, %v10903, %v11289
    %v11291 = vsel %vm5116, %v10911, %v10907
    %v11292 = vsel %vm4548, %v10915, %v11291
    %v11293 = vsel %vm4550, %v10919, %v11292
    %v11294 = vsel %vm4552, %v10923, %v11293
    %v11295 = vsel %vm4554, %v10927, %v11294
    %v11296 = vsel %vm4556, %v10931, %v11295
    %v11297 = vsel %vm4558, %v10935, %v11296
    %v11298 = vsel %vm5116, %v10943, %v10939
    %v11299 = vsel %vm4548, %v10947, %v11298
    %v11300 = vsel %vm4550, %v10951, %v11299
    %v11301 = vsel %vm4552, %v10955, %v11300
    %v11302 = vsel %vm4554, %v10959, %v11301
    %v11303 = vsel %vm4556, %v10963, %v11302
    %v11304 = vsel %vm4558, %v10967, %v11303
    %v11305 = vsel %vm5116, %v10975, %v10971
    %v11306 = vsel %vm4548, %v10979, %v11305
    %v11307 = vsel %vm4550, %v10983, %v11306
    %v11308 = vsel %vm4552, %v10987, %v11307
    %v11309 = vsel %vm4554, %v10991, %v11308
    %v11310 = vsel %vm4556, %v10995, %v11309
    %v11311 = vsel %vm4558, %v10999, %v11310
    %v11312 = vsel %vm5116, %v11007, %v11003
    %v11313 = vsel %vm4548, %v11011, %v11312
    %v11314 = vsel %vm4550, %v11015, %v11313
    %v11315 = vsel %vm4552, %v11019, %v11314
    %v11316 = vsel %vm4554, %v11023, %v11315
    %v11317 = vsel %vm4556, %v11027, %v11316
    %v11318 = vsel %vm4558, %v11031, %v11317
    %v11319 = vsel %vm5116, %v11039, %v11035
    %v11320 = vsel %vm4548, %v11043, %v11319
    %v11321 = vsel %vm4550, %v11047, %v11320
    %v11322 = vsel %vm4552, %v11051, %v11321
    %v11323 = vsel %vm4554, %v11055, %v11322
    %v11324 = vsel %vm4556, %v11059, %v11323
    %v11325 = vsel %vm4558, %v11063, %v11324
    %v11326 = vsel %vm5116, %v11071, %v11067
    %v11327 = vsel %vm4548, %v11075, %v11326
    %v11328 = vsel %vm4550, %v11079, %v11327
    %v11329 = vsel %vm4552, %v11083, %v11328
    %v11330 = vsel %vm4554, %v11087, %v11329
    %v11331 = vsel %vm4556, %v11091, %v11330
    %v11332 = vsel %vm4558, %v11095, %v11331
    %v11333 = vsel %vm5116, %v11103, %v11099
    %v11334 = vsel %vm4548, %v11107, %v11333
    %v11335 = vsel %vm4550, %v11111, %v11334
    %v11336 = vsel %vm4552, %v11115, %v11335
    %v11337 = vsel %vm4554, %v11119, %v11336
    %v11338 = vsel %vm4556, %v11123, %v11337
    %v11339 = vsel %vm4558, %v11127, %v11338
    %v11340 = vsel %vm5116, %v11135, %v11131
    %v11341 = vsel %vm4548, %v11139, %v11340
    %v11342 = vsel %vm4550, %v11143, %v11341
    %v11343 = vsel %vm4552, %v11147, %v11342
    %v11344 = vsel %vm4554, %v11151, %v11343
    %v11345 = vsel %vm4556, %v11155, %v11344
    %v11346 = vsel %vm4558, %v11159, %v11345
    %v11347 = vsel %vm5116, %v11167, %v11163
    %v11348 = vsel %vm4548, %v11171, %v11347
    %v11349 = vsel %vm4550, %v11175, %v11348
    %v11350 = vsel %vm4552, %v11179, %v11349
    %v11351 = vsel %vm4554, %v11183, %v11350
    %v11352 = vsel %vm4556, %v11187, %v11351
    %v11353 = vsel %vm4558, %v11191, %v11352
    %v11354 = vsel %vm5116, %v11199, %v11195
    %v11355 = vsel %vm4548, %v11203, %v11354
    %v11356 = vsel %vm4550, %v11207, %v11355
    %v11357 = vsel %vm4552, %v11211, %v11356
    %v11358 = vsel %vm4554, %v11215, %v11357
    %v11359 = vsel %vm4556, %v11219, %v11358
    %v11360 = vsel %vm4558, %v11223, %v11359
    %v11361 = vsel %vm5116, %v11231, %v11227
    %v11362 = vsel %vm4548, %v11235, %v11361
    %v11363 = vsel %vm4550, %v11239, %v11362
    %v11364 = vsel %vm4552, %v11243, %v11363
    %v11365 = vsel %vm4554, %v11247, %v11364
    %v11366 = vsel %vm4556, %v11251, %v11365
    %v11367 = vsel %vm4558, %v11255, %v11366
    %11384 = vst.msk [vmem:[#allocation3 + $0x8] sm:$0xff] %vm275, %v11262
    %11385 = vst.msk [vmem:[#allocation3 + $0x18] sm:$0xff] %vm275, %v11269
    %11386 = vst.msk [vmem:[#allocation3 + $0x28] sm:$0xff] %vm275, %v11276
    %11387 = vst.msk [vmem:[#allocation3 + $0x38] sm:$0xff] %vm275, %v11283
    %11388 = vst.msk [vmem:[#allocation3 + $0x48] sm:$0xff] %vm275, %v11290
    %11389 = vst.msk [vmem:[#allocation3 + $0x58] sm:$0xff] %vm275, %v11297
    %11390 = vst.msk [vmem:[#allocation3 + $0x68] sm:$0xff] %vm275, %v11304
    %11391 = vst.msk [vmem:[#allocation3 + $0x78] sm:$0xff] %vm275, %v11311
    %11392 = vst.msk [vmem:[#allocation3 + $0x88] sm:$0xff] %vm275, %v11318
    %11393 = vst.msk [vmem:[#allocation3 + $0x98] sm:$0xff] %vm275, %v11325
    %11394 = vst.msk [vmem:[#allocation3 + $0xa8] sm:$0xff] %vm275, %v11332
    %11395 = vst.msk [vmem:[#allocation3 + $0xb8] sm:$0xff] %vm275, %v11339
    %11396 = vst.msk [vmem:[#allocation3 + $0xc8] sm:$0xff] %vm275, %v11346
    %11397 = vst.msk [vmem:[#allocation3 + $0xd8] sm:$0xff] %vm275, %v11353
    %11398 = vst.msk [vmem:[#allocation3 + $0xe8] sm:$0xff] %vm275, %v11360
    %11399 = vst.msk [vmem:[#allocation3 + $0xf8] sm:$0xff] %vm275, %v11367
    %v11400 = vld [vmem:[#allocation3] sm:$0xff]
    %v11401 = vld [vmem:[#allocation3 + $0x8] sm:$0xff]
    %v11402 = vld [vmem:[#allocation3 + $0x10] sm:$0xff]
    %v11403 = vld [vmem:[#allocation3 + $0x18] sm:$0xff]
    %v11404 = vld [vmem:[#allocation3 + $0x20] sm:$0xff]
    %v11405 = vld [vmem:[#allocation3 + $0x28] sm:$0xff]
    %v11406 = vld [vmem:[#allocation3 + $0x30] sm:$0xff]
    %v11407 = vld [vmem:[#allocation3 + $0x38] sm:$0xff]
    %v11408 = vld [vmem:[#allocation3 + $0x40] sm:$0xff]
    %v11409 = vld [vmem:[#allocation3 + $0x48] sm:$0xff]
    %v11410 = vld [vmem:[#allocation3 + $0x50] sm:$0xff]
    %v11411 = vld [vmem:[#allocation3 + $0x58] sm:$0xff]
    %v11412 = vld [vmem:[#allocation3 + $0x60] sm:$0xff]
    %v11413 = vld [vmem:[#allocation3 + $0x68] sm:$0xff]
    %v11414 = vld [vmem:[#allocation3 + $0x70] sm:$0xff]
    %v11415 = vld [vmem:[#allocation3 + $0x78] sm:$0xff]
    %v11416 = vld [vmem:[#allocation3 + $0x80] sm:$0xff]
    %v11417 = vld [vmem:[#allocation3 + $0x88] sm:$0xff]
    %v11418 = vld [vmem:[#allocation3 + $0x90] sm:$0xff]
    %v11419 = vld [vmem:[#allocation3 + $0x98] sm:$0xff]
    %v11420 = vld [vmem:[#allocation3 + $0xa0] sm:$0xff]
    %v11421 = vld [vmem:[#allocation3 + $0xa8] sm:$0xff]
    %v11422 = vld [vmem:[#allocation3 + $0xb0] sm:$0xff]
    %v11423 = vld [vmem:[#allocation3 + $0xb8] sm:$0xff]
    %v11424 = vld [vmem:[#allocation3 + $0xc0] sm:$0xff]
    %v11425 = vld [vmem:[#allocation3 + $0xc8] sm:$0xff]
    %v11426 = vld [vmem:[#allocation3 + $0xd0] sm:$0xff]
    %v11427 = vld [vmem:[#allocation3 + $0xd8] sm:$0xff]
    %v11428 = vld [vmem:[#allocation3 + $0xe0] sm:$0xff]
    %v11429 = vld [vmem:[#allocation3 + $0xe8] sm:$0xff]
    %v11430 = vld [vmem:[#allocation3 + $0xf0] sm:$0xff]
    %v11431 = vld [vmem:[#allocation3 + $0xf8] sm:$0xff]
    %v11432 = vpack.c.bf16 %v11402, %v11400
    %v11433 = vpack.c.bf16 %v11403, %v11401
    %v11434 = vpack.c.bf16 %v11406, %v11404
    %v11435 = vpack.c.bf16 %v11407, %v11405
    %v11436 = vpack.c.bf16 %v11410, %v11408
    %v11437 = vpack.c.bf16 %v11411, %v11409
    %v11438 = vpack.c.bf16 %v11414, %v11412
    %v11439 = vpack.c.bf16 %v11415, %v11413
    %v11440 = vpack.c.bf16 %v11418, %v11416
    %v11441 = vpack.c.bf16 %v11419, %v11417
    %v11442 = vpack.c.bf16 %v11422, %v11420
    %v11443 = vpack.c.bf16 %v11423, %v11421
    %v11444 = vpack.c.bf16 %v11426, %v11424
    %v11445 = vpack.c.bf16 %v11427, %v11425
    %v11446 = vpack.c.bf16 %v11430, %v11428
    %v11447 = vpack.c.bf16 %v11431, %v11429
    %v11448 = vld [vmem:[%s2] sm:$0xf]
    %v11449 = vld [vmem:[%s2 + $0x4] sm:$0xf]
    %v11450 = vld [vmem:[%s2 + $0x8] sm:$0xf]
    %v11451 = vld [vmem:[%s2 + $0xc] sm:$0xf]
    %v11452 = vld [vmem:[%s2 + $0x10] sm:$0xf]
    %v11453 = vld [vmem:[%s2 + $0x14] sm:$0xf]
    %v11454 = vld [vmem:[%s2 + $0x18] sm:$0xf]
    %v11455 = vld [vmem:[%s2 + $0x1c] sm:$0xf]
    %v11456 = vld [vmem:[%s2 + $0x20] sm:$0xf]
    %v11457 = vld [vmem:[%s2 + $0x24] sm:$0xf]
    %v11458 = vld [vmem:[%s2 + $0x28] sm:$0xf]
    %v11459 = vld [vmem:[%s2 + $0x2c] sm:$0xf]
    %v11460 = vld [vmem:[%s2 + $0x30] sm:$0xf]
    %v11461 = vld [vmem:[%s2 + $0x34] sm:$0xf]
    %v11462 = vld [vmem:[%s2 + $0x38] sm:$0xf]
    %v11463 = vld [vmem:[%s2 + $0x3c] sm:$0xf]
    %v11464 = vld [vmem:[%s2 + $0x40] sm:$0x7]
    %v11482 = vunpack.c.l.b16 %v11448
    %v11483 = vunpack.c.l.b16 %v11449
    %v11484 = vunpack.c.l.b16 %v11450
    %v11485 = vunpack.c.l.b16 %v11451
    %v11486 = vunpack.c.l.b16 %v11452
    %v11487 = vunpack.c.l.b16 %v11453
    %v11488 = vunpack.c.l.b16 %v11454
    %v11489 = vunpack.c.l.b16 %v11455
    %v11490 = vunpack.c.l.b16 %v11456
    %v11491 = vunpack.c.l.b16 %v11457
    %v11492 = vunpack.c.l.b16 %v11458
    %v11493 = vunpack.c.l.b16 %v11459
    %v11494 = vunpack.c.l.b16 %v11460
    %v11495 = vunpack.c.l.b16 %v11461
    %v11496 = vunpack.c.l.b16 %v11462
    %v11497 = vunpack.c.l.b16 %v11463
    %v11498 = vunpack.c.l.b16 %v11464
    %v11499 = vpack.c.b16 %v11483, %v11482
    %v11500 = vpack.c.b16 %v11485, %v11484
    %v11501 = vpack.c.b16 %v11487, %v11486
    %v11502 = vpack.c.b16 %v11489, %v11488
    %v11503 = vpack.c.b16 %v11491, %v11490
    %v11504 = vpack.c.b16 %v11493, %v11492
    %v11505 = vpack.c.b16 %v11495, %v11494
    %v11506 = vpack.c.b16 %v11497, %v11496
    %v11507 = vpack.c.b16 %v11498, %v11498
    %v11517 = vsel %vm4107, %v11433, 0
    %v11520 = vsel %vm4107, %v11435, 0
    %v11523 = vsel %vm4107, %v11437, 0
    %v11526 = vsel %vm4107, %v11439, 0
    %v11529 = vsel %vm4107, %v11441, 0
    %v11532 = vsel %vm4107, %v11443, 0
    %v11535 = vsel %vm4107, %v11445, 0
    %v11538 = vsel %vm4107, %v11447, 0
    %v11541 = vand.u32 %v11507, %v2597
    %11543 = vmatprep.subr.bf16.mxu0 0
    %11544 = vmatpush1.bf16.msra.mxu0 %v11499
    %11545 = vmatprep.subr.bf16.mxu0 0
    %11546 = vmatpush1.bf16.msra.mxu0 %v11500
    %11547 = vmatprep.subr.bf16.mxu0 0
    %11548 = vmatpush1.bf16.msra.mxu0 %v11501
    %11549 = vmatprep.subr.bf16.mxu0 0
    %11550 = vmatpush1.bf16.msra.mxu0 %v11502
    %11551 = vmatprep.subr.bf16.mxu0 0
    %11552 = vmatpush1.bf16.msra.mxu0 %v11503
    %11553 = vmatprep.subr.bf16.mxu0 0
    %11554 = vmatpush1.bf16.msra.mxu0 %v11504
    %11555 = vmatprep.subr.bf16.mxu0 0
    %11556 = vmatpush1.bf16.msra.mxu0 %v11505
    %11557 = vmatprep.subr.bf16.mxu0 0
    %11558 = vmatpush1.bf16.msra.mxu0 %v11506
    %11559 = vmatprep.subr.bf16.mxu0 0
    %11560 = vmatpush1.bf16.msra.mxu0 %v11541
    %11561 = vmatprep.subr.bf16.mxu0 0
    %11562 = vmatpush1.bf16.msra.mxu0 0
    %11563 = vmatprep.subr.bf16.mxu0 0
    %11564 = vmatpush1.bf16.msra.mxu0 0
    %11565 = vmatprep.subr.bf16.mxu0 0
    %11566 = vmatpush1.bf16.msra.mxu0 0
    %11567 = vmatprep.subr.bf16.mxu0 0
    %11568 = vmatpush1.bf16.msra.mxu0 0
    %11569 = vmatprep.subr.bf16.mxu0 0
    %11570 = vmatpush1.bf16.msra.mxu0 0
    %11571 = vmatprep.subr.bf16.mxu0 0
    %11572 = vmatpush1.bf16.msra.mxu0 0
    %11573 = vmatprep.subr.bf16.mxu0 0
    %11574 = vmatpush1.bf16.msra.mxu0 0
    %11575 = vmatprep.mubr.bf16.mxu0 %v11517
    %11576 = vmatmul.mubr.bf16.gmra.mrb[0].mxu0 %v11432
    %v11577 = vpop.f32.mrb[0].mxu0
    %v11578 = vadd.f32 0.0, %v11577
    %v11579 = vpop.f32.mrb[0].mxu0
    %v11580 = vpop.f32.mrb[0].mxu0
    %v11581 = vadd.f32 0.0, %v11580
    %v11582 = vpop.f32.mrb[0].mxu0
    %11583 = vmatprep.mubr.bf16.mxu0 %v11520
    %11584 = vmatmul.mubr.bf16.gmra.mrb[0].mxu0 %v11434
    %v11585 = vpop.f32.mrb[0].mxu0
    %v11586 = vadd.f32 0.0, %v11585
    %v11587 = vpop.f32.mrb[0].mxu0
    %v11588 = vpop.f32.mrb[0].mxu0
    %v11589 = vadd.f32 0.0, %v11588
    %v11590 = vpop.f32.mrb[0].mxu0
    %11591 = vmatprep.mubr.bf16.mxu0 %v11523
    %11592 = vmatmul.mubr.bf16.gmra.mrb[0].mxu0 %v11436
    %v11593 = vpop.f32.mrb[0].mxu0
    %v11594 = vadd.f32 0.0, %v11593
    %v11595 = vpop.f32.mrb[0].mxu0
    %v11596 = vpop.f32.mrb[0].mxu0
    %v11597 = vadd.f32 0.0, %v11596
    %v11598 = vpop.f32.mrb[0].mxu0
    %11599 = vmatprep.mubr.bf16.mxu0 %v11526
    %11600 = vmatmul.mubr.bf16.gmra.mrb[0].mxu0 %v11438
    %v11601 = vpop.f32.mrb[0].mxu0
    %v11602 = vadd.f32 0.0, %v11601
    %v11603 = vpop.f32.mrb[0].mxu0
    %v11604 = vpop.f32.mrb[0].mxu0
    %v11605 = vadd.f32 0.0, %v11604
    %v11606 = vpop.f32.mrb[0].mxu0
    %11607 = vmatprep.mubr.bf16.mxu0 %v11529
    %11608 = vmatmul.mubr.bf16.gmra.mrb[0].mxu0 %v11440
    %v11609 = vpop.f32.mrb[0].mxu0
    %v11610 = vadd.f32 0.0, %v11609
    %v11611 = vpop.f32.mrb[0].mxu0
    %v11612 = vpop.f32.mrb[0].mxu0
    %v11613 = vadd.f32 0.0, %v11612
    %v11614 = vpop.f32.mrb[0].mxu0
    %11615 = vmatprep.mubr.bf16.mxu0 %v11532
    %11616 = vmatmul.mubr.bf16.gmra.mrb[0].mxu0 %v11442
    %v11617 = vpop.f32.mrb[0].mxu0
    %v11618 = vadd.f32 0.0, %v11617
    %v11619 = vpop.f32.mrb[0].mxu0
    %v11620 = vpop.f32.mrb[0].mxu0
    %v11621 = vadd.f32 0.0, %v11620
    %v11622 = vpop.f32.mrb[0].mxu0
    %11623 = vmatprep.mubr.bf16.mxu0 %v11535
    %11624 = vmatmul.mubr.bf16.gmra.mrb[0].mxu0 %v11444
    %v11625 = vpop.f32.mrb[0].mxu0
    %v11626 = vadd.f32 0.0, %v11625
    %v11627 = vpop.f32.mrb[0].mxu0
    %v11628 = vpop.f32.mrb[0].mxu0
    %v11629 = vadd.f32 0.0, %v11628
    %v11630 = vpop.f32.mrb[0].mxu0
    %11631 = vmatprep.mubr.bf16.mxu0 %v11538
    %11632 = vmatmul.mubr.bf16.gmra.mrb[0].mxu0 %v11446
    %v11633 = vpop.f32.mrb[0].mxu0
    %v11634 = vadd.f32 0.0, %v11633
    %v11635 = vpop.f32.mrb[0].mxu0
    %v11636 = vpop.f32.mrb[0].mxu0
    %v11637 = vadd.f32 0.0, %v11636
    %v11638 = vpop.f32.mrb[0].mxu0
    %11639 = vdwg.mxu0
    %v11656 = vrot.slane %v11581, 7
    %v11657 = vsel %vm5116, %v11656, %v11578
    %v11658 = vrot.slane %v11586, 6
    %v11659 = vsel %vm4548, %v11658, %v11657
    %v11660 = vrot.slane %v11589, 5
    %v11661 = vsel %vm4550, %v11660, %v11659
    %v11662 = vrot.slane %v11594, 4
    %v11663 = vsel %vm4552, %v11662, %v11661
    %v11664 = vrot.slane %v11597, 3
    %v11665 = vsel %vm4554, %v11664, %v11663
    %v11666 = vrot.slane %v11602, 2
    %v11667 = vsel %vm4556, %v11666, %v11665
    %v11668 = vrot.slane %v11605, 1
    %v11669 = vsel %vm4558, %v11668, %v11667
    %v11670 = vrot.slane %v11613, 7
    %v11671 = vsel %vm5116, %v11670, %v11610
    %v11672 = vrot.slane %v11618, 6
    %v11673 = vsel %vm4548, %v11672, %v11671
    %v11674 = vrot.slane %v11621, 5
    %v11675 = vsel %vm4550, %v11674, %v11673
    %v11676 = vrot.slane %v11626, 4
    %v11677 = vsel %vm4552, %v11676, %v11675
    %v11678 = vrot.slane %v11629, 3
    %v11679 = vsel %vm4554, %v11678, %v11677
    %v11680 = vrot.slane %v11634, 2
    %v11681 = vsel %vm4556, %v11680, %v11679
    %v11682 = vrot.slane %v11637, 1
    %v11683 = vsel %vm4558, %v11682, %v11681
    %v11686 = vrot.slane %v11578, 1
    %v11687 = vsel %vm5116, %v11581, %v11686
    %v11688 = vrot.slane %v11586, 7
    %v11689 = vsel %vm4548, %v11688, %v11687
    %v11690 = vrot.slane %v11589, 6
    %v11691 = vsel %vm4550, %v11690, %v11689
    %v11692 = vrot.slane %v11594, 5
    %v11693 = vsel %vm4552, %v11692, %v11691
    %v11694 = vrot.slane %v11597, 4
    %v11695 = vsel %vm4554, %v11694, %v11693
    %v11696 = vrot.slane %v11602, 3
    %v11697 = vsel %vm4556, %v11696, %v11695
    %v11698 = vrot.slane %v11605, 2
    %v11699 = vsel %vm4558, %v11698, %v11697
    %v11700 = vrot.slane %v11610, 1
    %v11701 = vsel %vm5116, %v11613, %v11700
    %v11702 = vrot.slane %v11618, 7
    %v11703 = vsel %vm4548, %v11702, %v11701
    %v11704 = vrot.slane %v11621, 6
    %v11705 = vsel %vm4550, %v11704, %v11703
    %v11706 = vrot.slane %v11626, 5
    %v11707 = vsel %vm4552, %v11706, %v11705
    %v11708 = vrot.slane %v11629, 4
    %v11709 = vsel %vm4554, %v11708, %v11707
    %v11710 = vrot.slane %v11634, 3
    %v11711 = vsel %vm4556, %v11710, %v11709
    %v11712 = vrot.slane %v11637, 2
    %v11713 = vsel %vm4558, %v11712, %v11711
    %11714 = vrot.lane.b32.xlu0 %v11699, 8
    %v11715 = vpop.permute.xlu0 %11714
    %11716 = vrot.lane.b32.xlu0 %v11713, 8
    %v11717 = vpop.permute.xlu0 %11716
    %v11720 = vrot.slane %v11578, 2
    %v11721 = vrot.slane %v11581, 1
    %v11722 = vsel %vm5116, %v11721, %v11720
    %v11723 = vsel %vm4548, %v11586, %v11722
    %v11724 = vrot.slane %v11589, 7
    %v11725 = vsel %vm4550, %v11724, %v11723
    %v11726 = vrot.slane %v11594, 6
    %v11727 = vsel %vm4552, %v11726, %v11725
    %v11728 = vrot.slane %v11597, 5
    %v11729 = vsel %vm4554, %v11728, %v11727
    %v11730 = vrot.slane %v11602, 4
    %v11731 = vsel %vm4556, %v11730, %v11729
    %v11732 = vrot.slane %v11605, 3
    %v11733 = vsel %vm4558, %v11732, %v11731
    %v11734 = vrot.slane %v11610, 2
    %v11735 = vrot.slane %v11613, 1
    %v11736 = vsel %vm5116, %v11735, %v11734
    %v11737 = vsel %vm4548, %v11618, %v11736
    %v11738 = vrot.slane %v11621, 7
    %v11739 = vsel %vm4550, %v11738, %v11737
    %v11740 = vrot.slane %v11626, 6
    %v11741 = vsel %vm4552, %v11740, %v11739
    %v11742 = vrot.slane %v11629, 5
    %v11743 = vsel %vm4554, %v11742, %v11741
    %v11744 = vrot.slane %v11634, 4
    %v11745 = vsel %vm4556, %v11744, %v11743
    %v11746 = vrot.slane %v11637, 3
    %v11747 = vsel %vm4558, %v11746, %v11745
    %11748 = vrot.lane.b32.xlu0 %v11733, 16
    %v11749 = vpop.permute.xlu0 %11748
    %11750 = vrot.lane.b32.xlu0 %v11747, 16
    %v11751 = vpop.permute.xlu0 %11750
    %v11754 = vrot.slane %v11578, 3
    %v11755 = vrot.slane %v11581, 2
    %v11756 = vsel %vm5116, %v11755, %v11754
    %v11757 = vrot.slane %v11586, 1
    %v11758 = vsel %vm4548, %v11757, %v11756
    %v11759 = vsel %vm4550, %v11589, %v11758
    %v11760 = vrot.slane %v11594, 7
    %v11761 = vsel %vm4552, %v11760, %v11759
    %v11762 = vrot.slane %v11597, 6
    %v11763 = vsel %vm4554, %v11762, %v11761
    %v11764 = vrot.slane %v11602, 5
    %v11765 = vsel %vm4556, %v11764, %v11763
    %v11766 = vrot.slane %v11605, 4
    %v11767 = vsel %vm4558, %v11766, %v11765
    %v11768 = vrot.slane %v11610, 3
    %v11769 = vrot.slane %v11613, 2
    %v11770 = vsel %vm5116, %v11769, %v11768
    %v11771 = vrot.slane %v11618, 1
    %v11772 = vsel %vm4548, %v11771, %v11770
    %v11773 = vsel %vm4550, %v11621, %v11772
    %v11774 = vrot.slane %v11626, 7
    %v11775 = vsel %vm4552, %v11774, %v11773
    %v11776 = vrot.slane %v11629, 6
    %v11777 = vsel %vm4554, %v11776, %v11775
    %v11778 = vrot.slane %v11634, 5
    %v11779 = vsel %vm4556, %v11778, %v11777
    %v11780 = vrot.slane %v11637, 4
    %v11781 = vsel %vm4558, %v11780, %v11779
    %11782 = vrot.lane.b32.xlu0 %v11767, 24
    %v11783 = vpop.permute.xlu0 %11782
    %11784 = vrot.lane.b32.xlu0 %v11781, 24
    %v11785 = vpop.permute.xlu0 %11784
    %v11788 = vrot.slane %v11578, 4
    %v11789 = vrot.slane %v11581, 3
    %v11790 = vsel %vm5116, %v11789, %v11788
    %v11791 = vrot.slane %v11586, 2
    %v11792 = vsel %vm4548, %v11791, %v11790
    %v11793 = vrot.slane %v11589, 1
    %v11794 = vsel %vm4550, %v11793, %v11792
    %v11795 = vsel %vm4552, %v11594, %v11794
    %v11796 = vrot.slane %v11597, 7
    %v11797 = vsel %vm4554, %v11796, %v11795
    %v11798 = vrot.slane %v11602, 6
    %v11799 = vsel %vm4556, %v11798, %v11797
    %v11800 = vrot.slane %v11605, 5
    %v11801 = vsel %vm4558, %v11800, %v11799
    %v11802 = vrot.slane %v11610, 4
    %v11803 = vrot.slane %v11613, 3
    %v11804 = vsel %vm5116, %v11803, %v11802
    %v11805 = vrot.slane %v11618, 2
    %v11806 = vsel %vm4548, %v11805, %v11804
    %v11807 = vrot.slane %v11621, 1
    %v11808 = vsel %vm4550, %v11807, %v11806
    %v11809 = vsel %vm4552, %v11626, %v11808
    %v11810 = vrot.slane %v11629, 7
    %v11811 = vsel %vm4554, %v11810, %v11809
    %v11812 = vrot.slane %v11634, 6
    %v11813 = vsel %vm4556, %v11812, %v11811
    %v11814 = vrot.slane %v11637, 5
    %v11815 = vsel %vm4558, %v11814, %v11813
    %11816 = vrot.lane.b32.xlu0 %v11801, 32
    %v11817 = vpop.permute.xlu0 %11816
    %11818 = vrot.lane.b32.xlu0 %v11815, 32
    %v11819 = vpop.permute.xlu0 %11818
    %v11822 = vrot.slane %v11578, 5
    %v11823 = vrot.slane %v11581, 4
    %v11824 = vsel %vm5116, %v11823, %v11822
    %v11825 = vrot.slane %v11586, 3
    %v11826 = vsel %vm4548, %v11825, %v11824
    %v11827 = vrot.slane %v11589, 2
    %v11828 = vsel %vm4550, %v11827, %v11826
    %v11829 = vrot.slane %v11594, 1
    %v11830 = vsel %vm4552, %v11829, %v11828
    %v11831 = vsel %vm4554, %v11597, %v11830
    %v11832 = vrot.slane %v11602, 7
    %v11833 = vsel %vm4556, %v11832, %v11831
    %v11834 = vrot.slane %v11605, 6
    %v11835 = vsel %vm4558, %v11834, %v11833
    %v11836 = vrot.slane %v11610, 5
    %v11837 = vrot.slane %v11613, 4
    %v11838 = vsel %vm5116, %v11837, %v11836
    %v11839 = vrot.slane %v11618, 3
    %v11840 = vsel %vm4548, %v11839, %v11838
    %v11841 = vrot.slane %v11621, 2
    %v11842 = vsel %vm4550, %v11841, %v11840
    %v11843 = vrot.slane %v11626, 1
    %v11844 = vsel %vm4552, %v11843, %v11842
    %v11845 = vsel %vm4554, %v11629, %v11844
    %v11846 = vrot.slane %v11634, 7
    %v11847 = vsel %vm4556, %v11846, %v11845
    %v11848 = vrot.slane %v11637, 6
    %v11849 = vsel %vm4558, %v11848, %v11847
    %11850 = vrot.lane.b32.xlu0 %v11835, 40
    %v11851 = vpop.permute.xlu0 %11850
    %11852 = vrot.lane.b32.xlu0 %v11849, 40
    %v11853 = vpop.permute.xlu0 %11852
    %v11856 = vrot.slane %v11578, 6
    %v11857 = vrot.slane %v11581, 5
    %v11858 = vsel %vm5116, %v11857, %v11856
    %v11859 = vrot.slane %v11586, 4
    %v11860 = vsel %vm4548, %v11859, %v11858
    %v11861 = vrot.slane %v11589, 3
    %v11862 = vsel %vm4550, %v11861, %v11860
    %v11863 = vrot.slane %v11594, 2
    %v11864 = vsel %vm4552, %v11863, %v11862
    %v11865 = vrot.slane %v11597, 1
    %v11866 = vsel %vm4554, %v11865, %v11864
    %v11867 = vsel %vm4556, %v11602, %v11866
    %v11868 = vrot.slane %v11605, 7
    %v11869 = vsel %vm4558, %v11868, %v11867
    %v11870 = vrot.slane %v11610, 6
    %v11871 = vrot.slane %v11613, 5
    %v11872 = vsel %vm5116, %v11871, %v11870
    %v11873 = vrot.slane %v11618, 4
    %v11874 = vsel %vm4548, %v11873, %v11872
    %v11875 = vrot.slane %v11621, 3
    %v11876 = vsel %vm4550, %v11875, %v11874
    %v11877 = vrot.slane %v11626, 2
    %v11878 = vsel %vm4552, %v11877, %v11876
    %v11879 = vrot.slane %v11629, 1
    %v11880 = vsel %vm4554, %v11879, %v11878
    %v11881 = vsel %vm4556, %v11634, %v11880
    %v11882 = vrot.slane %v11637, 7
    %v11883 = vsel %vm4558, %v11882, %v11881
    %11884 = vrot.lane.b32.xlu0 %v11869, 48
    %v11885 = vpop.permute.xlu0 %11884
    %11886 = vrot.lane.b32.xlu0 %v11883, 48
    %v11887 = vpop.permute.xlu0 %11886
    %v11890 = vrot.slane %v11578, 7
    %v11891 = vrot.slane %v11581, 6
    %v11892 = vsel %vm5116, %v11891, %v11890
    %v11893 = vrot.slane %v11586, 5
    %v11894 = vsel %vm4548, %v11893, %v11892
    %v11895 = vrot.slane %v11589, 4
    %v11896 = vsel %vm4550, %v11895, %v11894
    %v11897 = vrot.slane %v11594, 3
    %v11898 = vsel %vm4552, %v11897, %v11896
    %v11899 = vrot.slane %v11597, 2
    %v11900 = vsel %vm4554, %v11899, %v11898
    %v11901 = vrot.slane %v11602, 1
    %v11902 = vsel %vm4556, %v11901, %v11900
    %v11903 = vsel %vm4558, %v11605, %v11902
    %v11904 = vrot.slane %v11610, 7
    %v11905 = vrot.slane %v11613, 6
    %v11906 = vsel %vm5116, %v11905, %v11904
    %v11907 = vrot.slane %v11618, 5
    %v11908 = vsel %vm4548, %v11907, %v11906
    %v11909 = vrot.slane %v11621, 4
    %v11910 = vsel %vm4550, %v11909, %v11908
    %v11911 = vrot.slane %v11626, 3
    %v11912 = vsel %vm4552, %v11911, %v11910
    %v11913 = vrot.slane %v11629, 2
    %v11914 = vsel %vm4554, %v11913, %v11912
    %v11915 = vrot.slane %v11634, 1
    %v11916 = vsel %vm4556, %v11915, %v11914
    %v11917 = vsel %vm4558, %v11637, %v11916
    %11918 = vrot.lane.b32.xlu0 %v11903, 56
    %v11919 = vpop.permute.xlu0 %11918
    %11920 = vrot.lane.b32.xlu0 %v11917, 56
    %v11921 = vpop.permute.xlu0 %11920
    %vm11924 = vcmask 64512
    %v11925 = vsel %vm11924, %v11669, %v11715
    %v11926 = vsel %vm11924, %v11683, %v11717
    %vm11927 = vcmask 130048
    %v11928 = vsel %vm11927, %v11925, %v11749
    %v11929 = vsel %vm11927, %v11926, %v11751
    %vm11930 = vcmask 195584
    %v11931 = vsel %vm11930, %v11928, %v11783
    %v11932 = vsel %vm11930, %v11929, %v11785
    %vm11933 = vcmask 261120
    %v11934 = vsel %vm11933, %v11931, %v11817
    %v11935 = vsel %vm11933, %v11932, %v11819
    %vm11936 = vcmask 326656
    %v11937 = vsel %vm11936, %v11934, %v11851
    %v11938 = vsel %vm11936, %v11935, %v11853
    %vm11939 = vcmask 392192
    %v11940 = vsel %vm11939, %v11937, %v11885
    %v11941 = vsel %vm11939, %v11938, %v11887
    %vm11942 = vcmask 457728
    %v11943 = vsel %vm11942, %v11940, %v11919
    %v11944 = vsel %vm11942, %v11941, %v11921
    %v11947 = vrot.slane %v11944, 7
    %v11948 = vsel %vm5116, %v11947, %v11943
    %v11950 = vrot.slane %v11943, 1
    %v11951 = vsel %vm5116, %v11944, %v11950
    %11952 = vrot.lane.b32.xlu0 %v11951, 64
    %v11953 = vpop.permute.xlu0 %11952
    %v11955 = vrot.slane %v11943, 2
    %v11956 = vrot.slane %v11944, 1
    %v11957 = vsel %vm5116, %v11956, %v11955
    %v11959 = vrot.slane %v11943, 3
    %v11960 = vrot.slane %v11944, 2
    %v11961 = vsel %vm5116, %v11960, %v11959
    %11962 = vrot.lane.b32.xlu0 %v11961, 64
    %v11963 = vpop.permute.xlu0 %11962
    %v11965 = vrot.slane %v11943, 4
    %v11966 = vrot.slane %v11944, 3
    %v11967 = vsel %vm5116, %v11966, %v11965
    %v11969 = vrot.slane %v11943, 5
    %v11970 = vrot.slane %v11944, 4
    %v11971 = vsel %vm5116, %v11970, %v11969
    %11972 = vrot.lane.b32.xlu0 %v11971, 64
    %v11973 = vpop.permute.xlu0 %11972
    %v11975 = vrot.slane %v11943, 6
    %v11976 = vrot.slane %v11944, 5
    %v11977 = vsel %vm5116, %v11976, %v11975
    %v11979 = vrot.slane %v11943, 7
    %v11980 = vrot.slane %v11944, 6
    %v11981 = vsel %vm5116, %v11980, %v11979
    %11982 = vrot.lane.b32.xlu0 %v11981, 64
    %v11983 = vpop.permute.xlu0 %11982
    %vm11985 = vcmask 523264
    %v11986 = vsel %vm11985, %v11948, %v11953
    %v11987 = vsel %vm11985, %v11957, %v11963
    %v11988 = vsel %vm11985, %v11967, %v11973
    %v11989 = vsel %vm11985, %v11977, %v11983
    %v11994 = vcombine.low %v11986, %v11987
    %v11995 = vcombine.low %v11988, %v11989
    %v11997 = vunpack.c.l.s4 1966171168
    %v11998 = vunpack.c.0.s8 %v11997
    %v11999 = vlaneseq
    %v12000 = vshrl.u32 %v11999, 7
    %v12001 = vsub.s32 %v11998, %v12000
    %v12002 = vrot.slane %v11994, %v12001
    %v12004 = vunpack.c.l.s4 1966171168
    %v12005 = vunpack.c.0.s8 %v12004
    %v12006 = vlaneseq
    %v12007 = vshrl.u32 %v12006, 7
    %v12008 = vsub.s32 %v12005, %v12007
    %v12009 = vrot.slane %v11995, %v12008
    %v12010 = vcombine.low %v12002, %v12009
    %v12011 = vcombine.high %v12002, %v12009
    %v12013 = vunpack.c.l.s4 1966171168
    %v12014 = vunpack.c.0.s8 %v12013
    %v12015 = vlaneseq
    %v12016 = vshrl.u32 %v12015, 7
    %v12017 = vsub.s32 %v12014, %v12016
    %v12018 = vrot.slane %v12010, %v12017
    %v12020 = vunpack.c.l.s4 1966171168
    %v12021 = vunpack.c.0.s8 %v12020
    %v12022 = vlaneseq
    %v12023 = vshrl.u32 %v12022, 7
    %v12024 = vsub.s32 %v12021, %v12023
    %v12025 = vrot.slane %v12011, %v12024
    %v12028 = vlaneseq
    %vm12029 = vcmp.ge.s32.totalorder %v12028, 0
    %vm12030 = vcmp.lt.s32.totalorder %v12028, 512
    %vm12031 = vmand %vm12029, %vm12030
    %12032 = vst.msk [vmem:[#allocation4] sm:$0xf] %vm12031, %v12018
    %12033 = vst.msk [vmem:[#allocation4 + $0x4] sm:$0xf] %vm12031, %v12025
    // Predicated region
    $region14: #{tpu_custom_call.1} parent=1 // pred_check
      _
    $region15: #{tpu_custom_call.1} parent=1 // pred_check_branch
      %12035 = sbr.rel (0) target = $region17
    $region16: #{tpu_custom_call.1} parent=1 // pred_region
      %s12037 = ssub.s32 128, 128
      %12038 = vsyncadd [#allocation5], %s12037
      %s12039 = sshll.u32 [#allocation4], 4
      %s12040 = int_to_ptr.vmem [resolvable:$true] %s12039
      %12045 = dma.vmem_to_hbm [thread:$0]  %s12040, 128, %s3, [#allocation5], 64, 64, 4
    $region17: #{tpu_custom_call.1} parent=1 // pred_fallthru
      _
    // Predicated region
    $region18: #{tpu_custom_call.1} parent=1 // pred_check
      _
    $region19: #{tpu_custom_call.1} parent=1 // pred_check_branch
      %12047 = sbr.rel (0) target = $region21
    $region20: #{tpu_custom_call.1} parent=1 // pred_region
      %12048 = dma.done [#allocation5], 128
    $region21: #{tpu_custom_call.1} parent=1 // pred_fallthru
      _
    %12049 = vsyncpa [#allocation5], 1

</llo_original>
